<compile_context>
chip_gen: v5e
topology: v5e:2x2
jax: 0.10.0
libtpu: 0.0.40
codegen_flags: <defaults>
</compile_context>

<pallas_src>
import math
import functools
import numpy as np

import jax
import jax.numpy as jnp
from jax import lax
from jax.experimental import pallas as pl
from jax.experimental.pallas import tpu as pltpu

MATMUL_DTYPE = jnp.bfloat16   # MXU operand dtype; accumulation stays f32


# ----------------------------------------------------------------------------
# In-kernel math helpers (f32 VPU math; bf16 MXU operands, f32 accumulation)
# ----------------------------------------------------------------------------

def _gelu_tanh(x):
    # TODO(synk): tanh approximation of PyTorch's exact-erf nn.GELU().
    return 0.5 * x * (1.0 + jnp.tanh(0.7978845608028654 * (x + 0.044715 * x * x * x)))


def _layernorm(v, g, b, eps):
    mu = jnp.mean(v, axis=-1, keepdims=True)
    var = jnp.mean((v - mu) ** 2, axis=-1, keepdims=True)
    return (v - mu) * lax.rsqrt(var + eps) * g + b


def _mm(a, b):
    return jnp.dot(a.astype(MATMUL_DTYPE), b.astype(MATMUL_DTYPE),
                   preferred_element_type=jnp.float32)


def _mm_nt(a, b):  # a @ b.T
    return lax.dot_general(a.astype(MATMUL_DTYPE), b.astype(MATMUL_DTYPE),
                           (((1,), (1,)), ((), ())),
                           preferred_element_type=jnp.float32)


def _transformer_apply(x, ln_ref, qkv_w_ref, qkv_b_ref, proj_w_ref, proj_b_ref,
                       w1_ref, b1_ref, w2_ref, b2_ref, norm_ref,
                       *, depth, heads, head_dim, eps):
    """Pre-norm ViT-style encoder applied to a 2-D (S, E) f32 activation."""
    E = heads * head_dim
    scale = 1.0 / math.sqrt(head_dim)

    for d in range(depth):
        # ---- LN1 -> fused QKV matmul -> per-head attention -> merged proj ----
        h = _layernorm(x, ln_ref[d, 0], ln_ref[d, 1], eps)
        qkv = _mm(h, qkv_w_ref[d]) + qkv_b_ref[d]                  # (S, 3E)
        heads_out = []
        for hh in range(heads):
            lo = hh * head_dim
            q = qkv[:, lo:lo + head_dim]
            k = qkv[:, E + lo:E + lo + head_dim]
            v = qkv[:, 2 * E + lo:2 * E + lo + head_dim]
            s = _mm_nt(q, k) * scale                               # (S, S)
            s = s - jnp.max(s, axis=-1, keepdims=True)
            p = jnp.exp(s)
            p = p * pl.reciprocal(jnp.sum(p, axis=-1, keepdims=True), approx=True)
            heads_out.append(_mm(p, v))                            # (S, Dh)
        o = jnp.concatenate(heads_out, axis=-1)                    # (S, E)
        x = x + _mm(o, proj_w_ref[d]) + proj_b_ref[d]              # one (S,E)@(E,E)

        # ---- LN2 -> MLP (fc1 + GELU + fc2) -> residual ----
        h2 = _layernorm(x, ln_ref[d, 2], ln_ref[d, 3], eps)
        m = _gelu_tanh(_mm(h2, w1_ref[d]) + b1_ref[d])
        x = x + _mm(m, w2_ref[d]) + b2_ref[d]

    return _layernorm(x, norm_ref[0], norm_ref[1], eps)


# ----------------------------------------------------------------------------
# Shared BlockSpec helpers (constant, VMEM-resident weight slabs)
# ----------------------------------------------------------------------------

def _const_spec(shape):
    n = len(shape)
    return pl.BlockSpec(shape, lambda *_, _n=n: (0,) * _n)


def _weight_specs(tp):
    depth, heads, Dh, hidden = tp["depth"], tp["heads"], tp["head_dim"], tp["hidden"]
    E = heads * Dh
    S = tp["pos"].shape[1]
    return [
        _const_spec((1, S, E)),              # pos_embed
        _const_spec((depth, 4, 1, E)),       # ln1/ln2 gamma & beta
        _const_spec((depth, E, 3 * E)),      # fused qkv weight (bf16)
        _const_spec((depth, 1, 3 * E)),      # qkv bias
        _const_spec((depth, E, E)),          # attn out-proj weight (bf16)
        _const_spec((depth, 1, E)),          # attn out-proj bias
        _const_spec((depth, E, hidden)),     # mlp fc1 weight (bf16)
        _const_spec((depth, 1, hidden)),     # mlp fc1 bias
        _const_spec((depth, hidden, E)),     # mlp fc2 weight (bf16)
        _const_spec((depth, 1, E)),          # mlp fc2 bias
        _const_spec((2, 1, E)),              # final norm gamma/beta
    ]


def _weight_args(tp):
    return (tp["pos"], tp["ln"], tp["qkv_w"], tp["qkv_b"], tp["proj_w"],
            tp["proj_b"], tp["w1"], tp["b1"], tp["w2"], tp["b2"], tp["norm"])


# ----------------------------------------------------------------------------
# Kernel 1: condition-generator transformer (one launch, grid over batch)
# ----------------------------------------------------------------------------

def _cond_transformer_kernel(x_ref, pos_ref, ln_ref, qkv_w_ref, qkv_b_ref,
                             proj_w_ref, proj_b_ref, w1_ref, b1_ref,
                             w2_ref, b2_ref, norm_ref, o_ref,
                             *, depth, heads, head_dim, eps):
    x = x_ref[0].astype(jnp.float32) + pos_ref[0]
    x = _transformer_apply(x, ln_ref, qkv_w_ref, qkv_b_ref, proj_w_ref,
                           proj_b_ref, w1_ref, b1_ref, w2_ref, b2_ref, norm_ref,
                           depth=depth, heads=heads, head_dim=head_dim, eps=eps)
    o_ref[0] = x.astype(o_ref.dtype)


def pallas_cond_transformer(x, tp):
    """x: (B, S, E) -> (B, S, E); whole transformer fused into one pallas_call."""
    B, S, E = x.shape
    kernel = functools.partial(_cond_transformer_kernel, depth=tp["depth"],
                               heads=tp["heads"], head_dim=tp["head_dim"], eps=1e-5)
    return pl.pallas_call(
        kernel,
        grid=(B,),
        in_specs=[pl.BlockSpec((1, S, E), lambda b: (b, 0, 0))] + _weight_specs(tp),
        out_specs=pl.BlockSpec((1, S, E), lambda b: (b, 0, 0)),
        out_shape=jax.ShapeDtypeStruct((B, S, E), x.dtype),
        compiler_params=pltpu.CompilerParams(
            dimension_semantics=("parallel",),
            vmem_limit_bytes=32 * 1024 * 1024),
    )(x, *_weight_args(tp))


# ----------------------------------------------------------------------------
# Kernel 2: the ENTIRE N-step reverse-diffusion scan in one pallas_call.
#   grid=(B, N): batch "parallel" (2 TCs on v7x), step "arbitrary" (sequential).
#   xt carry lives in a VMEM scratch; cross-transformer weights are VMEM
#   resident; feat_g / [temb, a_k, b_k] are streamed per step; the DDIM update
#   and DiffMesh fc1(+GELU) run in the epilogue.
# ----------------------------------------------------------------------------

def _diffusion_scan_kernel(mesh_ref, feat_ref, aux_ref,
                           pos_ref, ln_ref, qkv_w_ref, qkv_b_ref, proj_w_ref,
                           proj_b_ref, w1_ref, b1_ref, w2_ref, b2_ref, norm_ref,
                           fc1_w_ref, fc1_b_ref,
                           xt_out_ref, cond_out_ref, y_out_ref,
                           xt_scr,
                           *, depth, heads, head_dim, eps, num_joints):
    f32 = jnp.float32
    J = num_joints
    k = pl.program_id(1)

    # xt carry: (re)initialize from the mesh template at step 0 of each batch row.
    @pl.when(k == 0)
    def _():
        xt_scr[...] = mesh_ref[0].astype(f32)

    xt = xt_scr[...]                                    # (J, C) f32
    aux = aux_ref[0].astype(f32)                        # (3, C): [temb_k; a_k; b_k]
    temb = aux[0:1, :]                                  # (1, C)

    # diffusion_model forward: temb add, token concat, pos embed, transformer.
    x_cur = xt + temb
    feat = feat_ref[0, 0].astype(f32) + temb
    x = jnp.concatenate([x_cur, feat], axis=0) + pos_ref[0]          # (2J, C)
    x = _transformer_apply(x, ln_ref, qkv_w_ref, qkv_b_ref, proj_w_ref,
                           proj_b_ref, w1_ref, b1_ref, w2_ref, b2_ref, norm_ref,
                           depth=depth, heads=heads, head_dim=head_dim, eps=eps)
    et = x[:J]                                          # epsilon prediction
    cond_pred = x[J:]                                   # next-condition prediction

    # DDIM update with c1 == 0, folded to  xt_next = a_k * xt + b_k * et  where
    #   a_k = sqrt(at_next/at),  b_k = sqrt(1-at_next) - a_k*sqrt(1-at).
    xt_next = aux[1:2, :] * xt + aux[2:3, :] * et

    xt_scr[...] = xt_next
    xt_out_ref[0, 0] = xt_next.astype(xt_out_ref.dtype)
    cond_out_ref[0, 0] = cond_pred.astype(cond_out_ref.dtype)

    # DiffMesh_Process.fc1 (Linear + GELU) fused into the epilogue.
    y = _gelu_tanh(_mm(xt_next, fc1_w_ref[...]) + fc1_b_ref[...])
    y_out_ref[0, 0] = y.astype(y_out_ref.dtype)


def pallas_diffusion_scan(mesh0, feat_g, aux, tp, fc1_w, fc1_b):
    """mesh0 (B,J,C), feat_g (B,N,J,C), aux (N,3,C) -> (xts, conds, ys) each (B,N,J,C)."""
    B, J, C = mesh0.shape
    N = feat_g.shape[1]
    kernel = functools.partial(
        _diffusion_scan_kernel, depth=tp["depth"], heads=tp["heads"],
        head_dim=tp["head_dim"], eps=1e-5, num_joints=J)
    step_spec = pl.BlockSpec((1, 1, J, C), lambda b, k: (b, k, 0, 0))
    out_sds = jax.ShapeDtypeStruct((B, N, J, C), jnp.float32)
    return pl.pallas_call(
        kernel,
        grid=(B, N),
        in_specs=[
            pl.BlockSpec((1, J, C), lambda b, k: (b, 0, 0)),    # mesh template (x_T)
            step_spec,                                          # feat_g, streamed per step
            pl.BlockSpec((1, 3, C), lambda b, k: (k, 0, 0)),    # [temb_k; a_k; b_k]
        ] + _weight_specs(tp) + [
            _const_spec((C, C)),                                # fc1 weight (bf16)
            _const_spec((1, C)),                                # fc1 bias
        ],
        out_specs=(step_spec, step_spec, step_spec),
        out_shape=(out_sds, out_sds, out_sds),
        scratch_shapes=[pltpu.VMEM((J, C), jnp.float32)],       # xt carry
        compiler_params=pltpu.CompilerParams(
            dimension_semantics=("parallel", "arbitrary"),
            vmem_limit_bytes=32 * 1024 * 1024),
    )(mesh0, feat_g, aux, *_weight_args(tp), fc1_w, fc1_b)


# ----------------------------------------------------------------------------
# Diffusion process (mirrors the PyTorch reference)
# ----------------------------------------------------------------------------

def get_timestep_embedding(timesteps, embedding_dim):
    half_dim = embedding_dim // 2
    emb = math.log(10000) / (half_dim - 1)
    freqs = jnp.exp(jnp.arange(half_dim, dtype=jnp.float32) * (-emb))
    args = timesteps.astype(jnp.float32)[:, None] * freqs[None, :]
    emb = jnp.concatenate([jnp.sin(args), jnp.cos(args)], axis=1)
    if embedding_dim % 2 == 1:
        emb = jnp.pad(emb, ((0, 0), (0, 1)))
    return emb


def generalized_steps(prep, cfg, x_in, mesh_template, betas):
    num_seq, add_step = cfg["seq_len"], cfg["add_step"]
    J, C = cfg["num_joints"], cfg["diff_dim"]
    take_mean = False
    if num_seq != x_in.shape[1]:
        x_in = jnp.tile(x_in, (1, num_seq, 1))
        take_mean = True
    B, _, emb_dim = x_in.shape
    N = num_seq + add_step

    # --- condition generator: ONE fused transformer kernel ---
    feat_g = jnp.concatenate(
        [jnp.zeros((B, add_step, emb_dim), x_in.dtype), x_in], axis=1)     # (B, N, J*C)
    feat_g = pallas_cond_transformer(feat_g, prep["cond"])

    # --- diffusion schedule; loop index k=0..N-1 corresponds to i=N-1-k ---
    alphas_ext = jnp.cumprod(
        1.0 - jnp.concatenate([jnp.zeros((1,), betas.dtype), betas]))
    i_vals = jnp.arange(N - 1, -1, -1)
    at = alphas_ext[i_vals + 1]                     # compute_alpha(b, i)
    at_next = alphas_ext[i_vals]                    # compute_alpha(b, i-1)
    a_coef = jnp.sqrt(at_next / at)
    b_coef = jnp.sqrt(1.0 - at_next) - a_coef * jnp.sqrt(1.0 - at)

    # --- timestep-embedding MLP hoisted out of the scan (tiny -> plain XLA) ---
    emb_all = get_timestep_embedding(i_vals.astype(jnp.float32), C)        # (N, C)
    h = jax.nn.gelu(emb_all @ prep["temb_w1"] + prep["temb_b1"], approximate=False)
    temb_all = h @ prep["temb_w2"] + prep["temb_b2"]                       # (N, C)

    aux = jnp.stack([temb_all,
                     jnp.broadcast_to(a_coef[:, None], (N, C)),
                     jnp.broadcast_to(b_coef[:, None], (N, C))], axis=1)   # (N, 3, C)

    # --- the entire reverse-diffusion scan in ONE fused Pallas kernel ---
    xts, conds, ys = pallas_diffusion_scan(
        mesh_template.reshape(B, J, C).astype(jnp.float32),
        feat_g.reshape(B, N, J, C).astype(jnp.float32),
        aux.astype(jnp.float32),
        prep["cross"], prep["fc1_w"], prep["fc1_b"])

    # collect only steps with k > add_step - 1, in loop order
    x_out = xts[:, add_step:].reshape(B, num_seq, J * C)
    condition_pred = conds[:, add_step:].reshape(B, num_seq, J * C)[:, :-1, :]
    y_out = ys[:, add_step:]                                               # fc1(pred_x)

    if take_mean:
        x_out = jnp.mean(x_out, axis=1, keepdims=True)
        condition_pred = jnp.mean(condition_pred, axis=1, keepdims=True)
        y_out = None            # fc1 must be applied to the mean (see forward)
    return x_out, condition_pred, y_out


def diffusion_process_fwd(prep, cfg, x_in, mesh_template):
    N = cfg["seq_len"] + cfg["add_step"]
    betas = jnp.asarray(
        np.linspace(0.0001, 0.001, N, dtype=np.float64), dtype=jnp.float32)
    pred_x, condition_pred, y_out = generalized_steps(
        prep, cfg, x_in, mesh_template, betas)
    if x_in.shape[1] != cfg["seq_len"]:
        cond_gt = x_in
    else:
        cond_gt = x_in[:, 1:, :]
    loss_diff = jnp.concatenate([cond_gt, condition_pred], axis=1)
    return pred_x, loss_diff, y_out


def diffmesh_forward(prep, cfg, x_in, mesh_template):
    B, T, J, C = x_in.shape
    x_flat = x_in.reshape(B, T, J * C)
    mesh_flat = mesh_template.reshape(B, 1, J * C)
    pred_x, loss_diff, y = diffusion_process_fwd(prep, cfg, x_flat, mesh_flat)
    if y is None:
        # take_mean path: fc1 could not be fused into the scan epilogue
        h = pred_x.reshape(B, T, J, C)
        y = _gelu_tanh(jnp.matmul(h, prep["fc1_w"].astype(jnp.float32))
                       + prep["fc1_b"])
    return y + x_in, loss_diff


# ----------------------------------------------------------------------------
# Parameter init (synthetic weights, shapes from the module) + host-side
# packing into the stacked, lane-dense (bf16 matmul-operand) layout.
# ----------------------------------------------------------------------------

def _w(key, shape):
    return 0.02 * jax.random.normal(key, shape, dtype=jnp.float32)


def _init_block(key, E, hidden):
    ks = jax.random.split(key, 4)
    return dict(
        ln1_g=jnp.ones((E,), jnp.float32), ln1_b=jnp.zeros((E,), jnp.float32),
        qkv_w=_w(ks[0], (E, 3 * E)), qkv_b=jnp.zeros((3 * E,), jnp.float32),
        proj_w=_w(ks[1], (E, E)), proj_b=jnp.zeros((E,), jnp.float32),
        ln2_g=jnp.ones((E,), jnp.float32), ln2_b=jnp.zeros((E,), jnp.float32),
        mlp_w1=_w(ks[2], (E, hidden)), mlp_b1=jnp.zeros((hidden,), jnp.float32),
        mlp_w2=_w(ks[3], (hidden, E)), mlp_b2=jnp.zeros((E,), jnp.float32),
    )


def _init_transformer(key, num_patch, E, depth, mlp_ratio):
    hidden = max(int(E * mlp_ratio), 1)
    ks = jax.random.split(key, depth + 1)
    return dict(
        pos_embed=_w(ks[0], (1, num_patch, E)),
        blocks=[_init_block(ks[i + 1], E, hidden) for i in range(depth)],
        norm_g=jnp.ones((E,), jnp.float32), norm_b=jnp.zeros((E,), jnp.float32),
    )


def init_params(key, cfg):
    J, C = cfg["num_joints"], cfg["diff_dim"]
    T, A = cfg["seq_len"], cfg["add_step"]
    ks = jax.random.split(key, 5)
    return dict(
        # diffusion_model.temb_fc : Linear(C,C) + GELU + Linear(C,C)
        temb_w1=_w(ks[0], (C, C)), temb_b1=jnp.zeros((C,), jnp.float32),
        temb_w2=_w(ks[1], (C, C)), temb_b2=jnp.zeros((C,), jnp.float32),
        # diffusion_model.diffmodel_encoder : Transformer_cross(C, depth=4, heads=4, mlp=2.0)
        cross=_init_transformer(ks[2], 2 * J, C, depth=4, mlp_ratio=2.0),
        # condition_generator : Transformer(num_patch=T+A, in_embed=J*C, depth=2, mlp=0.125)
        cond=_init_transformer(ks[3], T + A, J * C, depth=2, mlp_ratio=0.125),
        # DiffMesh_Process.fc1 : Linear(C,C) + GELU
        fc1_w=_w(ks[4], (C, C)), fc1_b=jnp.zeros((C,), jnp.float32),
    )


def prepare_transformer_params(p, num_heads):
    """Stack per-block weights; matmul operands cast to bf16, the rest stay f32."""
    E = p["norm_g"].shape[0]
    depth = len(p["blocks"])
    Dh = E // num_heads
    hidden = p["blocks"][0]["mlp_w1"].shape[1]

    qkv_w = jnp.stack([b["qkv_w"] for b in p["blocks"]]).astype(MATMUL_DTYPE)
    qkv_b = jnp.stack([b["qkv_b"] for b in p["blocks"]]).reshape(depth, 1, 3 * E)
    proj_w = jnp.stack([b["proj_w"] for b in p["blocks"]]).astype(MATMUL_DTYPE)
    proj_b = jnp.stack([b["proj_b"] for b in p["blocks"]]).reshape(depth, 1, E)
    ln = jnp.stack([jnp.stack([b["ln1_g"], b["ln1_b"], b["ln2_g"], b["ln2_b"]])
                    for b in p["blocks"]]).reshape(depth, 4, 1, E)
    w1 = jnp.stack([b["mlp_w1"] for b in p["blocks"]]).astype(MATMUL_DTYPE)
    b1 = jnp.stack([b["mlp_b1"] for b in p["blocks"]]).reshape(depth, 1, hidden)
    w2 = jnp.stack([b["mlp_w2"] for b in p["blocks"]]).astype(MATMUL_DTYPE)
    b2 = jnp.stack([b["mlp_b2"] for b in p["blocks"]]).reshape(depth, 1, E)
    norm = jnp.stack([p["norm_g"], p["norm_b"]]).reshape(2, 1, E)

    return dict(depth=depth, heads=num_heads, head_dim=Dh, hidden=hidden,
                pos=p["pos_embed"], ln=ln, qkv_w=qkv_w, qkv_b=qkv_b,
                proj_w=proj_w, proj_b=proj_b, w1=w1, b1=b1, w2=w2, b2=b2,
                norm=norm)


def prepare_params(params, cfg):
    return dict(
        temb_w1=params["temb_w1"], temb_b1=params["temb_b1"],
        temb_w2=params["temb_w2"], temb_b2=params["temb_b2"],
        fc1_w=params["fc1_w"].astype(MATMUL_DTYPE),
        fc1_b=params["fc1_b"].reshape(1, -1),
        cross=prepare_transformer_params(params["cross"], cfg["cross_heads"]),
        cond=prepare_transformer_params(params["cond"], cfg["cond_heads"]),
    )


# ----------------------------------------------------------------------------
# Main
# ----------------------------------------------------------------------------

if __name__ == "__main__":
    # small config consistent with the module (num_joints / diff_dim are ctor args)
    B, T, add_step, J, C = 2, 4, 2, 8, 32
    cfg = dict(seq_len=T, add_step=add_step, num_joints=J, diff_dim=C,
               cross_heads=4, cond_heads=8)

    key = jax.random.PRNGKey(0)
    kp, kx, km = jax.random.split(key, 3)
    params = init_params(kp, cfg)
    prep = prepare_params(params, cfg)

    x_in = jax.random.normal(kx, (B, T, J, C), dtype=jnp.float32)
    mesh_template = jax.random.normal(km, (B, 1, J, C), dtype=jnp.float32)

    fwd = jax.jit(functools.partial(diffmesh_forward, prep, cfg))
    x, loss_diff = fwd(x_in, mesh_template)
    jax.block_until_ready(x)
    jax.block_until_ready(loss_diff)

    assert x.shape == (B, T, J, C), x.shape
    assert loss_diff.shape == (B, 2 * (T - 1), J * C), loss_diff.shape
    assert jnp.all(jnp.isfinite(x)) and jnp.all(jnp.isfinite(loss_diff))
    print("KERNEL_OK")
</pallas_src>

<mosaic_0001>
module attributes {stable_mosaic.version = 11 : i64} {
  func.func @_cond_transformer_kernel(%arg0: i32, %arg1: memref<1x6x256xf32, #tpu.memory_space<vmem>>, %arg2: memref<1x6x256xf32, #tpu.memory_space<vmem>>, %arg3: memref<2x4x1x256xf32, #tpu.memory_space<vmem>>, %arg4: memref<2x256x768xbf16, #tpu.memory_space<vmem>>, %arg5: memref<2x1x768xf32, #tpu.memory_space<vmem>>, %arg6: memref<2x256x256xbf16, #tpu.memory_space<vmem>>, %arg7: memref<2x1x256xf32, #tpu.memory_space<vmem>>, %arg8: memref<2x256x32xbf16, #tpu.memory_space<vmem>>, %arg9: memref<2x1x32xf32, #tpu.memory_space<vmem>>, %arg10: memref<2x32x256xbf16, #tpu.memory_space<vmem>>, %arg11: memref<2x1x256xf32, #tpu.memory_space<vmem>>, %arg12: memref<2x1x256xf32, #tpu.memory_space<vmem>>, %arg13: memref<1x6x256xf32, #tpu.memory_space<vmem>>) attributes {dimension_semantics = [#tpu.dimension_semantics<parallel>], iteration_bounds = array<i64: 2>, scalar_prefetch = 0 : i64, scratch_operands = 0 : i64, tpu.core_type = #tpu.core_type<tc>, window_params = [{transform_indices = @transform_0, window_bounds = array<i64: 1, 6, 256>}, {pipeline_mode = #tpu.pipeline_mode<synchronous>, transform_indices = @transform_1, window_bounds = array<i64: 1, 6, 256>}, {pipeline_mode = #tpu.pipeline_mode<synchronous>, transform_indices = @transform_2, window_bounds = array<i64: 2, 4, 1, 256>}, {pipeline_mode = #tpu.pipeline_mode<synchronous>, transform_indices = @transform_3, window_bounds = array<i64: 2, 256, 768>}, {pipeline_mode = #tpu.pipeline_mode<synchronous>, transform_indices = @transform_4, window_bounds = array<i64: 2, 1, 768>}, {pipeline_mode = #tpu.pipeline_mode<synchronous>, transform_indices = @transform_5, window_bounds = array<i64: 2, 256, 256>}, {pipeline_mode = #tpu.pipeline_mode<synchronous>, transform_indices = @transform_6, window_bounds = array<i64: 2, 1, 256>}, {pipeline_mode = #tpu.pipeline_mode<synchronous>, transform_indices = @transform_7, window_bounds = array<i64: 2, 256, 32>}, {pipeline_mode = #tpu.pipeline_mode<synchronous>, transform_indices = @transform_8, window_bounds = array<i64: 2, 1, 32>}, {pipeline_mode = #tpu.pipeline_mode<synchronous>, transform_indices = @transform_9, window_bounds = array<i64: 2, 32, 256>}, {pipeline_mode = #tpu.pipeline_mode<synchronous>, transform_indices = @transform_10, window_bounds = array<i64: 2, 1, 256>}, {pipeline_mode = #tpu.pipeline_mode<synchronous>, transform_indices = @transform_11, window_bounds = array<i64: 2, 1, 256>}, {transform_indices = @transform_12, window_bounds = array<i64: 1, 6, 256>}]} {
    %c0 = arith.constant 0 : index
    %c0_0 = arith.constant 0 : index
    %c0_1 = arith.constant 0 : index
    %0 = vector.load %arg1[%c0, %c0_0, %c0_1] : memref<1x6x256xf32, #tpu.memory_space<vmem>>, vector<1x6x256xf32>
    %1 = vector.shape_cast %0 : vector<1x6x256xf32> to vector<6x256xf32>
    %c0_2 = arith.constant 0 : index
    %c0_3 = arith.constant 0 : index
    %c0_4 = arith.constant 0 : index
    %2 = vector.load %arg2[%c0_2, %c0_3, %c0_4] : memref<1x6x256xf32, #tpu.memory_space<vmem>>, vector<1x6x256xf32>
    %3 = vector.shape_cast %2 : vector<1x6x256xf32> to vector<6x256xf32>
    %4 = arith.addf %1, %3 : vector<6x256xf32>
    %c0_5 = arith.constant 0 : index
    %c0_6 = arith.constant 0 : index
    %c0_7 = arith.constant 0 : index
    %c0_8 = arith.constant 0 : index
    %5 = vector.load %arg3[%c0_5, %c0_6, %c0_7, %c0_8] : memref<2x4x1x256xf32, #tpu.memory_space<vmem>>, vector<1x1x1x256xf32>
    %6 = vector.shape_cast %5 : vector<1x1x1x256xf32> to vector<1x256xf32>
    %c0_9 = arith.constant 0 : index
    %c1 = arith.constant 1 : index
    %c0_10 = arith.constant 0 : index
    %c0_11 = arith.constant 0 : index
    %7 = vector.load %arg3[%c0_9, %c1, %c0_10, %c0_11] : memref<2x4x1x256xf32, #tpu.memory_space<vmem>>, vector<1x1x1x256xf32>
    %8 = vector.shape_cast %7 : vector<1x1x1x256xf32> to vector<1x256xf32>
    %cst = arith.constant dense<0.000000e+00> : vector<6xf32>
    %9 = vector.multi_reduction <add>, %4, %cst [1] : vector<6x256xf32> to vector<6xf32>
    %10 = vector.shape_cast %9 : vector<6xf32> to vector<6x1xf32>
    %cst_12 = arith.constant 2.560000e+02 : f32
    %11 = vector.broadcast %cst_12 : f32 to vector<6x1xf32>
    %12 = arith.divf %10, %11 : vector<6x1xf32>
    %13 = vector.broadcast %12 : vector<6x1xf32> to vector<6x256xf32>
    %14 = arith.subf %4, %13 : vector<6x256xf32>
    %15 = arith.mulf %14, %14 : vector<6x256xf32>
    %cst_13 = arith.constant dense<0.000000e+00> : vector<6xf32>
    %16 = vector.multi_reduction <add>, %15, %cst_13 [1] : vector<6x256xf32> to vector<6xf32>
    %17 = vector.shape_cast %16 : vector<6xf32> to vector<6x1xf32>
    %cst_14 = arith.constant 2.560000e+02 : f32
    %18 = vector.broadcast %cst_14 : f32 to vector<6x1xf32>
    %19 = arith.divf %17, %18 : vector<6x1xf32>
    %20 = vector.broadcast %12 : vector<6x1xf32> to vector<6x256xf32>
    %21 = arith.subf %4, %20 : vector<6x256xf32>
    %cst_15 = arith.constant 9.99999974E-6 : f32
    %22 = vector.broadcast %cst_15 : f32 to vector<6x1xf32>
    %23 = arith.addf %19, %22 : vector<6x1xf32>
    %24 = math.rsqrt %23 : vector<6x1xf32>
    %25 = vector.broadcast %24 : vector<6x1xf32> to vector<6x256xf32>
    %26 = arith.mulf %21, %25 : vector<6x256xf32>
    %27 = vector.broadcast %6 : vector<1x256xf32> to vector<6x256xf32>
    %28 = arith.mulf %26, %27 : vector<6x256xf32>
    %29 = vector.broadcast %8 : vector<1x256xf32> to vector<6x256xf32>
    %30 = arith.addf %28, %29 : vector<6x256xf32>
    %c0_16 = arith.constant 0 : index
    %c0_17 = arith.constant 0 : index
    %c0_18 = arith.constant 0 : index
    %31 = vector.load %arg4[%c0_16, %c0_17, %c0_18] : memref<2x256x768xbf16, #tpu.memory_space<vmem>>, vector<1x256x768xbf16>
    %32 = vector.shape_cast %31 : vector<1x256x768xbf16> to vector<256x768xbf16>
    %33 = arith.truncf %30 : vector<6x256xf32> to vector<6x256xbf16>
    %cst_19 = arith.constant dense<0.000000e+00> : vector<6x768xf32>
    %34 = tpu.matmul %33, %32, %cst_19 {dimension_numbers = #tpu.dot_dimension_numbers<[1], [0], [0], [1], [0, 0, 1, 1], [], []>} : vector<6x256xbf16>, vector<256x768xbf16>, vector<6x768xf32> -> vector<6x768xf32>
    %c0_20 = arith.constant 0 : index
    %c0_21 = arith.constant 0 : index
    %c0_22 = arith.constant 0 : index
    %35 = vector.load %arg5[%c0_20, %c0_21, %c0_22] : memref<2x1x768xf32, #tpu.memory_space<vmem>>, vector<1x1x768xf32>
    %36 = vector.shape_cast %35 : vector<1x1x768xf32> to vector<1x768xf32>
    %37 = vector.broadcast %36 : vector<1x768xf32> to vector<6x768xf32>
    %38 = arith.addf %34, %37 : vector<6x768xf32>
    %39 = vector.extract_strided_slice %38 {offsets = [0, 0], sizes = [6, 32], strides = [1, 1]} : vector<6x768xf32> to vector<6x32xf32>
    %40 = vector.extract_strided_slice %38 {offsets = [0, 256], sizes = [6, 32], strides = [1, 1]} : vector<6x768xf32> to vector<6x32xf32>
    %41 = vector.extract_strided_slice %38 {offsets = [0, 512], sizes = [6, 32], strides = [1, 1]} : vector<6x768xf32> to vector<6x32xf32>
    %42 = arith.truncf %39 : vector<6x32xf32> to vector<6x32xbf16>
    %43 = arith.truncf %40 : vector<6x32xf32> to vector<6x32xbf16>
    %cst_23 = arith.constant dense<0.000000e+00> : vector<6x6xf32>
    %44 = tpu.matmul %42, %43, %cst_23 {dimension_numbers = #tpu.dot_dimension_numbers<[1], [1], [0], [0], [0, 0, 1, 0], [], []>} : vector<6x32xbf16>, vector<6x32xbf16>, vector<6x6xf32> -> vector<6x6xf32>
    %cst_24 = arith.constant 0.176776692 : f32
    %45 = vector.broadcast %cst_24 : f32 to vector<6x6xf32>
    %46 = arith.mulf %44, %45 : vector<6x6xf32>
    %cst_25 = arith.constant dense<0xFF800000> : vector<6xf32>
    %47 = vector.multi_reduction <maximumf>, %46, %cst_25 [1] : vector<6x6xf32> to vector<6xf32>
    %48 = vector.shape_cast %47 : vector<6xf32> to vector<6x1xf32>
    %49 = vector.broadcast %48 : vector<6x1xf32> to vector<6x6xf32>
    %50 = arith.subf %46, %49 : vector<6x6xf32>
    %51 = math.exp %50 : vector<6x6xf32>
    %cst_26 = arith.constant dense<0.000000e+00> : vector<6xf32>
    %52 = vector.multi_reduction <add>, %51, %cst_26 [1] : vector<6x6xf32> to vector<6xf32>
    %53 = vector.shape_cast %52 : vector<6xf32> to vector<6x1xf32>
    %54 = tpu.reciprocal %53 {approx = true} : vector<6x1xf32> -> vector<6x1xf32>
    %55 = vector.broadcast %54 : vector<6x1xf32> to vector<6x6xf32>
    %56 = arith.mulf %51, %55 : vector<6x6xf32>
    %57 = arith.truncf %56 : vector<6x6xf32> to vector<6x6xbf16>
    %58 = arith.truncf %41 : vector<6x32xf32> to vector<6x32xbf16>
    %cst_27 = arith.constant dense<0.000000e+00> : vector<6x32xf32>
    %59 = tpu.matmul %57, %58, %cst_27 {dimension_numbers = #tpu.dot_dimension_numbers<[1], [0], [0], [1], [0, 0, 1, 1], [], []>} : vector<6x6xbf16>, vector<6x32xbf16>, vector<6x32xf32> -> vector<6x32xf32>
    %60 = vector.extract_strided_slice %38 {offsets = [0, 32], sizes = [6, 32], strides = [1, 1]} : vector<6x768xf32> to vector<6x32xf32>
    %61 = vector.extract_strided_slice %38 {offsets = [0, 288], sizes = [6, 32], strides = [1, 1]} : vector<6x768xf32> to vector<6x32xf32>
    %62 = vector.extract_strided_slice %38 {offsets = [0, 544], sizes = [6, 32], strides = [1, 1]} : vector<6x768xf32> to vector<6x32xf32>
    %63 = arith.truncf %60 : vector<6x32xf32> to vector<6x32xbf16>
    %64 = arith.truncf %61 : vector<6x32xf32> to vector<6x32xbf16>
    %cst_28 = arith.constant dense<0.000000e+00> : vector<6x6xf32>
    %65 = tpu.matmul %63, %64, %cst_28 {dimension_numbers = #tpu.dot_dimension_numbers<[1], [1], [0], [0], [0, 0, 1, 0], [], []>} : vector<6x32xbf16>, vector<6x32xbf16>, vector<6x6xf32> -> vector<6x6xf32>
    %cst_29 = arith.constant 0.176776692 : f32
    %66 = vector.broadcast %cst_29 : f32 to vector<6x6xf32>
    %67 = arith.mulf %65, %66 : vector<6x6xf32>
    %cst_30 = arith.constant dense<0xFF800000> : vector<6xf32>
    %68 = vector.multi_reduction <maximumf>, %67, %cst_30 [1] : vector<6x6xf32> to vector<6xf32>
    %69 = vector.shape_cast %68 : vector<6xf32> to vector<6x1xf32>
    %70 = vector.broadcast %69 : vector<6x1xf32> to vector<6x6xf32>
    %71 = arith.subf %67, %70 : vector<6x6xf32>
    %72 = math.exp %71 : vector<6x6xf32>
    %cst_31 = arith.constant dense<0.000000e+00> : vector<6xf32>
    %73 = vector.multi_reduction <add>, %72, %cst_31 [1] : vector<6x6xf32> to vector<6xf32>
    %74 = vector.shape_cast %73 : vector<6xf32> to vector<6x1xf32>
    %75 = tpu.reciprocal %74 {approx = true} : vector<6x1xf32> -> vector<6x1xf32>
    %76 = vector.broadcast %75 : vector<6x1xf32> to vector<6x6xf32>
    %77 = arith.mulf %72, %76 : vector<6x6xf32>
    %78 = arith.truncf %77 : vector<6x6xf32> to vector<6x6xbf16>
    %79 = arith.truncf %62 : vector<6x32xf32> to vector<6x32xbf16>
    %cst_32 = arith.constant dense<0.000000e+00> : vector<6x32xf32>
    %80 = tpu.matmul %78, %79, %cst_32 {dimension_numbers = #tpu.dot_dimension_numbers<[1], [0], [0], [1], [0, 0, 1, 1], [], []>} : vector<6x6xbf16>, vector<6x32xbf16>, vector<6x32xf32> -> vector<6x32xf32>
    %81 = vector.extract_strided_slice %38 {offsets = [0, 64], sizes = [6, 32], strides = [1, 1]} : vector<6x768xf32> to vector<6x32xf32>
    %82 = vector.extract_strided_slice %38 {offsets = [0, 320], sizes = [6, 32], strides = [1, 1]} : vector<6x768xf32> to vector<6x32xf32>
    %83 = vector.extract_strided_slice %38 {offsets = [0, 576], sizes = [6, 32], strides = [1, 1]} : vector<6x768xf32> to vector<6x32xf32>
    %84 = arith.truncf %81 : vector<6x32xf32> to vector<6x32xbf16>
    %85 = arith.truncf %82 : vector<6x32xf32> to vector<6x32xbf16>
    %cst_33 = arith.constant dense<0.000000e+00> : vector<6x6xf32>
    %86 = tpu.matmul %84, %85, %cst_33 {dimension_numbers = #tpu.dot_dimension_numbers<[1], [1], [0], [0], [0, 0, 1, 0], [], []>} : vector<6x32xbf16>, vector<6x32xbf16>, vector<6x6xf32> -> vector<6x6xf32>
    %cst_34 = arith.constant 0.176776692 : f32
    %87 = vector.broadcast %cst_34 : f32 to vector<6x6xf32>
    %88 = arith.mulf %86, %87 : vector<6x6xf32>
    %cst_35 = arith.constant dense<0xFF800000> : vector<6xf32>
    %89 = vector.multi_reduction <maximumf>, %88, %cst_35 [1] : vector<6x6xf32> to vector<6xf32>
    %90 = vector.shape_cast %89 : vector<6xf32> to vector<6x1xf32>
    %91 = vector.broadcast %90 : vector<6x1xf32> to vector<6x6xf32>
    %92 = arith.subf %88, %91 : vector<6x6xf32>
    %93 = math.exp %92 : vector<6x6xf32>
    %cst_36 = arith.constant dense<0.000000e+00> : vector<6xf32>
    %94 = vector.multi_reduction <add>, %93, %cst_36 [1] : vector<6x6xf32> to vector<6xf32>
    %95 = vector.shape_cast %94 : vector<6xf32> to vector<6x1xf32>
    %96 = tpu.reciprocal %95 {approx = true} : vector<6x1xf32> -> vector<6x1xf32>
    %97 = vector.broadcast %96 : vector<6x1xf32> to vector<6x6xf32>
    %98 = arith.mulf %93, %97 : vector<6x6xf32>
    %99 = arith.truncf %98 : vector<6x6xf32> to vector<6x6xbf16>
    %100 = arith.truncf %83 : vector<6x32xf32> to vector<6x32xbf16>
    %cst_37 = arith.constant dense<0.000000e+00> : vector<6x32xf32>
    %101 = tpu.matmul %99, %100, %cst_37 {dimension_numbers = #tpu.dot_dimension_numbers<[1], [0], [0], [1], [0, 0, 1, 1], [], []>} : vector<6x6xbf16>, vector<6x32xbf16>, vector<6x32xf32> -> vector<6x32xf32>
    %102 = vector.extract_strided_slice %38 {offsets = [0, 96], sizes = [6, 32], strides = [1, 1]} : vector<6x768xf32> to vector<6x32xf32>
    %103 = vector.extract_strided_slice %38 {offsets = [0, 352], sizes = [6, 32], strides = [1, 1]} : vector<6x768xf32> to vector<6x32xf32>
    %104 = vector.extract_strided_slice %38 {offsets = [0, 608], sizes = [6, 32], strides = [1, 1]} : vector<6x768xf32> to vector<6x32xf32>
    %105 = arith.truncf %102 : vector<6x32xf32> to vector<6x32xbf16>
    %106 = arith.truncf %103 : vector<6x32xf32> to vector<6x32xbf16>
    %cst_38 = arith.constant dense<0.000000e+00> : vector<6x6xf32>
    %107 = tpu.matmul %105, %106, %cst_38 {dimension_numbers = #tpu.dot_dimension_numbers<[1], [1], [0], [0], [0, 0, 1, 0], [], []>} : vector<6x32xbf16>, vector<6x32xbf16>, vector<6x6xf32> -> vector<6x6xf32>
    %cst_39 = arith.constant 0.176776692 : f32
    %108 = vector.broadcast %cst_39 : f32 to vector<6x6xf32>
    %109 = arith.mulf %107, %108 : vector<6x6xf32>
    %cst_40 = arith.constant dense<0xFF800000> : vector<6xf32>
    %110 = vector.multi_reduction <maximumf>, %109, %cst_40 [1] : vector<6x6xf32> to vector<6xf32>
    %111 = vector.shape_cast %110 : vector<6xf32> to vector<6x1xf32>
    %112 = vector.broadcast %111 : vector<6x1xf32> to vector<6x6xf32>
    %113 = arith.subf %109, %112 : vector<6x6xf32>
    %114 = math.exp %113 : vector<6x6xf32>
    %cst_41 = arith.constant dense<0.000000e+00> : vector<6xf32>
    %115 = vector.multi_reduction <add>, %114, %cst_41 [1] : vector<6x6xf32> to vector<6xf32>
    %116 = vector.shape_cast %115 : vector<6xf32> to vector<6x1xf32>
    %117 = tpu.reciprocal %116 {approx = true} : vector<6x1xf32> -> vector<6x1xf32>
    %118 = vector.broadcast %117 : vector<6x1xf32> to vector<6x6xf32>
    %119 = arith.mulf %114, %118 : vector<6x6xf32>
    %120 = arith.truncf %119 : vector<6x6xf32> to vector<6x6xbf16>
    %121 = arith.truncf %104 : vector<6x32xf32> to vector<6x32xbf16>
    %cst_42 = arith.constant dense<0.000000e+00> : vector<6x32xf32>
    %122 = tpu.matmul %120, %121, %cst_42 {dimension_numbers = #tpu.dot_dimension_numbers<[1], [0], [0], [1], [0, 0, 1, 1], [], []>} : vector<6x6xbf16>, vector<6x32xbf16>, vector<6x32xf32> -> vector<6x32xf32>
    %123 = vector.extract_strided_slice %38 {offsets = [0, 128], sizes = [6, 32], strides = [1, 1]} : vector<6x768xf32> to vector<6x32xf32>
    %124 = vector.extract_strided_slice %38 {offsets = [0, 384], sizes = [6, 32], strides = [1, 1]} : vector<6x768xf32> to vector<6x32xf32>
    %125 = vector.extract_strided_slice %38 {offsets = [0, 640], sizes = [6, 32], strides = [1, 1]} : vector<6x768xf32> to vector<6x32xf32>
    %126 = arith.truncf %123 : vector<6x32xf32> to vector<6x32xbf16>
    %127 = arith.truncf %124 : vector<6x32xf32> to vector<6x32xbf16>
    %cst_43 = arith.constant dense<0.000000e+00> : vector<6x6xf32>
    %128 = tpu.matmul %126, %127, %cst_43 {dimension_numbers = #tpu.dot_dimension_numbers<[1], [1], [0], [0], [0, 0, 1, 0], [], []>} : vector<6x32xbf16>, vector<6x32xbf16>, vector<6x6xf32> -> vector<6x6xf32>
    %cst_44 = arith.constant 0.176776692 : f32
    %129 = vector.broadcast %cst_44 : f32 to vector<6x6xf32>
    %130 = arith.mulf %128, %129 : vector<6x6xf32>
    %cst_45 = arith.constant dense<0xFF800000> : vector<6xf32>
    %131 = vector.multi_reduction <maximumf>, %130, %cst_45 [1] : vector<6x6xf32> to vector<6xf32>
    %132 = vector.shape_cast %131 : vector<6xf32> to vector<6x1xf32>
    %133 = vector.broadcast %132 : vector<6x1xf32> to vector<6x6xf32>
    %134 = arith.subf %130, %133 : vector<6x6xf32>
    %135 = math.exp %134 : vector<6x6xf32>
    %cst_46 = arith.constant dense<0.000000e+00> : vector<6xf32>
    %136 = vector.multi_reduction <add>, %135, %cst_46 [1] : vector<6x6xf32> to vector<6xf32>
    %137 = vector.shape_cast %136 : vector<6xf32> to vector<6x1xf32>
    %138 = tpu.reciprocal %137 {approx = true} : vector<6x1xf32> -> vector<6x1xf32>
    %139 = vector.broadcast %138 : vector<6x1xf32> to vector<6x6xf32>
    %140 = arith.mulf %135, %139 : vector<6x6xf32>
    %141 = arith.truncf %140 : vector<6x6xf32> to vector<6x6xbf16>
    %142 = arith.truncf %125 : vector<6x32xf32> to vector<6x32xbf16>
    %cst_47 = arith.constant dense<0.000000e+00> : vector<6x32xf32>
    %143 = tpu.matmul %141, %142, %cst_47 {dimension_numbers = #tpu.dot_dimension_numbers<[1], [0], [0], [1], [0, 0, 1, 1], [], []>} : vector<6x6xbf16>, vector<6x32xbf16>, vector<6x32xf32> -> vector<6x32xf32>
    %144 = vector.extract_strided_slice %38 {offsets = [0, 160], sizes = [6, 32], strides = [1, 1]} : vector<6x768xf32> to vector<6x32xf32>
    %145 = vector.extract_strided_slice %38 {offsets = [0, 416], sizes = [6, 32], strides = [1, 1]} : vector<6x768xf32> to vector<6x32xf32>
    %146 = vector.extract_strided_slice %38 {offsets = [0, 672], sizes = [6, 32], strides = [1, 1]} : vector<6x768xf32> to vector<6x32xf32>
    %147 = arith.truncf %144 : vector<6x32xf32> to vector<6x32xbf16>
    %148 = arith.truncf %145 : vector<6x32xf32> to vector<6x32xbf16>
    %cst_48 = arith.constant dense<0.000000e+00> : vector<6x6xf32>
    %149 = tpu.matmul %147, %148, %cst_48 {dimension_numbers = #tpu.dot_dimension_numbers<[1], [1], [0], [0], [0, 0, 1, 0], [], []>} : vector<6x32xbf16>, vector<6x32xbf16>, vector<6x6xf32> -> vector<6x6xf32>
    %cst_49 = arith.constant 0.176776692 : f32
    %150 = vector.broadcast %cst_49 : f32 to vector<6x6xf32>
    %151 = arith.mulf %149, %150 : vector<6x6xf32>
    %cst_50 = arith.constant dense<0xFF800000> : vector<6xf32>
    %152 = vector.multi_reduction <maximumf>, %151, %cst_50 [1] : vector<6x6xf32> to vector<6xf32>
    %153 = vector.shape_cast %152 : vector<6xf32> to vector<6x1xf32>
    %154 = vector.broadcast %153 : vector<6x1xf32> to vector<6x6xf32>
    %155 = arith.subf %151, %154 : vector<6x6xf32>
    %156 = math.exp %155 : vector<6x6xf32>
    %cst_51 = arith.constant dense<0.000000e+00> : vector<6xf32>
    %157 = vector.multi_reduction <add>, %156, %cst_51 [1] : vector<6x6xf32> to vector<6xf32>
    %158 = vector.shape_cast %157 : vector<6xf32> to vector<6x1xf32>
    %159 = tpu.reciprocal %158 {approx = true} : vector<6x1xf32> -> vector<6x1xf32>
    %160 = vector.broadcast %159 : vector<6x1xf32> to vector<6x6xf32>
    %161 = arith.mulf %156, %160 : vector<6x6xf32>
    %162 = arith.truncf %161 : vector<6x6xf32> to vector<6x6xbf16>
    %163 = arith.truncf %146 : vector<6x32xf32> to vector<6x32xbf16>
    %cst_52 = arith.constant dense<0.000000e+00> : vector<6x32xf32>
    %164 = tpu.matmul %162, %163, %cst_52 {dimension_numbers = #tpu.dot_dimension_numbers<[1], [0], [0], [1], [0, 0, 1, 1], [], []>} : vector<6x6xbf16>, vector<6x32xbf16>, vector<6x32xf32> -> vector<6x32xf32>
    %165 = vector.extract_strided_slice %38 {offsets = [0, 192], sizes = [6, 32], strides = [1, 1]} : vector<6x768xf32> to vector<6x32xf32>
    %166 = vector.extract_strided_slice %38 {offsets = [0, 448], sizes = [6, 32], strides = [1, 1]} : vector<6x768xf32> to vector<6x32xf32>
    %167 = vector.extract_strided_slice %38 {offsets = [0, 704], sizes = [6, 32], strides = [1, 1]} : vector<6x768xf32> to vector<6x32xf32>
    %168 = arith.truncf %165 : vector<6x32xf32> to vector<6x32xbf16>
    %169 = arith.truncf %166 : vector<6x32xf32> to vector<6x32xbf16>
    %cst_53 = arith.constant dense<0.000000e+00> : vector<6x6xf32>
    %170 = tpu.matmul %168, %169, %cst_53 {dimension_numbers = #tpu.dot_dimension_numbers<[1], [1], [0], [0], [0, 0, 1, 0], [], []>} : vector<6x32xbf16>, vector<6x32xbf16>, vector<6x6xf32> -> vector<6x6xf32>
    %cst_54 = arith.constant 0.176776692 : f32
    %171 = vector.broadcast %cst_54 : f32 to vector<6x6xf32>
    %172 = arith.mulf %170, %171 : vector<6x6xf32>
    %cst_55 = arith.constant dense<0xFF800000> : vector<6xf32>
    %173 = vector.multi_reduction <maximumf>, %172, %cst_55 [1] : vector<6x6xf32> to vector<6xf32>
    %174 = vector.shape_cast %173 : vector<6xf32> to vector<6x1xf32>
    %175 = vector.broadcast %174 : vector<6x1xf32> to vector<6x6xf32>
    %176 = arith.subf %172, %175 : vector<6x6xf32>
    %177 = math.exp %176 : vector<6x6xf32>
    %cst_56 = arith.constant dense<0.000000e+00> : vector<6xf32>
    %178 = vector.multi_reduction <add>, %177, %cst_56 [1] : vector<6x6xf32> to vector<6xf32>
    %179 = vector.shape_cast %178 : vector<6xf32> to vector<6x1xf32>
    %180 = tpu.reciprocal %179 {approx = true} : vector<6x1xf32> -> vector<6x1xf32>
    %181 = vector.broadcast %180 : vector<6x1xf32> to vector<6x6xf32>
    %182 = arith.mulf %177, %181 : vector<6x6xf32>
    %183 = arith.truncf %182 : vector<6x6xf32> to vector<6x6xbf16>
    %184 = arith.truncf %167 : vector<6x32xf32> to vector<6x32xbf16>
    %cst_57 = arith.constant dense<0.000000e+00> : vector<6x32xf32>
    %185 = tpu.matmul %183, %184, %cst_57 {dimension_numbers = #tpu.dot_dimension_numbers<[1], [0], [0], [1], [0, 0, 1, 1], [], []>} : vector<6x6xbf16>, vector<6x32xbf16>, vector<6x32xf32> -> vector<6x32xf32>
    %186 = vector.extract_strided_slice %38 {offsets = [0, 224], sizes = [6, 32], strides = [1, 1]} : vector<6x768xf32> to vector<6x32xf32>
    %187 = vector.extract_strided_slice %38 {offsets = [0, 480], sizes = [6, 32], strides = [1, 1]} : vector<6x768xf32> to vector<6x32xf32>
    %188 = vector.extract_strided_slice %38 {offsets = [0, 736], sizes = [6, 32], strides = [1, 1]} : vector<6x768xf32> to vector<6x32xf32>
    %189 = arith.truncf %186 : vector<6x32xf32> to vector<6x32xbf16>
    %190 = arith.truncf %187 : vector<6x32xf32> to vector<6x32xbf16>
    %cst_58 = arith.constant dense<0.000000e+00> : vector<6x6xf32>
    %191 = tpu.matmul %189, %190, %cst_58 {dimension_numbers = #tpu.dot_dimension_numbers<[1], [1], [0], [0], [0, 0, 1, 0], [], []>} : vector<6x32xbf16>, vector<6x32xbf16>, vector<6x6xf32> -> vector<6x6xf32>
    %cst_59 = arith.constant 0.176776692 : f32
    %192 = vector.broadcast %cst_59 : f32 to vector<6x6xf32>
    %193 = arith.mulf %191, %192 : vector<6x6xf32>
    %cst_60 = arith.constant dense<0xFF800000> : vector<6xf32>
    %194 = vector.multi_reduction <maximumf>, %193, %cst_60 [1] : vector<6x6xf32> to vector<6xf32>
    %195 = vector.shape_cast %194 : vector<6xf32> to vector<6x1xf32>
    %196 = vector.broadcast %195 : vector<6x1xf32> to vector<6x6xf32>
    %197 = arith.subf %193, %196 : vector<6x6xf32>
    %198 = math.exp %197 : vector<6x6xf32>
    %cst_61 = arith.constant dense<0.000000e+00> : vector<6xf32>
    %199 = vector.multi_reduction <add>, %198, %cst_61 [1] : vector<6x6xf32> to vector<6xf32>
    %200 = vector.shape_cast %199 : vector<6xf32> to vector<6x1xf32>
    %201 = tpu.reciprocal %200 {approx = true} : vector<6x1xf32> -> vector<6x1xf32>
    %202 = vector.broadcast %201 : vector<6x1xf32> to vector<6x6xf32>
    %203 = arith.mulf %198, %202 : vector<6x6xf32>
    %204 = arith.truncf %203 : vector<6x6xf32> to vector<6x6xbf16>
    %205 = arith.truncf %188 : vector<6x32xf32> to vector<6x32xbf16>
    %cst_62 = arith.constant dense<0.000000e+00> : vector<6x32xf32>
    %206 = tpu.matmul %204, %205, %cst_62 {dimension_numbers = #tpu.dot_dimension_numbers<[1], [0], [0], [1], [0, 0, 1, 1], [], []>} : vector<6x6xbf16>, vector<6x32xbf16>, vector<6x32xf32> -> vector<6x32xf32>
    %207 = tpu.concatenate %59, %80, %101, %122, %143, %164, %185, %206 in 1 : vector<6x32xf32>, vector<6x32xf32>, vector<6x32xf32>, vector<6x32xf32>, vector<6x32xf32>, vector<6x32xf32>, vector<6x32xf32>, vector<6x32xf32> -> vector<6x256xf32>
    %c0_63 = arith.constant 0 : index
    %c0_64 = arith.constant 0 : index
    %c0_65 = arith.constant 0 : index
    %208 = vector.load %arg6[%c0_63, %c0_64, %c0_65] : memref<2x256x256xbf16, #tpu.memory_space<vmem>>, vector<1x256x256xbf16>
    %209 = vector.shape_cast %208 : vector<1x256x256xbf16> to vector<256x256xbf16>
    %210 = arith.truncf %207 : vector<6x256xf32> to vector<6x256xbf16>
    %cst_66 = arith.constant dense<0.000000e+00> : vector<6x256xf32>
    %211 = tpu.matmul %210, %209, %cst_66 {dimension_numbers = #tpu.dot_dimension_numbers<[1], [0], [0], [1], [0, 0, 1, 1], [], []>} : vector<6x256xbf16>, vector<256x256xbf16>, vector<6x256xf32> -> vector<6x256xf32>
    %212 = arith.addf %4, %211 : vector<6x256xf32>
    %c0_67 = arith.constant 0 : index
    %c0_68 = arith.constant 0 : index
    %c0_69 = arith.constant 0 : index
    %213 = vector.load %arg7[%c0_67, %c0_68, %c0_69] : memref<2x1x256xf32, #tpu.memory_space<vmem>>, vector<1x1x256xf32>
    %214 = vector.shape_cast %213 : vector<1x1x256xf32> to vector<1x256xf32>
    %215 = vector.broadcast %214 : vector<1x256xf32> to vector<6x256xf32>
    %216 = arith.addf %212, %215 : vector<6x256xf32>
    %c0_70 = arith.constant 0 : index
    %c2 = arith.constant 2 : index
    %c0_71 = arith.constant 0 : index
    %c0_72 = arith.constant 0 : index
    %217 = vector.load %arg3[%c0_70, %c2, %c0_71, %c0_72] : memref<2x4x1x256xf32, #tpu.memory_space<vmem>>, vector<1x1x1x256xf32>
    %218 = vector.shape_cast %217 : vector<1x1x1x256xf32> to vector<1x256xf32>
    %c0_73 = arith.constant 0 : index
    %c3 = arith.constant 3 : index
    %c0_74 = arith.constant 0 : index
    %c0_75 = arith.constant 0 : index
    %219 = vector.load %arg3[%c0_73, %c3, %c0_74, %c0_75] : memref<2x4x1x256xf32, #tpu.memory_space<vmem>>, vector<1x1x1x256xf32>
    %220 = vector.shape_cast %219 : vector<1x1x1x256xf32> to vector<1x256xf32>
    %cst_76 = arith.constant dense<0.000000e+00> : vector<6xf32>
    %221 = vector.multi_reduction <add>, %216, %cst_76 [1] : vector<6x256xf32> to vector<6xf32>
    %222 = vector.shape_cast %221 : vector<6xf32> to vector<6x1xf32>
    %cst_77 = arith.constant 2.560000e+02 : f32
    %223 = vector.broadcast %cst_77 : f32 to vector<6x1xf32>
    %224 = arith.divf %222, %223 : vector<6x1xf32>
    %225 = vector.broadcast %224 : vector<6x1xf32> to vector<6x256xf32>
    %226 = arith.subf %216, %225 : vector<6x256xf32>
    %227 = arith.mulf %226, %226 : vector<6x256xf32>
    %cst_78 = arith.constant dense<0.000000e+00> : vector<6xf32>
    %228 = vector.multi_reduction <add>, %227, %cst_78 [1] : vector<6x256xf32> to vector<6xf32>
    %229 = vector.shape_cast %228 : vector<6xf32> to vector<6x1xf32>
    %cst_79 = arith.constant 2.560000e+02 : f32
    %230 = vector.broadcast %cst_79 : f32 to vector<6x1xf32>
    %231 = arith.divf %229, %230 : vector<6x1xf32>
    %232 = vector.broadcast %224 : vector<6x1xf32> to vector<6x256xf32>
    %233 = arith.subf %216, %232 : vector<6x256xf32>
    %cst_80 = arith.constant 9.99999974E-6 : f32
    %234 = vector.broadcast %cst_80 : f32 to vector<6x1xf32>
    %235 = arith.addf %231, %234 : vector<6x1xf32>
    %236 = math.rsqrt %235 : vector<6x1xf32>
    %237 = vector.broadcast %236 : vector<6x1xf32> to vector<6x256xf32>
    %238 = arith.mulf %233, %237 : vector<6x256xf32>
    %239 = vector.broadcast %218 : vector<1x256xf32> to vector<6x256xf32>
    %240 = arith.mulf %238, %239 : vector<6x256xf32>
    %241 = vector.broadcast %220 : vector<1x256xf32> to vector<6x256xf32>
    %242 = arith.addf %240, %241 : vector<6x256xf32>
    %c0_81 = arith.constant 0 : index
    %c0_82 = arith.constant 0 : index
    %c0_83 = arith.constant 0 : index
    %243 = vector.load %arg8[%c0_81, %c0_82, %c0_83] : memref<2x256x32xbf16, #tpu.memory_space<vmem>>, vector<1x256x32xbf16>
    %244 = vector.shape_cast %243 : vector<1x256x32xbf16> to vector<256x32xbf16>
    %245 = arith.truncf %242 : vector<6x256xf32> to vector<6x256xbf16>
    %cst_84 = arith.constant dense<0.000000e+00> : vector<6x32xf32>
    %246 = tpu.matmul %245, %244, %cst_84 {dimension_numbers = #tpu.dot_dimension_numbers<[1], [0], [0], [1], [0, 0, 1, 1], [], []>} : vector<6x256xbf16>, vector<256x32xbf16>, vector<6x32xf32> -> vector<6x32xf32>
    %c0_85 = arith.constant 0 : index
    %c0_86 = arith.constant 0 : index
    %c0_87 = arith.constant 0 : index
    %247 = vector.load %arg9[%c0_85, %c0_86, %c0_87] : memref<2x1x32xf32, #tpu.memory_space<vmem>>, vector<1x1x32xf32>
    %248 = vector.shape_cast %247 : vector<1x1x32xf32> to vector<1x32xf32>
    %249 = vector.broadcast %248 : vector<1x32xf32> to vector<6x32xf32>
    %250 = arith.addf %246, %249 : vector<6x32xf32>
    %cst_88 = arith.constant 5.000000e-01 : f32
    %251 = vector.broadcast %cst_88 : f32 to vector<6x32xf32>
    %252 = arith.mulf %251, %250 : vector<6x32xf32>
    %cst_89 = arith.constant 4.471500e-02 : f32
    %253 = vector.broadcast %cst_89 : f32 to vector<6x32xf32>
    %254 = arith.mulf %253, %250 : vector<6x32xf32>
    %255 = arith.mulf %254, %250 : vector<6x32xf32>
    %256 = arith.mulf %255, %250 : vector<6x32xf32>
    %257 = arith.addf %250, %256 : vector<6x32xf32>
    %cst_90 = arith.constant 0.797884583 : f32
    %258 = vector.broadcast %cst_90 : f32 to vector<6x32xf32>
    %259 = arith.mulf %258, %257 : vector<6x32xf32>
    %260 = math.tanh %259 : vector<6x32xf32>
    %cst_91 = arith.constant 1.000000e+00 : f32
    %261 = vector.broadcast %cst_91 : f32 to vector<6x32xf32>
    %262 = arith.addf %261, %260 : vector<6x32xf32>
    %263 = arith.mulf %252, %262 : vector<6x32xf32>
    %c0_92 = arith.constant 0 : index
    %c0_93 = arith.constant 0 : index
    %c0_94 = arith.constant 0 : index
    %264 = vector.load %arg10[%c0_92, %c0_93, %c0_94] : memref<2x32x256xbf16, #tpu.memory_space<vmem>>, vector<1x32x256xbf16>
    %265 = vector.shape_cast %264 : vector<1x32x256xbf16> to vector<32x256xbf16>
    %266 = arith.truncf %263 : vector<6x32xf32> to vector<6x32xbf16>
    %cst_95 = arith.constant dense<0.000000e+00> : vector<6x256xf32>
    %267 = tpu.matmul %266, %265, %cst_95 {dimension_numbers = #tpu.dot_dimension_numbers<[1], [0], [0], [1], [0, 0, 1, 1], [], []>} : vector<6x32xbf16>, vector<32x256xbf16>, vector<6x256xf32> -> vector<6x256xf32>
    %268 = arith.addf %216, %267 : vector<6x256xf32>
    %c0_96 = arith.constant 0 : index
    %c0_97 = arith.constant 0 : index
    %c0_98 = arith.constant 0 : index
    %269 = vector.load %arg11[%c0_96, %c0_97, %c0_98] : memref<2x1x256xf32, #tpu.memory_space<vmem>>, vector<1x1x256xf32>
    %270 = vector.shape_cast %269 : vector<1x1x256xf32> to vector<1x256xf32>
    %271 = vector.broadcast %270 : vector<1x256xf32> to vector<6x256xf32>
    %272 = arith.addf %268, %271 : vector<6x256xf32>
    %c1_99 = arith.constant 1 : index
    %c0_100 = arith.constant 0 : index
    %c0_101 = arith.constant 0 : index
    %c0_102 = arith.constant 0 : index
    %273 = vector.load %arg3[%c1_99, %c0_100, %c0_101, %c0_102] : memref<2x4x1x256xf32, #tpu.memory_space<vmem>>, vector<1x1x1x256xf32>
    %274 = vector.shape_cast %273 : vector<1x1x1x256xf32> to vector<1x256xf32>
    %c1_103 = arith.constant 1 : index
    %c1_104 = arith.constant 1 : index
    %c0_105 = arith.constant 0 : index
    %c0_106 = arith.constant 0 : index
    %275 = vector.load %arg3[%c1_103, %c1_104, %c0_105, %c0_106] : memref<2x4x1x256xf32, #tpu.memory_space<vmem>>, vector<1x1x1x256xf32>
    %276 = vector.shape_cast %275 : vector<1x1x1x256xf32> to vector<1x256xf32>
    %cst_107 = arith.constant dense<0.000000e+00> : vector<6xf32>
    %277 = vector.multi_reduction <add>, %272, %cst_107 [1] : vector<6x256xf32> to vector<6xf32>
    %278 = vector.shape_cast %277 : vector<6xf32> to vector<6x1xf32>
    %cst_108 = arith.constant 2.560000e+02 : f32
    %279 = vector.broadcast %cst_108 : f32 to vector<6x1xf32>
    %280 = arith.divf %278, %279 : vector<6x1xf32>
    %281 = vector.broadcast %280 : vector<6x1xf32> to vector<6x256xf32>
    %282 = arith.subf %272, %281 : vector<6x256xf32>
    %283 = arith.mulf %282, %282 : vector<6x256xf32>
    %cst_109 = arith.constant dense<0.000000e+00> : vector<6xf32>
    %284 = vector.multi_reduction <add>, %283, %cst_109 [1] : vector<6x256xf32> to vector<6xf32>
    %285 = vector.shape_cast %284 : vector<6xf32> to vector<6x1xf32>
    %cst_110 = arith.constant 2.560000e+02 : f32
    %286 = vector.broadcast %cst_110 : f32 to vector<6x1xf32>
    %287 = arith.divf %285, %286 : vector<6x1xf32>
    %288 = vector.broadcast %280 : vector<6x1xf32> to vector<6x256xf32>
    %289 = arith.subf %272, %288 : vector<6x256xf32>
    %cst_111 = arith.constant 9.99999974E-6 : f32
    %290 = vector.broadcast %cst_111 : f32 to vector<6x1xf32>
    %291 = arith.addf %287, %290 : vector<6x1xf32>
    %292 = math.rsqrt %291 : vector<6x1xf32>
    %293 = vector.broadcast %292 : vector<6x1xf32> to vector<6x256xf32>
    %294 = arith.mulf %289, %293 : vector<6x256xf32>
    %295 = vector.broadcast %274 : vector<1x256xf32> to vector<6x256xf32>
    %296 = arith.mulf %294, %295 : vector<6x256xf32>
    %297 = vector.broadcast %276 : vector<1x256xf32> to vector<6x256xf32>
    %298 = arith.addf %296, %297 : vector<6x256xf32>
    %c1_112 = arith.constant 1 : index
    %c0_113 = arith.constant 0 : index
    %c0_114 = arith.constant 0 : index
    %299 = vector.load %arg4[%c1_112, %c0_113, %c0_114] : memref<2x256x768xbf16, #tpu.memory_space<vmem>>, vector<1x256x768xbf16>
    %300 = vector.shape_cast %299 : vector<1x256x768xbf16> to vector<256x768xbf16>
    %301 = arith.truncf %298 : vector<6x256xf32> to vector<6x256xbf16>
    %cst_115 = arith.constant dense<0.000000e+00> : vector<6x768xf32>
    %302 = tpu.matmul %301, %300, %cst_115 {dimension_numbers = #tpu.dot_dimension_numbers<[1], [0], [0], [1], [0, 0, 1, 1], [], []>} : vector<6x256xbf16>, vector<256x768xbf16>, vector<6x768xf32> -> vector<6x768xf32>
    %c1_116 = arith.constant 1 : index
    %c0_117 = arith.constant 0 : index
    %c0_118 = arith.constant 0 : index
    %303 = vector.load %arg5[%c1_116, %c0_117, %c0_118] : memref<2x1x768xf32, #tpu.memory_space<vmem>>, vector<1x1x768xf32>
    %304 = vector.shape_cast %303 : vector<1x1x768xf32> to vector<1x768xf32>
    %305 = vector.broadcast %304 : vector<1x768xf32> to vector<6x768xf32>
    %306 = arith.addf %302, %305 : vector<6x768xf32>
    %307 = vector.extract_strided_slice %306 {offsets = [0, 0], sizes = [6, 32], strides = [1, 1]} : vector<6x768xf32> to vector<6x32xf32>
    %308 = vector.extract_strided_slice %306 {offsets = [0, 256], sizes = [6, 32], strides = [1, 1]} : vector<6x768xf32> to vector<6x32xf32>
    %309 = vector.extract_strided_slice %306 {offsets = [0, 512], sizes = [6, 32], strides = [1, 1]} : vector<6x768xf32> to vector<6x32xf32>
    %310 = arith.truncf %307 : vector<6x32xf32> to vector<6x32xbf16>
    %311 = arith.truncf %308 : vector<6x32xf32> to vector<6x32xbf16>
    %cst_119 = arith.constant dense<0.000000e+00> : vector<6x6xf32>
    %312 = tpu.matmul %310, %311, %cst_119 {dimension_numbers = #tpu.dot_dimension_numbers<[1], [1], [0], [0], [0, 0, 1, 0], [], []>} : vector<6x32xbf16>, vector<6x32xbf16>, vector<6x6xf32> -> vector<6x6xf32>
    %cst_120 = arith.constant 0.176776692 : f32
    %313 = vector.broadcast %cst_120 : f32 to vector<6x6xf32>
    %314 = arith.mulf %312, %313 : vector<6x6xf32>
    %cst_121 = arith.constant dense<0xFF800000> : vector<6xf32>
    %315 = vector.multi_reduction <maximumf>, %314, %cst_121 [1] : vector<6x6xf32> to vector<6xf32>
    %316 = vector.shape_cast %315 : vector<6xf32> to vector<6x1xf32>
    %317 = vector.broadcast %316 : vector<6x1xf32> to vector<6x6xf32>
    %318 = arith.subf %314, %317 : vector<6x6xf32>
    %319 = math.exp %318 : vector<6x6xf32>
    %cst_122 = arith.constant dense<0.000000e+00> : vector<6xf32>
    %320 = vector.multi_reduction <add>, %319, %cst_122 [1] : vector<6x6xf32> to vector<6xf32>
    %321 = vector.shape_cast %320 : vector<6xf32> to vector<6x1xf32>
    %322 = tpu.reciprocal %321 {approx = true} : vector<6x1xf32> -> vector<6x1xf32>
    %323 = vector.broadcast %322 : vector<6x1xf32> to vector<6x6xf32>
    %324 = arith.mulf %319, %323 : vector<6x6xf32>
    %325 = arith.truncf %324 : vector<6x6xf32> to vector<6x6xbf16>
    %326 = arith.truncf %309 : vector<6x32xf32> to vector<6x32xbf16>
    %cst_123 = arith.constant dense<0.000000e+00> : vector<6x32xf32>
    %327 = tpu.matmul %325, %326, %cst_123 {dimension_numbers = #tpu.dot_dimension_numbers<[1], [0], [0], [1], [0, 0, 1, 1], [], []>} : vector<6x6xbf16>, vector<6x32xbf16>, vector<6x32xf32> -> vector<6x32xf32>
    %328 = vector.extract_strided_slice %306 {offsets = [0, 32], sizes = [6, 32], strides = [1, 1]} : vector<6x768xf32> to vector<6x32xf32>
    %329 = vector.extract_strided_slice %306 {offsets = [0, 288], sizes = [6, 32], strides = [1, 1]} : vector<6x768xf32> to vector<6x32xf32>
    %330 = vector.extract_strided_slice %306 {offsets = [0, 544], sizes = [6, 32], strides = [1, 1]} : vector<6x768xf32> to vector<6x32xf32>
    %331 = arith.truncf %328 : vector<6x32xf32> to vector<6x32xbf16>
    %332 = arith.truncf %329 : vector<6x32xf32> to vector<6x32xbf16>
    %cst_124 = arith.constant dense<0.000000e+00> : vector<6x6xf32>
    %333 = tpu.matmul %331, %332, %cst_124 {dimension_numbers = #tpu.dot_dimension_numbers<[1], [1], [0], [0], [0, 0, 1, 0], [], []>} : vector<6x32xbf16>, vector<6x32xbf16>, vector<6x6xf32> -> vector<6x6xf32>
    %cst_125 = arith.constant 0.176776692 : f32
    %334 = vector.broadcast %cst_125 : f32 to vector<6x6xf32>
    %335 = arith.mulf %333, %334 : vector<6x6xf32>
    %cst_126 = arith.constant dense<0xFF800000> : vector<6xf32>
    %336 = vector.multi_reduction <maximumf>, %335, %cst_126 [1] : vector<6x6xf32> to vector<6xf32>
    %337 = vector.shape_cast %336 : vector<6xf32> to vector<6x1xf32>
    %338 = vector.broadcast %337 : vector<6x1xf32> to vector<6x6xf32>
    %339 = arith.subf %335, %338 : vector<6x6xf32>
    %340 = math.exp %339 : vector<6x6xf32>
    %cst_127 = arith.constant dense<0.000000e+00> : vector<6xf32>
    %341 = vector.multi_reduction <add>, %340, %cst_127 [1] : vector<6x6xf32> to vector<6xf32>
    %342 = vector.shape_cast %341 : vector<6xf32> to vector<6x1xf32>
    %343 = tpu.reciprocal %342 {approx = true} : vector<6x1xf32> -> vector<6x1xf32>
    %344 = vector.broadcast %343 : vector<6x1xf32> to vector<6x6xf32>
    %345 = arith.mulf %340, %344 : vector<6x6xf32>
    %346 = arith.truncf %345 : vector<6x6xf32> to vector<6x6xbf16>
    %347 = arith.truncf %330 : vector<6x32xf32> to vector<6x32xbf16>
    %cst_128 = arith.constant dense<0.000000e+00> : vector<6x32xf32>
    %348 = tpu.matmul %346, %347, %cst_128 {dimension_numbers = #tpu.dot_dimension_numbers<[1], [0], [0], [1], [0, 0, 1, 1], [], []>} : vector<6x6xbf16>, vector<6x32xbf16>, vector<6x32xf32> -> vector<6x32xf32>
    %349 = vector.extract_strided_slice %306 {offsets = [0, 64], sizes = [6, 32], strides = [1, 1]} : vector<6x768xf32> to vector<6x32xf32>
    %350 = vector.extract_strided_slice %306 {offsets = [0, 320], sizes = [6, 32], strides = [1, 1]} : vector<6x768xf32> to vector<6x32xf32>
    %351 = vector.extract_strided_slice %306 {offsets = [0, 576], sizes = [6, 32], strides = [1, 1]} : vector<6x768xf32> to vector<6x32xf32>
    %352 = arith.truncf %349 : vector<6x32xf32> to vector<6x32xbf16>
    %353 = arith.truncf %350 : vector<6x32xf32> to vector<6x32xbf16>
    %cst_129 = arith.constant dense<0.000000e+00> : vector<6x6xf32>
    %354 = tpu.matmul %352, %353, %cst_129 {dimension_numbers = #tpu.dot_dimension_numbers<[1], [1], [0], [0], [0, 0, 1, 0], [], []>} : vector<6x32xbf16>, vector<6x32xbf16>, vector<6x6xf32> -> vector<6x6xf32>
    %cst_130 = arith.constant 0.176776692 : f32
    %355 = vector.broadcast %cst_130 : f32 to vector<6x6xf32>
    %356 = arith.mulf %354, %355 : vector<6x6xf32>
    %cst_131 = arith.constant dense<0xFF800000> : vector<6xf32>
    %357 = vector.multi_reduction <maximumf>, %356, %cst_131 [1] : vector<6x6xf32> to vector<6xf32>
    %358 = vector.shape_cast %357 : vector<6xf32> to vector<6x1xf32>
    %359 = vector.broadcast %358 : vector<6x1xf32> to vector<6x6xf32>
    %360 = arith.subf %356, %359 : vector<6x6xf32>
    %361 = math.exp %360 : vector<6x6xf32>
    %cst_132 = arith.constant dense<0.000000e+00> : vector<6xf32>
    %362 = vector.multi_reduction <add>, %361, %cst_132 [1] : vector<6x6xf32> to vector<6xf32>
    %363 = vector.shape_cast %362 : vector<6xf32> to vector<6x1xf32>
    %364 = tpu.reciprocal %363 {approx = true} : vector<6x1xf32> -> vector<6x1xf32>
    %365 = vector.broadcast %364 : vector<6x1xf32> to vector<6x6xf32>
    %366 = arith.mulf %361, %365 : vector<6x6xf32>
    %367 = arith.truncf %366 : vector<6x6xf32> to vector<6x6xbf16>
    %368 = arith.truncf %351 : vector<6x32xf32> to vector<6x32xbf16>
    %cst_133 = arith.constant dense<0.000000e+00> : vector<6x32xf32>
    %369 = tpu.matmul %367, %368, %cst_133 {dimension_numbers = #tpu.dot_dimension_numbers<[1], [0], [0], [1], [0, 0, 1, 1], [], []>} : vector<6x6xbf16>, vector<6x32xbf16>, vector<6x32xf32> -> vector<6x32xf32>
    %370 = vector.extract_strided_slice %306 {offsets = [0, 96], sizes = [6, 32], strides = [1, 1]} : vector<6x768xf32> to vector<6x32xf32>
    %371 = vector.extract_strided_slice %306 {offsets = [0, 352], sizes = [6, 32], strides = [1, 1]} : vector<6x768xf32> to vector<6x32xf32>
    %372 = vector.extract_strided_slice %306 {offsets = [0, 608], sizes = [6, 32], strides = [1, 1]} : vector<6x768xf32> to vector<6x32xf32>
    %373 = arith.truncf %370 : vector<6x32xf32> to vector<6x32xbf16>
    %374 = arith.truncf %371 : vector<6x32xf32> to vector<6x32xbf16>
    %cst_134 = arith.constant dense<0.000000e+00> : vector<6x6xf32>
    %375 = tpu.matmul %373, %374, %cst_134 {dimension_numbers = #tpu.dot_dimension_numbers<[1], [1], [0], [0], [0, 0, 1, 0], [], []>} : vector<6x32xbf16>, vector<6x32xbf16>, vector<6x6xf32> -> vector<6x6xf32>
    %cst_135 = arith.constant 0.176776692 : f32
    %376 = vector.broadcast %cst_135 : f32 to vector<6x6xf32>
    %377 = arith.mulf %375, %376 : vector<6x6xf32>
    %cst_136 = arith.constant dense<0xFF800000> : vector<6xf32>
    %378 = vector.multi_reduction <maximumf>, %377, %cst_136 [1] : vector<6x6xf32> to vector<6xf32>
    %379 = vector.shape_cast %378 : vector<6xf32> to vector<6x1xf32>
    %380 = vector.broadcast %379 : vector<6x1xf32> to vector<6x6xf32>
    %381 = arith.subf %377, %380 : vector<6x6xf32>
    %382 = math.exp %381 : vector<6x6xf32>
    %cst_137 = arith.constant dense<0.000000e+00> : vector<6xf32>
    %383 = vector.multi_reduction <add>, %382, %cst_137 [1] : vector<6x6xf32> to vector<6xf32>
    %384 = vector.shape_cast %383 : vector<6xf32> to vector<6x1xf32>
    %385 = tpu.reciprocal %384 {approx = true} : vector<6x1xf32> -> vector<6x1xf32>
    %386 = vector.broadcast %385 : vector<6x1xf32> to vector<6x6xf32>
    %387 = arith.mulf %382, %386 : vector<6x6xf32>
    %388 = arith.truncf %387 : vector<6x6xf32> to vector<6x6xbf16>
    %389 = arith.truncf %372 : vector<6x32xf32> to vector<6x32xbf16>
    %cst_138 = arith.constant dense<0.000000e+00> : vector<6x32xf32>
    %390 = tpu.matmul %388, %389, %cst_138 {dimension_numbers = #tpu.dot_dimension_numbers<[1], [0], [0], [1], [0, 0, 1, 1], [], []>} : vector<6x6xbf16>, vector<6x32xbf16>, vector<6x32xf32> -> vector<6x32xf32>
    %391 = vector.extract_strided_slice %306 {offsets = [0, 128], sizes = [6, 32], strides = [1, 1]} : vector<6x768xf32> to vector<6x32xf32>
    %392 = vector.extract_strided_slice %306 {offsets = [0, 384], sizes = [6, 32], strides = [1, 1]} : vector<6x768xf32> to vector<6x32xf32>
    %393 = vector.extract_strided_slice %306 {offsets = [0, 640], sizes = [6, 32], strides = [1, 1]} : vector<6x768xf32> to vector<6x32xf32>
    %394 = arith.truncf %391 : vector<6x32xf32> to vector<6x32xbf16>
    %395 = arith.truncf %392 : vector<6x32xf32> to vector<6x32xbf16>
    %cst_139 = arith.constant dense<0.000000e+00> : vector<6x6xf32>
    %396 = tpu.matmul %394, %395, %cst_139 {dimension_numbers = #tpu.dot_dimension_numbers<[1], [1], [0], [0], [0, 0, 1, 0], [], []>} : vector<6x32xbf16>, vector<6x32xbf16>, vector<6x6xf32> -> vector<6x6xf32>
    %cst_140 = arith.constant 0.176776692 : f32
    %397 = vector.broadcast %cst_140 : f32 to vector<6x6xf32>
    %398 = arith.mulf %396, %397 : vector<6x6xf32>
    %cst_141 = arith.constant dense<0xFF800000> : vector<6xf32>
    %399 = vector.multi_reduction <maximumf>, %398, %cst_141 [1] : vector<6x6xf32> to vector<6xf32>
    %400 = vector.shape_cast %399 : vector<6xf32> to vector<6x1xf32>
    %401 = vector.broadcast %400 : vector<6x1xf32> to vector<6x6xf32>
    %402 = arith.subf %398, %401 : vector<6x6xf32>
    %403 = math.exp %402 : vector<6x6xf32>
    %cst_142 = arith.constant dense<0.000000e+00> : vector<6xf32>
    %404 = vector.multi_reduction <add>, %403, %cst_142 [1] : vector<6x6xf32> to vector<6xf32>
    %405 = vector.shape_cast %404 : vector<6xf32> to vector<6x1xf32>
    %406 = tpu.reciprocal %405 {approx = true} : vector<6x1xf32> -> vector<6x1xf32>
    %407 = vector.broadcast %406 : vector<6x1xf32> to vector<6x6xf32>
    %408 = arith.mulf %403, %407 : vector<6x6xf32>
    %409 = arith.truncf %408 : vector<6x6xf32> to vector<6x6xbf16>
    %410 = arith.truncf %393 : vector<6x32xf32> to vector<6x32xbf16>
    %cst_143 = arith.constant dense<0.000000e+00> : vector<6x32xf32>
    %411 = tpu.matmul %409, %410, %cst_143 {dimension_numbers = #tpu.dot_dimension_numbers<[1], [0], [0], [1], [0, 0, 1, 1], [], []>} : vector<6x6xbf16>, vector<6x32xbf16>, vector<6x32xf32> -> vector<6x32xf32>
    %412 = vector.extract_strided_slice %306 {offsets = [0, 160], sizes = [6, 32], strides = [1, 1]} : vector<6x768xf32> to vector<6x32xf32>
    %413 = vector.extract_strided_slice %306 {offsets = [0, 416], sizes = [6, 32], strides = [1, 1]} : vector<6x768xf32> to vector<6x32xf32>
    %414 = vector.extract_strided_slice %306 {offsets = [0, 672], sizes = [6, 32], strides = [1, 1]} : vector<6x768xf32> to vector<6x32xf32>
    %415 = arith.truncf %412 : vector<6x32xf32> to vector<6x32xbf16>
    %416 = arith.truncf %413 : vector<6x32xf32> to vector<6x32xbf16>
    %cst_144 = arith.constant dense<0.000000e+00> : vector<6x6xf32>
    %417 = tpu.matmul %415, %416, %cst_144 {dimension_numbers = #tpu.dot_dimension_numbers<[1], [1], [0], [0], [0, 0, 1, 0], [], []>} : vector<6x32xbf16>, vector<6x32xbf16>, vector<6x6xf32> -> vector<6x6xf32>
    %cst_145 = arith.constant 0.176776692 : f32
    %418 = vector.broadcast %cst_145 : f32 to vector<6x6xf32>
    %419 = arith.mulf %417, %418 : vector<6x6xf32>
    %cst_146 = arith.constant dense<0xFF800000> : vector<6xf32>
    %420 = vector.multi_reduction <maximumf>, %419, %cst_146 [1] : vector<6x6xf32> to vector<6xf32>
    %421 = vector.shape_cast %420 : vector<6xf32> to vector<6x1xf32>
    %422 = vector.broadcast %421 : vector<6x1xf32> to vector<6x6xf32>
    %423 = arith.subf %419, %422 : vector<6x6xf32>
    %424 = math.exp %423 : vector<6x6xf32>
    %cst_147 = arith.constant dense<0.000000e+00> : vector<6xf32>
    %425 = vector.multi_reduction <add>, %424, %cst_147 [1] : vector<6x6xf32> to vector<6xf32>
    %426 = vector.shape_cast %425 : vector<6xf32> to vector<6x1xf32>
    %427 = tpu.reciprocal %426 {approx = true} : vector<6x1xf32> -> vector<6x1xf32>
    %428 = vector.broadcast %427 : vector<6x1xf32> to vector<6x6xf32>
    %429 = arith.mulf %424, %428 : vector<6x6xf32>
    %430 = arith.truncf %429 : vector<6x6xf32> to vector<6x6xbf16>
    %431 = arith.truncf %414 : vector<6x32xf32> to vector<6x32xbf16>
    %cst_148 = arith.constant dense<0.000000e+00> : vector<6x32xf32>
    %432 = tpu.matmul %430, %431, %cst_148 {dimension_numbers = #tpu.dot_dimension_numbers<[1], [0], [0], [1], [0, 0, 1, 1], [], []>} : vector<6x6xbf16>, vector<6x32xbf16>, vector<6x32xf32> -> vector<6x32xf32>
    %433 = vector.extract_strided_slice %306 {offsets = [0, 192], sizes = [6, 32], strides = [1, 1]} : vector<6x768xf32> to vector<6x32xf32>
    %434 = vector.extract_strided_slice %306 {offsets = [0, 448], sizes = [6, 32], strides = [1, 1]} : vector<6x768xf32> to vector<6x32xf32>
    %435 = vector.extract_strided_slice %306 {offsets = [0, 704], sizes = [6, 32], strides = [1, 1]} : vector<6x768xf32> to vector<6x32xf32>
    %436 = arith.truncf %433 : vector<6x32xf32> to vector<6x32xbf16>
    %437 = arith.truncf %434 : vector<6x32xf32> to vector<6x32xbf16>
    %cst_149 = arith.constant dense<0.000000e+00> : vector<6x6xf32>
    %438 = tpu.matmul %436, %437, %cst_149 {dimension_numbers = #tpu.dot_dimension_numbers<[1], [1], [0], [0], [0, 0, 1, 0], [], []>} : vector<6x32xbf16>, vector<6x32xbf16>, vector<6x6xf32> -> vector<6x6xf32>
    %cst_150 = arith.constant 0.176776692 : f32
    %439 = vector.broadcast %cst_150 : f32 to vector<6x6xf32>
    %440 = arith.mulf %438, %439 : vector<6x6xf32>
    %cst_151 = arith.constant dense<0xFF800000> : vector<6xf32>
    %441 = vector.multi_reduction <maximumf>, %440, %cst_151 [1] : vector<6x6xf32> to vector<6xf32>
    %442 = vector.shape_cast %441 : vector<6xf32> to vector<6x1xf32>
    %443 = vector.broadcast %442 : vector<6x1xf32> to vector<6x6xf32>
    %444 = arith.subf %440, %443 : vector<6x6xf32>
    %445 = math.exp %444 : vector<6x6xf32>
    %cst_152 = arith.constant dense<0.000000e+00> : vector<6xf32>
    %446 = vector.multi_reduction <add>, %445, %cst_152 [1] : vector<6x6xf32> to vector<6xf32>
    %447 = vector.shape_cast %446 : vector<6xf32> to vector<6x1xf32>
    %448 = tpu.reciprocal %447 {approx = true} : vector<6x1xf32> -> vector<6x1xf32>
    %449 = vector.broadcast %448 : vector<6x1xf32> to vector<6x6xf32>
    %450 = arith.mulf %445, %449 : vector<6x6xf32>
    %451 = arith.truncf %450 : vector<6x6xf32> to vector<6x6xbf16>
    %452 = arith.truncf %435 : vector<6x32xf32> to vector<6x32xbf16>
    %cst_153 = arith.constant dense<0.000000e+00> : vector<6x32xf32>
    %453 = tpu.matmul %451, %452, %cst_153 {dimension_numbers = #tpu.dot_dimension_numbers<[1], [0], [0], [1], [0, 0, 1, 1], [], []>} : vector<6x6xbf16>, vector<6x32xbf16>, vector<6x32xf32> -> vector<6x32xf32>
    %454 = vector.extract_strided_slice %306 {offsets = [0, 224], sizes = [6, 32], strides = [1, 1]} : vector<6x768xf32> to vector<6x32xf32>
    %455 = vector.extract_strided_slice %306 {offsets = [0, 480], sizes = [6, 32], strides = [1, 1]} : vector<6x768xf32> to vector<6x32xf32>
    %456 = vector.extract_strided_slice %306 {offsets = [0, 736], sizes = [6, 32], strides = [1, 1]} : vector<6x768xf32> to vector<6x32xf32>
    %457 = arith.truncf %454 : vector<6x32xf32> to vector<6x32xbf16>
    %458 = arith.truncf %455 : vector<6x32xf32> to vector<6x32xbf16>
    %cst_154 = arith.constant dense<0.000000e+00> : vector<6x6xf32>
    %459 = tpu.matmul %457, %458, %cst_154 {dimension_numbers = #tpu.dot_dimension_numbers<[1], [1], [0], [0], [0, 0, 1, 0], [], []>} : vector<6x32xbf16>, vector<6x32xbf16>, vector<6x6xf32> -> vector<6x6xf32>
    %cst_155 = arith.constant 0.176776692 : f32
    %460 = vector.broadcast %cst_155 : f32 to vector<6x6xf32>
    %461 = arith.mulf %459, %460 : vector<6x6xf32>
    %cst_156 = arith.constant dense<0xFF800000> : vector<6xf32>
    %462 = vector.multi_reduction <maximumf>, %461, %cst_156 [1] : vector<6x6xf32> to vector<6xf32>
    %463 = vector.shape_cast %462 : vector<6xf32> to vector<6x1xf32>
    %464 = vector.broadcast %463 : vector<6x1xf32> to vector<6x6xf32>
    %465 = arith.subf %461, %464 : vector<6x6xf32>
    %466 = math.exp %465 : vector<6x6xf32>
    %cst_157 = arith.constant dense<0.000000e+00> : vector<6xf32>
    %467 = vector.multi_reduction <add>, %466, %cst_157 [1] : vector<6x6xf32> to vector<6xf32>
    %468 = vector.shape_cast %467 : vector<6xf32> to vector<6x1xf32>
    %469 = tpu.reciprocal %468 {approx = true} : vector<6x1xf32> -> vector<6x1xf32>
    %470 = vector.broadcast %469 : vector<6x1xf32> to vector<6x6xf32>
    %471 = arith.mulf %466, %470 : vector<6x6xf32>
    %472 = arith.truncf %471 : vector<6x6xf32> to vector<6x6xbf16>
    %473 = arith.truncf %456 : vector<6x32xf32> to vector<6x32xbf16>
    %cst_158 = arith.constant dense<0.000000e+00> : vector<6x32xf32>
    %474 = tpu.matmul %472, %473, %cst_158 {dimension_numbers = #tpu.dot_dimension_numbers<[1], [0], [0], [1], [0, 0, 1, 1], [], []>} : vector<6x6xbf16>, vector<6x32xbf16>, vector<6x32xf32> -> vector<6x32xf32>
    %475 = tpu.concatenate %327, %348, %369, %390, %411, %432, %453, %474 in 1 : vector<6x32xf32>, vector<6x32xf32>, vector<6x32xf32>, vector<6x32xf32>, vector<6x32xf32>, vector<6x32xf32>, vector<6x32xf32>, vector<6x32xf32> -> vector<6x256xf32>
    %c1_159 = arith.constant 1 : index
    %c0_160 = arith.constant 0 : index
    %c0_161 = arith.constant 0 : index
    %476 = vector.load %arg6[%c1_159, %c0_160, %c0_161] : memref<2x256x256xbf16, #tpu.memory_space<vmem>>, vector<1x256x256xbf16>
    %477 = vector.shape_cast %476 : vector<1x256x256xbf16> to vector<256x256xbf16>
    %478 = arith.truncf %475 : vector<6x256xf32> to vector<6x256xbf16>
    %cst_162 = arith.constant dense<0.000000e+00> : vector<6x256xf32>
    %479 = tpu.matmul %478, %477, %cst_162 {dimension_numbers = #tpu.dot_dimension_numbers<[1], [0], [0], [1], [0, 0, 1, 1], [], []>} : vector<6x256xbf16>, vector<256x256xbf16>, vector<6x256xf32> -> vector<6x256xf32>
    %480 = arith.addf %272, %479 : vector<6x256xf32>
    %c1_163 = arith.constant 1 : index
    %c0_164 = arith.constant 0 : index
    %c0_165 = arith.constant 0 : index
    %481 = vector.load %arg7[%c1_163, %c0_164, %c0_165] : memref<2x1x256xf32, #tpu.memory_space<vmem>>, vector<1x1x256xf32>
    %482 = vector.shape_cast %481 : vector<1x1x256xf32> to vector<1x256xf32>
    %483 = vector.broadcast %482 : vector<1x256xf32> to vector<6x256xf32>
    %484 = arith.addf %480, %483 : vector<6x256xf32>
    %c1_166 = arith.constant 1 : index
    %c2_167 = arith.constant 2 : index
    %c0_168 = arith.constant 0 : index
    %c0_169 = arith.constant 0 : index
    %485 = vector.load %arg3[%c1_166, %c2_167, %c0_168, %c0_169] : memref<2x4x1x256xf32, #tpu.memory_space<vmem>>, vector<1x1x1x256xf32>
    %486 = vector.shape_cast %485 : vector<1x1x1x256xf32> to vector<1x256xf32>
    %c1_170 = arith.constant 1 : index
    %c3_171 = arith.constant 3 : index
    %c0_172 = arith.constant 0 : index
    %c0_173 = arith.constant 0 : index
    %487 = vector.load %arg3[%c1_170, %c3_171, %c0_172, %c0_173] : memref<2x4x1x256xf32, #tpu.memory_space<vmem>>, vector<1x1x1x256xf32>
    %488 = vector.shape_cast %487 : vector<1x1x1x256xf32> to vector<1x256xf32>
    %cst_174 = arith.constant dense<0.000000e+00> : vector<6xf32>
    %489 = vector.multi_reduction <add>, %484, %cst_174 [1] : vector<6x256xf32> to vector<6xf32>
    %490 = vector.shape_cast %489 : vector<6xf32> to vector<6x1xf32>
    %cst_175 = arith.constant 2.560000e+02 : f32
    %491 = vector.broadcast %cst_175 : f32 to vector<6x1xf32>
    %492 = arith.divf %490, %491 : vector<6x1xf32>
    %493 = vector.broadcast %492 : vector<6x1xf32> to vector<6x256xf32>
    %494 = arith.subf %484, %493 : vector<6x256xf32>
    %495 = arith.mulf %494, %494 : vector<6x256xf32>
    %cst_176 = arith.constant dense<0.000000e+00> : vector<6xf32>
    %496 = vector.multi_reduction <add>, %495, %cst_176 [1] : vector<6x256xf32> to vector<6xf32>
    %497 = vector.shape_cast %496 : vector<6xf32> to vector<6x1xf32>
    %cst_177 = arith.constant 2.560000e+02 : f32
    %498 = vector.broadcast %cst_177 : f32 to vector<6x1xf32>
    %499 = arith.divf %497, %498 : vector<6x1xf32>
    %500 = vector.broadcast %492 : vector<6x1xf32> to vector<6x256xf32>
    %501 = arith.subf %484, %500 : vector<6x256xf32>
    %cst_178 = arith.constant 9.99999974E-6 : f32
    %502 = vector.broadcast %cst_178 : f32 to vector<6x1xf32>
    %503 = arith.addf %499, %502 : vector<6x1xf32>
    %504 = math.rsqrt %503 : vector<6x1xf32>
    %505 = vector.broadcast %504 : vector<6x1xf32> to vector<6x256xf32>
    %506 = arith.mulf %501, %505 : vector<6x256xf32>
    %507 = vector.broadcast %486 : vector<1x256xf32> to vector<6x256xf32>
    %508 = arith.mulf %506, %507 : vector<6x256xf32>
    %509 = vector.broadcast %488 : vector<1x256xf32> to vector<6x256xf32>
    %510 = arith.addf %508, %509 : vector<6x256xf32>
    %c1_179 = arith.constant 1 : index
    %c0_180 = arith.constant 0 : index
    %c0_181 = arith.constant 0 : index
    %511 = vector.load %arg8[%c1_179, %c0_180, %c0_181] : memref<2x256x32xbf16, #tpu.memory_space<vmem>>, vector<1x256x32xbf16>
    %512 = vector.shape_cast %511 : vector<1x256x32xbf16> to vector<256x32xbf16>
    %513 = arith.truncf %510 : vector<6x256xf32> to vector<6x256xbf16>
    %cst_182 = arith.constant dense<0.000000e+00> : vector<6x32xf32>
    %514 = tpu.matmul %513, %512, %cst_182 {dimension_numbers = #tpu.dot_dimension_numbers<[1], [0], [0], [1], [0, 0, 1, 1], [], []>} : vector<6x256xbf16>, vector<256x32xbf16>, vector<6x32xf32> -> vector<6x32xf32>
    %c1_183 = arith.constant 1 : index
    %c0_184 = arith.constant 0 : index
    %c0_185 = arith.constant 0 : index
    %515 = vector.load %arg9[%c1_183, %c0_184, %c0_185] : memref<2x1x32xf32, #tpu.memory_space<vmem>>, vector<1x1x32xf32>
    %516 = vector.shape_cast %515 : vector<1x1x32xf32> to vector<1x32xf32>
    %517 = vector.broadcast %516 : vector<1x32xf32> to vector<6x32xf32>
    %518 = arith.addf %514, %517 : vector<6x32xf32>
    %cst_186 = arith.constant 5.000000e-01 : f32
    %519 = vector.broadcast %cst_186 : f32 to vector<6x32xf32>
    %520 = arith.mulf %519, %518 : vector<6x32xf32>
    %cst_187 = arith.constant 4.471500e-02 : f32
    %521 = vector.broadcast %cst_187 : f32 to vector<6x32xf32>
    %522 = arith.mulf %521, %518 : vector<6x32xf32>
    %523 = arith.mulf %522, %518 : vector<6x32xf32>
    %524 = arith.mulf %523, %518 : vector<6x32xf32>
    %525 = arith.addf %518, %524 : vector<6x32xf32>
    %cst_188 = arith.constant 0.797884583 : f32
    %526 = vector.broadcast %cst_188 : f32 to vector<6x32xf32>
    %527 = arith.mulf %526, %525 : vector<6x32xf32>
    %528 = math.tanh %527 : vector<6x32xf32>
    %cst_189 = arith.constant 1.000000e+00 : f32
    %529 = vector.broadcast %cst_189 : f32 to vector<6x32xf32>
    %530 = arith.addf %529, %528 : vector<6x32xf32>
    %531 = arith.mulf %520, %530 : vector<6x32xf32>
    %c1_190 = arith.constant 1 : index
    %c0_191 = arith.constant 0 : index
    %c0_192 = arith.constant 0 : index
    %532 = vector.load %arg10[%c1_190, %c0_191, %c0_192] : memref<2x32x256xbf16, #tpu.memory_space<vmem>>, vector<1x32x256xbf16>
    %533 = vector.shape_cast %532 : vector<1x32x256xbf16> to vector<32x256xbf16>
    %534 = arith.truncf %531 : vector<6x32xf32> to vector<6x32xbf16>
    %cst_193 = arith.constant dense<0.000000e+00> : vector<6x256xf32>
    %535 = tpu.matmul %534, %533, %cst_193 {dimension_numbers = #tpu.dot_dimension_numbers<[1], [0], [0], [1], [0, 0, 1, 1], [], []>} : vector<6x32xbf16>, vector<32x256xbf16>, vector<6x256xf32> -> vector<6x256xf32>
    %536 = arith.addf %484, %535 : vector<6x256xf32>
    %c1_194 = arith.constant 1 : index
    %c0_195 = arith.constant 0 : index
    %c0_196 = arith.constant 0 : index
    %537 = vector.load %arg11[%c1_194, %c0_195, %c0_196] : memref<2x1x256xf32, #tpu.memory_space<vmem>>, vector<1x1x256xf32>
    %538 = vector.shape_cast %537 : vector<1x1x256xf32> to vector<1x256xf32>
    %539 = vector.broadcast %538 : vector<1x256xf32> to vector<6x256xf32>
    %540 = arith.addf %536, %539 : vector<6x256xf32>
    %c0_197 = arith.constant 0 : index
    %c0_198 = arith.constant 0 : index
    %c0_199 = arith.constant 0 : index
    %541 = vector.load %arg12[%c0_197, %c0_198, %c0_199] : memref<2x1x256xf32, #tpu.memory_space<vmem>>, vector<1x1x256xf32>
    %542 = vector.shape_cast %541 : vector<1x1x256xf32> to vector<1x256xf32>
    %c1_200 = arith.constant 1 : index
    %c0_201 = arith.constant 0 : index
    %c0_202 = arith.constant 0 : index
    %543 = vector.load %arg12[%c1_200, %c0_201, %c0_202] : memref<2x1x256xf32, #tpu.memory_space<vmem>>, vector<1x1x256xf32>
    %544 = vector.shape_cast %543 : vector<1x1x256xf32> to vector<1x256xf32>
    %cst_203 = arith.constant dense<0.000000e+00> : vector<6xf32>
    %545 = vector.multi_reduction <add>, %540, %cst_203 [1] : vector<6x256xf32> to vector<6xf32>
    %546 = vector.shape_cast %545 : vector<6xf32> to vector<6x1xf32>
    %cst_204 = arith.constant 2.560000e+02 : f32
    %547 = vector.broadcast %cst_204 : f32 to vector<6x1xf32>
    %548 = arith.divf %546, %547 : vector<6x1xf32>
    %549 = vector.broadcast %548 : vector<6x1xf32> to vector<6x256xf32>
    %550 = arith.subf %540, %549 : vector<6x256xf32>
    %551 = arith.mulf %550, %550 : vector<6x256xf32>
    %cst_205 = arith.constant dense<0.000000e+00> : vector<6xf32>
    %552 = vector.multi_reduction <add>, %551, %cst_205 [1] : vector<6x256xf32> to vector<6xf32>
    %553 = vector.shape_cast %552 : vector<6xf32> to vector<6x1xf32>
    %cst_206 = arith.constant 2.560000e+02 : f32
    %554 = vector.broadcast %cst_206 : f32 to vector<6x1xf32>
    %555 = arith.divf %553, %554 : vector<6x1xf32>
    %556 = vector.broadcast %548 : vector<6x1xf32> to vector<6x256xf32>
    %557 = arith.subf %540, %556 : vector<6x256xf32>
    %cst_207 = arith.constant 9.99999974E-6 : f32
    %558 = vector.broadcast %cst_207 : f32 to vector<6x1xf32>
    %559 = arith.addf %555, %558 : vector<6x1xf32>
    %560 = math.rsqrt %559 : vector<6x1xf32>
    %561 = vector.broadcast %560 : vector<6x1xf32> to vector<6x256xf32>
    %562 = arith.mulf %557, %561 : vector<6x256xf32>
    %563 = vector.broadcast %542 : vector<1x256xf32> to vector<6x256xf32>
    %564 = arith.mulf %562, %563 : vector<6x256xf32>
    %565 = vector.broadcast %544 : vector<1x256xf32> to vector<6x256xf32>
    %566 = arith.addf %564, %565 : vector<6x256xf32>
    %c0_208 = arith.constant 0 : index
    %c0_209 = arith.constant 0 : index
    %c0_210 = arith.constant 0 : index
    %567 = vector.load %arg13[%c0_208, %c0_209, %c0_210] : memref<1x6x256xf32, #tpu.memory_space<vmem>>, vector<1x6x256xf32>
    %568 = vector.shape_cast %567 : vector<1x6x256xf32> to vector<6x256xf32>
    %569 = vector.shape_cast %566 : vector<6x256xf32> to vector<1x6x256xf32>
    tpu.vector_store %arg13[%c0_208, %c0_209, %c0_210], %569 {strides = array<i32>} : memref<1x6x256xf32, #tpu.memory_space<vmem>>, vector<1x6x256xf32>,
    return
  }
  func.func @transform_0(%arg0: i32) -> (i32, i32, i32) {
    %c0_i32 = arith.constant 0 : i32
    %c0_i32_0 = arith.constant 0 : i32
    %c0_i32_1 = arith.constant 0 : i32
    return %arg0, %c0_i32, %c0_i32_0 : i32, i32, i32
  }
  func.func @transform_1(%arg0: i32) -> (i32, i32, i32) {
    %c0_i32 = arith.constant 0 : i32
    %c0_i32_0 = arith.constant 0 : i32
    %c0_i32_1 = arith.constant 0 : i32
    %c0_i32_2 = arith.constant 0 : i32
    return %c0_i32, %c0_i32_0, %c0_i32_1 : i32, i32, i32
  }
  func.func @transform_2(%arg0: i32) -> (i32, i32, i32, i32) {
    %c0_i32 = arith.constant 0 : i32
    %c0_i32_0 = arith.constant 0 : i32
    %c0_i32_1 = arith.constant 0 : i32
    %c0_i32_2 = arith.constant 0 : i32
    %c0_i32_3 = arith.constant 0 : i32
    return %c0_i32, %c0_i32_0, %c0_i32_1, %c0_i32_2 : i32, i32, i32, i32
  }
  func.func @transform_3(%arg0: i32) -> (i32, i32, i32) {
    %c0_i32 = arith.constant 0 : i32
    %c0_i32_0 = arith.constant 0 : i32
    %c0_i32_1 = arith.constant 0 : i32
    %c0_i32_2 = arith.constant 0 : i32
    return %c0_i32, %c0_i32_0, %c0_i32_1 : i32, i32, i32
  }
  func.func @transform_4(%arg0: i32) -> (i32, i32, i32) {
    %c0_i32 = arith.constant 0 : i32
    %c0_i32_0 = arith.constant 0 : i32
    %c0_i32_1 = arith.constant 0 : i32
    %c0_i32_2 = arith.constant 0 : i32
    return %c0_i32, %c0_i32_0, %c0_i32_1 : i32, i32, i32
  }
  func.func @transform_5(%arg0: i32) -> (i32, i32, i32) {
    %c0_i32 = arith.constant 0 : i32
    %c0_i32_0 = arith.constant 0 : i32
    %c0_i32_1 = arith.constant 0 : i32
    %c0_i32_2 = arith.constant 0 : i32
    return %c0_i32, %c0_i32_0, %c0_i32_1 : i32, i32, i32
  }
  func.func @transform_6(%arg0: i32) -> (i32, i32, i32) {
    %c0_i32 = arith.constant 0 : i32
    %c0_i32_0 = arith.constant 0 : i32
    %c0_i32_1 = arith.constant 0 : i32
    %c0_i32_2 = arith.constant 0 : i32
    return %c0_i32, %c0_i32_0, %c0_i32_1 : i32, i32, i32
  }
  func.func @transform_7(%arg0: i32) -> (i32, i32, i32) {
    %c0_i32 = arith.constant 0 : i32
    %c0_i32_0 = arith.constant 0 : i32
    %c0_i32_1 = arith.constant 0 : i32
    %c0_i32_2 = arith.constant 0 : i32
    return %c0_i32, %c0_i32_0, %c0_i32_1 : i32, i32, i32
  }
  func.func @transform_8(%arg0: i32) -> (i32, i32, i32) {
    %c0_i32 = arith.constant 0 : i32
    %c0_i32_0 = arith.constant 0 : i32
    %c0_i32_1 = arith.constant 0 : i32
    %c0_i32_2 = arith.constant 0 : i32
    return %c0_i32, %c0_i32_0, %c0_i32_1 : i32, i32, i32
  }
  func.func @transform_9(%arg0: i32) -> (i32, i32, i32) {
    %c0_i32 = arith.constant 0 : i32
    %c0_i32_0 = arith.constant 0 : i32
    %c0_i32_1 = arith.constant 0 : i32
    %c0_i32_2 = arith.constant 0 : i32
    return %c0_i32, %c0_i32_0, %c0_i32_1 : i32, i32, i32
  }
  func.func @transform_10(%arg0: i32) -> (i32, i32, i32) {
    %c0_i32 = arith.constant 0 : i32
    %c0_i32_0 = arith.constant 0 : i32
    %c0_i32_1 = arith.constant 0 : i32
    %c0_i32_2 = arith.constant 0 : i32
    return %c0_i32, %c0_i32_0, %c0_i32_1 : i32, i32, i32
  }
  func.func @transform_11(%arg0: i32) -> (i32, i32, i32) {
    %c0_i32 = arith.constant 0 : i32
    %c0_i32_0 = arith.constant 0 : i32
    %c0_i32_1 = arith.constant 0 : i32
    %c0_i32_2 = arith.constant 0 : i32
    return %c0_i32, %c0_i32_0, %c0_i32_1 : i32, i32, i32
  }
  func.func @transform_12(%arg0: i32) -> (i32, i32, i32) {
    %c0_i32 = arith.constant 0 : i32
    %c0_i32_0 = arith.constant 0 : i32
    %c0_i32_1 = arith.constant 0 : i32
    return %arg0, %c0_i32, %c0_i32_0 : i32, i32, i32
  }
}

module attributes {stable_mosaic.version = 11 : i64} {
  func.func @_diffusion_scan_kernel(%arg0: i32, %arg1: i32, %arg2: memref<1x8x32xf32, #tpu.memory_space<vmem>>, %arg3: memref<1x1x8x32xf32, #tpu.memory_space<vmem>>, %arg4: memref<1x3x32xf32, #tpu.memory_space<vmem>>, %arg5: memref<1x16x32xf32, #tpu.memory_space<vmem>>, %arg6: memref<4x4x1x32xf32, #tpu.memory_space<vmem>>, %arg7: memref<4x32x96xbf16, #tpu.memory_space<vmem>>, %arg8: memref<4x1x96xf32, #tpu.memory_space<vmem>>, %arg9: memref<4x32x32xbf16, #tpu.memory_space<vmem>>, %arg10: memref<4x1x32xf32, #tpu.memory_space<vmem>>, %arg11: memref<4x32x64xbf16, #tpu.memory_space<vmem>>, %arg12: memref<4x1x64xf32, #tpu.memory_space<vmem>>, %arg13: memref<4x64x32xbf16, #tpu.memory_space<vmem>>, %arg14: memref<4x1x32xf32, #tpu.memory_space<vmem>>, %arg15: memref<2x1x32xf32, #tpu.memory_space<vmem>>, %arg16: memref<32x32xbf16, #tpu.memory_space<vmem>>, %arg17: memref<1x32xf32, #tpu.memory_space<vmem>>, %arg18: memref<1x1x8x32xf32, #tpu.memory_space<vmem>>, %arg19: memref<1x1x8x32xf32, #tpu.memory_space<vmem>>, %arg20: memref<1x1x8x32xf32, #tpu.memory_space<vmem>>, %arg21: memref<8x32xf32, #tpu.memory_space<vmem>>) attributes {dimension_semantics = [#tpu.dimension_semantics<parallel>, #tpu.dimension_semantics<arbitrary>], iteration_bounds = array<i64: 2, 6>, scalar_prefetch = 0 : i64, scratch_operands = 1 : i64, tpu.core_type = #tpu.core_type<tc>, window_params = [{transform_indices = @transform_0, window_bounds = array<i64: 1, 8, 32>}, {transform_indices = @transform_1, window_bounds = array<i64: 1, 1, 8, 32>}, {transform_indices = @transform_2, window_bounds = array<i64: 1, 3, 32>}, {pipeline_mode = #tpu.pipeline_mode<synchronous>, transform_indices = @transform_3, window_bounds = array<i64: 1, 16, 32>}, {pipeline_mode = #tpu.pipeline_mode<synchronous>, transform_indices = @transform_4, window_bounds = array<i64: 4, 4, 1, 32>}, {pipeline_mode = #tpu.pipeline_mode<synchronous>, transform_indices = @transform_5, window_bounds = array<i64: 4, 32, 96>}, {pipeline_mode = #tpu.pipeline_mode<synchronous>, transform_indices = @transform_6, window_bounds = array<i64: 4, 1, 96>}, {pipeline_mode = #tpu.pipeline_mode<synchronous>, transform_indices = @transform_7, window_bounds = array<i64: 4, 32, 32>}, {pipeline_mode = #tpu.pipeline_mode<synchronous>, transform_indices = @transform_8, window_bounds = array<i64: 4, 1, 32>}, {pipeline_mode = #tpu.pipeline_mode<synchronous>, transform_indices = @transform_9, window_bounds = array<i64: 4, 32, 64>}, {pipeline_mode = #tpu.pipeline_mode<synchronous>, transform_indices = @transform_10, window_bounds = array<i64: 4, 1, 64>}, {pipeline_mode = #tpu.pipeline_mode<synchronous>, transform_indices = @transform_11, window_bounds = array<i64: 4, 64, 32>}, {pipeline_mode = #tpu.pipeline_mode<synchronous>, transform_indices = @transform_12, window_bounds = array<i64: 4, 1, 32>}, {pipeline_mode = #tpu.pipeline_mode<synchronous>, transform_indices = @transform_13, window_bounds = array<i64: 2, 1, 32>}, {pipeline_mode = #tpu.pipeline_mode<synchronous>, transform_indices = @transform_14, window_bounds = array<i64: 32, 32>}, {pipeline_mode = #tpu.pipeline_mode<synchronous>, transform_indices = @transform_15, window_bounds = array<i64: 1, 32>}, {transform_indices = @transform_16, window_bounds = array<i64: 1, 1, 8, 32>}, {transform_indices = @transform_17, window_bounds = array<i64: 1, 1, 8, 32>}, {transform_indices = @transform_18, window_bounds = array<i64: 1, 1, 8, 32>}]} {
    %c0_i32 = arith.constant 0 : i32
    %0 = arith.cmpi eq, %arg1, %c0_i32 : i32
    %1 = arith.extui %0 : i1 to i32
    %c0_i32_0 = arith.constant 0 : i32
    %2 = arith.cmpi ne, %1, %c0_i32_0 : i32
    scf.if %2 {
      %c0_354 = arith.constant 0 : index
      %c0_355 = arith.constant 0 : index
      %c0_356 = arith.constant 0 : index
      %817 = vector.load %arg2[%c0_354, %c0_355, %c0_356] : memref<1x8x32xf32, #tpu.memory_space<vmem>>, vector<1x8x32xf32>
      %818 = vector.shape_cast %817 : vector<1x8x32xf32> to vector<8x32xf32>
      %c0_357 = arith.constant 0 : index
      %c0_358 = arith.constant 0 : index
      %819 = vector.load %arg21[%c0_357, %c0_358] : memref<8x32xf32, #tpu.memory_space<vmem>>, vector<8x32xf32>
      tpu.vector_store %arg21[%c0_357, %c0_358], %818 {strides = array<i32>} : memref<8x32xf32, #tpu.memory_space<vmem>>, vector<8x32xf32>,
    } else {
    }
    %c0 = arith.constant 0 : index
    %c0_1 = arith.constant 0 : index
    %3 = vector.load %arg21[%c0, %c0_1] : memref<8x32xf32, #tpu.memory_space<vmem>>, vector<8x32xf32>
    %c0_2 = arith.constant 0 : index
    %c0_3 = arith.constant 0 : index
    %c0_4 = arith.constant 0 : index
    %4 = vector.load %arg4[%c0_2, %c0_3, %c0_4] : memref<1x3x32xf32, #tpu.memory_space<vmem>>, vector<1x3x32xf32>
    %5 = vector.shape_cast %4 : vector<1x3x32xf32> to vector<3x32xf32>
    %6 = vector.extract_strided_slice %5 {offsets = [0, 0], sizes = [1, 32], strides = [1, 1]} : vector<3x32xf32> to vector<1x32xf32>
    %7 = vector.broadcast %6 : vector<1x32xf32> to vector<8x32xf32>
    %8 = arith.addf %3, %7 : vector<8x32xf32>
    %c0_5 = arith.constant 0 : index
    %c0_6 = arith.constant 0 : index
    %c0_7 = arith.constant 0 : index
    %c0_8 = arith.constant 0 : index
    %9 = vector.load %arg3[%c0_5, %c0_6, %c0_7, %c0_8] : memref<1x1x8x32xf32, #tpu.memory_space<vmem>>, vector<1x1x8x32xf32>
    %10 = vector.shape_cast %9 : vector<1x1x8x32xf32> to vector<8x32xf32>
    %11 = vector.broadcast %6 : vector<1x32xf32> to vector<8x32xf32>
    %12 = arith.addf %10, %11 : vector<8x32xf32>
    %13 = tpu.concatenate %8, %12 in 0 : vector<8x32xf32>, vector<8x32xf32> -> vector<16x32xf32>
    %c0_9 = arith.constant 0 : index
    %c0_10 = arith.constant 0 : index
    %c0_11 = arith.constant 0 : index
    %14 = vector.load %arg5[%c0_9, %c0_10, %c0_11] : memref<1x16x32xf32, #tpu.memory_space<vmem>>, vector<1x16x32xf32>
    %15 = vector.shape_cast %14 : vector<1x16x32xf32> to vector<16x32xf32>
    %16 = arith.addf %13, %15 : vector<16x32xf32>
    %c0_12 = arith.constant 0 : index
    %c0_13 = arith.constant 0 : index
    %c0_14 = arith.constant 0 : index
    %c0_15 = arith.constant 0 : index
    %17 = vector.load %arg6[%c0_12, %c0_13, %c0_14, %c0_15] : memref<4x4x1x32xf32, #tpu.memory_space<vmem>>, vector<1x1x1x32xf32>
    %18 = vector.shape_cast %17 : vector<1x1x1x32xf32> to vector<1x32xf32>
    %c0_16 = arith.constant 0 : index
    %c1 = arith.constant 1 : index
    %c0_17 = arith.constant 0 : index
    %c0_18 = arith.constant 0 : index
    %19 = vector.load %arg6[%c0_16, %c1, %c0_17, %c0_18] : memref<4x4x1x32xf32, #tpu.memory_space<vmem>>, vector<1x1x1x32xf32>
    %20 = vector.shape_cast %19 : vector<1x1x1x32xf32> to vector<1x32xf32>
    %cst = arith.constant dense<0.000000e+00> : vector<16xf32>
    %21 = vector.multi_reduction <add>, %16, %cst [1] : vector<16x32xf32> to vector<16xf32>
    %22 = vector.shape_cast %21 : vector<16xf32> to vector<16x1xf32>
    %cst_19 = arith.constant 3.200000e+01 : f32
    %23 = vector.broadcast %cst_19 : f32 to vector<16x1xf32>
    %24 = arith.divf %22, %23 : vector<16x1xf32>
    %25 = vector.broadcast %24 : vector<16x1xf32> to vector<16x32xf32>
    %26 = arith.subf %16, %25 : vector<16x32xf32>
    %27 = arith.mulf %26, %26 : vector<16x32xf32>
    %cst_20 = arith.constant dense<0.000000e+00> : vector<16xf32>
    %28 = vector.multi_reduction <add>, %27, %cst_20 [1] : vector<16x32xf32> to vector<16xf32>
    %29 = vector.shape_cast %28 : vector<16xf32> to vector<16x1xf32>
    %cst_21 = arith.constant 3.200000e+01 : f32
    %30 = vector.broadcast %cst_21 : f32 to vector<16x1xf32>
    %31 = arith.divf %29, %30 : vector<16x1xf32>
    %32 = vector.broadcast %24 : vector<16x1xf32> to vector<16x32xf32>
    %33 = arith.subf %16, %32 : vector<16x32xf32>
    %cst_22 = arith.constant 9.99999974E-6 : f32
    %34 = vector.broadcast %cst_22 : f32 to vector<16x1xf32>
    %35 = arith.addf %31, %34 : vector<16x1xf32>
    %36 = math.rsqrt %35 : vector<16x1xf32>
    %37 = vector.broadcast %36 : vector<16x1xf32> to vector<16x32xf32>
    %38 = arith.mulf %33, %37 : vector<16x32xf32>
    %39 = vector.broadcast %18 : vector<1x32xf32> to vector<16x32xf32>
    %40 = arith.mulf %38, %39 : vector<16x32xf32>
    %41 = vector.broadcast %20 : vector<1x32xf32> to vector<16x32xf32>
    %42 = arith.addf %40, %41 : vector<16x32xf32>
    %c0_23 = arith.constant 0 : index
    %c0_24 = arith.constant 0 : index
    %c0_25 = arith.constant 0 : index
    %43 = vector.load %arg7[%c0_23, %c0_24, %c0_25] : memref<4x32x96xbf16, #tpu.memory_space<vmem>>, vector<1x32x96xbf16>
    %44 = vector.shape_cast %43 : vector<1x32x96xbf16> to vector<32x96xbf16>
    %45 = arith.truncf %42 : vector<16x32xf32> to vector<16x32xbf16>
    %cst_26 = arith.constant dense<0.000000e+00> : vector<16x96xf32>
    %46 = tpu.matmul %45, %44, %cst_26 {dimension_numbers = #tpu.dot_dimension_numbers<[1], [0], [0], [1], [0, 0, 1, 1], [], []>} : vector<16x32xbf16>, vector<32x96xbf16>, vector<16x96xf32> -> vector<16x96xf32>
    %c0_27 = arith.constant 0 : index
    %c0_28 = arith.constant 0 : index
    %c0_29 = arith.constant 0 : index
    %47 = vector.load %arg8[%c0_27, %c0_28, %c0_29] : memref<4x1x96xf32, #tpu.memory_space<vmem>>, vector<1x1x96xf32>
    %48 = vector.shape_cast %47 : vector<1x1x96xf32> to vector<1x96xf32>
    %49 = vector.broadcast %48 : vector<1x96xf32> to vector<16x96xf32>
    %50 = arith.addf %46, %49 : vector<16x96xf32>
    %51 = vector.extract_strided_slice %50 {offsets = [0, 0], sizes = [16, 8], strides = [1, 1]} : vector<16x96xf32> to vector<16x8xf32>
    %52 = vector.extract_strided_slice %50 {offsets = [0, 32], sizes = [16, 8], strides = [1, 1]} : vector<16x96xf32> to vector<16x8xf32>
    %53 = vector.extract_strided_slice %50 {offsets = [0, 64], sizes = [16, 8], strides = [1, 1]} : vector<16x96xf32> to vector<16x8xf32>
    %54 = arith.truncf %51 : vector<16x8xf32> to vector<16x8xbf16>
    %55 = arith.truncf %52 : vector<16x8xf32> to vector<16x8xbf16>
    %cst_30 = arith.constant dense<0.000000e+00> : vector<16x16xf32>
    %56 = tpu.matmul %54, %55, %cst_30 {dimension_numbers = #tpu.dot_dimension_numbers<[1], [1], [0], [0], [0, 0, 1, 0], [], []>} : vector<16x8xbf16>, vector<16x8xbf16>, vector<16x16xf32> -> vector<16x16xf32>
    %cst_31 = arith.constant 0.353553385 : f32
    %57 = vector.broadcast %cst_31 : f32 to vector<16x16xf32>
    %58 = arith.mulf %56, %57 : vector<16x16xf32>
    %cst_32 = arith.constant dense<0xFF800000> : vector<16xf32>
    %59 = vector.multi_reduction <maximumf>, %58, %cst_32 [1] : vector<16x16xf32> to vector<16xf32>
    %60 = vector.shape_cast %59 : vector<16xf32> to vector<16x1xf32>
    %61 = vector.broadcast %60 : vector<16x1xf32> to vector<16x16xf32>
    %62 = arith.subf %58, %61 : vector<16x16xf32>
    %63 = math.exp %62 : vector<16x16xf32>
    %cst_33 = arith.constant dense<0.000000e+00> : vector<16xf32>
    %64 = vector.multi_reduction <add>, %63, %cst_33 [1] : vector<16x16xf32> to vector<16xf32>
    %65 = vector.shape_cast %64 : vector<16xf32> to vector<16x1xf32>
    %66 = tpu.reciprocal %65 {approx = true} : vector<16x1xf32> -> vector<16x1xf32>
    %67 = vector.broadcast %66 : vector<16x1xf32> to vector<16x16xf32>
    %68 = arith.mulf %63, %67 : vector<16x16xf32>
    %69 = arith.truncf %68 : vector<16x16xf32> to vector<16x16xbf16>
    %70 = arith.truncf %53 : vector<16x8xf32> to vector<16x8xbf16>
    %cst_34 = arith.constant dense<0.000000e+00> : vector<16x8xf32>
    %71 = tpu.matmul %69, %70, %cst_34 {dimension_numbers = #tpu.dot_dimension_numbers<[1], [0], [0], [1], [0, 0, 1, 1], [], []>} : vector<16x16xbf16>, vector<16x8xbf16>, vector<16x8xf32> -> vector<16x8xf32>
    %72 = vector.extract_strided_slice %50 {offsets = [0, 8], sizes = [16, 8], strides = [1, 1]} : vector<16x96xf32> to vector<16x8xf32>
    %73 = vector.extract_strided_slice %50 {offsets = [0, 40], sizes = [16, 8], strides = [1, 1]} : vector<16x96xf32> to vector<16x8xf32>
    %74 = vector.extract_strided_slice %50 {offsets = [0, 72], sizes = [16, 8], strides = [1, 1]} : vector<16x96xf32> to vector<16x8xf32>
    %75 = arith.truncf %72 : vector<16x8xf32> to vector<16x8xbf16>
    %76 = arith.truncf %73 : vector<16x8xf32> to vector<16x8xbf16>
    %cst_35 = arith.constant dense<0.000000e+00> : vector<16x16xf32>
    %77 = tpu.matmul %75, %76, %cst_35 {dimension_numbers = #tpu.dot_dimension_numbers<[1], [1], [0], [0], [0, 0, 1, 0], [], []>} : vector<16x8xbf16>, vector<16x8xbf16>, vector<16x16xf32> -> vector<16x16xf32>
    %cst_36 = arith.constant 0.353553385 : f32
    %78 = vector.broadcast %cst_36 : f32 to vector<16x16xf32>
    %79 = arith.mulf %77, %78 : vector<16x16xf32>
    %cst_37 = arith.constant dense<0xFF800000> : vector<16xf32>
    %80 = vector.multi_reduction <maximumf>, %79, %cst_37 [1] : vector<16x16xf32> to vector<16xf32>
    %81 = vector.shape_cast %80 : vector<16xf32> to vector<16x1xf32>
    %82 = vector.broadcast %81 : vector<16x1xf32> to vector<16x16xf32>
    %83 = arith.subf %79, %82 : vector<16x16xf32>
    %84 = math.exp %83 : vector<16x16xf32>
    %cst_38 = arith.constant dense<0.000000e+00> : vector<16xf32>
    %85 = vector.multi_reduction <add>, %84, %cst_38 [1] : vector<16x16xf32> to vector<16xf32>
    %86 = vector.shape_cast %85 : vector<16xf32> to vector<16x1xf32>
    %87 = tpu.reciprocal %86 {approx = true} : vector<16x1xf32> -> vector<16x1xf32>
    %88 = vector.broadcast %87 : vector<16x1xf32> to vector<16x16xf32>
    %89 = arith.mulf %84, %88 : vector<16x16xf32>
    %90 = arith.truncf %89 : vector<16x16xf32> to vector<16x16xbf16>
    %91 = arith.truncf %74 : vector<16x8xf32> to vector<16x8xbf16>
    %cst_39 = arith.constant dense<0.000000e+00> : vector<16x8xf32>
    %92 = tpu.matmul %90, %91, %cst_39 {dimension_numbers = #tpu.dot_dimension_numbers<[1], [0], [0], [1], [0, 0, 1, 1], [], []>} : vector<16x16xbf16>, vector<16x8xbf16>, vector<16x8xf32> -> vector<16x8xf32>
    %93 = vector.extract_strided_slice %50 {offsets = [0, 16], sizes = [16, 8], strides = [1, 1]} : vector<16x96xf32> to vector<16x8xf32>
    %94 = vector.extract_strided_slice %50 {offsets = [0, 48], sizes = [16, 8], strides = [1, 1]} : vector<16x96xf32> to vector<16x8xf32>
    %95 = vector.extract_strided_slice %50 {offsets = [0, 80], sizes = [16, 8], strides = [1, 1]} : vector<16x96xf32> to vector<16x8xf32>
    %96 = arith.truncf %93 : vector<16x8xf32> to vector<16x8xbf16>
    %97 = arith.truncf %94 : vector<16x8xf32> to vector<16x8xbf16>
    %cst_40 = arith.constant dense<0.000000e+00> : vector<16x16xf32>
    %98 = tpu.matmul %96, %97, %cst_40 {dimension_numbers = #tpu.dot_dimension_numbers<[1], [1], [0], [0], [0, 0, 1, 0], [], []>} : vector<16x8xbf16>, vector<16x8xbf16>, vector<16x16xf32> -> vector<16x16xf32>
    %cst_41 = arith.constant 0.353553385 : f32
    %99 = vector.broadcast %cst_41 : f32 to vector<16x16xf32>
    %100 = arith.mulf %98, %99 : vector<16x16xf32>
    %cst_42 = arith.constant dense<0xFF800000> : vector<16xf32>
    %101 = vector.multi_reduction <maximumf>, %100, %cst_42 [1] : vector<16x16xf32> to vector<16xf32>
    %102 = vector.shape_cast %101 : vector<16xf32> to vector<16x1xf32>
    %103 = vector.broadcast %102 : vector<16x1xf32> to vector<16x16xf32>
    %104 = arith.subf %100, %103 : vector<16x16xf32>
    %105 = math.exp %104 : vector<16x16xf32>
    %cst_43 = arith.constant dense<0.000000e+00> : vector<16xf32>
    %106 = vector.multi_reduction <add>, %105, %cst_43 [1] : vector<16x16xf32> to vector<16xf32>
    %107 = vector.shape_cast %106 : vector<16xf32> to vector<16x1xf32>
    %108 = tpu.reciprocal %107 {approx = true} : vector<16x1xf32> -> vector<16x1xf32>
    %109 = vector.broadcast %108 : vector<16x1xf32> to vector<16x16xf32>
    %110 = arith.mulf %105, %109 : vector<16x16xf32>
    %111 = arith.truncf %110 : vector<16x16xf32> to vector<16x16xbf16>
    %112 = arith.truncf %95 : vector<16x8xf32> to vector<16x8xbf16>
    %cst_44 = arith.constant dense<0.000000e+00> : vector<16x8xf32>
    %113 = tpu.matmul %111, %112, %cst_44 {dimension_numbers = #tpu.dot_dimension_numbers<[1], [0], [0], [1], [0, 0, 1, 1], [], []>} : vector<16x16xbf16>, vector<16x8xbf16>, vector<16x8xf32> -> vector<16x8xf32>
    %114 = vector.extract_strided_slice %50 {offsets = [0, 24], sizes = [16, 8], strides = [1, 1]} : vector<16x96xf32> to vector<16x8xf32>
    %115 = vector.extract_strided_slice %50 {offsets = [0, 56], sizes = [16, 8], strides = [1, 1]} : vector<16x96xf32> to vector<16x8xf32>
    %116 = vector.extract_strided_slice %50 {offsets = [0, 88], sizes = [16, 8], strides = [1, 1]} : vector<16x96xf32> to vector<16x8xf32>
    %117 = arith.truncf %114 : vector<16x8xf32> to vector<16x8xbf16>
    %118 = arith.truncf %115 : vector<16x8xf32> to vector<16x8xbf16>
    %cst_45 = arith.constant dense<0.000000e+00> : vector<16x16xf32>
    %119 = tpu.matmul %117, %118, %cst_45 {dimension_numbers = #tpu.dot_dimension_numbers<[1], [1], [0], [0], [0, 0, 1, 0], [], []>} : vector<16x8xbf16>, vector<16x8xbf16>, vector<16x16xf32> -> vector<16x16xf32>
    %cst_46 = arith.constant 0.353553385 : f32
    %120 = vector.broadcast %cst_46 : f32 to vector<16x16xf32>
    %121 = arith.mulf %119, %120 : vector<16x16xf32>
    %cst_47 = arith.constant dense<0xFF800000> : vector<16xf32>
    %122 = vector.multi_reduction <maximumf>, %121, %cst_47 [1] : vector<16x16xf32> to vector<16xf32>
    %123 = vector.shape_cast %122 : vector<16xf32> to vector<16x1xf32>
    %124 = vector.broadcast %123 : vector<16x1xf32> to vector<16x16xf32>
    %125 = arith.subf %121, %124 : vector<16x16xf32>
    %126 = math.exp %125 : vector<16x16xf32>
    %cst_48 = arith.constant dense<0.000000e+00> : vector<16xf32>
    %127 = vector.multi_reduction <add>, %126, %cst_48 [1] : vector<16x16xf32> to vector<16xf32>
    %128 = vector.shape_cast %127 : vector<16xf32> to vector<16x1xf32>
    %129 = tpu.reciprocal %128 {approx = true} : vector<16x1xf32> -> vector<16x1xf32>
    %130 = vector.broadcast %129 : vector<16x1xf32> to vector<16x16xf32>
    %131 = arith.mulf %126, %130 : vector<16x16xf32>
    %132 = arith.truncf %131 : vector<16x16xf32> to vector<16x16xbf16>
    %133 = arith.truncf %116 : vector<16x8xf32> to vector<16x8xbf16>
    %cst_49 = arith.constant dense<0.000000e+00> : vector<16x8xf32>
    %134 = tpu.matmul %132, %133, %cst_49 {dimension_numbers = #tpu.dot_dimension_numbers<[1], [0], [0], [1], [0, 0, 1, 1], [], []>} : vector<16x16xbf16>, vector<16x8xbf16>, vector<16x8xf32> -> vector<16x8xf32>
    %135 = tpu.concatenate %71, %92, %113, %134 in 1 : vector<16x8xf32>, vector<16x8xf32>, vector<16x8xf32>, vector<16x8xf32> -> vector<16x32xf32>
    %c0_50 = arith.constant 0 : index
    %c0_51 = arith.constant 0 : index
    %c0_52 = arith.constant 0 : index
    %136 = vector.load %arg9[%c0_50, %c0_51, %c0_52] : memref<4x32x32xbf16, #tpu.memory_space<vmem>>, vector<1x32x32xbf16>
    %137 = vector.shape_cast %136 : vector<1x32x32xbf16> to vector<32x32xbf16>
    %138 = arith.truncf %135 : vector<16x32xf32> to vector<16x32xbf16>
    %cst_53 = arith.constant dense<0.000000e+00> : vector<16x32xf32>
    %139 = tpu.matmul %138, %137, %cst_53 {dimension_numbers = #tpu.dot_dimension_numbers<[1], [0], [0], [1], [0, 0, 1, 1], [], []>} : vector<16x32xbf16>, vector<32x32xbf16>, vector<16x32xf32> -> vector<16x32xf32>
    %140 = arith.addf %16, %139 : vector<16x32xf32>
    %c0_54 = arith.constant 0 : index
    %c0_55 = arith.constant 0 : index
    %c0_56 = arith.constant 0 : index
    %141 = vector.load %arg10[%c0_54, %c0_55, %c0_56] : memref<4x1x32xf32, #tpu.memory_space<vmem>>, vector<1x1x32xf32>
    %142 = vector.shape_cast %141 : vector<1x1x32xf32> to vector<1x32xf32>
    %143 = vector.broadcast %142 : vector<1x32xf32> to vector<16x32xf32>
    %144 = arith.addf %140, %143 : vector<16x32xf32>
    %c0_57 = arith.constant 0 : index
    %c2 = arith.constant 2 : index
    %c0_58 = arith.constant 0 : index
    %c0_59 = arith.constant 0 : index
    %145 = vector.load %arg6[%c0_57, %c2, %c0_58, %c0_59] : memref<4x4x1x32xf32, #tpu.memory_space<vmem>>, vector<1x1x1x32xf32>
    %146 = vector.shape_cast %145 : vector<1x1x1x32xf32> to vector<1x32xf32>
    %c0_60 = arith.constant 0 : index
    %c3 = arith.constant 3 : index
    %c0_61 = arith.constant 0 : index
    %c0_62 = arith.constant 0 : index
    %147 = vector.load %arg6[%c0_60, %c3, %c0_61, %c0_62] : memref<4x4x1x32xf32, #tpu.memory_space<vmem>>, vector<1x1x1x32xf32>
    %148 = vector.shape_cast %147 : vector<1x1x1x32xf32> to vector<1x32xf32>
    %cst_63 = arith.constant dense<0.000000e+00> : vector<16xf32>
    %149 = vector.multi_reduction <add>, %144, %cst_63 [1] : vector<16x32xf32> to vector<16xf32>
    %150 = vector.shape_cast %149 : vector<16xf32> to vector<16x1xf32>
    %cst_64 = arith.constant 3.200000e+01 : f32
    %151 = vector.broadcast %cst_64 : f32 to vector<16x1xf32>
    %152 = arith.divf %150, %151 : vector<16x1xf32>
    %153 = vector.broadcast %152 : vector<16x1xf32> to vector<16x32xf32>
    %154 = arith.subf %144, %153 : vector<16x32xf32>
    %155 = arith.mulf %154, %154 : vector<16x32xf32>
    %cst_65 = arith.constant dense<0.000000e+00> : vector<16xf32>
    %156 = vector.multi_reduction <add>, %155, %cst_65 [1] : vector<16x32xf32> to vector<16xf32>
    %157 = vector.shape_cast %156 : vector<16xf32> to vector<16x1xf32>
    %cst_66 = arith.constant 3.200000e+01 : f32
    %158 = vector.broadcast %cst_66 : f32 to vector<16x1xf32>
    %159 = arith.divf %157, %158 : vector<16x1xf32>
    %160 = vector.broadcast %152 : vector<16x1xf32> to vector<16x32xf32>
    %161 = arith.subf %144, %160 : vector<16x32xf32>
    %cst_67 = arith.constant 9.99999974E-6 : f32
    %162 = vector.broadcast %cst_67 : f32 to vector<16x1xf32>
    %163 = arith.addf %159, %162 : vector<16x1xf32>
    %164 = math.rsqrt %163 : vector<16x1xf32>
    %165 = vector.broadcast %164 : vector<16x1xf32> to vector<16x32xf32>
    %166 = arith.mulf %161, %165 : vector<16x32xf32>
    %167 = vector.broadcast %146 : vector<1x32xf32> to vector<16x32xf32>
    %168 = arith.mulf %166, %167 : vector<16x32xf32>
    %169 = vector.broadcast %148 : vector<1x32xf32> to vector<16x32xf32>
    %170 = arith.addf %168, %169 : vector<16x32xf32>
    %c0_68 = arith.constant 0 : index
    %c0_69 = arith.constant 0 : index
    %c0_70 = arith.constant 0 : index
    %171 = vector.load %arg11[%c0_68, %c0_69, %c0_70] : memref<4x32x64xbf16, #tpu.memory_space<vmem>>, vector<1x32x64xbf16>
    %172 = vector.shape_cast %171 : vector<1x32x64xbf16> to vector<32x64xbf16>
    %173 = arith.truncf %170 : vector<16x32xf32> to vector<16x32xbf16>
    %cst_71 = arith.constant dense<0.000000e+00> : vector<16x64xf32>
    %174 = tpu.matmul %173, %172, %cst_71 {dimension_numbers = #tpu.dot_dimension_numbers<[1], [0], [0], [1], [0, 0, 1, 1], [], []>} : vector<16x32xbf16>, vector<32x64xbf16>, vector<16x64xf32> -> vector<16x64xf32>
    %c0_72 = arith.constant 0 : index
    %c0_73 = arith.constant 0 : index
    %c0_74 = arith.constant 0 : index
    %175 = vector.load %arg12[%c0_72, %c0_73, %c0_74] : memref<4x1x64xf32, #tpu.memory_space<vmem>>, vector<1x1x64xf32>
    %176 = vector.shape_cast %175 : vector<1x1x64xf32> to vector<1x64xf32>
    %177 = vector.broadcast %176 : vector<1x64xf32> to vector<16x64xf32>
    %178 = arith.addf %174, %177 : vector<16x64xf32>
    %cst_75 = arith.constant 5.000000e-01 : f32
    %179 = vector.broadcast %cst_75 : f32 to vector<16x64xf32>
    %180 = arith.mulf %179, %178 : vector<16x64xf32>
    %cst_76 = arith.constant 4.471500e-02 : f32
    %181 = vector.broadcast %cst_76 : f32 to vector<16x64xf32>
    %182 = arith.mulf %181, %178 : vector<16x64xf32>
    %183 = arith.mulf %182, %178 : vector<16x64xf32>
    %184 = arith.mulf %183, %178 : vector<16x64xf32>
    %185 = arith.addf %178, %184 : vector<16x64xf32>
    %cst_77 = arith.constant 0.797884583 : f32
    %186 = vector.broadcast %cst_77 : f32 to vector<16x64xf32>
    %187 = arith.mulf %186, %185 : vector<16x64xf32>
    %188 = math.tanh %187 : vector<16x64xf32>
    %cst_78 = arith.constant 1.000000e+00 : f32
    %189 = vector.broadcast %cst_78 : f32 to vector<16x64xf32>
    %190 = arith.addf %189, %188 : vector<16x64xf32>
    %191 = arith.mulf %180, %190 : vector<16x64xf32>
    %c0_79 = arith.constant 0 : index
    %c0_80 = arith.constant 0 : index
    %c0_81 = arith.constant 0 : index
    %192 = vector.load %arg13[%c0_79, %c0_80, %c0_81] : memref<4x64x32xbf16, #tpu.memory_space<vmem>>, vector<1x64x32xbf16>
    %193 = vector.shape_cast %192 : vector<1x64x32xbf16> to vector<64x32xbf16>
    %194 = arith.truncf %191 : vector<16x64xf32> to vector<16x64xbf16>
    %cst_82 = arith.constant dense<0.000000e+00> : vector<16x32xf32>
    %195 = tpu.matmul %194, %193, %cst_82 {dimension_numbers = #tpu.dot_dimension_numbers<[1], [0], [0], [1], [0, 0, 1, 1], [], []>} : vector<16x64xbf16>, vector<64x32xbf16>, vector<16x32xf32> -> vector<16x32xf32>
    %196 = arith.addf %144, %195 : vector<16x32xf32>
    %c0_83 = arith.constant 0 : index
    %c0_84 = arith.constant 0 : index
    %c0_85 = arith.constant 0 : index
    %197 = vector.load %arg14[%c0_83, %c0_84, %c0_85] : memref<4x1x32xf32, #tpu.memory_space<vmem>>, vector<1x1x32xf32>
    %198 = vector.shape_cast %197 : vector<1x1x32xf32> to vector<1x32xf32>
    %199 = vector.broadcast %198 : vector<1x32xf32> to vector<16x32xf32>
    %200 = arith.addf %196, %199 : vector<16x32xf32>
    %c1_86 = arith.constant 1 : index
    %c0_87 = arith.constant 0 : index
    %c0_88 = arith.constant 0 : index
    %c0_89 = arith.constant 0 : index
    %201 = vector.load %arg6[%c1_86, %c0_87, %c0_88, %c0_89] : memref<4x4x1x32xf32, #tpu.memory_space<vmem>>, vector<1x1x1x32xf32>
    %202 = vector.shape_cast %201 : vector<1x1x1x32xf32> to vector<1x32xf32>
    %c1_90 = arith.constant 1 : index
    %c1_91 = arith.constant 1 : index
    %c0_92 = arith.constant 0 : index
    %c0_93 = arith.constant 0 : index
    %203 = vector.load %arg6[%c1_90, %c1_91, %c0_92, %c0_93] : memref<4x4x1x32xf32, #tpu.memory_space<vmem>>, vector<1x1x1x32xf32>
    %204 = vector.shape_cast %203 : vector<1x1x1x32xf32> to vector<1x32xf32>
    %cst_94 = arith.constant dense<0.000000e+00> : vector<16xf32>
    %205 = vector.multi_reduction <add>, %200, %cst_94 [1] : vector<16x32xf32> to vector<16xf32>
    %206 = vector.shape_cast %205 : vector<16xf32> to vector<16x1xf32>
    %cst_95 = arith.constant 3.200000e+01 : f32
    %207 = vector.broadcast %cst_95 : f32 to vector<16x1xf32>
    %208 = arith.divf %206, %207 : vector<16x1xf32>
    %209 = vector.broadcast %208 : vector<16x1xf32> to vector<16x32xf32>
    %210 = arith.subf %200, %209 : vector<16x32xf32>
    %211 = arith.mulf %210, %210 : vector<16x32xf32>
    %cst_96 = arith.constant dense<0.000000e+00> : vector<16xf32>
    %212 = vector.multi_reduction <add>, %211, %cst_96 [1] : vector<16x32xf32> to vector<16xf32>
    %213 = vector.shape_cast %212 : vector<16xf32> to vector<16x1xf32>
    %cst_97 = arith.constant 3.200000e+01 : f32
    %214 = vector.broadcast %cst_97 : f32 to vector<16x1xf32>
    %215 = arith.divf %213, %214 : vector<16x1xf32>
    %216 = vector.broadcast %208 : vector<16x1xf32> to vector<16x32xf32>
    %217 = arith.subf %200, %216 : vector<16x32xf32>
    %cst_98 = arith.constant 9.99999974E-6 : f32
    %218 = vector.broadcast %cst_98 : f32 to vector<16x1xf32>
    %219 = arith.addf %215, %218 : vector<16x1xf32>
    %220 = math.rsqrt %219 : vector<16x1xf32>
    %221 = vector.broadcast %220 : vector<16x1xf32> to vector<16x32xf32>
    %222 = arith.mulf %217, %221 : vector<16x32xf32>
    %223 = vector.broadcast %202 : vector<1x32xf32> to vector<16x32xf32>
    %224 = arith.mulf %222, %223 : vector<16x32xf32>
    %225 = vector.broadcast %204 : vector<1x32xf32> to vector<16x32xf32>
    %226 = arith.addf %224, %225 : vector<16x32xf32>
    %c1_99 = arith.constant 1 : index
    %c0_100 = arith.constant 0 : index
    %c0_101 = arith.constant 0 : index
    %227 = vector.load %arg7[%c1_99, %c0_100, %c0_101] : memref<4x32x96xbf16, #tpu.memory_space<vmem>>, vector<1x32x96xbf16>
    %228 = vector.shape_cast %227 : vector<1x32x96xbf16> to vector<32x96xbf16>
    %229 = arith.truncf %226 : vector<16x32xf32> to vector<16x32xbf16>
    %cst_102 = arith.constant dense<0.000000e+00> : vector<16x96xf32>
    %230 = tpu.matmul %229, %228, %cst_102 {dimension_numbers = #tpu.dot_dimension_numbers<[1], [0], [0], [1], [0, 0, 1, 1], [], []>} : vector<16x32xbf16>, vector<32x96xbf16>, vector<16x96xf32> -> vector<16x96xf32>
    %c1_103 = arith.constant 1 : index
    %c0_104 = arith.constant 0 : index
    %c0_105 = arith.constant 0 : index
    %231 = vector.load %arg8[%c1_103, %c0_104, %c0_105] : memref<4x1x96xf32, #tpu.memory_space<vmem>>, vector<1x1x96xf32>
    %232 = vector.shape_cast %231 : vector<1x1x96xf32> to vector<1x96xf32>
    %233 = vector.broadcast %232 : vector<1x96xf32> to vector<16x96xf32>
    %234 = arith.addf %230, %233 : vector<16x96xf32>
    %235 = vector.extract_strided_slice %234 {offsets = [0, 0], sizes = [16, 8], strides = [1, 1]} : vector<16x96xf32> to vector<16x8xf32>
    %236 = vector.extract_strided_slice %234 {offsets = [0, 32], sizes = [16, 8], strides = [1, 1]} : vector<16x96xf32> to vector<16x8xf32>
    %237 = vector.extract_strided_slice %234 {offsets = [0, 64], sizes = [16, 8], strides = [1, 1]} : vector<16x96xf32> to vector<16x8xf32>
    %238 = arith.truncf %235 : vector<16x8xf32> to vector<16x8xbf16>
    %239 = arith.truncf %236 : vector<16x8xf32> to vector<16x8xbf16>
    %cst_106 = arith.constant dense<0.000000e+00> : vector<16x16xf32>
    %240 = tpu.matmul %238, %239, %cst_106 {dimension_numbers = #tpu.dot_dimension_numbers<[1], [1], [0], [0], [0, 0, 1, 0], [], []>} : vector<16x8xbf16>, vector<16x8xbf16>, vector<16x16xf32> -> vector<16x16xf32>
    %cst_107 = arith.constant 0.353553385 : f32
    %241 = vector.broadcast %cst_107 : f32 to vector<16x16xf32>
    %242 = arith.mulf %240, %241 : vector<16x16xf32>
    %cst_108 = arith.constant dense<0xFF800000> : vector<16xf32>
    %243 = vector.multi_reduction <maximumf>, %242, %cst_108 [1] : vector<16x16xf32> to vector<16xf32>
    %244 = vector.shape_cast %243 : vector<16xf32> to vector<16x1xf32>
    %245 = vector.broadcast %244 : vector<16x1xf32> to vector<16x16xf32>
    %246 = arith.subf %242, %245 : vector<16x16xf32>
    %247 = math.exp %246 : vector<16x16xf32>
    %cst_109 = arith.constant dense<0.000000e+00> : vector<16xf32>
    %248 = vector.multi_reduction <add>, %247, %cst_109 [1] : vector<16x16xf32> to vector<16xf32>
    %249 = vector.shape_cast %248 : vector<16xf32> to vector<16x1xf32>
    %250 = tpu.reciprocal %249 {approx = true} : vector<16x1xf32> -> vector<16x1xf32>
    %251 = vector.broadcast %250 : vector<16x1xf32> to vector<16x16xf32>
    %252 = arith.mulf %247, %251 : vector<16x16xf32>
    %253 = arith.truncf %252 : vector<16x16xf32> to vector<16x16xbf16>
    %254 = arith.truncf %237 : vector<16x8xf32> to vector<16x8xbf16>
    %cst_110 = arith.constant dense<0.000000e+00> : vector<16x8xf32>
    %255 = tpu.matmul %253, %254, %cst_110 {dimension_numbers = #tpu.dot_dimension_numbers<[1], [0], [0], [1], [0, 0, 1, 1], [], []>} : vector<16x16xbf16>, vector<16x8xbf16>, vector<16x8xf32> -> vector<16x8xf32>
    %256 = vector.extract_strided_slice %234 {offsets = [0, 8], sizes = [16, 8], strides = [1, 1]} : vector<16x96xf32> to vector<16x8xf32>
    %257 = vector.extract_strided_slice %234 {offsets = [0, 40], sizes = [16, 8], strides = [1, 1]} : vector<16x96xf32> to vector<16x8xf32>
    %258 = vector.extract_strided_slice %234 {offsets = [0, 72], sizes = [16, 8], strides = [1, 1]} : vector<16x96xf32> to vector<16x8xf32>
    %259 = arith.truncf %256 : vector<16x8xf32> to vector<16x8xbf16>
    %260 = arith.truncf %257 : vector<16x8xf32> to vector<16x8xbf16>
    %cst_111 = arith.constant dense<0.000000e+00> : vector<16x16xf32>
    %261 = tpu.matmul %259, %260, %cst_111 {dimension_numbers = #tpu.dot_dimension_numbers<[1], [1], [0], [0], [0, 0, 1, 0], [], []>} : vector<16x8xbf16>, vector<16x8xbf16>, vector<16x16xf32> -> vector<16x16xf32>
    %cst_112 = arith.constant 0.353553385 : f32
    %262 = vector.broadcast %cst_112 : f32 to vector<16x16xf32>
    %263 = arith.mulf %261, %262 : vector<16x16xf32>
    %cst_113 = arith.constant dense<0xFF800000> : vector<16xf32>
    %264 = vector.multi_reduction <maximumf>, %263, %cst_113 [1] : vector<16x16xf32> to vector<16xf32>
    %265 = vector.shape_cast %264 : vector<16xf32> to vector<16x1xf32>
    %266 = vector.broadcast %265 : vector<16x1xf32> to vector<16x16xf32>
    %267 = arith.subf %263, %266 : vector<16x16xf32>
    %268 = math.exp %267 : vector<16x16xf32>
    %cst_114 = arith.constant dense<0.000000e+00> : vector<16xf32>
    %269 = vector.multi_reduction <add>, %268, %cst_114 [1] : vector<16x16xf32> to vector<16xf32>
    %270 = vector.shape_cast %269 : vector<16xf32> to vector<16x1xf32>
    %271 = tpu.reciprocal %270 {approx = true} : vector<16x1xf32> -> vector<16x1xf32>
    %272 = vector.broadcast %271 : vector<16x1xf32> to vector<16x16xf32>
    %273 = arith.mulf %268, %272 : vector<16x16xf32>
    %274 = arith.truncf %273 : vector<16x16xf32> to vector<16x16xbf16>
    %275 = arith.truncf %258 : vector<16x8xf32> to vector<16x8xbf16>
    %cst_115 = arith.constant dense<0.000000e+00> : vector<16x8xf32>
    %276 = tpu.matmul %274, %275, %cst_115 {dimension_numbers = #tpu.dot_dimension_numbers<[1], [0], [0], [1], [0, 0, 1, 1], [], []>} : vector<16x16xbf16>, vector<16x8xbf16>, vector<16x8xf32> -> vector<16x8xf32>
    %277 = vector.extract_strided_slice %234 {offsets = [0, 16], sizes = [16, 8], strides = [1, 1]} : vector<16x96xf32> to vector<16x8xf32>
    %278 = vector.extract_strided_slice %234 {offsets = [0, 48], sizes = [16, 8], strides = [1, 1]} : vector<16x96xf32> to vector<16x8xf32>
    %279 = vector.extract_strided_slice %234 {offsets = [0, 80], sizes = [16, 8], strides = [1, 1]} : vector<16x96xf32> to vector<16x8xf32>
    %280 = arith.truncf %277 : vector<16x8xf32> to vector<16x8xbf16>
    %281 = arith.truncf %278 : vector<16x8xf32> to vector<16x8xbf16>
    %cst_116 = arith.constant dense<0.000000e+00> : vector<16x16xf32>
    %282 = tpu.matmul %280, %281, %cst_116 {dimension_numbers = #tpu.dot_dimension_numbers<[1], [1], [0], [0], [0, 0, 1, 0], [], []>} : vector<16x8xbf16>, vector<16x8xbf16>, vector<16x16xf32> -> vector<16x16xf32>
    %cst_117 = arith.constant 0.353553385 : f32
    %283 = vector.broadcast %cst_117 : f32 to vector<16x16xf32>
    %284 = arith.mulf %282, %283 : vector<16x16xf32>
    %cst_118 = arith.constant dense<0xFF800000> : vector<16xf32>
    %285 = vector.multi_reduction <maximumf>, %284, %cst_118 [1] : vector<16x16xf32> to vector<16xf32>
    %286 = vector.shape_cast %285 : vector<16xf32> to vector<16x1xf32>
    %287 = vector.broadcast %286 : vector<16x1xf32> to vector<16x16xf32>
    %288 = arith.subf %284, %287 : vector<16x16xf32>
    %289 = math.exp %288 : vector<16x16xf32>
    %cst_119 = arith.constant dense<0.000000e+00> : vector<16xf32>
    %290 = vector.multi_reduction <add>, %289, %cst_119 [1] : vector<16x16xf32> to vector<16xf32>
    %291 = vector.shape_cast %290 : vector<16xf32> to vector<16x1xf32>
    %292 = tpu.reciprocal %291 {approx = true} : vector<16x1xf32> -> vector<16x1xf32>
    %293 = vector.broadcast %292 : vector<16x1xf32> to vector<16x16xf32>
    %294 = arith.mulf %289, %293 : vector<16x16xf32>
    %295 = arith.truncf %294 : vector<16x16xf32> to vector<16x16xbf16>
    %296 = arith.truncf %279 : vector<16x8xf32> to vector<16x8xbf16>
    %cst_120 = arith.constant dense<0.000000e+00> : vector<16x8xf32>
    %297 = tpu.matmul %295, %296, %cst_120 {dimension_numbers = #tpu.dot_dimension_numbers<[1], [0], [0], [1], [0, 0, 1, 1], [], []>} : vector<16x16xbf16>, vector<16x8xbf16>, vector<16x8xf32> -> vector<16x8xf32>
    %298 = vector.extract_strided_slice %234 {offsets = [0, 24], sizes = [16, 8], strides = [1, 1]} : vector<16x96xf32> to vector<16x8xf32>
    %299 = vector.extract_strided_slice %234 {offsets = [0, 56], sizes = [16, 8], strides = [1, 1]} : vector<16x96xf32> to vector<16x8xf32>
    %300 = vector.extract_strided_slice %234 {offsets = [0, 88], sizes = [16, 8], strides = [1, 1]} : vector<16x96xf32> to vector<16x8xf32>
    %301 = arith.truncf %298 : vector<16x8xf32> to vector<16x8xbf16>
    %302 = arith.truncf %299 : vector<16x8xf32> to vector<16x8xbf16>
    %cst_121 = arith.constant dense<0.000000e+00> : vector<16x16xf32>
    %303 = tpu.matmul %301, %302, %cst_121 {dimension_numbers = #tpu.dot_dimension_numbers<[1], [1], [0], [0], [0, 0, 1, 0], [], []>} : vector<16x8xbf16>, vector<16x8xbf16>, vector<16x16xf32> -> vector<16x16xf32>
    %cst_122 = arith.constant 0.353553385 : f32
    %304 = vector.broadcast %cst_122 : f32 to vector<16x16xf32>
    %305 = arith.mulf %303, %304 : vector<16x16xf32>
    %cst_123 = arith.constant dense<0xFF800000> : vector<16xf32>
    %306 = vector.multi_reduction <maximumf>, %305, %cst_123 [1] : vector<16x16xf32> to vector<16xf32>
    %307 = vector.shape_cast %306 : vector<16xf32> to vector<16x1xf32>
    %308 = vector.broadcast %307 : vector<16x1xf32> to vector<16x16xf32>
    %309 = arith.subf %305, %308 : vector<16x16xf32>
    %310 = math.exp %309 : vector<16x16xf32>
    %cst_124 = arith.constant dense<0.000000e+00> : vector<16xf32>
    %311 = vector.multi_reduction <add>, %310, %cst_124 [1] : vector<16x16xf32> to vector<16xf32>
    %312 = vector.shape_cast %311 : vector<16xf32> to vector<16x1xf32>
    %313 = tpu.reciprocal %312 {approx = true} : vector<16x1xf32> -> vector<16x1xf32>
    %314 = vector.broadcast %313 : vector<16x1xf32> to vector<16x16xf32>
    %315 = arith.mulf %310, %314 : vector<16x16xf32>
    %316 = arith.truncf %315 : vector<16x16xf32> to vector<16x16xbf16>
    %317 = arith.truncf %300 : vector<16x8xf32> to vector<16x8xbf16>
    %cst_125 = arith.constant dense<0.000000e+00> : vector<16x8xf32>
    %318 = tpu.matmul %316, %317, %cst_125 {dimension_numbers = #tpu.dot_dimension_numbers<[1], [0], [0], [1], [0, 0, 1, 1], [], []>} : vector<16x16xbf16>, vector<16x8xbf16>, vector<16x8xf32> -> vector<16x8xf32>
    %319 = tpu.concatenate %255, %276, %297, %318 in 1 : vector<16x8xf32>, vector<16x8xf32>, vector<16x8xf32>, vector<16x8xf32> -> vector<16x32xf32>
    %c1_126 = arith.constant 1 : index
    %c0_127 = arith.constant 0 : index
    %c0_128 = arith.constant 0 : index
    %320 = vector.load %arg9[%c1_126, %c0_127, %c0_128] : memref<4x32x32xbf16, #tpu.memory_space<vmem>>, vector<1x32x32xbf16>
    %321 = vector.shape_cast %320 : vector<1x32x32xbf16> to vector<32x32xbf16>
    %322 = arith.truncf %319 : vector<16x32xf32> to vector<16x32xbf16>
    %cst_129 = arith.constant dense<0.000000e+00> : vector<16x32xf32>
    %323 = tpu.matmul %322, %321, %cst_129 {dimension_numbers = #tpu.dot_dimension_numbers<[1], [0], [0], [1], [0, 0, 1, 1], [], []>} : vector<16x32xbf16>, vector<32x32xbf16>, vector<16x32xf32> -> vector<16x32xf32>
    %324 = arith.addf %200, %323 : vector<16x32xf32>
    %c1_130 = arith.constant 1 : index
    %c0_131 = arith.constant 0 : index
    %c0_132 = arith.constant 0 : index
    %325 = vector.load %arg10[%c1_130, %c0_131, %c0_132] : memref<4x1x32xf32, #tpu.memory_space<vmem>>, vector<1x1x32xf32>
    %326 = vector.shape_cast %325 : vector<1x1x32xf32> to vector<1x32xf32>
    %327 = vector.broadcast %326 : vector<1x32xf32> to vector<16x32xf32>
    %328 = arith.addf %324, %327 : vector<16x32xf32>
    %c1_133 = arith.constant 1 : index
    %c2_134 = arith.constant 2 : index
    %c0_135 = arith.constant 0 : index
    %c0_136 = arith.constant 0 : index
    %329 = vector.load %arg6[%c1_133, %c2_134, %c0_135, %c0_136] : memref<4x4x1x32xf32, #tpu.memory_space<vmem>>, vector<1x1x1x32xf32>
    %330 = vector.shape_cast %329 : vector<1x1x1x32xf32> to vector<1x32xf32>
    %c1_137 = arith.constant 1 : index
    %c3_138 = arith.constant 3 : index
    %c0_139 = arith.constant 0 : index
    %c0_140 = arith.constant 0 : index
    %331 = vector.load %arg6[%c1_137, %c3_138, %c0_139, %c0_140] : memref<4x4x1x32xf32, #tpu.memory_space<vmem>>, vector<1x1x1x32xf32>
    %332 = vector.shape_cast %331 : vector<1x1x1x32xf32> to vector<1x32xf32>
    %cst_141 = arith.constant dense<0.000000e+00> : vector<16xf32>
    %333 = vector.multi_reduction <add>, %328, %cst_141 [1] : vector<16x32xf32> to vector<16xf32>
    %334 = vector.shape_cast %333 : vector<16xf32> to vector<16x1xf32>
    %cst_142 = arith.constant 3.200000e+01 : f32
    %335 = vector.broadcast %cst_142 : f32 to vector<16x1xf32>
    %336 = arith.divf %334, %335 : vector<16x1xf32>
    %337 = vector.broadcast %336 : vector<16x1xf32> to vector<16x32xf32>
    %338 = arith.subf %328, %337 : vector<16x32xf32>
    %339 = arith.mulf %338, %338 : vector<16x32xf32>
    %cst_143 = arith.constant dense<0.000000e+00> : vector<16xf32>
    %340 = vector.multi_reduction <add>, %339, %cst_143 [1] : vector<16x32xf32> to vector<16xf32>
    %341 = vector.shape_cast %340 : vector<16xf32> to vector<16x1xf32>
    %cst_144 = arith.constant 3.200000e+01 : f32
    %342 = vector.broadcast %cst_144 : f32 to vector<16x1xf32>
    %343 = arith.divf %341, %342 : vector<16x1xf32>
    %344 = vector.broadcast %336 : vector<16x1xf32> to vector<16x32xf32>
    %345 = arith.subf %328, %344 : vector<16x32xf32>
    %cst_145 = arith.constant 9.99999974E-6 : f32
    %346 = vector.broadcast %cst_145 : f32 to vector<16x1xf32>
    %347 = arith.addf %343, %346 : vector<16x1xf32>
    %348 = math.rsqrt %347 : vector<16x1xf32>
    %349 = vector.broadcast %348 : vector<16x1xf32> to vector<16x32xf32>
    %350 = arith.mulf %345, %349 : vector<16x32xf32>
    %351 = vector.broadcast %330 : vector<1x32xf32> to vector<16x32xf32>
    %352 = arith.mulf %350, %351 : vector<16x32xf32>
    %353 = vector.broadcast %332 : vector<1x32xf32> to vector<16x32xf32>
    %354 = arith.addf %352, %353 : vector<16x32xf32>
    %c1_146 = arith.constant 1 : index
    %c0_147 = arith.constant 0 : index
    %c0_148 = arith.constant 0 : index
    %355 = vector.load %arg11[%c1_146, %c0_147, %c0_148] : memref<4x32x64xbf16, #tpu.memory_space<vmem>>, vector<1x32x64xbf16>
    %356 = vector.shape_cast %355 : vector<1x32x64xbf16> to vector<32x64xbf16>
    %357 = arith.truncf %354 : vector<16x32xf32> to vector<16x32xbf16>
    %cst_149 = arith.constant dense<0.000000e+00> : vector<16x64xf32>
    %358 = tpu.matmul %357, %356, %cst_149 {dimension_numbers = #tpu.dot_dimension_numbers<[1], [0], [0], [1], [0, 0, 1, 1], [], []>} : vector<16x32xbf16>, vector<32x64xbf16>, vector<16x64xf32> -> vector<16x64xf32>
    %c1_150 = arith.constant 1 : index
    %c0_151 = arith.constant 0 : index
    %c0_152 = arith.constant 0 : index
    %359 = vector.load %arg12[%c1_150, %c0_151, %c0_152] : memref<4x1x64xf32, #tpu.memory_space<vmem>>, vector<1x1x64xf32>
    %360 = vector.shape_cast %359 : vector<1x1x64xf32> to vector<1x64xf32>
    %361 = vector.broadcast %360 : vector<1x64xf32> to vector<16x64xf32>
    %362 = arith.addf %358, %361 : vector<16x64xf32>
    %cst_153 = arith.constant 5.000000e-01 : f32
    %363 = vector.broadcast %cst_153 : f32 to vector<16x64xf32>
    %364 = arith.mulf %363, %362 : vector<16x64xf32>
    %cst_154 = arith.constant 4.471500e-02 : f32
    %365 = vector.broadcast %cst_154 : f32 to vector<16x64xf32>
    %366 = arith.mulf %365, %362 : vector<16x64xf32>
    %367 = arith.mulf %366, %362 : vector<16x64xf32>
    %368 = arith.mulf %367, %362 : vector<16x64xf32>
    %369 = arith.addf %362, %368 : vector<16x64xf32>
    %cst_155 = arith.constant 0.797884583 : f32
    %370 = vector.broadcast %cst_155 : f32 to vector<16x64xf32>
    %371 = arith.mulf %370, %369 : vector<16x64xf32>
    %372 = math.tanh %371 : vector<16x64xf32>
    %cst_156 = arith.constant 1.000000e+00 : f32
    %373 = vector.broadcast %cst_156 : f32 to vector<16x64xf32>
    %374 = arith.addf %373, %372 : vector<16x64xf32>
    %375 = arith.mulf %364, %374 : vector<16x64xf32>
    %c1_157 = arith.constant 1 : index
    %c0_158 = arith.constant 0 : index
    %c0_159 = arith.constant 0 : index
    %376 = vector.load %arg13[%c1_157, %c0_158, %c0_159] : memref<4x64x32xbf16, #tpu.memory_space<vmem>>, vector<1x64x32xbf16>
    %377 = vector.shape_cast %376 : vector<1x64x32xbf16> to vector<64x32xbf16>
    %378 = arith.truncf %375 : vector<16x64xf32> to vector<16x64xbf16>
    %cst_160 = arith.constant dense<0.000000e+00> : vector<16x32xf32>
    %379 = tpu.matmul %378, %377, %cst_160 {dimension_numbers = #tpu.dot_dimension_numbers<[1], [0], [0], [1], [0, 0, 1, 1], [], []>} : vector<16x64xbf16>, vector<64x32xbf16>, vector<16x32xf32> -> vector<16x32xf32>
    %380 = arith.addf %328, %379 : vector<16x32xf32>
    %c1_161 = arith.constant 1 : index
    %c0_162 = arith.constant 0 : index
    %c0_163 = arith.constant 0 : index
    %381 = vector.load %arg14[%c1_161, %c0_162, %c0_163] : memref<4x1x32xf32, #tpu.memory_space<vmem>>, vector<1x1x32xf32>
    %382 = vector.shape_cast %381 : vector<1x1x32xf32> to vector<1x32xf32>
    %383 = vector.broadcast %382 : vector<1x32xf32> to vector<16x32xf32>
    %384 = arith.addf %380, %383 : vector<16x32xf32>
    %c2_164 = arith.constant 2 : index
    %c0_165 = arith.constant 0 : index
    %c0_166 = arith.constant 0 : index
    %c0_167 = arith.constant 0 : index
    %385 = vector.load %arg6[%c2_164, %c0_165, %c0_166, %c0_167] : memref<4x4x1x32xf32, #tpu.memory_space<vmem>>, vector<1x1x1x32xf32>
    %386 = vector.shape_cast %385 : vector<1x1x1x32xf32> to vector<1x32xf32>
    %c2_168 = arith.constant 2 : index
    %c1_169 = arith.constant 1 : index
    %c0_170 = arith.constant 0 : index
    %c0_171 = arith.constant 0 : index
    %387 = vector.load %arg6[%c2_168, %c1_169, %c0_170, %c0_171] : memref<4x4x1x32xf32, #tpu.memory_space<vmem>>, vector<1x1x1x32xf32>
    %388 = vector.shape_cast %387 : vector<1x1x1x32xf32> to vector<1x32xf32>
    %cst_172 = arith.constant dense<0.000000e+00> : vector<16xf32>
    %389 = vector.multi_reduction <add>, %384, %cst_172 [1] : vector<16x32xf32> to vector<16xf32>
    %390 = vector.shape_cast %389 : vector<16xf32> to vector<16x1xf32>
    %cst_173 = arith.constant 3.200000e+01 : f32
    %391 = vector.broadcast %cst_173 : f32 to vector<16x1xf32>
    %392 = arith.divf %390, %391 : vector<16x1xf32>
    %393 = vector.broadcast %392 : vector<16x1xf32> to vector<16x32xf32>
    %394 = arith.subf %384, %393 : vector<16x32xf32>
    %395 = arith.mulf %394, %394 : vector<16x32xf32>
    %cst_174 = arith.constant dense<0.000000e+00> : vector<16xf32>
    %396 = vector.multi_reduction <add>, %395, %cst_174 [1] : vector<16x32xf32> to vector<16xf32>
    %397 = vector.shape_cast %396 : vector<16xf32> to vector<16x1xf32>
    %cst_175 = arith.constant 3.200000e+01 : f32
    %398 = vector.broadcast %cst_175 : f32 to vector<16x1xf32>
    %399 = arith.divf %397, %398 : vector<16x1xf32>
    %400 = vector.broadcast %392 : vector<16x1xf32> to vector<16x32xf32>
    %401 = arith.subf %384, %400 : vector<16x32xf32>
    %cst_176 = arith.constant 9.99999974E-6 : f32
    %402 = vector.broadcast %cst_176 : f32 to vector<16x1xf32>
    %403 = arith.addf %399, %402 : vector<16x1xf32>
    %404 = math.rsqrt %403 : vector<16x1xf32>
    %405 = vector.broadcast %404 : vector<16x1xf32> to vector<16x32xf32>
    %406 = arith.mulf %401, %405 : vector<16x32xf32>
    %407 = vector.broadcast %386 : vector<1x32xf32> to vector<16x32xf32>
    %408 = arith.mulf %406, %407 : vector<16x32xf32>
    %409 = vector.broadcast %388 : vector<1x32xf32> to vector<16x32xf32>
    %410 = arith.addf %408, %409 : vector<16x32xf32>
    %c2_177 = arith.constant 2 : index
    %c0_178 = arith.constant 0 : index
    %c0_179 = arith.constant 0 : index
    %411 = vector.load %arg7[%c2_177, %c0_178, %c0_179] : memref<4x32x96xbf16, #tpu.memory_space<vmem>>, vector<1x32x96xbf16>
    %412 = vector.shape_cast %411 : vector<1x32x96xbf16> to vector<32x96xbf16>
    %413 = arith.truncf %410 : vector<16x32xf32> to vector<16x32xbf16>
    %cst_180 = arith.constant dense<0.000000e+00> : vector<16x96xf32>
    %414 = tpu.matmul %413, %412, %cst_180 {dimension_numbers = #tpu.dot_dimension_numbers<[1], [0], [0], [1], [0, 0, 1, 1], [], []>} : vector<16x32xbf16>, vector<32x96xbf16>, vector<16x96xf32> -> vector<16x96xf32>
    %c2_181 = arith.constant 2 : index
    %c0_182 = arith.constant 0 : index
    %c0_183 = arith.constant 0 : index
    %415 = vector.load %arg8[%c2_181, %c0_182, %c0_183] : memref<4x1x96xf32, #tpu.memory_space<vmem>>, vector<1x1x96xf32>
    %416 = vector.shape_cast %415 : vector<1x1x96xf32> to vector<1x96xf32>
    %417 = vector.broadcast %416 : vector<1x96xf32> to vector<16x96xf32>
    %418 = arith.addf %414, %417 : vector<16x96xf32>
    %419 = vector.extract_strided_slice %418 {offsets = [0, 0], sizes = [16, 8], strides = [1, 1]} : vector<16x96xf32> to vector<16x8xf32>
    %420 = vector.extract_strided_slice %418 {offsets = [0, 32], sizes = [16, 8], strides = [1, 1]} : vector<16x96xf32> to vector<16x8xf32>
    %421 = vector.extract_strided_slice %418 {offsets = [0, 64], sizes = [16, 8], strides = [1, 1]} : vector<16x96xf32> to vector<16x8xf32>
    %422 = arith.truncf %419 : vector<16x8xf32> to vector<16x8xbf16>
    %423 = arith.truncf %420 : vector<16x8xf32> to vector<16x8xbf16>
    %cst_184 = arith.constant dense<0.000000e+00> : vector<16x16xf32>
    %424 = tpu.matmul %422, %423, %cst_184 {dimension_numbers = #tpu.dot_dimension_numbers<[1], [1], [0], [0], [0, 0, 1, 0], [], []>} : vector<16x8xbf16>, vector<16x8xbf16>, vector<16x16xf32> -> vector<16x16xf32>
    %cst_185 = arith.constant 0.353553385 : f32
    %425 = vector.broadcast %cst_185 : f32 to vector<16x16xf32>
    %426 = arith.mulf %424, %425 : vector<16x16xf32>
    %cst_186 = arith.constant dense<0xFF800000> : vector<16xf32>
    %427 = vector.multi_reduction <maximumf>, %426, %cst_186 [1] : vector<16x16xf32> to vector<16xf32>
    %428 = vector.shape_cast %427 : vector<16xf32> to vector<16x1xf32>
    %429 = vector.broadcast %428 : vector<16x1xf32> to vector<16x16xf32>
    %430 = arith.subf %426, %429 : vector<16x16xf32>
    %431 = math.exp %430 : vector<16x16xf32>
    %cst_187 = arith.constant dense<0.000000e+00> : vector<16xf32>
    %432 = vector.multi_reduction <add>, %431, %cst_187 [1] : vector<16x16xf32> to vector<16xf32>
    %433 = vector.shape_cast %432 : vector<16xf32> to vector<16x1xf32>
    %434 = tpu.reciprocal %433 {approx = true} : vector<16x1xf32> -> vector<16x1xf32>
    %435 = vector.broadcast %434 : vector<16x1xf32> to vector<16x16xf32>
    %436 = arith.mulf %431, %435 : vector<16x16xf32>
    %437 = arith.truncf %436 : vector<16x16xf32> to vector<16x16xbf16>
    %438 = arith.truncf %421 : vector<16x8xf32> to vector<16x8xbf16>
    %cst_188 = arith.constant dense<0.000000e+00> : vector<16x8xf32>
    %439 = tpu.matmul %437, %438, %cst_188 {dimension_numbers = #tpu.dot_dimension_numbers<[1], [0], [0], [1], [0, 0, 1, 1], [], []>} : vector<16x16xbf16>, vector<16x8xbf16>, vector<16x8xf32> -> vector<16x8xf32>
    %440 = vector.extract_strided_slice %418 {offsets = [0, 8], sizes = [16, 8], strides = [1, 1]} : vector<16x96xf32> to vector<16x8xf32>
    %441 = vector.extract_strided_slice %418 {offsets = [0, 40], sizes = [16, 8], strides = [1, 1]} : vector<16x96xf32> to vector<16x8xf32>
    %442 = vector.extract_strided_slice %418 {offsets = [0, 72], sizes = [16, 8], strides = [1, 1]} : vector<16x96xf32> to vector<16x8xf32>
    %443 = arith.truncf %440 : vector<16x8xf32> to vector<16x8xbf16>
    %444 = arith.truncf %441 : vector<16x8xf32> to vector<16x8xbf16>
    %cst_189 = arith.constant dense<0.000000e+00> : vector<16x16xf32>
    %445 = tpu.matmul %443, %444, %cst_189 {dimension_numbers = #tpu.dot_dimension_numbers<[1], [1], [0], [0], [0, 0, 1, 0], [], []>} : vector<16x8xbf16>, vector<16x8xbf16>, vector<16x16xf32> -> vector<16x16xf32>
    %cst_190 = arith.constant 0.353553385 : f32
    %446 = vector.broadcast %cst_190 : f32 to vector<16x16xf32>
    %447 = arith.mulf %445, %446 : vector<16x16xf32>
    %cst_191 = arith.constant dense<0xFF800000> : vector<16xf32>
    %448 = vector.multi_reduction <maximumf>, %447, %cst_191 [1] : vector<16x16xf32> to vector<16xf32>
    %449 = vector.shape_cast %448 : vector<16xf32> to vector<16x1xf32>
    %450 = vector.broadcast %449 : vector<16x1xf32> to vector<16x16xf32>
    %451 = arith.subf %447, %450 : vector<16x16xf32>
    %452 = math.exp %451 : vector<16x16xf32>
    %cst_192 = arith.constant dense<0.000000e+00> : vector<16xf32>
    %453 = vector.multi_reduction <add>, %452, %cst_192 [1] : vector<16x16xf32> to vector<16xf32>
    %454 = vector.shape_cast %453 : vector<16xf32> to vector<16x1xf32>
    %455 = tpu.reciprocal %454 {approx = true} : vector<16x1xf32> -> vector<16x1xf32>
    %456 = vector.broadcast %455 : vector<16x1xf32> to vector<16x16xf32>
    %457 = arith.mulf %452, %456 : vector<16x16xf32>
    %458 = arith.truncf %457 : vector<16x16xf32> to vector<16x16xbf16>
    %459 = arith.truncf %442 : vector<16x8xf32> to vector<16x8xbf16>
    %cst_193 = arith.constant dense<0.000000e+00> : vector<16x8xf32>
    %460 = tpu.matmul %458, %459, %cst_193 {dimension_numbers = #tpu.dot_dimension_numbers<[1], [0], [0], [1], [0, 0, 1, 1], [], []>} : vector<16x16xbf16>, vector<16x8xbf16>, vector<16x8xf32> -> vector<16x8xf32>
    %461 = vector.extract_strided_slice %418 {offsets = [0, 16], sizes = [16, 8], strides = [1, 1]} : vector<16x96xf32> to vector<16x8xf32>
    %462 = vector.extract_strided_slice %418 {offsets = [0, 48], sizes = [16, 8], strides = [1, 1]} : vector<16x96xf32> to vector<16x8xf32>
    %463 = vector.extract_strided_slice %418 {offsets = [0, 80], sizes = [16, 8], strides = [1, 1]} : vector<16x96xf32> to vector<16x8xf32>
    %464 = arith.truncf %461 : vector<16x8xf32> to vector<16x8xbf16>
    %465 = arith.truncf %462 : vector<16x8xf32> to vector<16x8xbf16>
    %cst_194 = arith.constant dense<0.000000e+00> : vector<16x16xf32>
    %466 = tpu.matmul %464, %465, %cst_194 {dimension_numbers = #tpu.dot_dimension_numbers<[1], [1], [0], [0], [0, 0, 1, 0], [], []>} : vector<16x8xbf16>, vector<16x8xbf16>, vector<16x16xf32> -> vector<16x16xf32>
    %cst_195 = arith.constant 0.353553385 : f32
    %467 = vector.broadcast %cst_195 : f32 to vector<16x16xf32>
    %468 = arith.mulf %466, %467 : vector<16x16xf32>
    %cst_196 = arith.constant dense<0xFF800000> : vector<16xf32>
    %469 = vector.multi_reduction <maximumf>, %468, %cst_196 [1] : vector<16x16xf32> to vector<16xf32>
    %470 = vector.shape_cast %469 : vector<16xf32> to vector<16x1xf32>
    %471 = vector.broadcast %470 : vector<16x1xf32> to vector<16x16xf32>
    %472 = arith.subf %468, %471 : vector<16x16xf32>
    %473 = math.exp %472 : vector<16x16xf32>
    %cst_197 = arith.constant dense<0.000000e+00> : vector<16xf32>
    %474 = vector.multi_reduction <add>, %473, %cst_197 [1] : vector<16x16xf32> to vector<16xf32>
    %475 = vector.shape_cast %474 : vector<16xf32> to vector<16x1xf32>
    %476 = tpu.reciprocal %475 {approx = true} : vector<16x1xf32> -> vector<16x1xf32>
    %477 = vector.broadcast %476 : vector<16x1xf32> to vector<16x16xf32>
    %478 = arith.mulf %473, %477 : vector<16x16xf32>
    %479 = arith.truncf %478 : vector<16x16xf32> to vector<16x16xbf16>
    %480 = arith.truncf %463 : vector<16x8xf32> to vector<16x8xbf16>
    %cst_198 = arith.constant dense<0.000000e+00> : vector<16x8xf32>
    %481 = tpu.matmul %479, %480, %cst_198 {dimension_numbers = #tpu.dot_dimension_numbers<[1], [0], [0], [1], [0, 0, 1, 1], [], []>} : vector<16x16xbf16>, vector<16x8xbf16>, vector<16x8xf32> -> vector<16x8xf32>
    %482 = vector.extract_strided_slice %418 {offsets = [0, 24], sizes = [16, 8], strides = [1, 1]} : vector<16x96xf32> to vector<16x8xf32>
    %483 = vector.extract_strided_slice %418 {offsets = [0, 56], sizes = [16, 8], strides = [1, 1]} : vector<16x96xf32> to vector<16x8xf32>
    %484 = vector.extract_strided_slice %418 {offsets = [0, 88], sizes = [16, 8], strides = [1, 1]} : vector<16x96xf32> to vector<16x8xf32>
    %485 = arith.truncf %482 : vector<16x8xf32> to vector<16x8xbf16>
    %486 = arith.truncf %483 : vector<16x8xf32> to vector<16x8xbf16>
    %cst_199 = arith.constant dense<0.000000e+00> : vector<16x16xf32>
    %487 = tpu.matmul %485, %486, %cst_199 {dimension_numbers = #tpu.dot_dimension_numbers<[1], [1], [0], [0], [0, 0, 1, 0], [], []>} : vector<16x8xbf16>, vector<16x8xbf16>, vector<16x16xf32> -> vector<16x16xf32>
    %cst_200 = arith.constant 0.353553385 : f32
    %488 = vector.broadcast %cst_200 : f32 to vector<16x16xf32>
    %489 = arith.mulf %487, %488 : vector<16x16xf32>
    %cst_201 = arith.constant dense<0xFF800000> : vector<16xf32>
    %490 = vector.multi_reduction <maximumf>, %489, %cst_201 [1] : vector<16x16xf32> to vector<16xf32>
    %491 = vector.shape_cast %490 : vector<16xf32> to vector<16x1xf32>
    %492 = vector.broadcast %491 : vector<16x1xf32> to vector<16x16xf32>
    %493 = arith.subf %489, %492 : vector<16x16xf32>
    %494 = math.exp %493 : vector<16x16xf32>
    %cst_202 = arith.constant dense<0.000000e+00> : vector<16xf32>
    %495 = vector.multi_reduction <add>, %494, %cst_202 [1] : vector<16x16xf32> to vector<16xf32>
    %496 = vector.shape_cast %495 : vector<16xf32> to vector<16x1xf32>
    %497 = tpu.reciprocal %496 {approx = true} : vector<16x1xf32> -> vector<16x1xf32>
    %498 = vector.broadcast %497 : vector<16x1xf32> to vector<16x16xf32>
    %499 = arith.mulf %494, %498 : vector<16x16xf32>
    %500 = arith.truncf %499 : vector<16x16xf32> to vector<16x16xbf16>
    %501 = arith.truncf %484 : vector<16x8xf32> to vector<16x8xbf16>
    %cst_203 = arith.constant dense<0.000000e+00> : vector<16x8xf32>
    %502 = tpu.matmul %500, %501, %cst_203 {dimension_numbers = #tpu.dot_dimension_numbers<[1], [0], [0], [1], [0, 0, 1, 1], [], []>} : vector<16x16xbf16>, vector<16x8xbf16>, vector<16x8xf32> -> vector<16x8xf32>
    %503 = tpu.concatenate %439, %460, %481, %502 in 1 : vector<16x8xf32>, vector<16x8xf32>, vector<16x8xf32>, vector<16x8xf32> -> vector<16x32xf32>
    %c2_204 = arith.constant 2 : index
    %c0_205 = arith.constant 0 : index
    %c0_206 = arith.constant 0 : index
    %504 = vector.load %arg9[%c2_204, %c0_205, %c0_206] : memref<4x32x32xbf16, #tpu.memory_space<vmem>>, vector<1x32x32xbf16>
    %505 = vector.shape_cast %504 : vector<1x32x32xbf16> to vector<32x32xbf16>
    %506 = arith.truncf %503 : vector<16x32xf32> to vector<16x32xbf16>
    %cst_207 = arith.constant dense<0.000000e+00> : vector<16x32xf32>
    %507 = tpu.matmul %506, %505, %cst_207 {dimension_numbers = #tpu.dot_dimension_numbers<[1], [0], [0], [1], [0, 0, 1, 1], [], []>} : vector<16x32xbf16>, vector<32x32xbf16>, vector<16x32xf32> -> vector<16x32xf32>
    %508 = arith.addf %384, %507 : vector<16x32xf32>
    %c2_208 = arith.constant 2 : index
    %c0_209 = arith.constant 0 : index
    %c0_210 = arith.constant 0 : index
    %509 = vector.load %arg10[%c2_208, %c0_209, %c0_210] : memref<4x1x32xf32, #tpu.memory_space<vmem>>, vector<1x1x32xf32>
    %510 = vector.shape_cast %509 : vector<1x1x32xf32> to vector<1x32xf32>
    %511 = vector.broadcast %510 : vector<1x32xf32> to vector<16x32xf32>
    %512 = arith.addf %508, %511 : vector<16x32xf32>
    %c2_211 = arith.constant 2 : index
    %c2_212 = arith.constant 2 : index
    %c0_213 = arith.constant 0 : index
    %c0_214 = arith.constant 0 : index
    %513 = vector.load %arg6[%c2_211, %c2_212, %c0_213, %c0_214] : memref<4x4x1x32xf32, #tpu.memory_space<vmem>>, vector<1x1x1x32xf32>
    %514 = vector.shape_cast %513 : vector<1x1x1x32xf32> to vector<1x32xf32>
    %c2_215 = arith.constant 2 : index
    %c3_216 = arith.constant 3 : index
    %c0_217 = arith.constant 0 : index
    %c0_218 = arith.constant 0 : index
    %515 = vector.load %arg6[%c2_215, %c3_216, %c0_217, %c0_218] : memref<4x4x1x32xf32, #tpu.memory_space<vmem>>, vector<1x1x1x32xf32>
    %516 = vector.shape_cast %515 : vector<1x1x1x32xf32> to vector<1x32xf32>
    %cst_219 = arith.constant dense<0.000000e+00> : vector<16xf32>
    %517 = vector.multi_reduction <add>, %512, %cst_219 [1] : vector<16x32xf32> to vector<16xf32>
    %518 = vector.shape_cast %517 : vector<16xf32> to vector<16x1xf32>
    %cst_220 = arith.constant 3.200000e+01 : f32
    %519 = vector.broadcast %cst_220 : f32 to vector<16x1xf32>
    %520 = arith.divf %518, %519 : vector<16x1xf32>
    %521 = vector.broadcast %520 : vector<16x1xf32> to vector<16x32xf32>
    %522 = arith.subf %512, %521 : vector<16x32xf32>
    %523 = arith.mulf %522, %522 : vector<16x32xf32>
    %cst_221 = arith.constant dense<0.000000e+00> : vector<16xf32>
    %524 = vector.multi_reduction <add>, %523, %cst_221 [1] : vector<16x32xf32> to vector<16xf32>
    %525 = vector.shape_cast %524 : vector<16xf32> to vector<16x1xf32>
    %cst_222 = arith.constant 3.200000e+01 : f32
    %526 = vector.broadcast %cst_222 : f32 to vector<16x1xf32>
    %527 = arith.divf %525, %526 : vector<16x1xf32>
    %528 = vector.broadcast %520 : vector<16x1xf32> to vector<16x32xf32>
    %529 = arith.subf %512, %528 : vector<16x32xf32>
    %cst_223 = arith.constant 9.99999974E-6 : f32
    %530 = vector.broadcast %cst_223 : f32 to vector<16x1xf32>
    %531 = arith.addf %527, %530 : vector<16x1xf32>
    %532 = math.rsqrt %531 : vector<16x1xf32>
    %533 = vector.broadcast %532 : vector<16x1xf32> to vector<16x32xf32>
    %534 = arith.mulf %529, %533 : vector<16x32xf32>
    %535 = vector.broadcast %514 : vector<1x32xf32> to vector<16x32xf32>
    %536 = arith.mulf %534, %535 : vector<16x32xf32>
    %537 = vector.broadcast %516 : vector<1x32xf32> to vector<16x32xf32>
    %538 = arith.addf %536, %537 : vector<16x32xf32>
    %c2_224 = arith.constant 2 : index
    %c0_225 = arith.constant 0 : index
    %c0_226 = arith.constant 0 : index
    %539 = vector.load %arg11[%c2_224, %c0_225, %c0_226] : memref<4x32x64xbf16, #tpu.memory_space<vmem>>, vector<1x32x64xbf16>
    %540 = vector.shape_cast %539 : vector<1x32x64xbf16> to vector<32x64xbf16>
    %541 = arith.truncf %538 : vector<16x32xf32> to vector<16x32xbf16>
    %cst_227 = arith.constant dense<0.000000e+00> : vector<16x64xf32>
    %542 = tpu.matmul %541, %540, %cst_227 {dimension_numbers = #tpu.dot_dimension_numbers<[1], [0], [0], [1], [0, 0, 1, 1], [], []>} : vector<16x32xbf16>, vector<32x64xbf16>, vector<16x64xf32> -> vector<16x64xf32>
    %c2_228 = arith.constant 2 : index
    %c0_229 = arith.constant 0 : index
    %c0_230 = arith.constant 0 : index
    %543 = vector.load %arg12[%c2_228, %c0_229, %c0_230] : memref<4x1x64xf32, #tpu.memory_space<vmem>>, vector<1x1x64xf32>
    %544 = vector.shape_cast %543 : vector<1x1x64xf32> to vector<1x64xf32>
    %545 = vector.broadcast %544 : vector<1x64xf32> to vector<16x64xf32>
    %546 = arith.addf %542, %545 : vector<16x64xf32>
    %cst_231 = arith.constant 5.000000e-01 : f32
    %547 = vector.broadcast %cst_231 : f32 to vector<16x64xf32>
    %548 = arith.mulf %547, %546 : vector<16x64xf32>
    %cst_232 = arith.constant 4.471500e-02 : f32
    %549 = vector.broadcast %cst_232 : f32 to vector<16x64xf32>
    %550 = arith.mulf %549, %546 : vector<16x64xf32>
    %551 = arith.mulf %550, %546 : vector<16x64xf32>
    %552 = arith.mulf %551, %546 : vector<16x64xf32>
    %553 = arith.addf %546, %552 : vector<16x64xf32>
    %cst_233 = arith.constant 0.797884583 : f32
    %554 = vector.broadcast %cst_233 : f32 to vector<16x64xf32>
    %555 = arith.mulf %554, %553 : vector<16x64xf32>
    %556 = math.tanh %555 : vector<16x64xf32>
    %cst_234 = arith.constant 1.000000e+00 : f32
    %557 = vector.broadcast %cst_234 : f32 to vector<16x64xf32>
    %558 = arith.addf %557, %556 : vector<16x64xf32>
    %559 = arith.mulf %548, %558 : vector<16x64xf32>
    %c2_235 = arith.constant 2 : index
    %c0_236 = arith.constant 0 : index
    %c0_237 = arith.constant 0 : index
    %560 = vector.load %arg13[%c2_235, %c0_236, %c0_237] : memref<4x64x32xbf16, #tpu.memory_space<vmem>>, vector<1x64x32xbf16>
    %561 = vector.shape_cast %560 : vector<1x64x32xbf16> to vector<64x32xbf16>
    %562 = arith.truncf %559 : vector<16x64xf32> to vector<16x64xbf16>
    %cst_238 = arith.constant dense<0.000000e+00> : vector<16x32xf32>
    %563 = tpu.matmul %562, %561, %cst_238 {dimension_numbers = #tpu.dot_dimension_numbers<[1], [0], [0], [1], [0, 0, 1, 1], [], []>} : vector<16x64xbf16>, vector<64x32xbf16>, vector<16x32xf32> -> vector<16x32xf32>
    %564 = arith.addf %512, %563 : vector<16x32xf32>
    %c2_239 = arith.constant 2 : index
    %c0_240 = arith.constant 0 : index
    %c0_241 = arith.constant 0 : index
    %565 = vector.load %arg14[%c2_239, %c0_240, %c0_241] : memref<4x1x32xf32, #tpu.memory_space<vmem>>, vector<1x1x32xf32>
    %566 = vector.shape_cast %565 : vector<1x1x32xf32> to vector<1x32xf32>
    %567 = vector.broadcast %566 : vector<1x32xf32> to vector<16x32xf32>
    %568 = arith.addf %564, %567 : vector<16x32xf32>
    %c3_242 = arith.constant 3 : index
    %c0_243 = arith.constant 0 : index
    %c0_244 = arith.constant 0 : index
    %c0_245 = arith.constant 0 : index
    %569 = vector.load %arg6[%c3_242, %c0_243, %c0_244, %c0_245] : memref<4x4x1x32xf32, #tpu.memory_space<vmem>>, vector<1x1x1x32xf32>
    %570 = vector.shape_cast %569 : vector<1x1x1x32xf32> to vector<1x32xf32>
    %c3_246 = arith.constant 3 : index
    %c1_247 = arith.constant 1 : index
    %c0_248 = arith.constant 0 : index
    %c0_249 = arith.constant 0 : index
    %571 = vector.load %arg6[%c3_246, %c1_247, %c0_248, %c0_249] : memref<4x4x1x32xf32, #tpu.memory_space<vmem>>, vector<1x1x1x32xf32>
    %572 = vector.shape_cast %571 : vector<1x1x1x32xf32> to vector<1x32xf32>
    %cst_250 = arith.constant dense<0.000000e+00> : vector<16xf32>
    %573 = vector.multi_reduction <add>, %568, %cst_250 [1] : vector<16x32xf32> to vector<16xf32>
    %574 = vector.shape_cast %573 : vector<16xf32> to vector<16x1xf32>
    %cst_251 = arith.constant 3.200000e+01 : f32
    %575 = vector.broadcast %cst_251 : f32 to vector<16x1xf32>
    %576 = arith.divf %574, %575 : vector<16x1xf32>
    %577 = vector.broadcast %576 : vector<16x1xf32> to vector<16x32xf32>
    %578 = arith.subf %568, %577 : vector<16x32xf32>
    %579 = arith.mulf %578, %578 : vector<16x32xf32>
    %cst_252 = arith.constant dense<0.000000e+00> : vector<16xf32>
    %580 = vector.multi_reduction <add>, %579, %cst_252 [1] : vector<16x32xf32> to vector<16xf32>
    %581 = vector.shape_cast %580 : vector<16xf32> to vector<16x1xf32>
    %cst_253 = arith.constant 3.200000e+01 : f32
    %582 = vector.broadcast %cst_253 : f32 to vector<16x1xf32>
    %583 = arith.divf %581, %582 : vector<16x1xf32>
    %584 = vector.broadcast %576 : vector<16x1xf32> to vector<16x32xf32>
    %585 = arith.subf %568, %584 : vector<16x32xf32>
    %cst_254 = arith.constant 9.99999974E-6 : f32
    %586 = vector.broadcast %cst_254 : f32 to vector<16x1xf32>
    %587 = arith.addf %583, %586 : vector<16x1xf32>
    %588 = math.rsqrt %587 : vector<16x1xf32>
    %589 = vector.broadcast %588 : vector<16x1xf32> to vector<16x32xf32>
    %590 = arith.mulf %585, %589 : vector<16x32xf32>
    %591 = vector.broadcast %570 : vector<1x32xf32> to vector<16x32xf32>
    %592 = arith.mulf %590, %591 : vector<16x32xf32>
    %593 = vector.broadcast %572 : vector<1x32xf32> to vector<16x32xf32>
    %594 = arith.addf %592, %593 : vector<16x32xf32>
    %c3_255 = arith.constant 3 : index
    %c0_256 = arith.constant 0 : index
    %c0_257 = arith.constant 0 : index
    %595 = vector.load %arg7[%c3_255, %c0_256, %c0_257] : memref<4x32x96xbf16, #tpu.memory_space<vmem>>, vector<1x32x96xbf16>
    %596 = vector.shape_cast %595 : vector<1x32x96xbf16> to vector<32x96xbf16>
    %597 = arith.truncf %594 : vector<16x32xf32> to vector<16x32xbf16>
    %cst_258 = arith.constant dense<0.000000e+00> : vector<16x96xf32>
    %598 = tpu.matmul %597, %596, %cst_258 {dimension_numbers = #tpu.dot_dimension_numbers<[1], [0], [0], [1], [0, 0, 1, 1], [], []>} : vector<16x32xbf16>, vector<32x96xbf16>, vector<16x96xf32> -> vector<16x96xf32>
    %c3_259 = arith.constant 3 : index
    %c0_260 = arith.constant 0 : index
    %c0_261 = arith.constant 0 : index
    %599 = vector.load %arg8[%c3_259, %c0_260, %c0_261] : memref<4x1x96xf32, #tpu.memory_space<vmem>>, vector<1x1x96xf32>
    %600 = vector.shape_cast %599 : vector<1x1x96xf32> to vector<1x96xf32>
    %601 = vector.broadcast %600 : vector<1x96xf32> to vector<16x96xf32>
    %602 = arith.addf %598, %601 : vector<16x96xf32>
    %603 = vector.extract_strided_slice %602 {offsets = [0, 0], sizes = [16, 8], strides = [1, 1]} : vector<16x96xf32> to vector<16x8xf32>
    %604 = vector.extract_strided_slice %602 {offsets = [0, 32], sizes = [16, 8], strides = [1, 1]} : vector<16x96xf32> to vector<16x8xf32>
    %605 = vector.extract_strided_slice %602 {offsets = [0, 64], sizes = [16, 8], strides = [1, 1]} : vector<16x96xf32> to vector<16x8xf32>
    %606 = arith.truncf %603 : vector<16x8xf32> to vector<16x8xbf16>
    %607 = arith.truncf %604 : vector<16x8xf32> to vector<16x8xbf16>
    %cst_262 = arith.constant dense<0.000000e+00> : vector<16x16xf32>
    %608 = tpu.matmul %606, %607, %cst_262 {dimension_numbers = #tpu.dot_dimension_numbers<[1], [1], [0], [0], [0, 0, 1, 0], [], []>} : vector<16x8xbf16>, vector<16x8xbf16>, vector<16x16xf32> -> vector<16x16xf32>
    %cst_263 = arith.constant 0.353553385 : f32
    %609 = vector.broadcast %cst_263 : f32 to vector<16x16xf32>
    %610 = arith.mulf %608, %609 : vector<16x16xf32>
    %cst_264 = arith.constant dense<0xFF800000> : vector<16xf32>
    %611 = vector.multi_reduction <maximumf>, %610, %cst_264 [1] : vector<16x16xf32> to vector<16xf32>
    %612 = vector.shape_cast %611 : vector<16xf32> to vector<16x1xf32>
    %613 = vector.broadcast %612 : vector<16x1xf32> to vector<16x16xf32>
    %614 = arith.subf %610, %613 : vector<16x16xf32>
    %615 = math.exp %614 : vector<16x16xf32>
    %cst_265 = arith.constant dense<0.000000e+00> : vector<16xf32>
    %616 = vector.multi_reduction <add>, %615, %cst_265 [1] : vector<16x16xf32> to vector<16xf32>
    %617 = vector.shape_cast %616 : vector<16xf32> to vector<16x1xf32>
    %618 = tpu.reciprocal %617 {approx = true} : vector<16x1xf32> -> vector<16x1xf32>
    %619 = vector.broadcast %618 : vector<16x1xf32> to vector<16x16xf32>
    %620 = arith.mulf %615, %619 : vector<16x16xf32>
    %621 = arith.truncf %620 : vector<16x16xf32> to vector<16x16xbf16>
    %622 = arith.truncf %605 : vector<16x8xf32> to vector<16x8xbf16>
    %cst_266 = arith.constant dense<0.000000e+00> : vector<16x8xf32>
    %623 = tpu.matmul %621, %622, %cst_266 {dimension_numbers = #tpu.dot_dimension_numbers<[1], [0], [0], [1], [0, 0, 1, 1], [], []>} : vector<16x16xbf16>, vector<16x8xbf16>, vector<16x8xf32> -> vector<16x8xf32>
    %624 = vector.extract_strided_slice %602 {offsets = [0, 8], sizes = [16, 8], strides = [1, 1]} : vector<16x96xf32> to vector<16x8xf32>
    %625 = vector.extract_strided_slice %602 {offsets = [0, 40], sizes = [16, 8], strides = [1, 1]} : vector<16x96xf32> to vector<16x8xf32>
    %626 = vector.extract_strided_slice %602 {offsets = [0, 72], sizes = [16, 8], strides = [1, 1]} : vector<16x96xf32> to vector<16x8xf32>
    %627 = arith.truncf %624 : vector<16x8xf32> to vector<16x8xbf16>
    %628 = arith.truncf %625 : vector<16x8xf32> to vector<16x8xbf16>
    %cst_267 = arith.constant dense<0.000000e+00> : vector<16x16xf32>
    %629 = tpu.matmul %627, %628, %cst_267 {dimension_numbers = #tpu.dot_dimension_numbers<[1], [1], [0], [0], [0, 0, 1, 0], [], []>} : vector<16x8xbf16>, vector<16x8xbf16>, vector<16x16xf32> -> vector<16x16xf32>
    %cst_268 = arith.constant 0.353553385 : f32
    %630 = vector.broadcast %cst_268 : f32 to vector<16x16xf32>
    %631 = arith.mulf %629, %630 : vector<16x16xf32>
    %cst_269 = arith.constant dense<0xFF800000> : vector<16xf32>
    %632 = vector.multi_reduction <maximumf>, %631, %cst_269 [1] : vector<16x16xf32> to vector<16xf32>
    %633 = vector.shape_cast %632 : vector<16xf32> to vector<16x1xf32>
    %634 = vector.broadcast %633 : vector<16x1xf32> to vector<16x16xf32>
    %635 = arith.subf %631, %634 : vector<16x16xf32>
    %636 = math.exp %635 : vector<16x16xf32>
    %cst_270 = arith.constant dense<0.000000e+00> : vector<16xf32>
    %637 = vector.multi_reduction <add>, %636, %cst_270 [1] : vector<16x16xf32> to vector<16xf32>
    %638 = vector.shape_cast %637 : vector<16xf32> to vector<16x1xf32>
    %639 = tpu.reciprocal %638 {approx = true} : vector<16x1xf32> -> vector<16x1xf32>
    %640 = vector.broadcast %639 : vector<16x1xf32> to vector<16x16xf32>
    %641 = arith.mulf %636, %640 : vector<16x16xf32>
    %642 = arith.truncf %641 : vector<16x16xf32> to vector<16x16xbf16>
    %643 = arith.truncf %626 : vector<16x8xf32> to vector<16x8xbf16>
    %cst_271 = arith.constant dense<0.000000e+00> : vector<16x8xf32>
    %644 = tpu.matmul %642, %643, %cst_271 {dimension_numbers = #tpu.dot_dimension_numbers<[1], [0], [0], [1], [0, 0, 1, 1], [], []>} : vector<16x16xbf16>, vector<16x8xbf16>, vector<16x8xf32> -> vector<16x8xf32>
    %645 = vector.extract_strided_slice %602 {offsets = [0, 16], sizes = [16, 8], strides = [1, 1]} : vector<16x96xf32> to vector<16x8xf32>
    %646 = vector.extract_strided_slice %602 {offsets = [0, 48], sizes = [16, 8], strides = [1, 1]} : vector<16x96xf32> to vector<16x8xf32>
    %647 = vector.extract_strided_slice %602 {offsets = [0, 80], sizes = [16, 8], strides = [1, 1]} : vector<16x96xf32> to vector<16x8xf32>
    %648 = arith.truncf %645 : vector<16x8xf32> to vector<16x8xbf16>
    %649 = arith.truncf %646 : vector<16x8xf32> to vector<16x8xbf16>
    %cst_272 = arith.constant dense<0.000000e+00> : vector<16x16xf32>
    %650 = tpu.matmul %648, %649, %cst_272 {dimension_numbers = #tpu.dot_dimension_numbers<[1], [1], [0], [0], [0, 0, 1, 0], [], []>} : vector<16x8xbf16>, vector<16x8xbf16>, vector<16x16xf32> -> vector<16x16xf32>
    %cst_273 = arith.constant 0.353553385 : f32
    %651 = vector.broadcast %cst_273 : f32 to vector<16x16xf32>
    %652 = arith.mulf %650, %651 : vector<16x16xf32>
    %cst_274 = arith.constant dense<0xFF800000> : vector<16xf32>
    %653 = vector.multi_reduction <maximumf>, %652, %cst_274 [1] : vector<16x16xf32> to vector<16xf32>
    %654 = vector.shape_cast %653 : vector<16xf32> to vector<16x1xf32>
    %655 = vector.broadcast %654 : vector<16x1xf32> to vector<16x16xf32>
    %656 = arith.subf %652, %655 : vector<16x16xf32>
    %657 = math.exp %656 : vector<16x16xf32>
    %cst_275 = arith.constant dense<0.000000e+00> : vector<16xf32>
    %658 = vector.multi_reduction <add>, %657, %cst_275 [1] : vector<16x16xf32> to vector<16xf32>
    %659 = vector.shape_cast %658 : vector<16xf32> to vector<16x1xf32>
    %660 = tpu.reciprocal %659 {approx = true} : vector<16x1xf32> -> vector<16x1xf32>
    %661 = vector.broadcast %660 : vector<16x1xf32> to vector<16x16xf32>
    %662 = arith.mulf %657, %661 : vector<16x16xf32>
    %663 = arith.truncf %662 : vector<16x16xf32> to vector<16x16xbf16>
    %664 = arith.truncf %647 : vector<16x8xf32> to vector<16x8xbf16>
    %cst_276 = arith.constant dense<0.000000e+00> : vector<16x8xf32>
    %665 = tpu.matmul %663, %664, %cst_276 {dimension_numbers = #tpu.dot_dimension_numbers<[1], [0], [0], [1], [0, 0, 1, 1], [], []>} : vector<16x16xbf16>, vector<16x8xbf16>, vector<16x8xf32> -> vector<16x8xf32>
    %666 = vector.extract_strided_slice %602 {offsets = [0, 24], sizes = [16, 8], strides = [1, 1]} : vector<16x96xf32> to vector<16x8xf32>
    %667 = vector.extract_strided_slice %602 {offsets = [0, 56], sizes = [16, 8], strides = [1, 1]} : vector<16x96xf32> to vector<16x8xf32>
    %668 = vector.extract_strided_slice %602 {offsets = [0, 88], sizes = [16, 8], strides = [1, 1]} : vector<16x96xf32> to vector<16x8xf32>
    %669 = arith.truncf %666 : vector<16x8xf32> to vector<16x8xbf16>
    %670 = arith.truncf %667 : vector<16x8xf32> to vector<16x8xbf16>
    %cst_277 = arith.constant dense<0.000000e+00> : vector<16x16xf32>
    %671 = tpu.matmul %669, %670, %cst_277 {dimension_numbers = #tpu.dot_dimension_numbers<[1], [1], [0], [0], [0, 0, 1, 0], [], []>} : vector<16x8xbf16>, vector<16x8xbf16>, vector<16x16xf32> -> vector<16x16xf32>
    %cst_278 = arith.constant 0.353553385 : f32
    %672 = vector.broadcast %cst_278 : f32 to vector<16x16xf32>
    %673 = arith.mulf %671, %672 : vector<16x16xf32>
    %cst_279 = arith.constant dense<0xFF800000> : vector<16xf32>
    %674 = vector.multi_reduction <maximumf>, %673, %cst_279 [1] : vector<16x16xf32> to vector<16xf32>
    %675 = vector.shape_cast %674 : vector<16xf32> to vector<16x1xf32>
    %676 = vector.broadcast %675 : vector<16x1xf32> to vector<16x16xf32>
    %677 = arith.subf %673, %676 : vector<16x16xf32>
    %678 = math.exp %677 : vector<16x16xf32>
    %cst_280 = arith.constant dense<0.000000e+00> : vector<16xf32>
    %679 = vector.multi_reduction <add>, %678, %cst_280 [1] : vector<16x16xf32> to vector<16xf32>
    %680 = vector.shape_cast %679 : vector<16xf32> to vector<16x1xf32>
    %681 = tpu.reciprocal %680 {approx = true} : vector<16x1xf32> -> vector<16x1xf32>
    %682 = vector.broadcast %681 : vector<16x1xf32> to vector<16x16xf32>
    %683 = arith.mulf %678, %682 : vector<16x16xf32>
    %684 = arith.truncf %683 : vector<16x16xf32> to vector<16x16xbf16>
    %685 = arith.truncf %668 : vector<16x8xf32> to vector<16x8xbf16>
    %cst_281 = arith.constant dense<0.000000e+00> : vector<16x8xf32>
    %686 = tpu.matmul %684, %685, %cst_281 {dimension_numbers = #tpu.dot_dimension_numbers<[1], [0], [0], [1], [0, 0, 1, 1], [], []>} : vector<16x16xbf16>, vector<16x8xbf16>, vector<16x8xf32> -> vector<16x8xf32>
    %687 = tpu.concatenate %623, %644, %665, %686 in 1 : vector<16x8xf32>, vector<16x8xf32>, vector<16x8xf32>, vector<16x8xf32> -> vector<16x32xf32>
    %c3_282 = arith.constant 3 : index
    %c0_283 = arith.constant 0 : index
    %c0_284 = arith.constant 0 : index
    %688 = vector.load %arg9[%c3_282, %c0_283, %c0_284] : memref<4x32x32xbf16, #tpu.memory_space<vmem>>, vector<1x32x32xbf16>
    %689 = vector.shape_cast %688 : vector<1x32x32xbf16> to vector<32x32xbf16>
    %690 = arith.truncf %687 : vector<16x32xf32> to vector<16x32xbf16>
    %cst_285 = arith.constant dense<0.000000e+00> : vector<16x32xf32>
    %691 = tpu.matmul %690, %689, %cst_285 {dimension_numbers = #tpu.dot_dimension_numbers<[1], [0], [0], [1], [0, 0, 1, 1], [], []>} : vector<16x32xbf16>, vector<32x32xbf16>, vector<16x32xf32> -> vector<16x32xf32>
    %692 = arith.addf %568, %691 : vector<16x32xf32>
    %c3_286 = arith.constant 3 : index
    %c0_287 = arith.constant 0 : index
    %c0_288 = arith.constant 0 : index
    %693 = vector.load %arg10[%c3_286, %c0_287, %c0_288] : memref<4x1x32xf32, #tpu.memory_space<vmem>>, vector<1x1x32xf32>
    %694 = vector.shape_cast %693 : vector<1x1x32xf32> to vector<1x32xf32>
    %695 = vector.broadcast %694 : vector<1x32xf32> to vector<16x32xf32>
    %696 = arith.addf %692, %695 : vector<16x32xf32>
    %c3_289 = arith.constant 3 : index
    %c2_290 = arith.constant 2 : index
    %c0_291 = arith.constant 0 : index
    %c0_292 = arith.constant 0 : index
    %697 = vector.load %arg6[%c3_289, %c2_290, %c0_291, %c0_292] : memref<4x4x1x32xf32, #tpu.memory_space<vmem>>, vector<1x1x1x32xf32>
    %698 = vector.shape_cast %697 : vector<1x1x1x32xf32> to vector<1x32xf32>
    %c3_293 = arith.constant 3 : index
    %c3_294 = arith.constant 3 : index
    %c0_295 = arith.constant 0 : index
    %c0_296 = arith.constant 0 : index
    %699 = vector.load %arg6[%c3_293, %c3_294, %c0_295, %c0_296] : memref<4x4x1x32xf32, #tpu.memory_space<vmem>>, vector<1x1x1x32xf32>
    %700 = vector.shape_cast %699 : vector<1x1x1x32xf32> to vector<1x32xf32>
    %cst_297 = arith.constant dense<0.000000e+00> : vector<16xf32>
    %701 = vector.multi_reduction <add>, %696, %cst_297 [1] : vector<16x32xf32> to vector<16xf32>
    %702 = vector.shape_cast %701 : vector<16xf32> to vector<16x1xf32>
    %cst_298 = arith.constant 3.200000e+01 : f32
    %703 = vector.broadcast %cst_298 : f32 to vector<16x1xf32>
    %704 = arith.divf %702, %703 : vector<16x1xf32>
    %705 = vector.broadcast %704 : vector<16x1xf32> to vector<16x32xf32>
    %706 = arith.subf %696, %705 : vector<16x32xf32>
    %707 = arith.mulf %706, %706 : vector<16x32xf32>
    %cst_299 = arith.constant dense<0.000000e+00> : vector<16xf32>
    %708 = vector.multi_reduction <add>, %707, %cst_299 [1] : vector<16x32xf32> to vector<16xf32>
    %709 = vector.shape_cast %708 : vector<16xf32> to vector<16x1xf32>
    %cst_300 = arith.constant 3.200000e+01 : f32
    %710 = vector.broadcast %cst_300 : f32 to vector<16x1xf32>
    %711 = arith.divf %709, %710 : vector<16x1xf32>
    %712 = vector.broadcast %704 : vector<16x1xf32> to vector<16x32xf32>
    %713 = arith.subf %696, %712 : vector<16x32xf32>
    %cst_301 = arith.constant 9.99999974E-6 : f32
    %714 = vector.broadcast %cst_301 : f32 to vector<16x1xf32>
    %715 = arith.addf %711, %714 : vector<16x1xf32>
    %716 = math.rsqrt %715 : vector<16x1xf32>
    %717 = vector.broadcast %716 : vector<16x1xf32> to vector<16x32xf32>
    %718 = arith.mulf %713, %717 : vector<16x32xf32>
    %719 = vector.broadcast %698 : vector<1x32xf32> to vector<16x32xf32>
    %720 = arith.mulf %718, %719 : vector<16x32xf32>
    %721 = vector.broadcast %700 : vector<1x32xf32> to vector<16x32xf32>
    %722 = arith.addf %720, %721 : vector<16x32xf32>
    %c3_302 = arith.constant 3 : index
    %c0_303 = arith.constant 0 : index
    %c0_304 = arith.constant 0 : index
    %723 = vector.load %arg11[%c3_302, %c0_303, %c0_304] : memref<4x32x64xbf16, #tpu.memory_space<vmem>>, vector<1x32x64xbf16>
    %724 = vector.shape_cast %723 : vector<1x32x64xbf16> to vector<32x64xbf16>
    %725 = arith.truncf %722 : vector<16x32xf32> to vector<16x32xbf16>
    %cst_305 = arith.constant dense<0.000000e+00> : vector<16x64xf32>
    %726 = tpu.matmul %725, %724, %cst_305 {dimension_numbers = #tpu.dot_dimension_numbers<[1], [0], [0], [1], [0, 0, 1, 1], [], []>} : vector<16x32xbf16>, vector<32x64xbf16>, vector<16x64xf32> -> vector<16x64xf32>
    %c3_306 = arith.constant 3 : index
    %c0_307 = arith.constant 0 : index
    %c0_308 = arith.constant 0 : index
    %727 = vector.load %arg12[%c3_306, %c0_307, %c0_308] : memref<4x1x64xf32, #tpu.memory_space<vmem>>, vector<1x1x64xf32>
    %728 = vector.shape_cast %727 : vector<1x1x64xf32> to vector<1x64xf32>
    %729 = vector.broadcast %728 : vector<1x64xf32> to vector<16x64xf32>
    %730 = arith.addf %726, %729 : vector<16x64xf32>
    %cst_309 = arith.constant 5.000000e-01 : f32
    %731 = vector.broadcast %cst_309 : f32 to vector<16x64xf32>
    %732 = arith.mulf %731, %730 : vector<16x64xf32>
    %cst_310 = arith.constant 4.471500e-02 : f32
    %733 = vector.broadcast %cst_310 : f32 to vector<16x64xf32>
    %734 = arith.mulf %733, %730 : vector<16x64xf32>
    %735 = arith.mulf %734, %730 : vector<16x64xf32>
    %736 = arith.mulf %735, %730 : vector<16x64xf32>
    %737 = arith.addf %730, %736 : vector<16x64xf32>
    %cst_311 = arith.constant 0.797884583 : f32
    %738 = vector.broadcast %cst_311 : f32 to vector<16x64xf32>
    %739 = arith.mulf %738, %737 : vector<16x64xf32>
    %740 = math.tanh %739 : vector<16x64xf32>
    %cst_312 = arith.constant 1.000000e+00 : f32
    %741 = vector.broadcast %cst_312 : f32 to vector<16x64xf32>
    %742 = arith.addf %741, %740 : vector<16x64xf32>
    %743 = arith.mulf %732, %742 : vector<16x64xf32>
    %c3_313 = arith.constant 3 : index
    %c0_314 = arith.constant 0 : index
    %c0_315 = arith.constant 0 : index
    %744 = vector.load %arg13[%c3_313, %c0_314, %c0_315] : memref<4x64x32xbf16, #tpu.memory_space<vmem>>, vector<1x64x32xbf16>
    %745 = vector.shape_cast %744 : vector<1x64x32xbf16> to vector<64x32xbf16>
    %746 = arith.truncf %743 : vector<16x64xf32> to vector<16x64xbf16>
    %cst_316 = arith.constant dense<0.000000e+00> : vector<16x32xf32>
    %747 = tpu.matmul %746, %745, %cst_316 {dimension_numbers = #tpu.dot_dimension_numbers<[1], [0], [0], [1], [0, 0, 1, 1], [], []>} : vector<16x64xbf16>, vector<64x32xbf16>, vector<16x32xf32> -> vector<16x32xf32>
    %748 = arith.addf %696, %747 : vector<16x32xf32>
    %c3_317 = arith.constant 3 : index
    %c0_318 = arith.constant 0 : index
    %c0_319 = arith.constant 0 : index
    %749 = vector.load %arg14[%c3_317, %c0_318, %c0_319] : memref<4x1x32xf32, #tpu.memory_space<vmem>>, vector<1x1x32xf32>
    %750 = vector.shape_cast %749 : vector<1x1x32xf32> to vector<1x32xf32>
    %751 = vector.broadcast %750 : vector<1x32xf32> to vector<16x32xf32>
    %752 = arith.addf %748, %751 : vector<16x32xf32>
    %c0_320 = arith.constant 0 : index
    %c0_321 = arith.constant 0 : index
    %c0_322 = arith.constant 0 : index
    %753 = vector.load %arg15[%c0_320, %c0_321, %c0_322] : memref<2x1x32xf32, #tpu.memory_space<vmem>>, vector<1x1x32xf32>
    %754 = vector.shape_cast %753 : vector<1x1x32xf32> to vector<1x32xf32>
    %c1_323 = arith.constant 1 : index
    %c0_324 = arith.constant 0 : index
    %c0_325 = arith.constant 0 : index
    %755 = vector.load %arg15[%c1_323, %c0_324, %c0_325] : memref<2x1x32xf32, #tpu.memory_space<vmem>>, vector<1x1x32xf32>
    %756 = vector.shape_cast %755 : vector<1x1x32xf32> to vector<1x32xf32>
    %cst_326 = arith.constant dense<0.000000e+00> : vector<16xf32>
    %757 = vector.multi_reduction <add>, %752, %cst_326 [1] : vector<16x32xf32> to vector<16xf32>
    %758 = vector.shape_cast %757 : vector<16xf32> to vector<16x1xf32>
    %cst_327 = arith.constant 3.200000e+01 : f32
    %759 = vector.broadcast %cst_327 : f32 to vector<16x1xf32>
    %760 = arith.divf %758, %759 : vector<16x1xf32>
    %761 = vector.broadcast %760 : vector<16x1xf32> to vector<16x32xf32>
    %762 = arith.subf %752, %761 : vector<16x32xf32>
    %763 = arith.mulf %762, %762 : vector<16x32xf32>
    %cst_328 = arith.constant dense<0.000000e+00> : vector<16xf32>
    %764 = vector.multi_reduction <add>, %763, %cst_328 [1] : vector<16x32xf32> to vector<16xf32>
    %765 = vector.shape_cast %764 : vector<16xf32> to vector<16x1xf32>
    %cst_329 = arith.constant 3.200000e+01 : f32
    %766 = vector.broadcast %cst_329 : f32 to vector<16x1xf32>
    %767 = arith.divf %765, %766 : vector<16x1xf32>
    %768 = vector.broadcast %760 : vector<16x1xf32> to vector<16x32xf32>
    %769 = arith.subf %752, %768 : vector<16x32xf32>
    %cst_330 = arith.constant 9.99999974E-6 : f32
    %770 = vector.broadcast %cst_330 : f32 to vector<16x1xf32>
    %771 = arith.addf %767, %770 : vector<16x1xf32>
    %772 = math.rsqrt %771 : vector<16x1xf32>
    %773 = vector.broadcast %772 : vector<16x1xf32> to vector<16x32xf32>
    %774 = arith.mulf %769, %773 : vector<16x32xf32>
    %775 = vector.broadcast %754 : vector<1x32xf32> to vector<16x32xf32>
    %776 = arith.mulf %774, %775 : vector<16x32xf32>
    %777 = vector.broadcast %756 : vector<1x32xf32> to vector<16x32xf32>
    %778 = arith.addf %776, %777 : vector<16x32xf32>
    %779 = vector.extract_strided_slice %778 {offsets = [0, 0], sizes = [8, 32], strides = [1, 1]} : vector<16x32xf32> to vector<8x32xf32>
    %780 = vector.extract_strided_slice %778 {offsets = [8, 0], sizes = [8, 32], strides = [1, 1]} : vector<16x32xf32> to vector<8x32xf32>
    %781 = vector.extract_strided_slice %5 {offsets = [1, 0], sizes = [1, 32], strides = [1, 1]} : vector<3x32xf32> to vector<1x32xf32>
    %782 = vector.broadcast %781 : vector<1x32xf32> to vector<8x32xf32>
    %783 = arith.mulf %782, %3 : vector<8x32xf32>
    %784 = vector.extract_strided_slice %5 {offsets = [2, 0], sizes = [1, 32], strides = [1, 1]} : vector<3x32xf32> to vector<1x32xf32>
    %785 = vector.broadcast %784 : vector<1x32xf32> to vector<8x32xf32>
    %786 = arith.mulf %785, %779 : vector<8x32xf32>
    %787 = arith.addf %783, %786 : vector<8x32xf32>
    %c0_331 = arith.constant 0 : index
    %c0_332 = arith.constant 0 : index
    %788 = vector.load %arg21[%c0_331, %c0_332] : memref<8x32xf32, #tpu.memory_space<vmem>>, vector<8x32xf32>
    tpu.vector_store %arg21[%c0_331, %c0_332], %787 {strides = array<i32>} : memref<8x32xf32, #tpu.memory_space<vmem>>, vector<8x32xf32>,
    %c0_333 = arith.constant 0 : index
    %c0_334 = arith.constant 0 : index
    %c0_335 = arith.constant 0 : index
    %c0_336 = arith.constant 0 : index
    %789 = vector.load %arg18[%c0_333, %c0_334, %c0_335, %c0_336] : memref<1x1x8x32xf32, #tpu.memory_space<vmem>>, vector<1x1x8x32xf32>
    %790 = vector.shape_cast %789 : vector<1x1x8x32xf32> to vector<8x32xf32>
    %791 = vector.shape_cast %787 : vector<8x32xf32> to vector<1x1x8x32xf32>
    tpu.vector_store %arg18[%c0_333, %c0_334, %c0_335, %c0_336], %791 {strides = array<i32>} : memref<1x1x8x32xf32, #tpu.memory_space<vmem>>, vector<1x1x8x32xf32>,
    %c0_337 = arith.constant 0 : index
    %c0_338 = arith.constant 0 : index
    %c0_339 = arith.constant 0 : index
    %c0_340 = arith.constant 0 : index
    %792 = vector.load %arg19[%c0_337, %c0_338, %c0_339, %c0_340] : memref<1x1x8x32xf32, #tpu.memory_space<vmem>>, vector<1x1x8x32xf32>
    %793 = vector.shape_cast %792 : vector<1x1x8x32xf32> to vector<8x32xf32>
    %794 = vector.shape_cast %780 : vector<8x32xf32> to vector<1x1x8x32xf32>
    tpu.vector_store %arg19[%c0_337, %c0_338, %c0_339, %c0_340], %794 {strides = array<i32>} : memref<1x1x8x32xf32, #tpu.memory_space<vmem>>, vector<1x1x8x32xf32>,
    %c0_341 = arith.constant 0 : index
    %c0_342 = arith.constant 0 : index
    %795 = vector.load %arg16[%c0_341, %c0_342] : memref<32x32xbf16, #tpu.memory_space<vmem>>, vector<32x32xbf16>
    %796 = arith.truncf %787 : vector<8x32xf32> to vector<8x32xbf16>
    %cst_343 = arith.constant dense<0.000000e+00> : vector<8x32xf32>
    %797 = tpu.matmul %796, %795, %cst_343 {dimension_numbers = #tpu.dot_dimension_numbers<[1], [0], [0], [1], [0, 0, 1, 1], [], []>} : vector<8x32xbf16>, vector<32x32xbf16>, vector<8x32xf32> -> vector<8x32xf32>
    %c0_344 = arith.constant 0 : index
    %c0_345 = arith.constant 0 : index
    %798 = vector.load %arg17[%c0_344, %c0_345] : memref<1x32xf32, #tpu.memory_space<vmem>>, vector<1x32xf32>
    %799 = vector.broadcast %798 : vector<1x32xf32> to vector<8x32xf32>
    %800 = arith.addf %797, %799 : vector<8x32xf32>
    %cst_346 = arith.constant 5.000000e-01 : f32
    %801 = vector.broadcast %cst_346 : f32 to vector<8x32xf32>
    %802 = arith.mulf %801, %800 : vector<8x32xf32>
    %cst_347 = arith.constant 4.471500e-02 : f32
    %803 = vector.broadcast %cst_347 : f32 to vector<8x32xf32>
    %804 = arith.mulf %803, %800 : vector<8x32xf32>
    %805 = arith.mulf %804, %800 : vector<8x32xf32>
    %806 = arith.mulf %805, %800 : vector<8x32xf32>
    %807 = arith.addf %800, %806 : vector<8x32xf32>
    %cst_348 = arith.constant 0.797884583 : f32
    %808 = vector.broadcast %cst_348 : f32 to vector<8x32xf32>
    %809 = arith.mulf %808, %807 : vector<8x32xf32>
    %810 = math.tanh %809 : vector<8x32xf32>
    %cst_349 = arith.constant 1.000000e+00 : f32
    %811 = vector.broadcast %cst_349 : f32 to vector<8x32xf32>
    %812 = arith.addf %811, %810 : vector<8x32xf32>
    %813 = arith.mulf %802, %812 : vector<8x32xf32>
    %c0_350 = arith.constant 0 : index
    %c0_351 = arith.constant 0 : index
    %c0_352 = arith.constant 0 : index
    %c0_353 = arith.constant 0 : index
    %814 = vector.load %arg20[%c0_350, %c0_351, %c0_352, %c0_353] : memref<1x1x8x32xf32, #tpu.memory_space<vmem>>, vector<1x1x8x32xf32>
    %815 = vector.shape_cast %814 : vector<1x1x8x32xf32> to vector<8x32xf32>
    %816 = vector.shape_cast %813 : vector<8x32xf32> to vector<1x1x8x32xf32>
    tpu.vector_store %arg20[%c0_350, %c0_351, %c0_352, %c0_353], %816 {strides = array<i32>} : memref<1x1x8x32xf32, #tpu.memory_space<vmem>>, vector<1x1x8x32xf32>,
    return
  }
  func.func @transform_0(%arg0: i32, %arg1: i32) -> (i32, i32, i32) {
    %c0_i32 = arith.constant 0 : i32
    %c0_i32_0 = arith.constant 0 : i32
    %c0_i32_1 = arith.constant 0 : i32
    return %arg0, %c0_i32, %c0_i32_0 : i32, i32, i32
  }
  func.func @transform_1(%arg0: i32, %arg1: i32) -> (i32, i32, i32, i32) {
    %c0_i32 = arith.constant 0 : i32
    %c0_i32_0 = arith.constant 0 : i32
    %c0_i32_1 = arith.constant 0 : i32
    return %arg0, %arg1, %c0_i32, %c0_i32_0 : i32, i32, i32, i32
  }
  func.func @transform_2(%arg0: i32, %arg1: i32) -> (i32, i32, i32) {
    %c0_i32 = arith.constant 0 : i32
    %c0_i32_0 = arith.constant 0 : i32
    %c0_i32_1 = arith.constant 0 : i32
    return %arg1, %c0_i32, %c0_i32_0 : i32, i32, i32
  }
  func.func @transform_3(%arg0: i32, %arg1: i32) -> (i32, i32, i32) {
    %c0_i32 = arith.constant 0 : i32
    %c0_i32_0 = arith.constant 0 : i32
    %c0_i32_1 = arith.constant 0 : i32
    %c0_i32_2 = arith.constant 0 : i32
    return %c0_i32, %c0_i32_0, %c0_i32_1 : i32, i32, i32
  }
  func.func @transform_4(%arg0: i32, %arg1: i32) -> (i32, i32, i32, i32) {
    %c0_i32 = arith.constant 0 : i32
    %c0_i32_0 = arith.constant 0 : i32
    %c0_i32_1 = arith.constant 0 : i32
    %c0_i32_2 = arith.constant 0 : i32
    %c0_i32_3 = arith.constant 0 : i32
    return %c0_i32, %c0_i32_0, %c0_i32_1, %c0_i32_2 : i32, i32, i32, i32
  }
  func.func @transform_5(%arg0: i32, %arg1: i32) -> (i32, i32, i32) {
    %c0_i32 = arith.constant 0 : i32
    %c0_i32_0 = arith.constant 0 : i32
    %c0_i32_1 = arith.constant 0 : i32
    %c0_i32_2 = arith.constant 0 : i32
    return %c0_i32, %c0_i32_0, %c0_i32_1 : i32, i32, i32
  }
  func.func @transform_6(%arg0: i32, %arg1: i32) -> (i32, i32, i32) {
    %c0_i32 = arith.constant 0 : i32
    %c0_i32_0 = arith.constant 0 : i32
    %c0_i32_1 = arith.constant 0 : i32
    %c0_i32_2 = arith.constant 0 : i32
    return %c0_i32, %c0_i32_0, %c0_i32_1 : i32, i32, i32
  }
  func.func @transform_7(%arg0: i32, %arg1: i32) -> (i32, i32, i32) {
    %c0_i32 = arith.constant 0 : i32
    %c0_i32_0 = arith.constant 0 : i32
    %c0_i32_1 = arith.constant 0 : i32
    %c0_i32_2 = arith.constant 0 : i32
    return %c0_i32, %c0_i32_0, %c0_i32_1 : i32, i32, i32
  }
  func.func @transform_8(%arg0: i32, %arg1: i32) -> (i32, i32, i32) {
    %c0_i32 = arith.constant 0 : i32
    %c0_i32_0 = arith.constant 0 : i32
    %c0_i32_1 = arith.constant 0 : i32
    %c0_i32_2 = arith.constant 0 : i32
    return %c0_i32, %c0_i32_0, %c0_i32_1 : i32, i32, i32
  }
  func.func @transform_9(%arg0: i32, %arg1: i32) -> (i32, i32, i32) {
    %c0_i32 = arith.constant 0 : i32
    %c0_i32_0 = arith.constant 0 : i32
    %c0_i32_1 = arith.constant 0 : i32
    %c0_i32_2 = arith.constant 0 : i32
    return %c0_i32, %c0_i32_0, %c0_i32_1 : i32, i32, i32
  }
  func.func @transform_10(%arg0: i32, %arg1: i32) -> (i32, i32, i32) {
    %c0_i32 = arith.constant 0 : i32
    %c0_i32_0 = arith.constant 0 : i32
    %c0_i32_1 = arith.constant 0 : i32
    %c0_i32_2 = arith.constant 0 : i32
    return %c0_i32, %c0_i32_0, %c0_i32_1 : i32, i32, i32
  }
  func.func @transform_11(%arg0: i32, %arg1: i32) -> (i32, i32, i32) {
    %c0_i32 = arith.constant 0 : i32
    %c0_i32_0 = arith.constant 0 : i32
    %c0_i32_1 = arith.constant 0 : i32
    %c0_i32_2 = arith.constant 0 : i32
    return %c0_i32, %c0_i32_0, %c0_i32_1 : i32, i32, i32
  }
  func.func @transform_12(%arg0: i32, %arg1: i32) -> (i32, i32, i32) {
    %c0_i32 = arith.constant 0 : i32
    %c0_i32_0 = arith.constant 0 : i32
    %c0_i32_1 = arith.constant 0 : i32
    %c0_i32_2 = arith.constant 0 : i32
    return %c0_i32, %c0_i32_0, %c0_i32_1 : i32, i32, i32
  }
  func.func @transform_13(%arg0: i32, %arg1: i32) -> (i32, i32, i32) {
    %c0_i32 = arith.constant 0 : i32
    %c0_i32_0 = arith.constant 0 : i32
    %c0_i32_1 = arith.constant 0 : i32
    %c0_i32_2 = arith.constant 0 : i32
    return %c0_i32, %c0_i32_0, %c0_i32_1 : i32, i32, i32
  }
  func.func @transform_14(%arg0: i32, %arg1: i32) -> (i32, i32) {
    %c0_i32 = arith.constant 0 : i32
    %c0_i32_0 = arith.constant 0 : i32
    %c0_i32_1 = arith.constant 0 : i32
    return %c0_i32, %c0_i32_0 : i32, i32
  }
  func.func @transform_15(%arg0: i32, %arg1: i32) -> (i32, i32) {
    %c0_i32 = arith.constant 0 : i32
    %c0_i32_0 = arith.constant 0 : i32
    %c0_i32_1 = arith.constant 0 : i32
    return %c0_i32, %c0_i32_0 : i32, i32
  }
  func.func @transform_16(%arg0: i32, %arg1: i32) -> (i32, i32, i32, i32) {
    %c0_i32 = arith.constant 0 : i32
    %c0_i32_0 = arith.constant 0 : i32
    %c0_i32_1 = arith.constant 0 : i32
    return %arg0, %arg1, %c0_i32, %c0_i32_0 : i32, i32, i32, i32
  }
  func.func @transform_17(%arg0: i32, %arg1: i32) -> (i32, i32, i32, i32) {
    %c0_i32 = arith.constant 0 : i32
    %c0_i32_0 = arith.constant 0 : i32
    %c0_i32_1 = arith.constant 0 : i32
    return %arg0, %arg1, %c0_i32, %c0_i32_0 : i32, i32, i32, i32
  }
  func.func @transform_18(%arg0: i32, %arg1: i32) -> (i32, i32, i32, i32) {
    %c0_i32 = arith.constant 0 : i32
    %c0_i32_0 = arith.constant 0 : i32
    %c0_i32_1 = arith.constant 0 : i32
    return %arg0, %arg1, %c0_i32, %c0_i32_0 : i32, i32, i32, i32
  }
}

</mosaic_0001>

<llo_original>
// kernel: diffmesh_forward.3
$region0: #{diffmesh_forward.3}
  #allocation0 [shape = 'u32[]', space=smem, size = 0x4, offset = 0x4, fixed_abs, tag = 'smem constant byte address 0x4 - core index']
  #allocation1 [shape = 'u32[72,128]{1,0:T(1,128)}', space=vmem, size = 0x9000, scoped, tag = 'internal scratch']
  #allocation2 [shape = 'f32[8,32]{1,0:T(8,128)}', space=vmem, size = 0x1000, scoped, tag = 'scratch operand']
  %s0 = inlined_call_operand.vmem [shape: f32[2,8,32], index: 0, kind: input, shape index: {}]
  %s1 = inlined_call_operand.vmem [shape: f32[2,6,8,32], index: 1, kind: input, shape index: {}]
  %s2 = inlined_call_operand.vmem [shape: f32[6,3,32], index: 2, kind: input, shape index: {}]
  %s3 = inlined_call_operand.vmem [shape: f32[1,16,32], index: 3, kind: input, shape index: {}]
  %s4 = inlined_call_operand.vmem [shape: f32[4,4,1,32], index: 4, kind: input, shape index: {}]
  %s5 = inlined_call_operand.vmem [shape: bf16[4,32,96], index: 5, kind: input, shape index: {}]
  %s6 = inlined_call_operand.vmem [shape: f32[4,1,96], index: 6, kind: input, shape index: {}]
  %s7 = inlined_call_operand.vmem [shape: bf16[4,32,32], index: 7, kind: input, shape index: {}]
  %s8 = inlined_call_operand.vmem [shape: f32[4,1,32], index: 8, kind: input, shape index: {}, may-alias: {8,12}]
  %s9 = inlined_call_operand.vmem [shape: bf16[4,32,64], index: 9, kind: input, shape index: {}]
  %s10 = inlined_call_operand.vmem [shape: f32[4,1,64], index: 10, kind: input, shape index: {}]
  %s11 = inlined_call_operand.vmem [shape: bf16[4,64,32], index: 11, kind: input, shape index: {}]
  %s12 = inlined_call_operand.vmem [shape: f32[4,1,32], index: 12, kind: input, shape index: {}, may-alias: {8,12}]
  %s13 = inlined_call_operand.hbm [shape: f32[2,1,32], index: 13, kind: input, shape index: {}]
  %s14 = inlined_call_operand.vmem [shape: bf16[32,32], index: 14, kind: input, shape index: {}]
  %s15 = inlined_call_operand.vmem [shape: f32[1,32], index: 15, kind: input, shape index: {}]
  %s16 = inlined_call_operand.hbm [shape: f32[2,6,8,32], index: 16, kind: output, shape index: {0}]
  %s17 = inlined_call_operand.vmem [shape: f32[2,6,8,32], index: 17, kind: output, shape index: {1}]
  %s18 = inlined_call_operand.vmem [shape: f32[2,6,8,32], index: 18, kind: output, shape index: {2}]
  %19 = xla_tuple %s16, %s17, %s18
  %s20 = sld [smem:[#allocation0]]
  $region121: #{diffmesh_forward.3} parent=0
    _
  %s22 = ssub.s32 1, %s20
  %s23 = scalar_select 0, %s22, %s20
  $region1: #{diffmesh_forward.3} parent=0
    #allocation3 [shape = 'u8[1024]{0}', space=vmem, size = 0x400, scoped, tag = 'input window, operand 13, single buffered']
    #allocation4 [shape = 's32[2]{0}', space=sflag, size = 0x8, scoped, tag = 'scoped memory for diffmesh_forward.3']
    #allocation5 [shape = 's32[2]{0}', space=sflag, size = 0x8, scoped, tag = 'scoped memory for diffmesh_forward.3']
    #allocation6 [shape = 'u8[8192]{0}', space=vmem, size = 0x2000, scoped, tag = 'output window, operand 0']
    %24 = vsyncpa [#allocation4], 0
    %25 = vsyncpa [#allocation5], 0
    %s26 = scalar_lea.sflag [#allocation5], 1
    %27 = vsyncpa %s26, 0
    loop: start=0, step=1, limit=14
    $region2: #{diffmesh_forward.3} parent=1 // loop_pre_header
      _
    $region3: #{diffmesh_forward.3} parent=1 // loop_header
      %s29 = sphi 0, %s33
      %p30 = scmp.ge.s32.totalorder %s29, 14
      %s36 = sphi 0, %s48
      %s37 = sphi 0, %s44
      %s38 = sphi 0, %s36
      %s39 = sphi 0, %s37
      %s40 = sphi 0, %s38
      %s41 = sphi 0, %s39
      %s51 = sphi 0, %s53
      %s54 = sphi 0, %s51
      %s55 = sphi 0, %s54
      %s71 = sphi 0, %s55
      %s79 = sphi 0, %s81
      %s82 = sphi 0, %s79
      %s83 = sphi 0, %s82
      %s99 = sphi 0, %s83
      %s105 = sphi 0, %s107
      %s108 = sphi 0, %s105
      %s109 = sphi 0, %s108
      %s125 = sphi 0, %s109
      %s129 = sphi 0, %s129
      %s131 = sphi 0, %s129
      %s132 = sphi 0, %s131
      %s146 = sphi 0, %s132
      %s150 = sphi 0, %s150
      %s152 = sphi 0, %s150
      %s153 = sphi 0, %s152
      %s167 = sphi 0, %s153
      %s171 = sphi 0, %s171
      %s173 = sphi 0, %s171
      %s174 = sphi 0, %s173
      %s188 = sphi 0, %s174
      %s192 = sphi 0, %s192
      %s194 = sphi 0, %s192
      %s195 = sphi 0, %s194
      %s209 = sphi 0, %s195
      %s213 = sphi 0, %s213
      %s215 = sphi 0, %s213
      %s216 = sphi 0, %s215
      %s230 = sphi 0, %s216
      %s234 = sphi 0, %s234
      %s236 = sphi 0, %s234
      %s237 = sphi 0, %s236
      %s251 = sphi 0, %s237
      %s255 = sphi 0, %s255
      %s257 = sphi 0, %s255
      %s258 = sphi 0, %s257
      %s272 = sphi 0, %s258
      %s276 = sphi 0, %s276
      %s278 = sphi 0, %s276
      %s279 = sphi 0, %s278
      %s293 = sphi 0, %s279
      %s297 = sphi 0, %s297
      %s299 = sphi 0, %s297
      %s300 = sphi 0, %s299
      %s314 = sphi 0, %s300
      %s318 = sphi 0, %s318
      %s320 = sphi 0, %s318
      %s321 = sphi 0, %s320
      %s335 = sphi 0, %s321
      %s339 = sphi 0, %s339
      %s341 = sphi 0, %s339
      %s342 = sphi 0, %s341
      %s356 = sphi 0, %s342
      %s360 = sphi 0, %s360
      %s362 = sphi 0, %s360
      %s363 = sphi 0, %s362
      %s377 = sphi 0, %s363
      %s381 = sphi 0, %s381
      %s383 = sphi 0, %s381
      %s384 = sphi 0, %s383
      %s398 = sphi 0, %s384
      %s406 = sphi 0, %s408
      %s409 = sphi 0, %s406
      %s410 = sphi 0, %s409
      %s426 = sphi 0, %s410
      %s434 = sphi 0, %s436
      %s437 = sphi 0, %s434
      %s438 = sphi 0, %s437
      %s454 = sphi 0, %s438
      %s462 = sphi 0, %s464
      %s465 = sphi 0, %s462
      %s466 = sphi 0, %s465
      %s482 = sphi 0, %s466
    $region4: #{diffmesh_forward.3} parent=1 // loop_header_branch
      %32 = sbr.rel (%p30) target = $region8
    $region5: #{diffmesh_forward.3} parent=1 // loop_body
      %s34 = ssub.s32 %s29, 1
      %s35 = ssub.s32 %s29, 2
      %s42 = sadd.s32 1, %s37
      %p43 = scmp.ge.s32.totalorder %s42, 6
      %s44 = scalar_select %p43, 0, %s42
      %s45 = sadd.s32 1, %s36
      %s46 = scalar_select %p43, %s45, %s36
      %p47 = scmp.ge.s32.totalorder %s46, 2
      %s48 = scalar_select %p47, 0, %s46
      %s49 = ssub.s32 %s36, %s48
      %p50 = scmp.eq.s32.totalorder %s49, 0
      %s52 = sadd.s32 %s51, 1
      %s53 = scalar_select %p50, %s51, %s52
      %p56 = pneg %p50
      %p57 = scmp.eq.s32.totalorder %s29, 11
      %p58 = por %p56, %p57
      %p59 = scmp.ne.s32.totalorder %s51, %s54
      %p60 = scmp.eq.s32.totalorder %s29, 0
      %p61 = por %p59, %p60
      %p62 = scmp.ne.s32.totalorder %s51, %s54
      %p63 = scmp.eq.s32.totalorder %s34, 11
      %p64 = por %p62, %p63
      %p65 = scmp.ne.s32.totalorder %s54, %s55
      %p66 = scmp.eq.s32.totalorder %s34, 0
      %p67 = por %p65, %p66
      %p68 = scmp.ne.s32.totalorder %s54, %s55
      %p69 = scmp.eq.s32.totalorder %s35, 11
      %p70 = por %p68, %p69
      %p72 = scmp.ne.s32.totalorder %s55, %s71
      %p73 = scmp.eq.s32.totalorder %s35, 0
      %p74 = por %p72, %p73
      %s75 = ssub.s32 %s36, %s48
      %s76 = ssub.s32 %s37, %s44
      %s77 = sor.u32 %s75, %s76
      %p78 = scmp.eq.s32.totalorder %s77, 0
      %s80 = sadd.s32 %s79, 1
      %s81 = scalar_select %p78, %s79, %s80
      %p84 = pneg %p78
      %p85 = scmp.eq.s32.totalorder %s29, 11
      %p86 = por %p84, %p85
      %p87 = scmp.ne.s32.totalorder %s79, %s82
      %p88 = scmp.eq.s32.totalorder %s29, 0
      %p89 = por %p87, %p88
      %p90 = scmp.ne.s32.totalorder %s79, %s82
      %p91 = scmp.eq.s32.totalorder %s34, 11
      %p92 = por %p90, %p91
      %p93 = scmp.ne.s32.totalorder %s82, %s83
      %p94 = scmp.eq.s32.totalorder %s34, 0
      %p95 = por %p93, %p94
      %p96 = scmp.ne.s32.totalorder %s82, %s83
      %p97 = scmp.eq.s32.totalorder %s35, 11
      %p98 = por %p96, %p97
      %p100 = scmp.ne.s32.totalorder %s83, %s99
      %p101 = scmp.eq.s32.totalorder %s35, 0
      %p102 = por %p100, %p101
      %s103 = ssub.s32 %s37, %s44
      %p104 = scmp.eq.s32.totalorder %s103, 0
      %s106 = sadd.s32 %s105, 1
      %s107 = scalar_select %p104, %s105, %s106
      %p110 = pneg %p104
      %p111 = scmp.eq.s32.totalorder %s29, 11
      %p112 = por %p110, %p111
      %p113 = scmp.ne.s32.totalorder %s105, %s108
      %p114 = scmp.eq.s32.totalorder %s29, 0
      %p115 = por %p113, %p114
      %p116 = scmp.ne.s32.totalorder %s105, %s108
      %p117 = scmp.eq.s32.totalorder %s34, 11
      %p118 = por %p116, %p117
      %p119 = scmp.ne.s32.totalorder %s108, %s109
      %p120 = scmp.eq.s32.totalorder %s34, 0
      %p121 = por %p119, %p120
      %p122 = scmp.ne.s32.totalorder %s108, %s109
      %p123 = scmp.eq.s32.totalorder %s35, 11
      %p124 = por %p122, %p123
      %p126 = scmp.ne.s32.totalorder %s109, %s125
      %p127 = scmp.eq.s32.totalorder %s35, 0
      %p128 = por %p126, %p127
      %s130 = sadd.s32 %s129, 1
      %p133 = scmp.eq.s32.totalorder %s29, 11
      %p134 = scmp.ne.s32.totalorder %s129, %s131
      %p135 = scmp.eq.s32.totalorder %s29, 0
      %p136 = por %p134, %p135
      %p137 = scmp.ne.s32.totalorder %s129, %s131
      %p138 = scmp.eq.s32.totalorder %s34, 11
      %p139 = por %p137, %p138
      %p140 = scmp.ne.s32.totalorder %s131, %s132
      %p141 = scmp.eq.s32.totalorder %s34, 0
      %p142 = por %p140, %p141
      %p143 = scmp.ne.s32.totalorder %s131, %s132
      %p144 = scmp.eq.s32.totalorder %s35, 11
      %p145 = por %p143, %p144
      %p147 = scmp.ne.s32.totalorder %s132, %s146
      %p148 = scmp.eq.s32.totalorder %s35, 0
      %p149 = por %p147, %p148
      %s151 = sadd.s32 %s150, 1
      %p154 = scmp.eq.s32.totalorder %s29, 11
      %p155 = scmp.ne.s32.totalorder %s150, %s152
      %p156 = scmp.eq.s32.totalorder %s29, 0
      %p157 = por %p155, %p156
      %p158 = scmp.ne.s32.totalorder %s150, %s152
      %p159 = scmp.eq.s32.totalorder %s34, 11
      %p160 = por %p158, %p159
      %p161 = scmp.ne.s32.totalorder %s152, %s153
      %p162 = scmp.eq.s32.totalorder %s34, 0
      %p163 = por %p161, %p162
      %p164 = scmp.ne.s32.totalorder %s152, %s153
      %p165 = scmp.eq.s32.totalorder %s35, 11
      %p166 = por %p164, %p165
      %p168 = scmp.ne.s32.totalorder %s153, %s167
      %p169 = scmp.eq.s32.totalorder %s35, 0
      %p170 = por %p168, %p169
      %s172 = sadd.s32 %s171, 1
      %p175 = scmp.eq.s32.totalorder %s29, 11
      %p176 = scmp.ne.s32.totalorder %s171, %s173
      %p177 = scmp.eq.s32.totalorder %s29, 0
      %p178 = por %p176, %p177
      %p179 = scmp.ne.s32.totalorder %s171, %s173
      %p180 = scmp.eq.s32.totalorder %s34, 11
      %p181 = por %p179, %p180
      %p182 = scmp.ne.s32.totalorder %s173, %s174
      %p183 = scmp.eq.s32.totalorder %s34, 0
      %p184 = por %p182, %p183
      %p185 = scmp.ne.s32.totalorder %s173, %s174
      %p186 = scmp.eq.s32.totalorder %s35, 11
      %p187 = por %p185, %p186
      %p189 = scmp.ne.s32.totalorder %s174, %s188
      %p190 = scmp.eq.s32.totalorder %s35, 0
      %p191 = por %p189, %p190
      %s193 = sadd.s32 %s192, 1
      %p196 = scmp.eq.s32.totalorder %s29, 11
      %p197 = scmp.ne.s32.totalorder %s192, %s194
      %p198 = scmp.eq.s32.totalorder %s29, 0
      %p199 = por %p197, %p198
      %p200 = scmp.ne.s32.totalorder %s192, %s194
      %p201 = scmp.eq.s32.totalorder %s34, 11
      %p202 = por %p200, %p201
      %p203 = scmp.ne.s32.totalorder %s194, %s195
      %p204 = scmp.eq.s32.totalorder %s34, 0
      %p205 = por %p203, %p204
      %p206 = scmp.ne.s32.totalorder %s194, %s195
      %p207 = scmp.eq.s32.totalorder %s35, 11
      %p208 = por %p206, %p207
      %p210 = scmp.ne.s32.totalorder %s195, %s209
      %p211 = scmp.eq.s32.totalorder %s35, 0
      %p212 = por %p210, %p211
      %s214 = sadd.s32 %s213, 1
      %p217 = scmp.eq.s32.totalorder %s29, 11
      %p218 = scmp.ne.s32.totalorder %s213, %s215
      %p219 = scmp.eq.s32.totalorder %s29, 0
      %p220 = por %p218, %p219
      %p221 = scmp.ne.s32.totalorder %s213, %s215
      %p222 = scmp.eq.s32.totalorder %s34, 11
      %p223 = por %p221, %p222
      %p224 = scmp.ne.s32.totalorder %s215, %s216
      %p225 = scmp.eq.s32.totalorder %s34, 0
      %p226 = por %p224, %p225
      %p227 = scmp.ne.s32.totalorder %s215, %s216
      %p228 = scmp.eq.s32.totalorder %s35, 11
      %p229 = por %p227, %p228
      %p231 = scmp.ne.s32.totalorder %s216, %s230
      %p232 = scmp.eq.s32.totalorder %s35, 0
      %p233 = por %p231, %p232
      %s235 = sadd.s32 %s234, 1
      %p238 = scmp.eq.s32.totalorder %s29, 11
      %p239 = scmp.ne.s32.totalorder %s234, %s236
      %p240 = scmp.eq.s32.totalorder %s29, 0
      %p241 = por %p239, %p240
      %p242 = scmp.ne.s32.totalorder %s234, %s236
      %p243 = scmp.eq.s32.totalorder %s34, 11
      %p244 = por %p242, %p243
      %p245 = scmp.ne.s32.totalorder %s236, %s237
      %p246 = scmp.eq.s32.totalorder %s34, 0
      %p247 = por %p245, %p246
      %p248 = scmp.ne.s32.totalorder %s236, %s237
      %p249 = scmp.eq.s32.totalorder %s35, 11
      %p250 = por %p248, %p249
      %p252 = scmp.ne.s32.totalorder %s237, %s251
      %p253 = scmp.eq.s32.totalorder %s35, 0
      %p254 = por %p252, %p253
      %s256 = sadd.s32 %s255, 1
      %p259 = scmp.eq.s32.totalorder %s29, 11
      %p260 = scmp.ne.s32.totalorder %s255, %s257
      %p261 = scmp.eq.s32.totalorder %s29, 0
      %p262 = por %p260, %p261
      %p263 = scmp.ne.s32.totalorder %s255, %s257
      %p264 = scmp.eq.s32.totalorder %s34, 11
      %p265 = por %p263, %p264
      %p266 = scmp.ne.s32.totalorder %s257, %s258
      %p267 = scmp.eq.s32.totalorder %s34, 0
      %p268 = por %p266, %p267
      %p269 = scmp.ne.s32.totalorder %s257, %s258
      %p270 = scmp.eq.s32.totalorder %s35, 11
      %p271 = por %p269, %p270
      %p273 = scmp.ne.s32.totalorder %s258, %s272
      %p274 = scmp.eq.s32.totalorder %s35, 0
      %p275 = por %p273, %p274
      %s277 = sadd.s32 %s276, 1
      %p280 = scmp.eq.s32.totalorder %s29, 11
      %p281 = scmp.ne.s32.totalorder %s276, %s278
      %p282 = scmp.eq.s32.totalorder %s29, 0
      %p283 = por %p281, %p282
      %p284 = scmp.ne.s32.totalorder %s276, %s278
      %p285 = scmp.eq.s32.totalorder %s34, 11
      %p286 = por %p284, %p285
      %p287 = scmp.ne.s32.totalorder %s278, %s279
      %p288 = scmp.eq.s32.totalorder %s34, 0
      %p289 = por %p287, %p288
      %p290 = scmp.ne.s32.totalorder %s278, %s279
      %p291 = scmp.eq.s32.totalorder %s35, 11
      %p292 = por %p290, %p291
      %p294 = scmp.ne.s32.totalorder %s279, %s293
      %p295 = scmp.eq.s32.totalorder %s35, 0
      %p296 = por %p294, %p295
      %s298 = sadd.s32 %s297, 1
      %p301 = scmp.eq.s32.totalorder %s29, 11
      %p302 = scmp.ne.s32.totalorder %s297, %s299
      %p303 = scmp.eq.s32.totalorder %s29, 0
      %p304 = por %p302, %p303
      %p305 = scmp.ne.s32.totalorder %s297, %s299
      %p306 = scmp.eq.s32.totalorder %s34, 11
      %p307 = por %p305, %p306
      %p308 = scmp.ne.s32.totalorder %s299, %s300
      %p309 = scmp.eq.s32.totalorder %s34, 0
      %p310 = por %p308, %p309
      %p311 = scmp.ne.s32.totalorder %s299, %s300
      %p312 = scmp.eq.s32.totalorder %s35, 11
      %p313 = por %p311, %p312
      %p315 = scmp.ne.s32.totalorder %s300, %s314
      %p316 = scmp.eq.s32.totalorder %s35, 0
      %p317 = por %p315, %p316
      %s319 = sadd.s32 %s318, 1
      %p322 = scmp.eq.s32.totalorder %s29, 11
      %p323 = scmp.ne.s32.totalorder %s318, %s320
      %p324 = scmp.eq.s32.totalorder %s29, 0
      %p325 = por %p323, %p324
      %p326 = scmp.ne.s32.totalorder %s318, %s320
      %p327 = scmp.eq.s32.totalorder %s34, 11
      %p328 = por %p326, %p327
      %p329 = scmp.ne.s32.totalorder %s320, %s321
      %p330 = scmp.eq.s32.totalorder %s34, 0
      %p331 = por %p329, %p330
      %p332 = scmp.ne.s32.totalorder %s320, %s321
      %p333 = scmp.eq.s32.totalorder %s35, 11
      %p334 = por %p332, %p333
      %p336 = scmp.ne.s32.totalorder %s321, %s335
      %p337 = scmp.eq.s32.totalorder %s35, 0
      %p338 = por %p336, %p337
      %s340 = sadd.s32 %s339, 1
      %p343 = scmp.eq.s32.totalorder %s29, 11
      %p344 = scmp.ne.s32.totalorder %s339, %s341
      %p345 = scmp.eq.s32.totalorder %s29, 0
      %p346 = por %p344, %p345
      %p347 = scmp.ne.s32.totalorder %s339, %s341
      %p348 = scmp.eq.s32.totalorder %s34, 11
      %p349 = por %p347, %p348
      %p350 = scmp.ne.s32.totalorder %s341, %s342
      %p351 = scmp.eq.s32.totalorder %s34, 0
      %p352 = por %p350, %p351
      %p353 = scmp.ne.s32.totalorder %s341, %s342
      %p354 = scmp.eq.s32.totalorder %s35, 11
      %p355 = por %p353, %p354
      %p357 = scmp.ne.s32.totalorder %s342, %s356
      %p358 = scmp.eq.s32.totalorder %s35, 0
      %p359 = por %p357, %p358
      %s361 = sadd.s32 %s360, 1
      %p364 = scmp.eq.s32.totalorder %s29, 11
      %p365 = scmp.ne.s32.totalorder %s360, %s362
      %p366 = scmp.eq.s32.totalorder %s29, 0
      %p367 = por %p365, %p366
      %p368 = scmp.ne.s32.totalorder %s360, %s362
      %p369 = scmp.eq.s32.totalorder %s34, 11
      %p370 = por %p368, %p369
      %p371 = scmp.ne.s32.totalorder %s362, %s363
      %p372 = scmp.eq.s32.totalorder %s34, 0
      %p373 = por %p371, %p372
      %p374 = scmp.ne.s32.totalorder %s362, %s363
      %p375 = scmp.eq.s32.totalorder %s35, 11
      %p376 = por %p374, %p375
      %p378 = scmp.ne.s32.totalorder %s363, %s377
      %p379 = scmp.eq.s32.totalorder %s35, 0
      %p380 = por %p378, %p379
      %s382 = sadd.s32 %s381, 1
      %p385 = scmp.eq.s32.totalorder %s29, 11
      %p386 = scmp.ne.s32.totalorder %s381, %s383
      %p387 = scmp.eq.s32.totalorder %s29, 0
      %p388 = por %p386, %p387
      %p389 = scmp.ne.s32.totalorder %s381, %s383
      %p390 = scmp.eq.s32.totalorder %s34, 11
      %p391 = por %p389, %p390
      %p392 = scmp.ne.s32.totalorder %s383, %s384
      %p393 = scmp.eq.s32.totalorder %s34, 0
      %p394 = por %p392, %p393
      %p395 = scmp.ne.s32.totalorder %s383, %s384
      %p396 = scmp.eq.s32.totalorder %s35, 11
      %p397 = por %p395, %p396
      %p399 = scmp.ne.s32.totalorder %s384, %s398
      %p400 = scmp.eq.s32.totalorder %s35, 0
      %p401 = por %p399, %p400
      %s402 = ssub.s32 %s36, %s48
      %s403 = ssub.s32 %s37, %s44
      %s404 = sor.u32 %s402, %s403
      %p405 = scmp.eq.s32.totalorder %s404, 0
      %s407 = sadd.s32 %s406, 1
      %s408 = scalar_select %p405, %s406, %s407
      %p411 = pneg %p405
      %p412 = scmp.eq.s32.totalorder %s29, 11
      %p413 = por %p411, %p412
      %p414 = scmp.ne.s32.totalorder %s406, %s409
      %p415 = scmp.eq.s32.totalorder %s29, 0
      %p416 = por %p414, %p415
      %p417 = scmp.ne.s32.totalorder %s406, %s409
      %p418 = scmp.eq.s32.totalorder %s34, 11
      %p419 = por %p417, %p418
      %p420 = scmp.ne.s32.totalorder %s409, %s410
      %p421 = scmp.eq.s32.totalorder %s34, 0
      %p422 = por %p420, %p421
      %p423 = scmp.ne.s32.totalorder %s409, %s410
      %p424 = scmp.eq.s32.totalorder %s35, 11
      %p425 = por %p423, %p424
      %p427 = scmp.ne.s32.totalorder %s410, %s426
      %p428 = scmp.eq.s32.totalorder %s35, 0
      %p429 = por %p427, %p428
      %s430 = ssub.s32 %s36, %s48
      %s431 = ssub.s32 %s37, %s44
      %s432 = sor.u32 %s430, %s431
      %p433 = scmp.eq.s32.totalorder %s432, 0
      %s435 = sadd.s32 %s434, 1
      %s436 = scalar_select %p433, %s434, %s435
      %p439 = pneg %p433
      %p440 = scmp.eq.s32.totalorder %s29, 11
      %p441 = por %p439, %p440
      %p442 = scmp.ne.s32.totalorder %s434, %s437
      %p443 = scmp.eq.s32.totalorder %s29, 0
      %p444 = por %p442, %p443
      %p445 = scmp.ne.s32.totalorder %s434, %s437
      %p446 = scmp.eq.s32.totalorder %s34, 11
      %p447 = por %p445, %p446
      %p448 = scmp.ne.s32.totalorder %s437, %s438
      %p449 = scmp.eq.s32.totalorder %s34, 0
      %p450 = por %p448, %p449
      %p451 = scmp.ne.s32.totalorder %s437, %s438
      %p452 = scmp.eq.s32.totalorder %s35, 11
      %p453 = por %p451, %p452
      %p455 = scmp.ne.s32.totalorder %s438, %s454
      %p456 = scmp.eq.s32.totalorder %s35, 0
      %p457 = por %p455, %p456
      %s458 = ssub.s32 %s36, %s48
      %s459 = ssub.s32 %s37, %s44
      %s460 = sor.u32 %s458, %s459
      %p461 = scmp.eq.s32.totalorder %s460, 0
      %s463 = sadd.s32 %s462, 1
      %s464 = scalar_select %p461, %s462, %s463
      %p467 = pneg %p461
      %p468 = scmp.eq.s32.totalorder %s29, 11
      %p469 = por %p467, %p468
      %p470 = scmp.ne.s32.totalorder %s462, %s465
      %p471 = scmp.eq.s32.totalorder %s29, 0
      %p472 = por %p470, %p471
      %p473 = scmp.ne.s32.totalorder %s462, %s465
      %p474 = scmp.eq.s32.totalorder %s34, 11
      %p475 = por %p473, %p474
      %p476 = scmp.ne.s32.totalorder %s465, %s466
      %p477 = scmp.eq.s32.totalorder %s34, 0
      %p478 = por %p476, %p477
      %p479 = scmp.ne.s32.totalorder %s465, %s466
      %p480 = scmp.eq.s32.totalorder %s35, 11
      %p481 = por %p479, %p480
      %p483 = scmp.ne.s32.totalorder %s466, %s482
      %p484 = scmp.eq.s32.totalorder %s35, 0
      %p485 = por %p483, %p484
      %p486 = scmp.le.s32.totalorder 1, %s29
      %p487 = scmp.lt.s32.totalorder %s29, 13
      %p488 = pnand %p486, %p487
      %p489 = pneg %p488
      // Predicated region
      $region9: #{diffmesh_forward.3} parent=5 // pred_check
        _
      $region10: #{diffmesh_forward.3} parent=5 // pred_check_branch
        %491 = sbr.rel (%p488) target = $region12
      $region11: #{diffmesh_forward.3} parent=5 // pred_region
        %s492 = ssub.s32 %s29, 1
        // Predicated region
        $region13: #{diffmesh_forward.3} parent=11 // pred_check
          %p493 = pneg %p142
        $region14: #{diffmesh_forward.3} parent=11 // pred_check_branch
          %495 = sbr.rel (%p493) target = $region16
        $region15: #{diffmesh_forward.3} parent=11 // pred_region
          _
        $region16: #{diffmesh_forward.3} parent=11 // pred_fallthru
          _
        // Predicated region
        $region17: #{diffmesh_forward.3} parent=11 // pred_check
          %p496 = pneg %p163
        $region18: #{diffmesh_forward.3} parent=11 // pred_check_branch
          %498 = sbr.rel (%p496) target = $region20
        $region19: #{diffmesh_forward.3} parent=11 // pred_region
          _
        $region20: #{diffmesh_forward.3} parent=11 // pred_fallthru
          _
        // Predicated region
        $region21: #{diffmesh_forward.3} parent=11 // pred_check
          %p499 = pneg %p184
        $region22: #{diffmesh_forward.3} parent=11 // pred_check_branch
          %501 = sbr.rel (%p499) target = $region24
        $region23: #{diffmesh_forward.3} parent=11 // pred_region
          _
        $region24: #{diffmesh_forward.3} parent=11 // pred_fallthru
          _
        // Predicated region
        $region25: #{diffmesh_forward.3} parent=11 // pred_check
          %p502 = pneg %p205
        $region26: #{diffmesh_forward.3} parent=11 // pred_check_branch
          %504 = sbr.rel (%p502) target = $region28
        $region27: #{diffmesh_forward.3} parent=11 // pred_region
          _
        $region28: #{diffmesh_forward.3} parent=11 // pred_fallthru
          _
        // Predicated region
        $region29: #{diffmesh_forward.3} parent=11 // pred_check
          %p505 = pneg %p226
        $region30: #{diffmesh_forward.3} parent=11 // pred_check_branch
          %507 = sbr.rel (%p505) target = $region32
        $region31: #{diffmesh_forward.3} parent=11 // pred_region
          _
        $region32: #{diffmesh_forward.3} parent=11 // pred_fallthru
          _
        // Predicated region
        $region33: #{diffmesh_forward.3} parent=11 // pred_check
          %p508 = pneg %p247
        $region34: #{diffmesh_forward.3} parent=11 // pred_check_branch
          %510 = sbr.rel (%p508) target = $region36
        $region35: #{diffmesh_forward.3} parent=11 // pred_region
          _
        $region36: #{diffmesh_forward.3} parent=11 // pred_fallthru
          _
        // Predicated region
        $region37: #{diffmesh_forward.3} parent=11 // pred_check
          %p511 = pneg %p268
        $region38: #{diffmesh_forward.3} parent=11 // pred_check_branch
          %513 = sbr.rel (%p511) target = $region40
        $region39: #{diffmesh_forward.3} parent=11 // pred_region
          _
        $region40: #{diffmesh_forward.3} parent=11 // pred_fallthru
          _
        // Predicated region
        $region41: #{diffmesh_forward.3} parent=11 // pred_check
          %p514 = pneg %p289
        $region42: #{diffmesh_forward.3} parent=11 // pred_check_branch
          %516 = sbr.rel (%p514) target = $region44
        $region43: #{diffmesh_forward.3} parent=11 // pred_region
          _
        $region44: #{diffmesh_forward.3} parent=11 // pred_fallthru
          _
        // Predicated region
        $region45: #{diffmesh_forward.3} parent=11 // pred_check
          %p517 = pneg %p310
        $region46: #{diffmesh_forward.3} parent=11 // pred_check_branch
          %519 = sbr.rel (%p517) target = $region48
        $region47: #{diffmesh_forward.3} parent=11 // pred_region
          _
        $region48: #{diffmesh_forward.3} parent=11 // pred_fallthru
          _
        // Predicated region
        $region49: #{diffmesh_forward.3} parent=11 // pred_check
          %p520 = pneg %p331
        $region50: #{diffmesh_forward.3} parent=11 // pred_check_branch
          %522 = sbr.rel (%p520) target = $region52
        $region51: #{diffmesh_forward.3} parent=11 // pred_region
          _
        $region52: #{diffmesh_forward.3} parent=11 // pred_fallthru
          _
        // Predicated region
        $region53: #{diffmesh_forward.3} parent=11 // pred_check
          %p523 = pneg %p352
        $region54: #{diffmesh_forward.3} parent=11 // pred_check_branch
          %525 = sbr.rel (%p523) target = $region56
        $region55: #{diffmesh_forward.3} parent=11 // pred_region
          %527 = vsyncadd [#allocation4], 0
          %s528 = sshll.u32 %s13, 4
          %s529 = int_to_ptr.hbm [resolvable:$true] %s528
          %s530 = sshll.u32 [#allocation3], 4
          %s531 = int_to_ptr.vmem [resolvable:$true] %s530
          %536 = dma.hbm_to_vmem [thread:$0]  %s529, 32, %s531, [#allocation4], 16, 16, 1
        $region56: #{diffmesh_forward.3} parent=11 // pred_fallthru
          _
        // Predicated region
        $region57: #{diffmesh_forward.3} parent=11 // pred_check
          %p537 = pneg %p373
        $region58: #{diffmesh_forward.3} parent=11 // pred_check_branch
          %539 = sbr.rel (%p537) target = $region60
        $region59: #{diffmesh_forward.3} parent=11 // pred_region
          _
        $region60: #{diffmesh_forward.3} parent=11 // pred_fallthru
          _
        // Predicated region
        $region61: #{diffmesh_forward.3} parent=11 // pred_check
          %p540 = pneg %p394
        $region62: #{diffmesh_forward.3} parent=11 // pred_check_branch
          %542 = sbr.rel (%p540) target = $region64
        $region63: #{diffmesh_forward.3} parent=11 // pred_region
          _
        $region64: #{diffmesh_forward.3} parent=11 // pred_fallthru
          _
      $region12: #{diffmesh_forward.3} parent=5 // pred_fallthru
        _
      %p543 = scmp.lt.s32.totalorder %s29, 12
      // Predicated region
      $region65: #{diffmesh_forward.3} parent=5 // pred_check
        %p544 = pneg %p543
      $region66: #{diffmesh_forward.3} parent=5 // pred_check_branch
        %546 = sbr.rel (%p544) target = $region68
      $region67: #{diffmesh_forward.3} parent=5 // pred_region
        // Predicated region
        $region69: #{diffmesh_forward.3} parent=67 // pred_check
          %p547 = pneg %p61
        $region70: #{diffmesh_forward.3} parent=67 // pred_check_branch
          %549 = sbr.rel (%p547) target = $region72
        $region71: #{diffmesh_forward.3} parent=67 // pred_region
          %p550 = scmp.lt.s32.totalorder %s36, 1
          %s551 = scalar_select %p550, %s36, 1
          %s552 = smul.addr %s551, 8
          %s553 = scalar_lea.vmem %s0, %s552
        $region72: #{diffmesh_forward.3} parent=67 // pred_fallthru
          _
        // Predicated region
        $region73: #{diffmesh_forward.3} parent=67 // pred_check
          %p554 = pneg %p89
        $region74: #{diffmesh_forward.3} parent=67 // pred_check_branch
          %556 = sbr.rel (%p554) target = $region76
        $region75: #{diffmesh_forward.3} parent=67 // pred_region
          %p557 = scmp.lt.s32.totalorder %s36, 1
          %s558 = scalar_select %p557, %s36, 1
          %p559 = scmp.lt.s32.totalorder %s37, 5
          %s560 = scalar_select %p559, %s37, 5
          %s561 = smul.addr %s558, 6
          %s562 = sadd.s32 %s560, %s561
          %s563 = smul.addr %s562, 8
          %s564 = scalar_lea.vmem %s1, %s563
        $region76: #{diffmesh_forward.3} parent=67 // pred_fallthru
          _
        // Predicated region
        $region77: #{diffmesh_forward.3} parent=67 // pred_check
          %p565 = pneg %p115
        $region78: #{diffmesh_forward.3} parent=67 // pred_check_branch
          %567 = sbr.rel (%p565) target = $region80
        $region79: #{diffmesh_forward.3} parent=67 // pred_region
          %p568 = scmp.lt.s32.totalorder %s37, 5
          %s569 = scalar_select %p568, %s37, 5
          %s570 = smul.addr %s569, 4
          %s571 = scalar_lea.vmem %s2, %s570
        $region80: #{diffmesh_forward.3} parent=67 // pred_fallthru
          _
      $region68: #{diffmesh_forward.3} parent=5 // pred_fallthru
        _
      %p572 = scmp.le.s32.totalorder 1, %s29
      %p573 = scmp.lt.s32.totalorder %s29, 13
      %p574 = pnand %p572, %p573
      %p575 = pneg %p574
      // Predicated region
      $region81: #{diffmesh_forward.3} parent=5 // pred_check
        _
      $region82: #{diffmesh_forward.3} parent=5 // pred_check_branch
        %577 = sbr.rel (%p574) target = $region84
      $region83: #{diffmesh_forward.3} parent=5 // pred_region
        %s578 = ssub.s32 %s29, 1
        // Predicated region
        $region85: #{diffmesh_forward.3} parent=83 // pred_check
          %p579 = pneg %p352
        $region86: #{diffmesh_forward.3} parent=83 // pred_check_branch
          %581 = sbr.rel (%p579) target = $region88
        $region87: #{diffmesh_forward.3} parent=83 // pred_region
          %583 = dma.done [#allocation4], 32
        $region88: #{diffmesh_forward.3} parent=83 // pred_fallthru
          _
        %p584 = scmp.lt.s32.totalorder %s38, 1
        %s585 = scalar_select %p584, %s38, 1
        %s586 = smul.addr %s585, 8
        %s587 = scalar_lea.vmem %s0, %s586
        %p588 = pneg %p67
        %p589 = pneg %p64
        %p590 = scmp.lt.s32.totalorder %s38, 1
        %s591 = scalar_select %p590, %s38, 1
        %p592 = scmp.lt.s32.totalorder %s39, 5
        %s593 = scalar_select %p592, %s39, 5
        %s594 = smul.addr %s591, 6
        %s595 = sadd.s32 %s593, %s594
        %s596 = smul.addr %s595, 8
        %s597 = scalar_lea.vmem %s1, %s596
        %p598 = pneg %p95
        %p599 = pneg %p92
        %p600 = scmp.lt.s32.totalorder %s39, 5
        %s601 = scalar_select %p600, %s39, 5
        %s602 = smul.addr %s601, 4
        %s603 = scalar_lea.vmem %s2, %s602
        %p604 = pneg %p121
        %p605 = pneg %p118
        %p606 = pneg %p142
        %p607 = pneg %p139
        %p608 = pneg %p163
        %p609 = pneg %p160
        %p610 = pneg %p184
        %p611 = pneg %p181
        %p612 = pneg %p205
        %p613 = pneg %p202
        %p614 = pneg %p226
        %p615 = pneg %p223
        %p616 = pneg %p247
        %p617 = pneg %p244
        %p618 = pneg %p268
        %p619 = pneg %p265
        %p620 = pneg %p289
        %p621 = pneg %p286
        %p622 = pneg %p310
        %p623 = pneg %p307
        %p624 = pneg %p331
        %p625 = pneg %p328
        %p626 = pneg %p352
        %p627 = pneg %p349
        %p628 = pneg %p373
        %p629 = pneg %p370
        %p630 = pneg %p394
        %p631 = pneg %p391
        %p632 = pneg %p422
        %p633 = pneg %p419
        %s634 = sand.u32 %s409, 1
        %s635 = scalar_lea.sflag [#allocation5], %s634
        %s636 = sand.u32 %s409, 1
        %s637 = smul.addr %s636, 8
        %s638 = scalar_lea.vmem [#allocation6], %s637
        %p639 = pneg %p450
        %p640 = pneg %p447
        %p641 = scmp.lt.s32.totalorder %s38, 1
        %s642 = scalar_select %p641, %s38, 1
        %p643 = scmp.lt.s32.totalorder %s39, 5
        %s644 = scalar_select %p643, %s39, 5
        %s645 = smul.addr %s642, 6
        %s646 = sadd.s32 %s644, %s645
        %s647 = smul.addr %s646, 8
        %s648 = scalar_lea.vmem %s17, %s647
        %p649 = pneg %p478
        %p650 = pneg %p475
        %p651 = scmp.lt.s32.totalorder %s38, 1
        %s652 = scalar_select %p651, %s38, 1
        %p653 = scmp.lt.s32.totalorder %s39, 5
        %s654 = scalar_select %p653, %s39, 5
        %s655 = smul.addr %s652, 6
        %s656 = sadd.s32 %s654, %s655
        %s657 = smul.addr %s656, 8
        %s658 = scalar_lea.vmem %s18, %s657
        %p659 = scmp.lt.s32.totalorder %s38, 1
        %s660 = scalar_select %p659, %s38, 1
        %s661 = smul.addr %s660, 8
        %s662 = scalar_lea.vmem %s0, %s661
        %p663 = scmp.lt.s32.totalorder %s38, 1
        %s664 = scalar_select %p663, %s38, 1
        %p665 = scmp.lt.s32.totalorder %s39, 5
        %s666 = scalar_select %p665, %s39, 5
        %s667 = smul.addr %s664, 6
        %s668 = sadd.s32 %s666, %s667
        %s669 = smul.addr %s668, 8
        %s670 = scalar_lea.vmem %s1, %s669
        %p671 = scmp.lt.s32.totalorder %s39, 5
        %s672 = scalar_select %p671, %s39, 5
        %s673 = smul.addr %s672, 4
        %s674 = scalar_lea.vmem %s2, %s673
        %p675 = scmp.lt.s32.totalorder %s38, 1
        %s676 = scalar_select %p675, %s38, 1
        %p677 = scmp.lt.s32.totalorder %s39, 5
        %s678 = scalar_select %p677, %s39, 5
        %s679 = smul.addr %s676, 6
        %s680 = sadd.s32 %s678, %s679
        %s681 = smul.addr %s680, 8
        %s682 = scalar_lea.vmem %s17, %s681
        %p683 = scmp.lt.s32.totalorder %s38, 1
        %s684 = scalar_select %p683, %s38, 1
        %p685 = scmp.lt.s32.totalorder %s39, 5
        %s686 = scalar_select %p685, %s39, 5
        %s687 = smul.addr %s684, 6
        %s688 = sadd.s32 %s686, %s687
        %s689 = smul.addr %s688, 8
        %s690 = scalar_lea.vmem %s18, %s689
        %p692 = scmp.eq.s32.totalorder %s39, 0
        // Predicated region
        $region89: #{diffmesh_forward.3} parent=83 // pred_check
          %p693 = pneg %p692
        $region90: #{diffmesh_forward.3} parent=83 // pred_check_branch
          %695 = sbr.rel (%p693) target = $region92
        $region91: #{diffmesh_forward.3} parent=83 // pred_region
          %v696 = vld [vmem:[%s662] sm:$0xff]
          %vm697 = vcmask 261120
          %698 = vst.msk [vmem:[#allocation2] sm:$0xff] %vm697, %v696
        $region92: #{diffmesh_forward.3} parent=83 // pred_fallthru
          _
        %v699 = vld [vmem:[#allocation2] sm:$0xff]
        %v700 = vld [vmem:[%s674] sm:$0x7]
        %v701 = vperm.slane %v700, 0
        %v702 = vadd.f32 %v699, %v701
        %v703 = vld [vmem:[%s670] sm:$0xff]
        %v704 = vadd.f32 %v703, %v701
        %v705 = vld [vmem:[%s3] sm:$0xff]
        %v706 = vld [vmem:[%s3 + $0x8] sm:$0xff]
        %v707 = vadd.f32 %v702, %v705
        %v708 = vadd.f32 %v704, %v706
        %v709 = vld [vmem:[%s4] sm:$0x1]
        %s710 = scalar_lea.vmem %s4, 1
        %v711 = vld [vmem:[%s710] sm:$0x1]
        %vm712 = vcmask 261120
        %v713 = vsel %vm712, %v707, 0.0
        %714 = vadd.xlane.f32.xlu0 %v713
        %v715 = vpop.xlane.xlu0 %714
        %v716 = vsel %vm712, %v708, 0.0
        %717 = vadd.xlane.f32.xlu0 %v716
        %v718 = vpop.xlane.xlu0 %717
        %v719 = vrcp.pop 32.0
        %v720 = vmul.f32 32.0, %v719
        %v721 = vsub.f32 1.0, %v720
        %v722 = vmul.f32 %v719, %v721
        %v723 = vadd.f32 %v719, %v722
        %vm724 = vweird.f32 %v719
        %v725 = vsel %vm724, %v719, %v723
        %v726 = vmul.f32 %v715, %v725
        %v727 = vmul.f32 %v718, %v725
        %v728 = vsub.f32 %v707, %v726
        %v729 = vsub.f32 %v708, %v727
        %v730 = vmul.f32 %v728, %v728
        %v731 = vmul.f32 %v729, %v729
        %v732 = vsel %vm712, %v730, 0.0
        %733 = vadd.xlane.f32.xlu0 %v732
        %v734 = vpop.xlane.xlu0 %733
        %v735 = vsel %vm712, %v731, 0.0
        %736 = vadd.xlane.f32.xlu0 %v735
        %v737 = vpop.xlane.xlu0 %736
        %v738 = vmul.f32 %v734, %v725
        %v739 = vmul.f32 %v737, %v725
        %v740 = vadd.f32 %v738, 1e-05
        %v741 = vadd.f32 %v739, 1e-05
        %v742 = vrsqrt.pop %v740
        %v743 = vmul.f32 %v742, %v740
        %v744 = vmul.f32 %v743, %v742
        %v745 = vmul.f32 0.5, %v744
        %v746 = vsub.f32 1.5, %v745
        %v747 = vmul.f32 %v742, %v746
        %vm748 = vweird.f32 %v740
        %vm749 = vweird.f32 %v742
        %vm750 = vmor %vm748, %vm749
        %v751 = vsel %vm750, %v742, %v747
        %v752 = vrsqrt.pop %v741
        %v753 = vmul.f32 %v752, %v741
        %v754 = vmul.f32 %v753, %v752
        %v755 = vmul.f32 0.5, %v754
        %v756 = vsub.f32 1.5, %v755
        %v757 = vmul.f32 %v752, %v756
        %vm758 = vweird.f32 %v741
        %vm759 = vweird.f32 %v752
        %vm760 = vmor %vm758, %vm759
        %v761 = vsel %vm760, %v752, %v757
        %v762 = vmul.f32 %v728, %v751
        %v763 = vmul.f32 %v729, %v761
        %v765 = vperm.slane %v709, 0
        %v767 = vmul.f32 %v762, %v765
        %v768 = vmul.f32 %v763, %v765
        %v770 = vperm.slane %v711, 0
        %v772 = vadd.f32 %v767, %v770
        %v773 = vadd.f32 %v768, %v770
        %v774 = vld [vmem:[%s5] sm:$0xf]
        %v775 = vld [vmem:[%s5 + $0x4] sm:$0xf]
        %v776 = vld [vmem:[%s5 + $0x8] sm:$0xf]
        %v777 = vld [vmem:[%s5 + $0xc] sm:$0xf]
        %v778 = vpack.c.bf16 %v773, %v772
        %v779 = vld [vmem:[%s6] sm:$0x1]
        %v781 = vperm.slane %v779, 0
        %v787 = vunpack.c.l.b16 %v774
        %v788 = vunpack.c.l.b16 %v775
        %v789 = vunpack.c.l.b16 %v776
        %v790 = vunpack.c.l.b16 %v777
        %v791 = vpack.c.b16 %v788, %v787
        %v792 = vpack.c.b16 %v790, %v789
        %v796 = vsel %vm712, %v778, 0
        %798 = vmatpush.bf16.msra.mxu0 0
        %799 = vmatpush.bf16.msra.mxu0 0
        %800 = vmatpush.bf16.msra.mxu0 0
        %801 = vmatpush.bf16.msra.mxu0 0
        %802 = vmatpush.bf16.msra.mxu0 0
        %803 = vmatpush.bf16.msra.mxu0 0
        %804 = vmatpush.bf16.msra.mxu0 %v792
        %805 = vmatpush.bf16.msra.mxu0 %v791
        %806 = vmatmul.bf16.gmra.mxu0 %v796
        %v807 = vpop.f32.mrf.mxu0
        %v808 = vadd.f32 %v781, %v807
        %v809 = vpop.f32.mrf.mxu0
        %v810 = vadd.f32 %v781, %v809
        %811 = vdwg.mxu0
        %v812 = vpack.c.bf16 %v810, %v808
        %814 = vrot.lane.b32.xlu0 %v812, 96
        %v815 = vpop.permute.xlu0 %814
        %vm816 = vcmask 64512
        %v818 = vsel %vm816, %v812, 0
        %v821 = vsel %vm816, %v815, 0
        %823 = vmatpush.bf16.xpose.msra.mxu0 0
        %824 = vmatpush.bf16.xpose.msra.mxu0 0
        %825 = vmatpush.bf16.xpose.msra.mxu0 0
        %826 = vmatpush.bf16.xpose.msra.mxu0 0
        %827 = vmatpush.bf16.xpose.msra.mxu0 0
        %828 = vmatpush.bf16.xpose.msra.mxu0 0
        %829 = vmatpush.bf16.xpose.msra.mxu0 0
        %830 = vmatpush.bf16.xpose.msra.mxu0 %v821
        %831 = vmatmul.bf16.gmra.mxu0 %v818
        %v832 = vpop.f32.mrf.mxu0
        %v833 = vadd.f32 0.0, %v832
        %v834 = vpop.f32.mrf.mxu0
        %v835 = vadd.f32 0.0, %v834
        %836 = vdwg.mxu0
        %v837 = vmul.f32 %v833, 0.35355338
        %v838 = vmul.f32 %v835, 0.35355338
        %vm839 = vcmask 130048
        %v840 = vsel %vm839, %v837, -inf
        %841 = vmax.xlane.f32.xlu0 %v840
        %v842 = vpop.xlane.xlu0 %841
        %v843 = vsel %vm839, %v838, -inf
        %844 = vmax.xlane.f32.xlu0 %v843
        %v845 = vpop.xlane.xlu0 %844
        %v846 = vsub.f32 %v837, %v842
        %v847 = vsub.f32 %v838, %v845
        %v848 = vmul.f32 %v846, 1.442695
        %v849 = vpow.pop %v848
        %v850 = vmul.f32 %v847, 1.442695
        %v851 = vpow.pop %v850
        %v852 = vsel %vm839, %v849, 0.0
        %853 = vadd.xlane.f32.xlu0 %v852
        %v854 = vpop.xlane.xlu0 %853
        %v855 = vsel %vm839, %v851, 0.0
        %856 = vadd.xlane.f32.xlu0 %v855
        %v857 = vpop.xlane.xlu0 %856
        %v858 = vrcp.pop %v854
        %v859 = vrcp.pop %v857
        %v860 = vmul.f32 %v849, %v858
        %v861 = vmul.f32 %v851, %v859
        %v862 = vpack.c.bf16 %v861, %v860
        %863 = vrot.lane.b32.xlu0 %v812, 64
        %v864 = vpop.permute.xlu0 %863
        %v867 = vsel %vm839, %v862, 0
        %869 = vmatpush.bf16.msra.mxu0 0
        %870 = vmatpush.bf16.msra.mxu0 0
        %871 = vmatpush.bf16.msra.mxu0 0
        %872 = vmatpush.bf16.msra.mxu0 0
        %873 = vmatpush.bf16.msra.mxu0 0
        %874 = vmatpush.bf16.msra.mxu0 0
        %875 = vmatpush.bf16.msra.mxu0 0
        %876 = vmatpush.bf16.msra.mxu0 %v864
        %877 = vmatmul.bf16.gmra.mxu0 %v867
        %v878 = vpop.f32.mrf.mxu0
        %v879 = vadd.f32 0.0, %v878
        %v880 = vpop.f32.mrf.mxu0
        %v881 = vadd.f32 0.0, %v880
        %882 = vdwg.mxu0
        %883 = vrot.lane.b32.xlu0 %v812, 120
        %v884 = vpop.permute.xlu0 %883
        %885 = vrot.lane.b32.xlu0 %v812, 88
        %v886 = vpop.permute.xlu0 %885
        %v888 = vsel %vm816, %v884, 0
        %v891 = vsel %vm816, %v886, 0
        %893 = vmatpush.bf16.xpose.msra.mxu0 0
        %894 = vmatpush.bf16.xpose.msra.mxu0 0
        %895 = vmatpush.bf16.xpose.msra.mxu0 0
        %896 = vmatpush.bf16.xpose.msra.mxu0 0
        %897 = vmatpush.bf16.xpose.msra.mxu0 0
        %898 = vmatpush.bf16.xpose.msra.mxu0 0
        %899 = vmatpush.bf16.xpose.msra.mxu0 0
        %900 = vmatpush.bf16.xpose.msra.mxu0 %v891
        %901 = vmatmul.bf16.gmra.mxu0 %v888
        %v902 = vpop.f32.mrf.mxu0
        %v903 = vadd.f32 0.0, %v902
        %v904 = vpop.f32.mrf.mxu0
        %v905 = vadd.f32 0.0, %v904
        %906 = vdwg.mxu0
        %v907 = vmul.f32 %v903, 0.35355338
        %v908 = vmul.f32 %v905, 0.35355338
        %v909 = vsel %vm839, %v907, -inf
        %910 = vmax.xlane.f32.xlu0 %v909
        %v911 = vpop.xlane.xlu0 %910
        %v912 = vsel %vm839, %v908, -inf
        %913 = vmax.xlane.f32.xlu0 %v912
        %v914 = vpop.xlane.xlu0 %913
        %v915 = vsub.f32 %v907, %v911
        %v916 = vsub.f32 %v908, %v914
        %v917 = vmul.f32 %v915, 1.442695
        %v918 = vpow.pop %v917
        %v919 = vmul.f32 %v916, 1.442695
        %v920 = vpow.pop %v919
        %v921 = vsel %vm839, %v918, 0.0
        %922 = vadd.xlane.f32.xlu0 %v921
        %v923 = vpop.xlane.xlu0 %922
        %v924 = vsel %vm839, %v920, 0.0
        %925 = vadd.xlane.f32.xlu0 %v924
        %v926 = vpop.xlane.xlu0 %925
        %v927 = vrcp.pop %v923
        %v928 = vrcp.pop %v926
        %v929 = vmul.f32 %v918, %v927
        %v930 = vmul.f32 %v920, %v928
        %v931 = vpack.c.bf16 %v930, %v929
        %932 = vrot.lane.b32.xlu0 %v812, 56
        %v933 = vpop.permute.xlu0 %932
        %v936 = vsel %vm839, %v931, 0
        %938 = vmatpush.bf16.msra.mxu0 0
        %939 = vmatpush.bf16.msra.mxu0 0
        %940 = vmatpush.bf16.msra.mxu0 0
        %941 = vmatpush.bf16.msra.mxu0 0
        %942 = vmatpush.bf16.msra.mxu0 0
        %943 = vmatpush.bf16.msra.mxu0 0
        %944 = vmatpush.bf16.msra.mxu0 0
        %945 = vmatpush.bf16.msra.mxu0 %v933
        %946 = vmatmul.bf16.gmra.mxu0 %v936
        %v947 = vpop.f32.mrf.mxu0
        %v948 = vadd.f32 0.0, %v947
        %v949 = vpop.f32.mrf.mxu0
        %v950 = vadd.f32 0.0, %v949
        %951 = vdwg.mxu0
        %952 = vrot.lane.b32.xlu0 %v812, 112
        %v953 = vpop.permute.xlu0 %952
        %954 = vrot.lane.b32.xlu0 %v812, 80
        %v955 = vpop.permute.xlu0 %954
        %v957 = vsel %vm816, %v953, 0
        %v960 = vsel %vm816, %v955, 0
        %962 = vmatpush.bf16.xpose.msra.mxu0 0
        %963 = vmatpush.bf16.xpose.msra.mxu0 0
        %964 = vmatpush.bf16.xpose.msra.mxu0 0
        %965 = vmatpush.bf16.xpose.msra.mxu0 0
        %966 = vmatpush.bf16.xpose.msra.mxu0 0
        %967 = vmatpush.bf16.xpose.msra.mxu0 0
        %968 = vmatpush.bf16.xpose.msra.mxu0 0
        %969 = vmatpush.bf16.xpose.msra.mxu0 %v960
        %970 = vmatmul.bf16.gmra.mxu0 %v957
        %v971 = vpop.f32.mrf.mxu0
        %v972 = vadd.f32 0.0, %v971
        %v973 = vpop.f32.mrf.mxu0
        %v974 = vadd.f32 0.0, %v973
        %975 = vdwg.mxu0
        %v976 = vmul.f32 %v972, 0.35355338
        %v977 = vmul.f32 %v974, 0.35355338
        %v978 = vsel %vm839, %v976, -inf
        %979 = vmax.xlane.f32.xlu0 %v978
        %v980 = vpop.xlane.xlu0 %979
        %v981 = vsel %vm839, %v977, -inf
        %982 = vmax.xlane.f32.xlu0 %v981
        %v983 = vpop.xlane.xlu0 %982
        %v984 = vsub.f32 %v976, %v980
        %v985 = vsub.f32 %v977, %v983
        %v986 = vmul.f32 %v984, 1.442695
        %v987 = vpow.pop %v986
        %v988 = vmul.f32 %v985, 1.442695
        %v989 = vpow.pop %v988
        %v990 = vsel %vm839, %v987, 0.0
        %991 = vadd.xlane.f32.xlu0 %v990
        %v992 = vpop.xlane.xlu0 %991
        %v993 = vsel %vm839, %v989, 0.0
        %994 = vadd.xlane.f32.xlu0 %v993
        %v995 = vpop.xlane.xlu0 %994
        %v996 = vrcp.pop %v992
        %v997 = vrcp.pop %v995
        %v998 = vmul.f32 %v987, %v996
        %v999 = vmul.f32 %v989, %v997
        %v1000 = vpack.c.bf16 %v999, %v998
        %1001 = vrot.lane.b32.xlu0 %v812, 48
        %v1002 = vpop.permute.xlu0 %1001
        %v1005 = vsel %vm839, %v1000, 0
        %1007 = vmatpush.bf16.msra.mxu0 0
        %1008 = vmatpush.bf16.msra.mxu0 0
        %1009 = vmatpush.bf16.msra.mxu0 0
        %1010 = vmatpush.bf16.msra.mxu0 0
        %1011 = vmatpush.bf16.msra.mxu0 0
        %1012 = vmatpush.bf16.msra.mxu0 0
        %1013 = vmatpush.bf16.msra.mxu0 0
        %1014 = vmatpush.bf16.msra.mxu0 %v1002
        %1015 = vmatmul.bf16.gmra.mxu0 %v1005
        %v1016 = vpop.f32.mrf.mxu0
        %v1017 = vadd.f32 0.0, %v1016
        %v1018 = vpop.f32.mrf.mxu0
        %v1019 = vadd.f32 0.0, %v1018
        %1020 = vdwg.mxu0
        %1021 = vrot.lane.b32.xlu0 %v812, 104
        %v1022 = vpop.permute.xlu0 %1021
        %1023 = vrot.lane.b32.xlu0 %v812, 72
        %v1024 = vpop.permute.xlu0 %1023
        %v1026 = vsel %vm816, %v1022, 0
        %v1029 = vsel %vm816, %v1024, 0
        %1031 = vmatpush.bf16.xpose.msra.mxu0 0
        %1032 = vmatpush.bf16.xpose.msra.mxu0 0
        %1033 = vmatpush.bf16.xpose.msra.mxu0 0
        %1034 = vmatpush.bf16.xpose.msra.mxu0 0
        %1035 = vmatpush.bf16.xpose.msra.mxu0 0
        %1036 = vmatpush.bf16.xpose.msra.mxu0 0
        %1037 = vmatpush.bf16.xpose.msra.mxu0 0
        %1038 = vmatpush.bf16.xpose.msra.mxu0 %v1029
        %1039 = vmatmul.bf16.gmra.mxu0 %v1026
        %v1040 = vpop.f32.mrf.mxu0
        %v1041 = vadd.f32 0.0, %v1040
        %v1042 = vpop.f32.mrf.mxu0
        %v1043 = vadd.f32 0.0, %v1042
        %1044 = vdwg.mxu0
        %v1045 = vmul.f32 %v1041, 0.35355338
        %v1046 = vmul.f32 %v1043, 0.35355338
        %v1047 = vsel %vm839, %v1045, -inf
        %1048 = vmax.xlane.f32.xlu0 %v1047
        %v1049 = vpop.xlane.xlu0 %1048
        %v1050 = vsel %vm839, %v1046, -inf
        %1051 = vmax.xlane.f32.xlu0 %v1050
        %v1052 = vpop.xlane.xlu0 %1051
        %v1053 = vsub.f32 %v1045, %v1049
        %v1054 = vsub.f32 %v1046, %v1052
        %v1055 = vmul.f32 %v1053, 1.442695
        %v1056 = vpow.pop %v1055
        %v1057 = vmul.f32 %v1054, 1.442695
        %v1058 = vpow.pop %v1057
        %v1059 = vsel %vm839, %v1056, 0.0
        %1060 = vadd.xlane.f32.xlu0 %v1059
        %v1061 = vpop.xlane.xlu0 %1060
        %v1062 = vsel %vm839, %v1058, 0.0
        %1063 = vadd.xlane.f32.xlu0 %v1062
        %v1064 = vpop.xlane.xlu0 %1063
        %v1065 = vrcp.pop %v1061
        %v1066 = vrcp.pop %v1064
        %v1067 = vmul.f32 %v1056, %v1065
        %v1068 = vmul.f32 %v1058, %v1066
        %v1069 = vpack.c.bf16 %v1068, %v1067
        %1070 = vrot.lane.b32.xlu0 %v812, 40
        %v1071 = vpop.permute.xlu0 %1070
        %v1074 = vsel %vm839, %v1069, 0
        %1076 = vmatpush.bf16.msra.mxu0 0
        %1077 = vmatpush.bf16.msra.mxu0 0
        %1078 = vmatpush.bf16.msra.mxu0 0
        %1079 = vmatpush.bf16.msra.mxu0 0
        %1080 = vmatpush.bf16.msra.mxu0 0
        %1081 = vmatpush.bf16.msra.mxu0 0
        %1082 = vmatpush.bf16.msra.mxu0 0
        %1083 = vmatpush.bf16.msra.mxu0 %v1071
        %1084 = vmatmul.bf16.gmra.mxu0 %v1074
        %v1085 = vpop.f32.mrf.mxu0
        %v1086 = vadd.f32 0.0, %v1085
        %v1087 = vpop.f32.mrf.mxu0
        %v1088 = vadd.f32 0.0, %v1087
        %1089 = vdwg.mxu0
        %1092 = vrot.lane.b32.xlu0 %v948, 8
        %v1093 = vpop.permute.xlu0 %1092
        %1094 = vrot.lane.b32.xlu0 %v950, 8
        %v1095 = vpop.permute.xlu0 %1094
        %1100 = vrot.lane.b32.xlu0 %v1017, 16
        %v1101 = vpop.permute.xlu0 %1100
        %1102 = vrot.lane.b32.xlu0 %v1019, 16
        %v1103 = vpop.permute.xlu0 %1102
        %1108 = vrot.lane.b32.xlu0 %v1086, 24
        %v1109 = vpop.permute.xlu0 %1108
        %1110 = vrot.lane.b32.xlu0 %v1088, 24
        %v1111 = vpop.permute.xlu0 %1110
        %v1114 = vsel %vm816, %v879, %v1093
        %v1115 = vsel %vm816, %v881, %v1095
        %v1116 = vsel %vm839, %v1114, %v1101
        %v1117 = vsel %vm839, %v1115, %v1103
        %vm1118 = vcmask 195584
        %v1119 = vsel %vm1118, %v1116, %v1109
        %v1120 = vsel %vm1118, %v1117, %v1111
        %v1121 = vld [vmem:[%s7] sm:$0xf]
        %v1122 = vld [vmem:[%s7 + $0x4] sm:$0xf]
        %v1123 = vld [vmem:[%s7 + $0x8] sm:$0xf]
        %v1124 = vld [vmem:[%s7 + $0xc] sm:$0xf]
        %v1125 = vpack.c.bf16 %v1120, %v1119
        %v1130 = vunpack.c.l.b16 %v1121
        %v1131 = vunpack.c.l.b16 %v1122
        %v1132 = vunpack.c.l.b16 %v1123
        %v1133 = vunpack.c.l.b16 %v1124
        %v1134 = vpack.c.b16 %v1131, %v1130
        %v1135 = vpack.c.b16 %v1133, %v1132
        %v1139 = vsel %vm712, %v1125, 0
        %1141 = vmatpush.bf16.msra.mxu0 0
        %1142 = vmatpush.bf16.msra.mxu0 0
        %1143 = vmatpush.bf16.msra.mxu0 0
        %1144 = vmatpush.bf16.msra.mxu0 0
        %1145 = vmatpush.bf16.msra.mxu0 0
        %1146 = vmatpush.bf16.msra.mxu0 0
        %1147 = vmatpush.bf16.msra.mxu0 %v1135
        %1148 = vmatpush.bf16.msra.mxu0 %v1134
        %1149 = vmatmul.bf16.gmra.mxu0 %v1139
        %v1150 = vpop.f32.mrf.mxu0
        %v1151 = vadd.f32 0.0, %v1150
        %v1152 = vpop.f32.mrf.mxu0
        %v1153 = vadd.f32 0.0, %v1152
        %1154 = vdwg.mxu0
        %v1155 = vadd.f32 %v707, %v1151
        %v1156 = vadd.f32 %v708, %v1153
        %v1157 = vld [vmem:[%s8] sm:$0x1]
        %v1159 = vperm.slane %v1157, 0
        %v1161 = vadd.f32 %v1155, %v1159
        %v1162 = vadd.f32 %v1156, %v1159
        %s1163 = scalar_lea.vmem %s4, 2
        %v1164 = vld [vmem:[%s1163] sm:$0x1]
        %s1165 = scalar_lea.vmem %s4, 3
        %v1166 = vld [vmem:[%s1165] sm:$0x1]
        %v1167 = vsel %vm712, %v1161, 0.0
        %1168 = vadd.xlane.f32.xlu0 %v1167
        %v1169 = vpop.xlane.xlu0 %1168
        %v1170 = vsel %vm712, %v1162, 0.0
        %1171 = vadd.xlane.f32.xlu0 %v1170
        %v1172 = vpop.xlane.xlu0 %1171
        %v1173 = vmul.f32 %v1169, %v725
        %v1174 = vmul.f32 %v1172, %v725
        %v1175 = vsub.f32 %v1161, %v1173
        %v1176 = vsub.f32 %v1162, %v1174
        %v1177 = vmul.f32 %v1175, %v1175
        %v1178 = vmul.f32 %v1176, %v1176
        %v1179 = vsel %vm712, %v1177, 0.0
        %1180 = vadd.xlane.f32.xlu0 %v1179
        %v1181 = vpop.xlane.xlu0 %1180
        %v1182 = vsel %vm712, %v1178, 0.0
        %1183 = vadd.xlane.f32.xlu0 %v1182
        %v1184 = vpop.xlane.xlu0 %1183
        %v1185 = vmul.f32 %v1181, %v725
        %v1186 = vmul.f32 %v1184, %v725
        %v1187 = vadd.f32 %v1185, 1e-05
        %v1188 = vadd.f32 %v1186, 1e-05
        %v1189 = vrsqrt.pop %v1187
        %v1190 = vmul.f32 %v1189, %v1187
        %v1191 = vmul.f32 %v1190, %v1189
        %v1192 = vmul.f32 0.5, %v1191
        %v1193 = vsub.f32 1.5, %v1192
        %v1194 = vmul.f32 %v1189, %v1193
        %vm1195 = vweird.f32 %v1187
        %vm1196 = vweird.f32 %v1189
        %vm1197 = vmor %vm1195, %vm1196
        %v1198 = vsel %vm1197, %v1189, %v1194
        %v1199 = vrsqrt.pop %v1188
        %v1200 = vmul.f32 %v1199, %v1188
        %v1201 = vmul.f32 %v1200, %v1199
        %v1202 = vmul.f32 0.5, %v1201
        %v1203 = vsub.f32 1.5, %v1202
        %v1204 = vmul.f32 %v1199, %v1203
        %vm1205 = vweird.f32 %v1188
        %vm1206 = vweird.f32 %v1199
        %vm1207 = vmor %vm1205, %vm1206
        %v1208 = vsel %vm1207, %v1199, %v1204
        %v1209 = vmul.f32 %v1175, %v1198
        %v1210 = vmul.f32 %v1176, %v1208
        %v1212 = vperm.slane %v1164, 0
        %v1214 = vmul.f32 %v1209, %v1212
        %v1215 = vmul.f32 %v1210, %v1212
        %v1217 = vperm.slane %v1166, 0
        %v1219 = vadd.f32 %v1214, %v1217
        %v1220 = vadd.f32 %v1215, %v1217
        %v1221 = vld [vmem:[%s9] sm:$0xf]
        %v1222 = vld [vmem:[%s9 + $0x4] sm:$0xf]
        %v1223 = vld [vmem:[%s9 + $0x8] sm:$0xf]
        %v1224 = vld [vmem:[%s9 + $0xc] sm:$0xf]
        %v1225 = vpack.c.bf16 %v1220, %v1219
        %v1226 = vld [vmem:[%s10] sm:$0x1]
        %v1228 = vperm.slane %v1226, 0
        %v1234 = vunpack.c.l.b16 %v1221
        %v1235 = vunpack.c.l.b16 %v1222
        %v1236 = vunpack.c.l.b16 %v1223
        %v1237 = vunpack.c.l.b16 %v1224
        %v1238 = vpack.c.b16 %v1235, %v1234
        %v1239 = vpack.c.b16 %v1237, %v1236
        %v1243 = vsel %vm712, %v1225, 0
        %1245 = vmatpush.bf16.msra.mxu0 0
        %1246 = vmatpush.bf16.msra.mxu0 0
        %1247 = vmatpush.bf16.msra.mxu0 0
        %1248 = vmatpush.bf16.msra.mxu0 0
        %1249 = vmatpush.bf16.msra.mxu0 0
        %1250 = vmatpush.bf16.msra.mxu0 0
        %1251 = vmatpush.bf16.msra.mxu0 %v1239
        %1252 = vmatpush.bf16.msra.mxu0 %v1238
        %1253 = vmatmul.bf16.gmra.mxu0 %v1243
        %v1254 = vpop.f32.mrf.mxu0
        %v1255 = vadd.f32 %v1228, %v1254
        %v1256 = vpop.f32.mrf.mxu0
        %v1257 = vadd.f32 %v1228, %v1256
        %1258 = vdwg.mxu0
        %v1259 = vmul.f32 %v1255, 0.5
        %v1260 = vmul.f32 %v1257, 0.5
        %v1261 = vmul.f32 %v1255, 0.044715
        %v1262 = vmul.f32 %v1257, 0.044715
        %v1263 = vmul.f32 %v1261, %v1255
        %v1264 = vmul.f32 %v1262, %v1257
        %v1265 = vmul.f32 %v1263, %v1255
        %v1266 = vmul.f32 %v1264, %v1257
        %v1267 = vadd.f32 %v1255, %v1265
        %v1268 = vadd.f32 %v1257, %v1266
        %v1269 = vmul.f32 %v1267, 0.7978846
        %v1270 = vmul.f32 %v1268, 0.7978846
        %v1271 = vtanh.pop %v1269
        %v1272 = vtanh.pop %v1270
        %v1273 = vadd.f32 %v1271, 1.0
        %v1274 = vadd.f32 %v1272, 1.0
        %v1275 = vmul.f32 %v1259, %v1273
        %v1276 = vmul.f32 %v1260, %v1274
        %v1277 = vld [vmem:[%s11] sm:$0xf]
        %v1278 = vld [vmem:[%s11 + $0x4] sm:$0xf]
        %v1279 = vld [vmem:[%s11 + $0x8] sm:$0xf]
        %v1280 = vld [vmem:[%s11 + $0xc] sm:$0xf]
        %v1281 = vld [vmem:[%s11 + $0x10] sm:$0xf]
        %v1282 = vld [vmem:[%s11 + $0x14] sm:$0xf]
        %v1283 = vld [vmem:[%s11 + $0x18] sm:$0xf]
        %v1284 = vld [vmem:[%s11 + $0x1c] sm:$0xf]
        %v1285 = vpack.c.bf16 %v1276, %v1275
        %v1294 = vunpack.c.l.b16 %v1277
        %v1295 = vunpack.c.l.b16 %v1278
        %v1296 = vunpack.c.l.b16 %v1279
        %v1297 = vunpack.c.l.b16 %v1280
        %v1298 = vunpack.c.l.b16 %v1281
        %v1299 = vunpack.c.l.b16 %v1282
        %v1300 = vunpack.c.l.b16 %v1283
        %v1301 = vunpack.c.l.b16 %v1284
        %v1302 = vpack.c.b16 %v1295, %v1294
        %v1303 = vpack.c.b16 %v1297, %v1296
        %v1304 = vpack.c.b16 %v1299, %v1298
        %v1305 = vpack.c.b16 %v1301, %v1300
        %vm1310 = vcmask 523264
        %v1312 = vsel %vm1310, %v1285, 0
        %1314 = vmatpush.bf16.msra.mxu0 0
        %1315 = vmatpush.bf16.msra.mxu0 0
        %1316 = vmatpush.bf16.msra.mxu0 0
        %1317 = vmatpush.bf16.msra.mxu0 0
        %1318 = vmatpush.bf16.msra.mxu0 %v1305
        %1319 = vmatpush.bf16.msra.mxu0 %v1304
        %1320 = vmatpush.bf16.msra.mxu0 %v1303
        %1321 = vmatpush.bf16.msra.mxu0 %v1302
        %1322 = vmatmul.bf16.gmra.mxu0 %v1312
        %v1323 = vpop.f32.mrf.mxu0
        %v1324 = vadd.f32 0.0, %v1323
        %v1325 = vpop.f32.mrf.mxu0
        %v1326 = vadd.f32 0.0, %v1325
        %1327 = vdwg.mxu0
        %v1328 = vadd.f32 %v1161, %v1324
        %v1329 = vadd.f32 %v1162, %v1326
        %v1330 = vld [vmem:[%s12] sm:$0x1]
        %v1332 = vperm.slane %v1330, 0
        %v1334 = vadd.f32 %v1328, %v1332
        %v1335 = vadd.f32 %v1329, %v1332
        %s1336 = scalar_lea.vmem %s4, 4
        %v1337 = vld [vmem:[%s1336] sm:$0x1]
        %s1338 = scalar_lea.vmem %s4, 5
        %v1339 = vld [vmem:[%s1338] sm:$0x1]
        %v1340 = vsel %vm712, %v1334, 0.0
        %1341 = vadd.xlane.f32.xlu0 %v1340
        %v1342 = vpop.xlane.xlu0 %1341
        %v1343 = vsel %vm712, %v1335, 0.0
        %1344 = vadd.xlane.f32.xlu0 %v1343
        %v1345 = vpop.xlane.xlu0 %1344
        %v1346 = vmul.f32 %v1342, %v725
        %v1347 = vmul.f32 %v1345, %v725
        %v1348 = vsub.f32 %v1334, %v1346
        %v1349 = vsub.f32 %v1335, %v1347
        %v1350 = vmul.f32 %v1348, %v1348
        %v1351 = vmul.f32 %v1349, %v1349
        %v1352 = vsel %vm712, %v1350, 0.0
        %1353 = vadd.xlane.f32.xlu0 %v1352
        %v1354 = vpop.xlane.xlu0 %1353
        %v1355 = vsel %vm712, %v1351, 0.0
        %1356 = vadd.xlane.f32.xlu0 %v1355
        %v1357 = vpop.xlane.xlu0 %1356
        %v1358 = vmul.f32 %v1354, %v725
        %v1359 = vmul.f32 %v1357, %v725
        %v1360 = vadd.f32 %v1358, 1e-05
        %v1361 = vadd.f32 %v1359, 1e-05
        %v1362 = vrsqrt.pop %v1360
        %v1363 = vmul.f32 %v1362, %v1360
        %v1364 = vmul.f32 %v1363, %v1362
        %v1365 = vmul.f32 0.5, %v1364
        %v1366 = vsub.f32 1.5, %v1365
        %v1367 = vmul.f32 %v1362, %v1366
        %vm1368 = vweird.f32 %v1360
        %vm1369 = vweird.f32 %v1362
        %vm1370 = vmor %vm1368, %vm1369
        %v1371 = vsel %vm1370, %v1362, %v1367
        %v1372 = vrsqrt.pop %v1361
        %v1373 = vmul.f32 %v1372, %v1361
        %v1374 = vmul.f32 %v1373, %v1372
        %v1375 = vmul.f32 0.5, %v1374
        %v1376 = vsub.f32 1.5, %v1375
        %v1377 = vmul.f32 %v1372, %v1376
        %vm1378 = vweird.f32 %v1361
        %vm1379 = vweird.f32 %v1372
        %vm1380 = vmor %vm1378, %vm1379
        %v1381 = vsel %vm1380, %v1372, %v1377
        %v1382 = vmul.f32 %v1348, %v1371
        %v1383 = vmul.f32 %v1349, %v1381
        %v1385 = vperm.slane %v1337, 0
        %v1387 = vmul.f32 %v1382, %v1385
        %v1388 = vmul.f32 %v1383, %v1385
        %v1390 = vperm.slane %v1339, 0
        %v1392 = vadd.f32 %v1387, %v1390
        %v1393 = vadd.f32 %v1388, %v1390
        %s1394 = scalar_lea.vmem %s5, 16
        %v1395 = vld [vmem:[%s1394] sm:$0xf]
        %v1396 = vld [vmem:[%s1394 + $0x4] sm:$0xf]
        %v1397 = vld [vmem:[%s1394 + $0x8] sm:$0xf]
        %v1398 = vld [vmem:[%s1394 + $0xc] sm:$0xf]
        %v1399 = vpack.c.bf16 %v1393, %v1392
        %s1400 = scalar_lea.vmem %s6, 1
        %v1401 = vld [vmem:[%s1400] sm:$0x1]
        %v1403 = vperm.slane %v1401, 0
        %v1409 = vunpack.c.l.b16 %v1395
        %v1410 = vunpack.c.l.b16 %v1396
        %v1411 = vunpack.c.l.b16 %v1397
        %v1412 = vunpack.c.l.b16 %v1398
        %v1413 = vpack.c.b16 %v1410, %v1409
        %v1414 = vpack.c.b16 %v1412, %v1411
        %v1418 = vsel %vm712, %v1399, 0
        %1420 = vmatpush.bf16.msra.mxu0 0
        %1421 = vmatpush.bf16.msra.mxu0 0
        %1422 = vmatpush.bf16.msra.mxu0 0
        %1423 = vmatpush.bf16.msra.mxu0 0
        %1424 = vmatpush.bf16.msra.mxu0 0
        %1425 = vmatpush.bf16.msra.mxu0 0
        %1426 = vmatpush.bf16.msra.mxu0 %v1414
        %1427 = vmatpush.bf16.msra.mxu0 %v1413
        %1428 = vmatmul.bf16.gmra.mxu0 %v1418
        %v1429 = vpop.f32.mrf.mxu0
        %v1430 = vadd.f32 %v1403, %v1429
        %v1431 = vpop.f32.mrf.mxu0
        %v1432 = vadd.f32 %v1403, %v1431
        %1433 = vdwg.mxu0
        %v1434 = vpack.c.bf16 %v1432, %v1430
        %1436 = vrot.lane.b32.xlu0 %v1434, 96
        %v1437 = vpop.permute.xlu0 %1436
        %v1439 = vsel %vm816, %v1434, 0
        %v1442 = vsel %vm816, %v1437, 0
        %1444 = vmatpush.bf16.xpose.msra.mxu0 0
        %1445 = vmatpush.bf16.xpose.msra.mxu0 0
        %1446 = vmatpush.bf16.xpose.msra.mxu0 0
        %1447 = vmatpush.bf16.xpose.msra.mxu0 0
        %1448 = vmatpush.bf16.xpose.msra.mxu0 0
        %1449 = vmatpush.bf16.xpose.msra.mxu0 0
        %1450 = vmatpush.bf16.xpose.msra.mxu0 0
        %1451 = vmatpush.bf16.xpose.msra.mxu0 %v1442
        %1452 = vmatmul.bf16.gmra.mxu0 %v1439
        %v1453 = vpop.f32.mrf.mxu0
        %v1454 = vadd.f32 0.0, %v1453
        %v1455 = vpop.f32.mrf.mxu0
        %v1456 = vadd.f32 0.0, %v1455
        %1457 = vdwg.mxu0
        %v1458 = vmul.f32 %v1454, 0.35355338
        %v1459 = vmul.f32 %v1456, 0.35355338
        %v1460 = vsel %vm839, %v1458, -inf
        %1461 = vmax.xlane.f32.xlu0 %v1460
        %v1462 = vpop.xlane.xlu0 %1461
        %v1463 = vsel %vm839, %v1459, -inf
        %1464 = vmax.xlane.f32.xlu0 %v1463
        %v1465 = vpop.xlane.xlu0 %1464
        %v1466 = vsub.f32 %v1458, %v1462
        %v1467 = vsub.f32 %v1459, %v1465
        %v1468 = vmul.f32 %v1466, 1.442695
        %v1469 = vpow.pop %v1468
        %v1470 = vmul.f32 %v1467, 1.442695
        %v1471 = vpow.pop %v1470
        %v1472 = vsel %vm839, %v1469, 0.0
        %1473 = vadd.xlane.f32.xlu0 %v1472
        %v1474 = vpop.xlane.xlu0 %1473
        %v1475 = vsel %vm839, %v1471, 0.0
        %1476 = vadd.xlane.f32.xlu0 %v1475
        %v1477 = vpop.xlane.xlu0 %1476
        %v1478 = vrcp.pop %v1474
        %v1479 = vrcp.pop %v1477
        %v1480 = vmul.f32 %v1469, %v1478
        %v1481 = vmul.f32 %v1471, %v1479
        %v1482 = vpack.c.bf16 %v1481, %v1480
        %1483 = vrot.lane.b32.xlu0 %v1434, 64
        %v1484 = vpop.permute.xlu0 %1483
        %v1487 = vsel %vm839, %v1482, 0
        %1489 = vmatpush.bf16.msra.mxu0 0
        %1490 = vmatpush.bf16.msra.mxu0 0
        %1491 = vmatpush.bf16.msra.mxu0 0
        %1492 = vmatpush.bf16.msra.mxu0 0
        %1493 = vmatpush.bf16.msra.mxu0 0
        %1494 = vmatpush.bf16.msra.mxu0 0
        %1495 = vmatpush.bf16.msra.mxu0 0
        %1496 = vmatpush.bf16.msra.mxu0 %v1484
        %1497 = vmatmul.bf16.gmra.mxu0 %v1487
        %v1498 = vpop.f32.mrf.mxu0
        %v1499 = vadd.f32 0.0, %v1498
        %v1500 = vpop.f32.mrf.mxu0
        %v1501 = vadd.f32 0.0, %v1500
        %1502 = vdwg.mxu0
        %1503 = vrot.lane.b32.xlu0 %v1434, 120
        %v1504 = vpop.permute.xlu0 %1503
        %1505 = vrot.lane.b32.xlu0 %v1434, 88
        %v1506 = vpop.permute.xlu0 %1505
        %v1508 = vsel %vm816, %v1504, 0
        %v1511 = vsel %vm816, %v1506, 0
        %1513 = vmatpush.bf16.xpose.msra.mxu0 0
        %1514 = vmatpush.bf16.xpose.msra.mxu0 0
        %1515 = vmatpush.bf16.xpose.msra.mxu0 0
        %1516 = vmatpush.bf16.xpose.msra.mxu0 0
        %1517 = vmatpush.bf16.xpose.msra.mxu0 0
        %1518 = vmatpush.bf16.xpose.msra.mxu0 0
        %1519 = vmatpush.bf16.xpose.msra.mxu0 0
        %1520 = vmatpush.bf16.xpose.msra.mxu0 %v1511
        %1521 = vmatmul.bf16.gmra.mxu0 %v1508
        %v1522 = vpop.f32.mrf.mxu0
        %v1523 = vadd.f32 0.0, %v1522
        %v1524 = vpop.f32.mrf.mxu0
        %v1525 = vadd.f32 0.0, %v1524
        %1526 = vdwg.mxu0
        %v1527 = vmul.f32 %v1523, 0.35355338
        %v1528 = vmul.f32 %v1525, 0.35355338
        %v1529 = vsel %vm839, %v1527, -inf
        %1530 = vmax.xlane.f32.xlu0 %v1529
        %v1531 = vpop.xlane.xlu0 %1530
        %v1532 = vsel %vm839, %v1528, -inf
        %1533 = vmax.xlane.f32.xlu0 %v1532
        %v1534 = vpop.xlane.xlu0 %1533
        %v1535 = vsub.f32 %v1527, %v1531
        %v1536 = vsub.f32 %v1528, %v1534
        %v1537 = vmul.f32 %v1535, 1.442695
        %v1538 = vpow.pop %v1537
        %v1539 = vmul.f32 %v1536, 1.442695
        %v1540 = vpow.pop %v1539
        %v1541 = vsel %vm839, %v1538, 0.0
        %1542 = vadd.xlane.f32.xlu0 %v1541
        %v1543 = vpop.xlane.xlu0 %1542
        %v1544 = vsel %vm839, %v1540, 0.0
        %1545 = vadd.xlane.f32.xlu0 %v1544
        %v1546 = vpop.xlane.xlu0 %1545
        %v1547 = vrcp.pop %v1543
        %v1548 = vrcp.pop %v1546
        %v1549 = vmul.f32 %v1538, %v1547
        %v1550 = vmul.f32 %v1540, %v1548
        %v1551 = vpack.c.bf16 %v1550, %v1549
        %1552 = vrot.lane.b32.xlu0 %v1434, 56
        %v1553 = vpop.permute.xlu0 %1552
        %v1556 = vsel %vm839, %v1551, 0
        %1558 = vmatpush.bf16.msra.mxu0 0
        %1559 = vmatpush.bf16.msra.mxu0 0
        %1560 = vmatpush.bf16.msra.mxu0 0
        %1561 = vmatpush.bf16.msra.mxu0 0
        %1562 = vmatpush.bf16.msra.mxu0 0
        %1563 = vmatpush.bf16.msra.mxu0 0
        %1564 = vmatpush.bf16.msra.mxu0 0
        %1565 = vmatpush.bf16.msra.mxu0 %v1553
        %1566 = vmatmul.bf16.gmra.mxu0 %v1556
        %v1567 = vpop.f32.mrf.mxu0
        %v1568 = vadd.f32 0.0, %v1567
        %v1569 = vpop.f32.mrf.mxu0
        %v1570 = vadd.f32 0.0, %v1569
        %1571 = vdwg.mxu0
        %1572 = vrot.lane.b32.xlu0 %v1434, 112
        %v1573 = vpop.permute.xlu0 %1572
        %1574 = vrot.lane.b32.xlu0 %v1434, 80
        %v1575 = vpop.permute.xlu0 %1574
        %v1577 = vsel %vm816, %v1573, 0
        %v1580 = vsel %vm816, %v1575, 0
        %1582 = vmatpush.bf16.xpose.msra.mxu0 0
        %1583 = vmatpush.bf16.xpose.msra.mxu0 0
        %1584 = vmatpush.bf16.xpose.msra.mxu0 0
        %1585 = vmatpush.bf16.xpose.msra.mxu0 0
        %1586 = vmatpush.bf16.xpose.msra.mxu0 0
        %1587 = vmatpush.bf16.xpose.msra.mxu0 0
        %1588 = vmatpush.bf16.xpose.msra.mxu0 0
        %1589 = vmatpush.bf16.xpose.msra.mxu0 %v1580
        %1590 = vmatmul.bf16.gmra.mxu0 %v1577
        %v1591 = vpop.f32.mrf.mxu0
        %v1592 = vadd.f32 0.0, %v1591
        %v1593 = vpop.f32.mrf.mxu0
        %v1594 = vadd.f32 0.0, %v1593
        %1595 = vdwg.mxu0
        %v1596 = vmul.f32 %v1592, 0.35355338
        %v1597 = vmul.f32 %v1594, 0.35355338
        %v1598 = vsel %vm839, %v1596, -inf
        %1599 = vmax.xlane.f32.xlu0 %v1598
        %v1600 = vpop.xlane.xlu0 %1599
        %v1601 = vsel %vm839, %v1597, -inf
        %1602 = vmax.xlane.f32.xlu0 %v1601
        %v1603 = vpop.xlane.xlu0 %1602
        %v1604 = vsub.f32 %v1596, %v1600
        %v1605 = vsub.f32 %v1597, %v1603
        %v1606 = vmul.f32 %v1604, 1.442695
        %v1607 = vpow.pop %v1606
        %v1608 = vmul.f32 %v1605, 1.442695
        %v1609 = vpow.pop %v1608
        %v1610 = vsel %vm839, %v1607, 0.0
        %1611 = vadd.xlane.f32.xlu0 %v1610
        %v1612 = vpop.xlane.xlu0 %1611
        %v1613 = vsel %vm839, %v1609, 0.0
        %1614 = vadd.xlane.f32.xlu0 %v1613
        %v1615 = vpop.xlane.xlu0 %1614
        %v1616 = vrcp.pop %v1612
        %v1617 = vrcp.pop %v1615
        %v1618 = vmul.f32 %v1607, %v1616
        %v1619 = vmul.f32 %v1609, %v1617
        %v1620 = vpack.c.bf16 %v1619, %v1618
        %1621 = vrot.lane.b32.xlu0 %v1434, 48
        %v1622 = vpop.permute.xlu0 %1621
        %v1625 = vsel %vm839, %v1620, 0
        %1627 = vmatpush.bf16.msra.mxu0 0
        %1628 = vmatpush.bf16.msra.mxu0 0
        %1629 = vmatpush.bf16.msra.mxu0 0
        %1630 = vmatpush.bf16.msra.mxu0 0
        %1631 = vmatpush.bf16.msra.mxu0 0
        %1632 = vmatpush.bf16.msra.mxu0 0
        %1633 = vmatpush.bf16.msra.mxu0 0
        %1634 = vmatpush.bf16.msra.mxu0 %v1622
        %1635 = vmatmul.bf16.gmra.mxu0 %v1625
        %v1636 = vpop.f32.mrf.mxu0
        %v1637 = vadd.f32 0.0, %v1636
        %v1638 = vpop.f32.mrf.mxu0
        %v1639 = vadd.f32 0.0, %v1638
        %1640 = vdwg.mxu0
        %1641 = vrot.lane.b32.xlu0 %v1434, 104
        %v1642 = vpop.permute.xlu0 %1641
        %1643 = vrot.lane.b32.xlu0 %v1434, 72
        %v1644 = vpop.permute.xlu0 %1643
        %v1646 = vsel %vm816, %v1642, 0
        %v1649 = vsel %vm816, %v1644, 0
        %1651 = vmatpush.bf16.xpose.msra.mxu0 0
        %1652 = vmatpush.bf16.xpose.msra.mxu0 0
        %1653 = vmatpush.bf16.xpose.msra.mxu0 0
        %1654 = vmatpush.bf16.xpose.msra.mxu0 0
        %1655 = vmatpush.bf16.xpose.msra.mxu0 0
        %1656 = vmatpush.bf16.xpose.msra.mxu0 0
        %1657 = vmatpush.bf16.xpose.msra.mxu0 0
        %1658 = vmatpush.bf16.xpose.msra.mxu0 %v1649
        %1659 = vmatmul.bf16.gmra.mxu0 %v1646
        %v1660 = vpop.f32.mrf.mxu0
        %v1661 = vadd.f32 0.0, %v1660
        %v1662 = vpop.f32.mrf.mxu0
        %v1663 = vadd.f32 0.0, %v1662
        %1664 = vdwg.mxu0
        %v1665 = vmul.f32 %v1661, 0.35355338
        %v1666 = vmul.f32 %v1663, 0.35355338
        %v1667 = vsel %vm839, %v1665, -inf
        %1668 = vmax.xlane.f32.xlu0 %v1667
        %v1669 = vpop.xlane.xlu0 %1668
        %v1670 = vsel %vm839, %v1666, -inf
        %1671 = vmax.xlane.f32.xlu0 %v1670
        %v1672 = vpop.xlane.xlu0 %1671
        %v1673 = vsub.f32 %v1665, %v1669
        %v1674 = vsub.f32 %v1666, %v1672
        %v1675 = vmul.f32 %v1673, 1.442695
        %v1676 = vpow.pop %v1675
        %v1677 = vmul.f32 %v1674, 1.442695
        %v1678 = vpow.pop %v1677
        %v1679 = vsel %vm839, %v1676, 0.0
        %1680 = vadd.xlane.f32.xlu0 %v1679
        %v1681 = vpop.xlane.xlu0 %1680
        %v1682 = vsel %vm839, %v1678, 0.0
        %1683 = vadd.xlane.f32.xlu0 %v1682
        %v1684 = vpop.xlane.xlu0 %1683
        %v1685 = vrcp.pop %v1681
        %v1686 = vrcp.pop %v1684
        %v1687 = vmul.f32 %v1676, %v1685
        %v1688 = vmul.f32 %v1678, %v1686
        %v1689 = vpack.c.bf16 %v1688, %v1687
        %1690 = vrot.lane.b32.xlu0 %v1434, 40
        %v1691 = vpop.permute.xlu0 %1690
        %v1694 = vsel %vm839, %v1689, 0
        %1696 = vmatpush.bf16.msra.mxu0 0
        %1697 = vmatpush.bf16.msra.mxu0 0
        %1698 = vmatpush.bf16.msra.mxu0 0
        %1699 = vmatpush.bf16.msra.mxu0 0
        %1700 = vmatpush.bf16.msra.mxu0 0
        %1701 = vmatpush.bf16.msra.mxu0 0
        %1702 = vmatpush.bf16.msra.mxu0 0
        %1703 = vmatpush.bf16.msra.mxu0 %v1691
        %1704 = vmatmul.bf16.gmra.mxu0 %v1694
        %v1705 = vpop.f32.mrf.mxu0
        %v1706 = vadd.f32 0.0, %v1705
        %v1707 = vpop.f32.mrf.mxu0
        %v1708 = vadd.f32 0.0, %v1707
        %1709 = vdwg.mxu0
        %1712 = vrot.lane.b32.xlu0 %v1568, 8
        %v1713 = vpop.permute.xlu0 %1712
        %1714 = vrot.lane.b32.xlu0 %v1570, 8
        %v1715 = vpop.permute.xlu0 %1714
        %1720 = vrot.lane.b32.xlu0 %v1637, 16
        %v1721 = vpop.permute.xlu0 %1720
        %1722 = vrot.lane.b32.xlu0 %v1639, 16
        %v1723 = vpop.permute.xlu0 %1722
        %1728 = vrot.lane.b32.xlu0 %v1706, 24
        %v1729 = vpop.permute.xlu0 %1728
        %1730 = vrot.lane.b32.xlu0 %v1708, 24
        %v1731 = vpop.permute.xlu0 %1730
        %v1734 = vsel %vm816, %v1499, %v1713
        %v1735 = vsel %vm816, %v1501, %v1715
        %v1736 = vsel %vm839, %v1734, %v1721
        %v1737 = vsel %vm839, %v1735, %v1723
        %v1738 = vsel %vm1118, %v1736, %v1729
        %v1739 = vsel %vm1118, %v1737, %v1731
        %s1740 = scalar_lea.vmem %s7, 16
        %v1741 = vld [vmem:[%s1740] sm:$0xf]
        %v1742 = vld [vmem:[%s1740 + $0x4] sm:$0xf]
        %v1743 = vld [vmem:[%s1740 + $0x8] sm:$0xf]
        %v1744 = vld [vmem:[%s1740 + $0xc] sm:$0xf]
        %v1745 = vpack.c.bf16 %v1739, %v1738
        %v1750 = vunpack.c.l.b16 %v1741
        %v1751 = vunpack.c.l.b16 %v1742
        %v1752 = vunpack.c.l.b16 %v1743
        %v1753 = vunpack.c.l.b16 %v1744
        %v1754 = vpack.c.b16 %v1751, %v1750
        %v1755 = vpack.c.b16 %v1753, %v1752
        %v1759 = vsel %vm712, %v1745, 0
        %1761 = vmatpush.bf16.msra.mxu0 0
        %1762 = vmatpush.bf16.msra.mxu0 0
        %1763 = vmatpush.bf16.msra.mxu0 0
        %1764 = vmatpush.bf16.msra.mxu0 0
        %1765 = vmatpush.bf16.msra.mxu0 0
        %1766 = vmatpush.bf16.msra.mxu0 0
        %1767 = vmatpush.bf16.msra.mxu0 %v1755
        %1768 = vmatpush.bf16.msra.mxu0 %v1754
        %1769 = vmatmul.bf16.gmra.mxu0 %v1759
        %v1770 = vpop.f32.mrf.mxu0
        %v1771 = vadd.f32 0.0, %v1770
        %v1772 = vpop.f32.mrf.mxu0
        %v1773 = vadd.f32 0.0, %v1772
        %1774 = vdwg.mxu0
        %v1775 = vadd.f32 %v1334, %v1771
        %v1776 = vadd.f32 %v1335, %v1773
        %s1777 = scalar_lea.vmem %s8, 1
        %v1778 = vld [vmem:[%s1777] sm:$0x1]
        %v1780 = vperm.slane %v1778, 0
        %v1782 = vadd.f32 %v1775, %v1780
        %v1783 = vadd.f32 %v1776, %v1780
        %s1784 = scalar_lea.vmem %s4, 6
        %v1785 = vld [vmem:[%s1784] sm:$0x1]
        %s1786 = scalar_lea.vmem %s4, 7
        %v1787 = vld [vmem:[%s1786] sm:$0x1]
        %v1788 = vsel %vm712, %v1782, 0.0
        %1789 = vadd.xlane.f32.xlu0 %v1788
        %v1790 = vpop.xlane.xlu0 %1789
        %v1791 = vsel %vm712, %v1783, 0.0
        %1792 = vadd.xlane.f32.xlu0 %v1791
        %v1793 = vpop.xlane.xlu0 %1792
        %v1794 = vmul.f32 %v1790, %v725
        %v1795 = vmul.f32 %v1793, %v725
        %v1796 = vsub.f32 %v1782, %v1794
        %v1797 = vsub.f32 %v1783, %v1795
        %v1798 = vmul.f32 %v1796, %v1796
        %v1799 = vmul.f32 %v1797, %v1797
        %v1800 = vsel %vm712, %v1798, 0.0
        %1801 = vadd.xlane.f32.xlu0 %v1800
        %v1802 = vpop.xlane.xlu0 %1801
        %v1803 = vsel %vm712, %v1799, 0.0
        %1804 = vadd.xlane.f32.xlu0 %v1803
        %v1805 = vpop.xlane.xlu0 %1804
        %v1806 = vmul.f32 %v1802, %v725
        %v1807 = vmul.f32 %v1805, %v725
        %v1808 = vadd.f32 %v1806, 1e-05
        %v1809 = vadd.f32 %v1807, 1e-05
        %v1810 = vrsqrt.pop %v1808
        %v1811 = vmul.f32 %v1810, %v1808
        %v1812 = vmul.f32 %v1811, %v1810
        %v1813 = vmul.f32 0.5, %v1812
        %v1814 = vsub.f32 1.5, %v1813
        %v1815 = vmul.f32 %v1810, %v1814
        %vm1816 = vweird.f32 %v1808
        %vm1817 = vweird.f32 %v1810
        %vm1818 = vmor %vm1816, %vm1817
        %v1819 = vsel %vm1818, %v1810, %v1815
        %v1820 = vrsqrt.pop %v1809
        %v1821 = vmul.f32 %v1820, %v1809
        %v1822 = vmul.f32 %v1821, %v1820
        %v1823 = vmul.f32 0.5, %v1822
        %v1824 = vsub.f32 1.5, %v1823
        %v1825 = vmul.f32 %v1820, %v1824
        %vm1826 = vweird.f32 %v1809
        %vm1827 = vweird.f32 %v1820
        %vm1828 = vmor %vm1826, %vm1827
        %v1829 = vsel %vm1828, %v1820, %v1825
        %v1830 = vmul.f32 %v1796, %v1819
        %v1831 = vmul.f32 %v1797, %v1829
        %v1833 = vperm.slane %v1785, 0
        %v1835 = vmul.f32 %v1830, %v1833
        %v1836 = vmul.f32 %v1831, %v1833
        %v1838 = vperm.slane %v1787, 0
        %v1840 = vadd.f32 %v1835, %v1838
        %v1841 = vadd.f32 %v1836, %v1838
        %s1842 = scalar_lea.vmem %s9, 16
        %v1843 = vld [vmem:[%s1842] sm:$0xf]
        %v1844 = vld [vmem:[%s1842 + $0x4] sm:$0xf]
        %v1845 = vld [vmem:[%s1842 + $0x8] sm:$0xf]
        %v1846 = vld [vmem:[%s1842 + $0xc] sm:$0xf]
        %v1847 = vpack.c.bf16 %v1841, %v1840
        %s1848 = scalar_lea.vmem %s10, 1
        %v1849 = vld [vmem:[%s1848] sm:$0x1]
        %v1851 = vperm.slane %v1849, 0
        %v1857 = vunpack.c.l.b16 %v1843
        %v1858 = vunpack.c.l.b16 %v1844
        %v1859 = vunpack.c.l.b16 %v1845
        %v1860 = vunpack.c.l.b16 %v1846
        %v1861 = vpack.c.b16 %v1858, %v1857
        %v1862 = vpack.c.b16 %v1860, %v1859
        %v1866 = vsel %vm712, %v1847, 0
        %1868 = vmatpush.bf16.msra.mxu0 0
        %1869 = vmatpush.bf16.msra.mxu0 0
        %1870 = vmatpush.bf16.msra.mxu0 0
        %1871 = vmatpush.bf16.msra.mxu0 0
        %1872 = vmatpush.bf16.msra.mxu0 0
        %1873 = vmatpush.bf16.msra.mxu0 0
        %1874 = vmatpush.bf16.msra.mxu0 %v1862
        %1875 = vmatpush.bf16.msra.mxu0 %v1861
        %1876 = vmatmul.bf16.gmra.mxu0 %v1866
        %v1877 = vpop.f32.mrf.mxu0
        %v1878 = vadd.f32 %v1851, %v1877
        %v1879 = vpop.f32.mrf.mxu0
        %v1880 = vadd.f32 %v1851, %v1879
        %1881 = vdwg.mxu0
        %v1882 = vmul.f32 %v1878, 0.5
        %v1883 = vmul.f32 %v1880, 0.5
        %v1884 = vmul.f32 %v1878, 0.044715
        %v1885 = vmul.f32 %v1880, 0.044715
        %v1886 = vmul.f32 %v1884, %v1878
        %v1887 = vmul.f32 %v1885, %v1880
        %v1888 = vmul.f32 %v1886, %v1878
        %v1889 = vmul.f32 %v1887, %v1880
        %v1890 = vadd.f32 %v1878, %v1888
        %v1891 = vadd.f32 %v1880, %v1889
        %v1892 = vmul.f32 %v1890, 0.7978846
        %v1893 = vmul.f32 %v1891, 0.7978846
        %v1894 = vtanh.pop %v1892
        %v1895 = vtanh.pop %v1893
        %v1896 = vadd.f32 %v1894, 1.0
        %v1897 = vadd.f32 %v1895, 1.0
        %v1898 = vmul.f32 %v1882, %v1896
        %v1899 = vmul.f32 %v1883, %v1897
        %s1900 = scalar_lea.vmem %s11, 32
        %v1901 = vld [vmem:[%s1900] sm:$0xf]
        %v1902 = vld [vmem:[%s1900 + $0x4] sm:$0xf]
        %v1903 = vld [vmem:[%s1900 + $0x8] sm:$0xf]
        %v1904 = vld [vmem:[%s1900 + $0xc] sm:$0xf]
        %v1905 = vld [vmem:[%s1900 + $0x10] sm:$0xf]
        %v1906 = vld [vmem:[%s1900 + $0x14] sm:$0xf]
        %v1907 = vld [vmem:[%s1900 + $0x18] sm:$0xf]
        %v1908 = vld [vmem:[%s1900 + $0x1c] sm:$0xf]
        %v1909 = vpack.c.bf16 %v1899, %v1898
        %v1918 = vunpack.c.l.b16 %v1901
        %v1919 = vunpack.c.l.b16 %v1902
        %v1920 = vunpack.c.l.b16 %v1903
        %v1921 = vunpack.c.l.b16 %v1904
        %v1922 = vunpack.c.l.b16 %v1905
        %v1923 = vunpack.c.l.b16 %v1906
        %v1924 = vunpack.c.l.b16 %v1907
        %v1925 = vunpack.c.l.b16 %v1908
        %v1926 = vpack.c.b16 %v1919, %v1918
        %v1927 = vpack.c.b16 %v1921, %v1920
        %v1928 = vpack.c.b16 %v1923, %v1922
        %v1929 = vpack.c.b16 %v1925, %v1924
        %v1935 = vsel %vm1310, %v1909, 0
        %1937 = vmatpush.bf16.msra.mxu0 0
        %1938 = vmatpush.bf16.msra.mxu0 0
        %1939 = vmatpush.bf16.msra.mxu0 0
        %1940 = vmatpush.bf16.msra.mxu0 0
        %1941 = vmatpush.bf16.msra.mxu0 %v1929
        %1942 = vmatpush.bf16.msra.mxu0 %v1928
        %1943 = vmatpush.bf16.msra.mxu0 %v1927
        %1944 = vmatpush.bf16.msra.mxu0 %v1926
        %1945 = vmatmul.bf16.gmra.mxu0 %v1935
        %v1946 = vpop.f32.mrf.mxu0
        %v1947 = vadd.f32 0.0, %v1946
        %v1948 = vpop.f32.mrf.mxu0
        %v1949 = vadd.f32 0.0, %v1948
        %1950 = vdwg.mxu0
        %v1951 = vadd.f32 %v1782, %v1947
        %v1952 = vadd.f32 %v1783, %v1949
        %s1953 = scalar_lea.vmem %s12, 1
        %v1954 = vld [vmem:[%s1953] sm:$0x1]
        %v1956 = vperm.slane %v1954, 0
        %v1958 = vadd.f32 %v1951, %v1956
        %v1959 = vadd.f32 %v1952, %v1956
        %s1960 = scalar_lea.vmem %s4, 8
        %v1961 = vld [vmem:[%s1960] sm:$0x1]
        %s1962 = scalar_lea.vmem %s4, 9
        %v1963 = vld [vmem:[%s1962] sm:$0x1]
        %v1964 = vsel %vm712, %v1958, 0.0
        %1965 = vadd.xlane.f32.xlu0 %v1964
        %v1966 = vpop.xlane.xlu0 %1965
        %v1967 = vsel %vm712, %v1959, 0.0
        %1968 = vadd.xlane.f32.xlu0 %v1967
        %v1969 = vpop.xlane.xlu0 %1968
        %v1970 = vmul.f32 %v1966, %v725
        %v1971 = vmul.f32 %v1969, %v725
        %v1972 = vsub.f32 %v1958, %v1970
        %v1973 = vsub.f32 %v1959, %v1971
        %v1974 = vmul.f32 %v1972, %v1972
        %v1975 = vmul.f32 %v1973, %v1973
        %v1976 = vsel %vm712, %v1974, 0.0
        %1977 = vadd.xlane.f32.xlu0 %v1976
        %v1978 = vpop.xlane.xlu0 %1977
        %v1979 = vsel %vm712, %v1975, 0.0
        %1980 = vadd.xlane.f32.xlu0 %v1979
        %v1981 = vpop.xlane.xlu0 %1980
        %v1982 = vmul.f32 %v1978, %v725
        %v1983 = vmul.f32 %v1981, %v725
        %v1984 = vadd.f32 %v1982, 1e-05
        %v1985 = vadd.f32 %v1983, 1e-05
        %v1986 = vrsqrt.pop %v1984
        %v1987 = vmul.f32 %v1986, %v1984
        %v1988 = vmul.f32 %v1987, %v1986
        %v1989 = vmul.f32 0.5, %v1988
        %v1990 = vsub.f32 1.5, %v1989
        %v1991 = vmul.f32 %v1986, %v1990
        %vm1992 = vweird.f32 %v1984
        %vm1993 = vweird.f32 %v1986
        %vm1994 = vmor %vm1992, %vm1993
        %v1995 = vsel %vm1994, %v1986, %v1991
        %v1996 = vrsqrt.pop %v1985
        %v1997 = vmul.f32 %v1996, %v1985
        %v1998 = vmul.f32 %v1997, %v1996
        %v1999 = vmul.f32 0.5, %v1998
        %v2000 = vsub.f32 1.5, %v1999
        %v2001 = vmul.f32 %v1996, %v2000
        %vm2002 = vweird.f32 %v1985
        %vm2003 = vweird.f32 %v1996
        %vm2004 = vmor %vm2002, %vm2003
        %v2005 = vsel %vm2004, %v1996, %v2001
        %v2006 = vmul.f32 %v1972, %v1995
        %v2007 = vmul.f32 %v1973, %v2005
        %v2009 = vperm.slane %v1961, 0
        %v2011 = vmul.f32 %v2006, %v2009
        %v2012 = vmul.f32 %v2007, %v2009
        %v2014 = vperm.slane %v1963, 0
        %v2016 = vadd.f32 %v2011, %v2014
        %v2017 = vadd.f32 %v2012, %v2014
        %s2018 = scalar_lea.vmem %s5, 32
        %v2019 = vld [vmem:[%s2018] sm:$0xf]
        %v2020 = vld [vmem:[%s2018 + $0x4] sm:$0xf]
        %v2021 = vld [vmem:[%s2018 + $0x8] sm:$0xf]
        %v2022 = vld [vmem:[%s2018 + $0xc] sm:$0xf]
        %v2023 = vpack.c.bf16 %v2017, %v2016
        %s2024 = scalar_lea.vmem %s6, 2
        %v2025 = vld [vmem:[%s2024] sm:$0x1]
        %v2027 = vperm.slane %v2025, 0
        %v2033 = vunpack.c.l.b16 %v2019
        %v2034 = vunpack.c.l.b16 %v2020
        %v2035 = vunpack.c.l.b16 %v2021
        %v2036 = vunpack.c.l.b16 %v2022
        %v2037 = vpack.c.b16 %v2034, %v2033
        %v2038 = vpack.c.b16 %v2036, %v2035
        %v2042 = vsel %vm712, %v2023, 0
        %2044 = vmatpush.bf16.msra.mxu0 0
        %2045 = vmatpush.bf16.msra.mxu0 0
        %2046 = vmatpush.bf16.msra.mxu0 0
        %2047 = vmatpush.bf16.msra.mxu0 0
        %2048 = vmatpush.bf16.msra.mxu0 0
        %2049 = vmatpush.bf16.msra.mxu0 0
        %2050 = vmatpush.bf16.msra.mxu0 %v2038
        %2051 = vmatpush.bf16.msra.mxu0 %v2037
        %2052 = vmatmul.bf16.gmra.mxu0 %v2042
        %v2053 = vpop.f32.mrf.mxu0
        %v2054 = vadd.f32 %v2027, %v2053
        %v2055 = vpop.f32.mrf.mxu0
        %v2056 = vadd.f32 %v2027, %v2055
        %2057 = vdwg.mxu0
        %v2058 = vpack.c.bf16 %v2056, %v2054
        %2060 = vrot.lane.b32.xlu0 %v2058, 96
        %v2061 = vpop.permute.xlu0 %2060
        %v2063 = vsel %vm816, %v2058, 0
        %v2066 = vsel %vm816, %v2061, 0
        %2068 = vmatpush.bf16.xpose.msra.mxu0 0
        %2069 = vmatpush.bf16.xpose.msra.mxu0 0
        %2070 = vmatpush.bf16.xpose.msra.mxu0 0
        %2071 = vmatpush.bf16.xpose.msra.mxu0 0
        %2072 = vmatpush.bf16.xpose.msra.mxu0 0
        %2073 = vmatpush.bf16.xpose.msra.mxu0 0
        %2074 = vmatpush.bf16.xpose.msra.mxu0 0
        %2075 = vmatpush.bf16.xpose.msra.mxu0 %v2066
        %2076 = vmatmul.bf16.gmra.mxu0 %v2063
        %v2077 = vpop.f32.mrf.mxu0
        %v2078 = vadd.f32 0.0, %v2077
        %v2079 = vpop.f32.mrf.mxu0
        %v2080 = vadd.f32 0.0, %v2079
        %2081 = vdwg.mxu0
        %v2082 = vmul.f32 %v2078, 0.35355338
        %v2083 = vmul.f32 %v2080, 0.35355338
        %v2084 = vsel %vm839, %v2082, -inf
        %2085 = vmax.xlane.f32.xlu0 %v2084
        %v2086 = vpop.xlane.xlu0 %2085
        %v2087 = vsel %vm839, %v2083, -inf
        %2088 = vmax.xlane.f32.xlu0 %v2087
        %v2089 = vpop.xlane.xlu0 %2088
        %v2090 = vsub.f32 %v2082, %v2086
        %v2091 = vsub.f32 %v2083, %v2089
        %v2092 = vmul.f32 %v2090, 1.442695
        %v2093 = vpow.pop %v2092
        %v2094 = vmul.f32 %v2091, 1.442695
        %v2095 = vpow.pop %v2094
        %v2096 = vsel %vm839, %v2093, 0.0
        %2097 = vadd.xlane.f32.xlu0 %v2096
        %v2098 = vpop.xlane.xlu0 %2097
        %v2099 = vsel %vm839, %v2095, 0.0
        %2100 = vadd.xlane.f32.xlu0 %v2099
        %v2101 = vpop.xlane.xlu0 %2100
        %v2102 = vrcp.pop %v2098
        %v2103 = vrcp.pop %v2101
        %v2104 = vmul.f32 %v2093, %v2102
        %v2105 = vmul.f32 %v2095, %v2103
        %v2106 = vpack.c.bf16 %v2105, %v2104
        %2107 = vrot.lane.b32.xlu0 %v2058, 64
        %v2108 = vpop.permute.xlu0 %2107
        %v2111 = vsel %vm839, %v2106, 0
        %2113 = vmatpush.bf16.msra.mxu0 0
        %2114 = vmatpush.bf16.msra.mxu0 0
        %2115 = vmatpush.bf16.msra.mxu0 0
        %2116 = vmatpush.bf16.msra.mxu0 0
        %2117 = vmatpush.bf16.msra.mxu0 0
        %2118 = vmatpush.bf16.msra.mxu0 0
        %2119 = vmatpush.bf16.msra.mxu0 0
        %2120 = vmatpush.bf16.msra.mxu0 %v2108
        %2121 = vmatmul.bf16.gmra.mxu0 %v2111
        %v2122 = vpop.f32.mrf.mxu0
        %v2123 = vadd.f32 0.0, %v2122
        %v2124 = vpop.f32.mrf.mxu0
        %v2125 = vadd.f32 0.0, %v2124
        %2126 = vdwg.mxu0
        %2127 = vrot.lane.b32.xlu0 %v2058, 120
        %v2128 = vpop.permute.xlu0 %2127
        %2129 = vrot.lane.b32.xlu0 %v2058, 88
        %v2130 = vpop.permute.xlu0 %2129
        %v2132 = vsel %vm816, %v2128, 0
        %v2135 = vsel %vm816, %v2130, 0
        %2137 = vmatpush.bf16.xpose.msra.mxu0 0
        %2138 = vmatpush.bf16.xpose.msra.mxu0 0
        %2139 = vmatpush.bf16.xpose.msra.mxu0 0
        %2140 = vmatpush.bf16.xpose.msra.mxu0 0
        %2141 = vmatpush.bf16.xpose.msra.mxu0 0
        %2142 = vmatpush.bf16.xpose.msra.mxu0 0
        %2143 = vmatpush.bf16.xpose.msra.mxu0 0
        %2144 = vmatpush.bf16.xpose.msra.mxu0 %v2135
        %2145 = vmatmul.bf16.gmra.mxu0 %v2132
        %v2146 = vpop.f32.mrf.mxu0
        %v2147 = vadd.f32 0.0, %v2146
        %v2148 = vpop.f32.mrf.mxu0
        %v2149 = vadd.f32 0.0, %v2148
        %2150 = vdwg.mxu0
        %v2151 = vmul.f32 %v2147, 0.35355338
        %v2152 = vmul.f32 %v2149, 0.35355338
        %v2153 = vsel %vm839, %v2151, -inf
        %2154 = vmax.xlane.f32.xlu0 %v2153
        %v2155 = vpop.xlane.xlu0 %2154
        %v2156 = vsel %vm839, %v2152, -inf
        %2157 = vmax.xlane.f32.xlu0 %v2156
        %v2158 = vpop.xlane.xlu0 %2157
        %v2159 = vsub.f32 %v2151, %v2155
        %v2160 = vsub.f32 %v2152, %v2158
        %v2161 = vmul.f32 %v2159, 1.442695
        %v2162 = vpow.pop %v2161
        %v2163 = vmul.f32 %v2160, 1.442695
        %v2164 = vpow.pop %v2163
        %v2165 = vsel %vm839, %v2162, 0.0
        %2166 = vadd.xlane.f32.xlu0 %v2165
        %v2167 = vpop.xlane.xlu0 %2166
        %v2168 = vsel %vm839, %v2164, 0.0
        %2169 = vadd.xlane.f32.xlu0 %v2168
        %v2170 = vpop.xlane.xlu0 %2169
        %v2171 = vrcp.pop %v2167
        %v2172 = vrcp.pop %v2170
        %v2173 = vmul.f32 %v2162, %v2171
        %v2174 = vmul.f32 %v2164, %v2172
        %v2175 = vpack.c.bf16 %v2174, %v2173
        %2176 = vrot.lane.b32.xlu0 %v2058, 56
        %v2177 = vpop.permute.xlu0 %2176
        %v2180 = vsel %vm839, %v2175, 0
        %2182 = vmatpush.bf16.msra.mxu0 0
        %2183 = vmatpush.bf16.msra.mxu0 0
        %2184 = vmatpush.bf16.msra.mxu0 0
        %2185 = vmatpush.bf16.msra.mxu0 0
        %2186 = vmatpush.bf16.msra.mxu0 0
        %2187 = vmatpush.bf16.msra.mxu0 0
        %2188 = vmatpush.bf16.msra.mxu0 0
        %2189 = vmatpush.bf16.msra.mxu0 %v2177
        %2190 = vmatmul.bf16.gmra.mxu0 %v2180
        %v2191 = vpop.f32.mrf.mxu0
        %v2192 = vadd.f32 0.0, %v2191
        %v2193 = vpop.f32.mrf.mxu0
        %v2194 = vadd.f32 0.0, %v2193
        %2195 = vdwg.mxu0
        %2196 = vrot.lane.b32.xlu0 %v2058, 112
        %v2197 = vpop.permute.xlu0 %2196
        %2198 = vrot.lane.b32.xlu0 %v2058, 80
        %v2199 = vpop.permute.xlu0 %2198
        %v2201 = vsel %vm816, %v2197, 0
        %v2204 = vsel %vm816, %v2199, 0
        %2206 = vmatpush.bf16.xpose.msra.mxu0 0
        %2207 = vmatpush.bf16.xpose.msra.mxu0 0
        %2208 = vmatpush.bf16.xpose.msra.mxu0 0
        %2209 = vmatpush.bf16.xpose.msra.mxu0 0
        %2210 = vmatpush.bf16.xpose.msra.mxu0 0
        %2211 = vmatpush.bf16.xpose.msra.mxu0 0
        %2212 = vmatpush.bf16.xpose.msra.mxu0 0
        %2213 = vmatpush.bf16.xpose.msra.mxu0 %v2204
        %2214 = vmatmul.bf16.gmra.mxu0 %v2201
        %v2215 = vpop.f32.mrf.mxu0
        %v2216 = vadd.f32 0.0, %v2215
        %v2217 = vpop.f32.mrf.mxu0
        %v2218 = vadd.f32 0.0, %v2217
        %2219 = vdwg.mxu0
        %v2220 = vmul.f32 %v2216, 0.35355338
        %v2221 = vmul.f32 %v2218, 0.35355338
        %v2222 = vsel %vm839, %v2220, -inf
        %2223 = vmax.xlane.f32.xlu0 %v2222
        %v2224 = vpop.xlane.xlu0 %2223
        %v2225 = vsel %vm839, %v2221, -inf
        %2226 = vmax.xlane.f32.xlu0 %v2225
        %v2227 = vpop.xlane.xlu0 %2226
        %v2228 = vsub.f32 %v2220, %v2224
        %v2229 = vsub.f32 %v2221, %v2227
        %v2230 = vmul.f32 %v2228, 1.442695
        %v2231 = vpow.pop %v2230
        %v2232 = vmul.f32 %v2229, 1.442695
        %v2233 = vpow.pop %v2232
        %v2234 = vsel %vm839, %v2231, 0.0
        %2235 = vadd.xlane.f32.xlu0 %v2234
        %v2236 = vpop.xlane.xlu0 %2235
        %v2237 = vsel %vm839, %v2233, 0.0
        %2238 = vadd.xlane.f32.xlu0 %v2237
        %v2239 = vpop.xlane.xlu0 %2238
        %v2240 = vrcp.pop %v2236
        %v2241 = vrcp.pop %v2239
        %v2242 = vmul.f32 %v2231, %v2240
        %v2243 = vmul.f32 %v2233, %v2241
        %v2244 = vpack.c.bf16 %v2243, %v2242
        %2245 = vrot.lane.b32.xlu0 %v2058, 48
        %v2246 = vpop.permute.xlu0 %2245
        %v2249 = vsel %vm839, %v2244, 0
        %2251 = vmatpush.bf16.msra.mxu0 0
        %2252 = vmatpush.bf16.msra.mxu0 0
        %2253 = vmatpush.bf16.msra.mxu0 0
        %2254 = vmatpush.bf16.msra.mxu0 0
        %2255 = vmatpush.bf16.msra.mxu0 0
        %2256 = vmatpush.bf16.msra.mxu0 0
        %2257 = vmatpush.bf16.msra.mxu0 0
        %2258 = vmatpush.bf16.msra.mxu0 %v2246
        %2259 = vmatmul.bf16.gmra.mxu0 %v2249
        %v2260 = vpop.f32.mrf.mxu0
        %v2261 = vadd.f32 0.0, %v2260
        %v2262 = vpop.f32.mrf.mxu0
        %v2263 = vadd.f32 0.0, %v2262
        %2264 = vdwg.mxu0
        %2265 = vrot.lane.b32.xlu0 %v2058, 104
        %v2266 = vpop.permute.xlu0 %2265
        %2267 = vrot.lane.b32.xlu0 %v2058, 72
        %v2268 = vpop.permute.xlu0 %2267
        %v2270 = vsel %vm816, %v2266, 0
        %v2273 = vsel %vm816, %v2268, 0
        %2275 = vmatpush.bf16.xpose.msra.mxu0 0
        %2276 = vmatpush.bf16.xpose.msra.mxu0 0
        %2277 = vmatpush.bf16.xpose.msra.mxu0 0
        %2278 = vmatpush.bf16.xpose.msra.mxu0 0
        %2279 = vmatpush.bf16.xpose.msra.mxu0 0
        %2280 = vmatpush.bf16.xpose.msra.mxu0 0
        %2281 = vmatpush.bf16.xpose.msra.mxu0 0
        %2282 = vmatpush.bf16.xpose.msra.mxu0 %v2273
        %2283 = vmatmul.bf16.gmra.mxu0 %v2270
        %v2284 = vpop.f32.mrf.mxu0
        %v2285 = vadd.f32 0.0, %v2284
        %v2286 = vpop.f32.mrf.mxu0
        %v2287 = vadd.f32 0.0, %v2286
        %2288 = vdwg.mxu0
        %v2289 = vmul.f32 %v2285, 0.35355338
        %v2290 = vmul.f32 %v2287, 0.35355338
        %v2291 = vsel %vm839, %v2289, -inf
        %2292 = vmax.xlane.f32.xlu0 %v2291
        %v2293 = vpop.xlane.xlu0 %2292
        %v2294 = vsel %vm839, %v2290, -inf
        %2295 = vmax.xlane.f32.xlu0 %v2294
        %v2296 = vpop.xlane.xlu0 %2295
        %v2297 = vsub.f32 %v2289, %v2293
        %v2298 = vsub.f32 %v2290, %v2296
        %v2299 = vmul.f32 %v2297, 1.442695
        %v2300 = vpow.pop %v2299
        %v2301 = vmul.f32 %v2298, 1.442695
        %v2302 = vpow.pop %v2301
        %v2303 = vsel %vm839, %v2300, 0.0
        %2304 = vadd.xlane.f32.xlu0 %v2303
        %v2305 = vpop.xlane.xlu0 %2304
        %v2306 = vsel %vm839, %v2302, 0.0
        %2307 = vadd.xlane.f32.xlu0 %v2306
        %v2308 = vpop.xlane.xlu0 %2307
        %v2309 = vrcp.pop %v2305
        %v2310 = vrcp.pop %v2308
        %v2311 = vmul.f32 %v2300, %v2309
        %v2312 = vmul.f32 %v2302, %v2310
        %v2313 = vpack.c.bf16 %v2312, %v2311
        %2314 = vrot.lane.b32.xlu0 %v2058, 40
        %v2315 = vpop.permute.xlu0 %2314
        %v2318 = vsel %vm839, %v2313, 0
        %2320 = vmatpush.bf16.msra.mxu0 0
        %2321 = vmatpush.bf16.msra.mxu0 0
        %2322 = vmatpush.bf16.msra.mxu0 0
        %2323 = vmatpush.bf16.msra.mxu0 0
        %2324 = vmatpush.bf16.msra.mxu0 0
        %2325 = vmatpush.bf16.msra.mxu0 0
        %2326 = vmatpush.bf16.msra.mxu0 0
        %2327 = vmatpush.bf16.msra.mxu0 %v2315
        %2328 = vmatmul.bf16.gmra.mxu0 %v2318
        %v2329 = vpop.f32.mrf.mxu0
        %v2330 = vadd.f32 0.0, %v2329
        %v2331 = vpop.f32.mrf.mxu0
        %v2332 = vadd.f32 0.0, %v2331
        %2333 = vdwg.mxu0
        %2336 = vrot.lane.b32.xlu0 %v2192, 8
        %v2337 = vpop.permute.xlu0 %2336
        %2338 = vrot.lane.b32.xlu0 %v2194, 8
        %v2339 = vpop.permute.xlu0 %2338
        %2344 = vrot.lane.b32.xlu0 %v2261, 16
        %v2345 = vpop.permute.xlu0 %2344
        %2346 = vrot.lane.b32.xlu0 %v2263, 16
        %v2347 = vpop.permute.xlu0 %2346
        %2352 = vrot.lane.b32.xlu0 %v2330, 24
        %v2353 = vpop.permute.xlu0 %2352
        %2354 = vrot.lane.b32.xlu0 %v2332, 24
        %v2355 = vpop.permute.xlu0 %2354
        %v2358 = vsel %vm816, %v2123, %v2337
        %v2359 = vsel %vm816, %v2125, %v2339
        %v2360 = vsel %vm839, %v2358, %v2345
        %v2361 = vsel %vm839, %v2359, %v2347
        %v2362 = vsel %vm1118, %v2360, %v2353
        %v2363 = vsel %vm1118, %v2361, %v2355
        %s2364 = scalar_lea.vmem %s7, 32
        %v2365 = vld [vmem:[%s2364] sm:$0xf]
        %v2366 = vld [vmem:[%s2364 + $0x4] sm:$0xf]
        %v2367 = vld [vmem:[%s2364 + $0x8] sm:$0xf]
        %v2368 = vld [vmem:[%s2364 + $0xc] sm:$0xf]
        %v2369 = vpack.c.bf16 %v2363, %v2362
        %v2374 = vunpack.c.l.b16 %v2365
        %v2375 = vunpack.c.l.b16 %v2366
        %v2376 = vunpack.c.l.b16 %v2367
        %v2377 = vunpack.c.l.b16 %v2368
        %v2378 = vpack.c.b16 %v2375, %v2374
        %v2379 = vpack.c.b16 %v2377, %v2376
        %v2383 = vsel %vm712, %v2369, 0
        %2385 = vmatpush.bf16.msra.mxu0 0
        %2386 = vmatpush.bf16.msra.mxu0 0
        %2387 = vmatpush.bf16.msra.mxu0 0
        %2388 = vmatpush.bf16.msra.mxu0 0
        %2389 = vmatpush.bf16.msra.mxu0 0
        %2390 = vmatpush.bf16.msra.mxu0 0
        %2391 = vmatpush.bf16.msra.mxu0 %v2379
        %2392 = vmatpush.bf16.msra.mxu0 %v2378
        %2393 = vmatmul.bf16.gmra.mxu0 %v2383
        %v2394 = vpop.f32.mrf.mxu0
        %v2395 = vadd.f32 0.0, %v2394
        %v2396 = vpop.f32.mrf.mxu0
        %v2397 = vadd.f32 0.0, %v2396
        %2398 = vdwg.mxu0
        %v2399 = vadd.f32 %v1958, %v2395
        %v2400 = vadd.f32 %v1959, %v2397
        %s2401 = scalar_lea.vmem %s8, 2
        %v2402 = vld [vmem:[%s2401] sm:$0x1]
        %v2404 = vperm.slane %v2402, 0
        %v2406 = vadd.f32 %v2399, %v2404
        %v2407 = vadd.f32 %v2400, %v2404
        %s2408 = scalar_lea.vmem %s4, 10
        %v2409 = vld [vmem:[%s2408] sm:$0x1]
        %s2410 = scalar_lea.vmem %s4, 11
        %v2411 = vld [vmem:[%s2410] sm:$0x1]
        %v2412 = vsel %vm712, %v2406, 0.0
        %2413 = vadd.xlane.f32.xlu0 %v2412
        %v2414 = vpop.xlane.xlu0 %2413
        %v2415 = vsel %vm712, %v2407, 0.0
        %2416 = vadd.xlane.f32.xlu0 %v2415
        %v2417 = vpop.xlane.xlu0 %2416
        %v2418 = vmul.f32 %v2414, %v725
        %v2419 = vmul.f32 %v2417, %v725
        %v2420 = vsub.f32 %v2406, %v2418
        %v2421 = vsub.f32 %v2407, %v2419
        %v2422 = vmul.f32 %v2420, %v2420
        %v2423 = vmul.f32 %v2421, %v2421
        %v2424 = vsel %vm712, %v2422, 0.0
        %2425 = vadd.xlane.f32.xlu0 %v2424
        %v2426 = vpop.xlane.xlu0 %2425
        %v2427 = vsel %vm712, %v2423, 0.0
        %2428 = vadd.xlane.f32.xlu0 %v2427
        %v2429 = vpop.xlane.xlu0 %2428
        %v2430 = vmul.f32 %v2426, %v725
        %v2431 = vmul.f32 %v2429, %v725
        %v2432 = vadd.f32 %v2430, 1e-05
        %v2433 = vadd.f32 %v2431, 1e-05
        %v2434 = vrsqrt.pop %v2432
        %v2435 = vmul.f32 %v2434, %v2432
        %v2436 = vmul.f32 %v2435, %v2434
        %v2437 = vmul.f32 0.5, %v2436
        %v2438 = vsub.f32 1.5, %v2437
        %v2439 = vmul.f32 %v2434, %v2438
        %vm2440 = vweird.f32 %v2432
        %vm2441 = vweird.f32 %v2434
        %vm2442 = vmor %vm2440, %vm2441
        %v2443 = vsel %vm2442, %v2434, %v2439
        %v2444 = vrsqrt.pop %v2433
        %v2445 = vmul.f32 %v2444, %v2433
        %v2446 = vmul.f32 %v2445, %v2444
        %v2447 = vmul.f32 0.5, %v2446
        %v2448 = vsub.f32 1.5, %v2447
        %v2449 = vmul.f32 %v2444, %v2448
        %vm2450 = vweird.f32 %v2433
        %vm2451 = vweird.f32 %v2444
        %vm2452 = vmor %vm2450, %vm2451
        %v2453 = vsel %vm2452, %v2444, %v2449
        %v2454 = vmul.f32 %v2420, %v2443
        %v2455 = vmul.f32 %v2421, %v2453
        %v2457 = vperm.slane %v2409, 0
        %v2459 = vmul.f32 %v2454, %v2457
        %v2460 = vmul.f32 %v2455, %v2457
        %v2462 = vperm.slane %v2411, 0
        %v2464 = vadd.f32 %v2459, %v2462
        %v2465 = vadd.f32 %v2460, %v2462
        %s2466 = scalar_lea.vmem %s9, 32
        %v2467 = vld [vmem:[%s2466] sm:$0xf]
        %v2468 = vld [vmem:[%s2466 + $0x4] sm:$0xf]
        %v2469 = vld [vmem:[%s2466 + $0x8] sm:$0xf]
        %v2470 = vld [vmem:[%s2466 + $0xc] sm:$0xf]
        %v2471 = vpack.c.bf16 %v2465, %v2464
        %s2472 = scalar_lea.vmem %s10, 2
        %v2473 = vld [vmem:[%s2472] sm:$0x1]
        %v2475 = vperm.slane %v2473, 0
        %v2481 = vunpack.c.l.b16 %v2467
        %v2482 = vunpack.c.l.b16 %v2468
        %v2483 = vunpack.c.l.b16 %v2469
        %v2484 = vunpack.c.l.b16 %v2470
        %v2485 = vpack.c.b16 %v2482, %v2481
        %v2486 = vpack.c.b16 %v2484, %v2483
        %v2490 = vsel %vm712, %v2471, 0
        %2492 = vmatpush.bf16.msra.mxu0 0
        %2493 = vmatpush.bf16.msra.mxu0 0
        %2494 = vmatpush.bf16.msra.mxu0 0
        %2495 = vmatpush.bf16.msra.mxu0 0
        %2496 = vmatpush.bf16.msra.mxu0 0
        %2497 = vmatpush.bf16.msra.mxu0 0
        %2498 = vmatpush.bf16.msra.mxu0 %v2486
        %2499 = vmatpush.bf16.msra.mxu0 %v2485
        %2500 = vmatmul.bf16.gmra.mxu0 %v2490
        %v2501 = vpop.f32.mrf.mxu0
        %v2502 = vadd.f32 %v2475, %v2501
        %v2503 = vpop.f32.mrf.mxu0
        %v2504 = vadd.f32 %v2475, %v2503
        %2505 = vdwg.mxu0
        %v2506 = vmul.f32 %v2502, 0.5
        %v2507 = vmul.f32 %v2504, 0.5
        %v2508 = vmul.f32 %v2502, 0.044715
        %v2509 = vmul.f32 %v2504, 0.044715
        %v2510 = vmul.f32 %v2508, %v2502
        %v2511 = vmul.f32 %v2509, %v2504
        %v2512 = vmul.f32 %v2510, %v2502
        %v2513 = vmul.f32 %v2511, %v2504
        %v2514 = vadd.f32 %v2502, %v2512
        %v2515 = vadd.f32 %v2504, %v2513
        %v2516 = vmul.f32 %v2514, 0.7978846
        %v2517 = vmul.f32 %v2515, 0.7978846
        %v2518 = vtanh.pop %v2516
        %v2519 = vtanh.pop %v2517
        %v2520 = vadd.f32 %v2518, 1.0
        %v2521 = vadd.f32 %v2519, 1.0
        %v2522 = vmul.f32 %v2506, %v2520
        %v2523 = vmul.f32 %v2507, %v2521
        %s2524 = scalar_lea.vmem %s11, 64
        %v2525 = vld [vmem:[%s2524] sm:$0xf]
        %v2526 = vld [vmem:[%s2524 + $0x4] sm:$0xf]
        %v2527 = vld [vmem:[%s2524 + $0x8] sm:$0xf]
        %v2528 = vld [vmem:[%s2524 + $0xc] sm:$0xf]
        %v2529 = vld [vmem:[%s2524 + $0x10] sm:$0xf]
        %v2530 = vld [vmem:[%s2524 + $0x14] sm:$0xf]
        %v2531 = vld [vmem:[%s2524 + $0x18] sm:$0xf]
        %v2532 = vld [vmem:[%s2524 + $0x1c] sm:$0xf]
        %v2533 = vpack.c.bf16 %v2523, %v2522
        %v2542 = vunpack.c.l.b16 %v2525
        %v2543 = vunpack.c.l.b16 %v2526
        %v2544 = vunpack.c.l.b16 %v2527
        %v2545 = vunpack.c.l.b16 %v2528
        %v2546 = vunpack.c.l.b16 %v2529
        %v2547 = vunpack.c.l.b16 %v2530
        %v2548 = vunpack.c.l.b16 %v2531
        %v2549 = vunpack.c.l.b16 %v2532
        %v2550 = vpack.c.b16 %v2543, %v2542
        %v2551 = vpack.c.b16 %v2545, %v2544
        %v2552 = vpack.c.b16 %v2547, %v2546
        %v2553 = vpack.c.b16 %v2549, %v2548
        %v2559 = vsel %vm1310, %v2533, 0
        %2561 = vmatpush.bf16.msra.mxu0 0
        %2562 = vmatpush.bf16.msra.mxu0 0
        %2563 = vmatpush.bf16.msra.mxu0 0
        %2564 = vmatpush.bf16.msra.mxu0 0
        %2565 = vmatpush.bf16.msra.mxu0 %v2553
        %2566 = vmatpush.bf16.msra.mxu0 %v2552
        %2567 = vmatpush.bf16.msra.mxu0 %v2551
        %2568 = vmatpush.bf16.msra.mxu0 %v2550
        %2569 = vmatmul.bf16.gmra.mxu0 %v2559
        %v2570 = vpop.f32.mrf.mxu0
        %v2571 = vadd.f32 0.0, %v2570
        %v2572 = vpop.f32.mrf.mxu0
        %v2573 = vadd.f32 0.0, %v2572
        %2574 = vdwg.mxu0
        %v2575 = vadd.f32 %v2406, %v2571
        %v2576 = vadd.f32 %v2407, %v2573
        %s2577 = scalar_lea.vmem %s12, 2
        %v2578 = vld [vmem:[%s2577] sm:$0x1]
        %v2580 = vperm.slane %v2578, 0
        %v2582 = vadd.f32 %v2575, %v2580
        %v2583 = vadd.f32 %v2576, %v2580
        %s2584 = scalar_lea.vmem %s4, 12
        %v2585 = vld [vmem:[%s2584] sm:$0x1]
        %s2586 = scalar_lea.vmem %s4, 13
        %v2587 = vld [vmem:[%s2586] sm:$0x1]
        %v2588 = vsel %vm712, %v2582, 0.0
        %2589 = vadd.xlane.f32.xlu0 %v2588
        %v2590 = vpop.xlane.xlu0 %2589
        %v2591 = vsel %vm712, %v2583, 0.0
        %2592 = vadd.xlane.f32.xlu0 %v2591
        %v2593 = vpop.xlane.xlu0 %2592
        %v2594 = vmul.f32 %v2590, %v725
        %v2595 = vmul.f32 %v2593, %v725
        %v2596 = vsub.f32 %v2582, %v2594
        %v2597 = vsub.f32 %v2583, %v2595
        %v2598 = vmul.f32 %v2596, %v2596
        %v2599 = vmul.f32 %v2597, %v2597
        %v2600 = vsel %vm712, %v2598, 0.0
        %2601 = vadd.xlane.f32.xlu0 %v2600
        %v2602 = vpop.xlane.xlu0 %2601
        %v2603 = vsel %vm712, %v2599, 0.0
        %2604 = vadd.xlane.f32.xlu0 %v2603
        %v2605 = vpop.xlane.xlu0 %2604
        %v2606 = vmul.f32 %v2602, %v725
        %v2607 = vmul.f32 %v2605, %v725
        %v2608 = vadd.f32 %v2606, 1e-05
        %v2609 = vadd.f32 %v2607, 1e-05
        %v2610 = vrsqrt.pop %v2608
        %v2611 = vmul.f32 %v2610, %v2608
        %v2612 = vmul.f32 %v2611, %v2610
        %v2613 = vmul.f32 0.5, %v2612
        %v2614 = vsub.f32 1.5, %v2613
        %v2615 = vmul.f32 %v2610, %v2614
        %vm2616 = vweird.f32 %v2608
        %vm2617 = vweird.f32 %v2610
        %vm2618 = vmor %vm2616, %vm2617
        %v2619 = vsel %vm2618, %v2610, %v2615
        %v2620 = vrsqrt.pop %v2609
        %v2621 = vmul.f32 %v2620, %v2609
        %v2622 = vmul.f32 %v2621, %v2620
        %v2623 = vmul.f32 0.5, %v2622
        %v2624 = vsub.f32 1.5, %v2623
        %v2625 = vmul.f32 %v2620, %v2624
        %vm2626 = vweird.f32 %v2609
        %vm2627 = vweird.f32 %v2620
        %vm2628 = vmor %vm2626, %vm2627
        %v2629 = vsel %vm2628, %v2620, %v2625
        %v2630 = vmul.f32 %v2596, %v2619
        %v2631 = vmul.f32 %v2597, %v2629
        %v2633 = vperm.slane %v2585, 0
        %v2635 = vmul.f32 %v2630, %v2633
        %v2636 = vmul.f32 %v2631, %v2633
        %v2638 = vperm.slane %v2587, 0
        %v2640 = vadd.f32 %v2635, %v2638
        %v2641 = vadd.f32 %v2636, %v2638
        %s2642 = scalar_lea.vmem %s5, 48
        %v2643 = vld [vmem:[%s2642] sm:$0xf]
        %v2644 = vld [vmem:[%s2642 + $0x4] sm:$0xf]
        %v2645 = vld [vmem:[%s2642 + $0x8] sm:$0xf]
        %v2646 = vld [vmem:[%s2642 + $0xc] sm:$0xf]
        %v2647 = vpack.c.bf16 %v2641, %v2640
        %s2648 = scalar_lea.vmem %s6, 3
        %v2649 = vld [vmem:[%s2648] sm:$0x1]
        %v2651 = vperm.slane %v2649, 0
        %v2657 = vunpack.c.l.b16 %v2643
        %v2658 = vunpack.c.l.b16 %v2644
        %v2659 = vunpack.c.l.b16 %v2645
        %v2660 = vunpack.c.l.b16 %v2646
        %v2661 = vpack.c.b16 %v2658, %v2657
        %v2662 = vpack.c.b16 %v2660, %v2659
        %v2666 = vsel %vm712, %v2647, 0
        %2668 = vmatpush.bf16.msra.mxu0 0
        %2669 = vmatpush.bf16.msra.mxu0 0
        %2670 = vmatpush.bf16.msra.mxu0 0
        %2671 = vmatpush.bf16.msra.mxu0 0
        %2672 = vmatpush.bf16.msra.mxu0 0
        %2673 = vmatpush.bf16.msra.mxu0 0
        %2674 = vmatpush.bf16.msra.mxu0 %v2662
        %2675 = vmatpush.bf16.msra.mxu0 %v2661
        %2676 = vmatmul.bf16.gmra.mxu0 %v2666
        %v2677 = vpop.f32.mrf.mxu0
        %v2678 = vadd.f32 %v2651, %v2677
        %v2679 = vpop.f32.mrf.mxu0
        %v2680 = vadd.f32 %v2651, %v2679
        %2681 = vdwg.mxu0
        %v2682 = vpack.c.bf16 %v2680, %v2678
        %2684 = vrot.lane.b32.xlu0 %v2682, 96
        %v2685 = vpop.permute.xlu0 %2684
        %v2687 = vsel %vm816, %v2682, 0
        %v2690 = vsel %vm816, %v2685, 0
        %2692 = vmatpush.bf16.xpose.msra.mxu0 0
        %2693 = vmatpush.bf16.xpose.msra.mxu0 0
        %2694 = vmatpush.bf16.xpose.msra.mxu0 0
        %2695 = vmatpush.bf16.xpose.msra.mxu0 0
        %2696 = vmatpush.bf16.xpose.msra.mxu0 0
        %2697 = vmatpush.bf16.xpose.msra.mxu0 0
        %2698 = vmatpush.bf16.xpose.msra.mxu0 0
        %2699 = vmatpush.bf16.xpose.msra.mxu0 %v2690
        %2700 = vmatmul.bf16.gmra.mxu0 %v2687
        %v2701 = vpop.f32.mrf.mxu0
        %v2702 = vadd.f32 0.0, %v2701
        %v2703 = vpop.f32.mrf.mxu0
        %v2704 = vadd.f32 0.0, %v2703
        %2705 = vdwg.mxu0
        %v2706 = vmul.f32 %v2702, 0.35355338
        %v2707 = vmul.f32 %v2704, 0.35355338
        %v2708 = vsel %vm839, %v2706, -inf
        %2709 = vmax.xlane.f32.xlu0 %v2708
        %v2710 = vpop.xlane.xlu0 %2709
        %v2711 = vsel %vm839, %v2707, -inf
        %2712 = vmax.xlane.f32.xlu0 %v2711
        %v2713 = vpop.xlane.xlu0 %2712
        %v2714 = vsub.f32 %v2706, %v2710
        %v2715 = vsub.f32 %v2707, %v2713
        %v2716 = vmul.f32 %v2714, 1.442695
        %v2717 = vpow.pop %v2716
        %v2718 = vmul.f32 %v2715, 1.442695
        %v2719 = vpow.pop %v2718
        %v2720 = vsel %vm839, %v2717, 0.0
        %2721 = vadd.xlane.f32.xlu0 %v2720
        %v2722 = vpop.xlane.xlu0 %2721
        %v2723 = vsel %vm839, %v2719, 0.0
        %2724 = vadd.xlane.f32.xlu0 %v2723
        %v2725 = vpop.xlane.xlu0 %2724
        %v2726 = vrcp.pop %v2722
        %v2727 = vrcp.pop %v2725
        %v2728 = vmul.f32 %v2717, %v2726
        %v2729 = vmul.f32 %v2719, %v2727
        %v2730 = vpack.c.bf16 %v2729, %v2728
        %2731 = vrot.lane.b32.xlu0 %v2682, 64
        %v2732 = vpop.permute.xlu0 %2731
        %v2735 = vsel %vm839, %v2730, 0
        %2737 = vmatpush.bf16.msra.mxu0 0
        %2738 = vmatpush.bf16.msra.mxu0 0
        %2739 = vmatpush.bf16.msra.mxu0 0
        %2740 = vmatpush.bf16.msra.mxu0 0
        %2741 = vmatpush.bf16.msra.mxu0 0
        %2742 = vmatpush.bf16.msra.mxu0 0
        %2743 = vmatpush.bf16.msra.mxu0 0
        %2744 = vmatpush.bf16.msra.mxu0 %v2732
        %2745 = vmatmul.bf16.gmra.mxu0 %v2735
        %v2746 = vpop.f32.mrf.mxu0
        %v2747 = vadd.f32 0.0, %v2746
        %v2748 = vpop.f32.mrf.mxu0
        %v2749 = vadd.f32 0.0, %v2748
        %2750 = vdwg.mxu0
        %2751 = vrot.lane.b32.xlu0 %v2682, 120
        %v2752 = vpop.permute.xlu0 %2751
        %2753 = vrot.lane.b32.xlu0 %v2682, 88
        %v2754 = vpop.permute.xlu0 %2753
        %v2756 = vsel %vm816, %v2752, 0
        %v2759 = vsel %vm816, %v2754, 0
        %2761 = vmatpush.bf16.xpose.msra.mxu0 0
        %2762 = vmatpush.bf16.xpose.msra.mxu0 0
        %2763 = vmatpush.bf16.xpose.msra.mxu0 0
        %2764 = vmatpush.bf16.xpose.msra.mxu0 0
        %2765 = vmatpush.bf16.xpose.msra.mxu0 0
        %2766 = vmatpush.bf16.xpose.msra.mxu0 0
        %2767 = vmatpush.bf16.xpose.msra.mxu0 0
        %2768 = vmatpush.bf16.xpose.msra.mxu0 %v2759
        %2769 = vmatmul.bf16.gmra.mxu0 %v2756
        %v2770 = vpop.f32.mrf.mxu0
        %v2771 = vadd.f32 0.0, %v2770
        %v2772 = vpop.f32.mrf.mxu0
        %v2773 = vadd.f32 0.0, %v2772
        %2774 = vdwg.mxu0
        %v2775 = vmul.f32 %v2771, 0.35355338
        %v2776 = vmul.f32 %v2773, 0.35355338
        %v2777 = vsel %vm839, %v2775, -inf
        %2778 = vmax.xlane.f32.xlu0 %v2777
        %v2779 = vpop.xlane.xlu0 %2778
        %v2780 = vsel %vm839, %v2776, -inf
        %2781 = vmax.xlane.f32.xlu0 %v2780
        %v2782 = vpop.xlane.xlu0 %2781
        %v2783 = vsub.f32 %v2775, %v2779
        %v2784 = vsub.f32 %v2776, %v2782
        %v2785 = vmul.f32 %v2783, 1.442695
        %v2786 = vpow.pop %v2785
        %v2787 = vmul.f32 %v2784, 1.442695
        %v2788 = vpow.pop %v2787
        %v2789 = vsel %vm839, %v2786, 0.0
        %2790 = vadd.xlane.f32.xlu0 %v2789
        %v2791 = vpop.xlane.xlu0 %2790
        %v2792 = vsel %vm839, %v2788, 0.0
        %2793 = vadd.xlane.f32.xlu0 %v2792
        %v2794 = vpop.xlane.xlu0 %2793
        %v2795 = vrcp.pop %v2791
        %v2796 = vrcp.pop %v2794
        %v2797 = vmul.f32 %v2786, %v2795
        %v2798 = vmul.f32 %v2788, %v2796
        %v2799 = vpack.c.bf16 %v2798, %v2797
        %2800 = vrot.lane.b32.xlu0 %v2682, 56
        %v2801 = vpop.permute.xlu0 %2800
        %v2804 = vsel %vm839, %v2799, 0
        %2806 = vmatpush.bf16.msra.mxu0 0
        %2807 = vmatpush.bf16.msra.mxu0 0
        %2808 = vmatpush.bf16.msra.mxu0 0
        %2809 = vmatpush.bf16.msra.mxu0 0
        %2810 = vmatpush.bf16.msra.mxu0 0
        %2811 = vmatpush.bf16.msra.mxu0 0
        %2812 = vmatpush.bf16.msra.mxu0 0
        %2813 = vmatpush.bf16.msra.mxu0 %v2801
        %2814 = vmatmul.bf16.gmra.mxu0 %v2804
        %v2815 = vpop.f32.mrf.mxu0
        %v2816 = vadd.f32 0.0, %v2815
        %v2817 = vpop.f32.mrf.mxu0
        %v2818 = vadd.f32 0.0, %v2817
        %2819 = vdwg.mxu0
        %2820 = vrot.lane.b32.xlu0 %v2682, 112
        %v2821 = vpop.permute.xlu0 %2820
        %2822 = vrot.lane.b32.xlu0 %v2682, 80
        %v2823 = vpop.permute.xlu0 %2822
        %v2825 = vsel %vm816, %v2821, 0
        %v2828 = vsel %vm816, %v2823, 0
        %2830 = vmatpush.bf16.xpose.msra.mxu0 0
        %2831 = vmatpush.bf16.xpose.msra.mxu0 0
        %2832 = vmatpush.bf16.xpose.msra.mxu0 0
        %2833 = vmatpush.bf16.xpose.msra.mxu0 0
        %2834 = vmatpush.bf16.xpose.msra.mxu0 0
        %2835 = vmatpush.bf16.xpose.msra.mxu0 0
        %2836 = vmatpush.bf16.xpose.msra.mxu0 0
        %2837 = vmatpush.bf16.xpose.msra.mxu0 %v2828
        %2838 = vmatmul.bf16.gmra.mxu0 %v2825
        %v2839 = vpop.f32.mrf.mxu0
        %v2840 = vadd.f32 0.0, %v2839
        %v2841 = vpop.f32.mrf.mxu0
        %v2842 = vadd.f32 0.0, %v2841
        %2843 = vdwg.mxu0
        %v2844 = vmul.f32 %v2840, 0.35355338
        %v2845 = vmul.f32 %v2842, 0.35355338
        %v2846 = vsel %vm839, %v2844, -inf
        %2847 = vmax.xlane.f32.xlu0 %v2846
        %v2848 = vpop.xlane.xlu0 %2847
        %v2849 = vsel %vm839, %v2845, -inf
        %2850 = vmax.xlane.f32.xlu0 %v2849
        %v2851 = vpop.xlane.xlu0 %2850
        %v2852 = vsub.f32 %v2844, %v2848
        %v2853 = vsub.f32 %v2845, %v2851
        %v2854 = vmul.f32 %v2852, 1.442695
        %v2855 = vpow.pop %v2854
        %v2856 = vmul.f32 %v2853, 1.442695
        %v2857 = vpow.pop %v2856
        %v2858 = vsel %vm839, %v2855, 0.0
        %2859 = vadd.xlane.f32.xlu0 %v2858
        %v2860 = vpop.xlane.xlu0 %2859
        %v2861 = vsel %vm839, %v2857, 0.0
        %2862 = vadd.xlane.f32.xlu0 %v2861
        %v2863 = vpop.xlane.xlu0 %2862
        %v2864 = vrcp.pop %v2860
        %v2865 = vrcp.pop %v2863
        %v2866 = vmul.f32 %v2855, %v2864
        %v2867 = vmul.f32 %v2857, %v2865
        %v2868 = vpack.c.bf16 %v2867, %v2866
        %2869 = vrot.lane.b32.xlu0 %v2682, 48
        %v2870 = vpop.permute.xlu0 %2869
        %v2873 = vsel %vm839, %v2868, 0
        %2875 = vmatpush.bf16.msra.mxu0 0
        %2876 = vmatpush.bf16.msra.mxu0 0
        %2877 = vmatpush.bf16.msra.mxu0 0
        %2878 = vmatpush.bf16.msra.mxu0 0
        %2879 = vmatpush.bf16.msra.mxu0 0
        %2880 = vmatpush.bf16.msra.mxu0 0
        %2881 = vmatpush.bf16.msra.mxu0 0
        %2882 = vmatpush.bf16.msra.mxu0 %v2870
        %2883 = vmatmul.bf16.gmra.mxu0 %v2873
        %v2884 = vpop.f32.mrf.mxu0
        %v2885 = vadd.f32 0.0, %v2884
        %v2886 = vpop.f32.mrf.mxu0
        %v2887 = vadd.f32 0.0, %v2886
        %2888 = vdwg.mxu0
        %2889 = vrot.lane.b32.xlu0 %v2682, 104
        %v2890 = vpop.permute.xlu0 %2889
        %2891 = vrot.lane.b32.xlu0 %v2682, 72
        %v2892 = vpop.permute.xlu0 %2891
        %v2894 = vsel %vm816, %v2890, 0
        %v2897 = vsel %vm816, %v2892, 0
        %2899 = vmatpush.bf16.xpose.msra.mxu0 0
        %2900 = vmatpush.bf16.xpose.msra.mxu0 0
        %2901 = vmatpush.bf16.xpose.msra.mxu0 0
        %2902 = vmatpush.bf16.xpose.msra.mxu0 0
        %2903 = vmatpush.bf16.xpose.msra.mxu0 0
        %2904 = vmatpush.bf16.xpose.msra.mxu0 0
        %2905 = vmatpush.bf16.xpose.msra.mxu0 0
        %2906 = vmatpush.bf16.xpose.msra.mxu0 %v2897
        %2907 = vmatmul.bf16.gmra.mxu0 %v2894
        %v2908 = vpop.f32.mrf.mxu0
        %v2909 = vadd.f32 0.0, %v2908
        %v2910 = vpop.f32.mrf.mxu0
        %v2911 = vadd.f32 0.0, %v2910
        %2912 = vdwg.mxu0
        %v2913 = vmul.f32 %v2909, 0.35355338
        %v2914 = vmul.f32 %v2911, 0.35355338
        %v2915 = vsel %vm839, %v2913, -inf
        %2916 = vmax.xlane.f32.xlu0 %v2915
        %v2917 = vpop.xlane.xlu0 %2916
        %v2918 = vsel %vm839, %v2914, -inf
        %2919 = vmax.xlane.f32.xlu0 %v2918
        %v2920 = vpop.xlane.xlu0 %2919
        %v2921 = vsub.f32 %v2913, %v2917
        %v2922 = vsub.f32 %v2914, %v2920
        %v2923 = vmul.f32 %v2921, 1.442695
        %v2924 = vpow.pop %v2923
        %v2925 = vmul.f32 %v2922, 1.442695
        %v2926 = vpow.pop %v2925
        %v2927 = vsel %vm839, %v2924, 0.0
        %2928 = vadd.xlane.f32.xlu0 %v2927
        %v2929 = vpop.xlane.xlu0 %2928
        %v2930 = vsel %vm839, %v2926, 0.0
        %2931 = vadd.xlane.f32.xlu0 %v2930
        %v2932 = vpop.xlane.xlu0 %2931
        %v2933 = vrcp.pop %v2929
        %v2934 = vrcp.pop %v2932
        %v2935 = vmul.f32 %v2924, %v2933
        %v2936 = vmul.f32 %v2926, %v2934
        %v2937 = vpack.c.bf16 %v2936, %v2935
        %2938 = vrot.lane.b32.xlu0 %v2682, 40
        %v2939 = vpop.permute.xlu0 %2938
        %v2942 = vsel %vm839, %v2937, 0
        %2944 = vmatpush.bf16.msra.mxu0 0
        %2945 = vmatpush.bf16.msra.mxu0 0
        %2946 = vmatpush.bf16.msra.mxu0 0
        %2947 = vmatpush.bf16.msra.mxu0 0
        %2948 = vmatpush.bf16.msra.mxu0 0
        %2949 = vmatpush.bf16.msra.mxu0 0
        %2950 = vmatpush.bf16.msra.mxu0 0
        %2951 = vmatpush.bf16.msra.mxu0 %v2939
        %2952 = vmatmul.bf16.gmra.mxu0 %v2942
        %v2953 = vpop.f32.mrf.mxu0
        %v2954 = vadd.f32 0.0, %v2953
        %v2955 = vpop.f32.mrf.mxu0
        %v2956 = vadd.f32 0.0, %v2955
        %2957 = vdwg.mxu0
        %2960 = vrot.lane.b32.xlu0 %v2816, 8
        %v2961 = vpop.permute.xlu0 %2960
        %2962 = vrot.lane.b32.xlu0 %v2818, 8
        %v2963 = vpop.permute.xlu0 %2962
        %2968 = vrot.lane.b32.xlu0 %v2885, 16
        %v2969 = vpop.permute.xlu0 %2968
        %2970 = vrot.lane.b32.xlu0 %v2887, 16
        %v2971 = vpop.permute.xlu0 %2970
        %2976 = vrot.lane.b32.xlu0 %v2954, 24
        %v2977 = vpop.permute.xlu0 %2976
        %2978 = vrot.lane.b32.xlu0 %v2956, 24
        %v2979 = vpop.permute.xlu0 %2978
        %v2982 = vsel %vm816, %v2747, %v2961
        %v2983 = vsel %vm816, %v2749, %v2963
        %v2984 = vsel %vm839, %v2982, %v2969
        %v2985 = vsel %vm839, %v2983, %v2971
        %v2986 = vsel %vm1118, %v2984, %v2977
        %v2987 = vsel %vm1118, %v2985, %v2979
        %s2988 = scalar_lea.vmem %s7, 48
        %v2989 = vld [vmem:[%s2988] sm:$0xf]
        %v2990 = vld [vmem:[%s2988 + $0x4] sm:$0xf]
        %v2991 = vld [vmem:[%s2988 + $0x8] sm:$0xf]
        %v2992 = vld [vmem:[%s2988 + $0xc] sm:$0xf]
        %v2993 = vpack.c.bf16 %v2987, %v2986
        %v2998 = vunpack.c.l.b16 %v2989
        %v2999 = vunpack.c.l.b16 %v2990
        %v3000 = vunpack.c.l.b16 %v2991
        %v3001 = vunpack.c.l.b16 %v2992
        %v3002 = vpack.c.b16 %v2999, %v2998
        %v3003 = vpack.c.b16 %v3001, %v3000
        %v3007 = vsel %vm712, %v2993, 0
        %3009 = vmatpush.bf16.msra.mxu0 0
        %3010 = vmatpush.bf16.msra.mxu0 0
        %3011 = vmatpush.bf16.msra.mxu0 0
        %3012 = vmatpush.bf16.msra.mxu0 0
        %3013 = vmatpush.bf16.msra.mxu0 0
        %3014 = vmatpush.bf16.msra.mxu0 0
        %3015 = vmatpush.bf16.msra.mxu0 %v3003
        %3016 = vmatpush.bf16.msra.mxu0 %v3002
        %3017 = vmatmul.bf16.gmra.mxu0 %v3007
        %v3018 = vpop.f32.mrf.mxu0
        %v3019 = vadd.f32 0.0, %v3018
        %v3020 = vpop.f32.mrf.mxu0
        %v3021 = vadd.f32 0.0, %v3020
        %3022 = vdwg.mxu0
        %v3023 = vadd.f32 %v2582, %v3019
        %v3024 = vadd.f32 %v2583, %v3021
        %s3025 = scalar_lea.vmem %s8, 3
        %v3026 = vld [vmem:[%s3025] sm:$0x1]
        %v3028 = vperm.slane %v3026, 0
        %v3030 = vadd.f32 %v3023, %v3028
        %v3031 = vadd.f32 %v3024, %v3028
        %s3032 = scalar_lea.vmem %s4, 14
        %v3033 = vld [vmem:[%s3032] sm:$0x1]
        %s3034 = scalar_lea.vmem %s4, 15
        %v3035 = vld [vmem:[%s3034] sm:$0x1]
        %v3036 = vsel %vm712, %v3030, 0.0
        %3037 = vadd.xlane.f32.xlu0 %v3036
        %v3038 = vpop.xlane.xlu0 %3037
        %v3039 = vsel %vm712, %v3031, 0.0
        %3040 = vadd.xlane.f32.xlu0 %v3039
        %v3041 = vpop.xlane.xlu0 %3040
        %v3042 = vmul.f32 %v3038, %v725
        %v3043 = vmul.f32 %v3041, %v725
        %v3044 = vsub.f32 %v3030, %v3042
        %v3045 = vsub.f32 %v3031, %v3043
        %v3046 = vmul.f32 %v3044, %v3044
        %v3047 = vmul.f32 %v3045, %v3045
        %v3048 = vsel %vm712, %v3046, 0.0
        %3049 = vadd.xlane.f32.xlu0 %v3048
        %v3050 = vpop.xlane.xlu0 %3049
        %v3051 = vsel %vm712, %v3047, 0.0
        %3052 = vadd.xlane.f32.xlu0 %v3051
        %v3053 = vpop.xlane.xlu0 %3052
        %v3054 = vmul.f32 %v3050, %v725
        %v3055 = vmul.f32 %v3053, %v725
        %v3056 = vadd.f32 %v3054, 1e-05
        %v3057 = vadd.f32 %v3055, 1e-05
        %v3058 = vrsqrt.pop %v3056
        %v3059 = vmul.f32 %v3058, %v3056
        %v3060 = vmul.f32 %v3059, %v3058
        %v3061 = vmul.f32 0.5, %v3060
        %v3062 = vsub.f32 1.5, %v3061
        %v3063 = vmul.f32 %v3058, %v3062
        %vm3064 = vweird.f32 %v3056
        %vm3065 = vweird.f32 %v3058
        %vm3066 = vmor %vm3064, %vm3065
        %v3067 = vsel %vm3066, %v3058, %v3063
        %v3068 = vrsqrt.pop %v3057
        %v3069 = vmul.f32 %v3068, %v3057
        %v3070 = vmul.f32 %v3069, %v3068
        %v3071 = vmul.f32 0.5, %v3070
        %v3072 = vsub.f32 1.5, %v3071
        %v3073 = vmul.f32 %v3068, %v3072
        %vm3074 = vweird.f32 %v3057
        %vm3075 = vweird.f32 %v3068
        %vm3076 = vmor %vm3074, %vm3075
        %v3077 = vsel %vm3076, %v3068, %v3073
        %v3078 = vmul.f32 %v3044, %v3067
        %v3079 = vmul.f32 %v3045, %v3077
        %v3081 = vperm.slane %v3033, 0
        %v3083 = vmul.f32 %v3078, %v3081
        %v3084 = vmul.f32 %v3079, %v3081
        %v3086 = vperm.slane %v3035, 0
        %v3088 = vadd.f32 %v3083, %v3086
        %v3089 = vadd.f32 %v3084, %v3086
        %s3090 = scalar_lea.vmem %s9, 48
        %v3091 = vld [vmem:[%s3090] sm:$0xf]
        %v3092 = vld [vmem:[%s3090 + $0x4] sm:$0xf]
        %v3093 = vld [vmem:[%s3090 + $0x8] sm:$0xf]
        %v3094 = vld [vmem:[%s3090 + $0xc] sm:$0xf]
        %v3095 = vpack.c.bf16 %v3089, %v3088
        %s3096 = scalar_lea.vmem %s10, 3
        %v3097 = vld [vmem:[%s3096] sm:$0x1]
        %v3099 = vperm.slane %v3097, 0
        %v3105 = vunpack.c.l.b16 %v3091
        %v3106 = vunpack.c.l.b16 %v3092
        %v3107 = vunpack.c.l.b16 %v3093
        %v3108 = vunpack.c.l.b16 %v3094
        %v3109 = vpack.c.b16 %v3106, %v3105
        %v3110 = vpack.c.b16 %v3108, %v3107
        %v3114 = vsel %vm712, %v3095, 0
        %3116 = vmatpush.bf16.msra.mxu0 0
        %3117 = vmatpush.bf16.msra.mxu0 0
        %3118 = vmatpush.bf16.msra.mxu0 0
        %3119 = vmatpush.bf16.msra.mxu0 0
        %3120 = vmatpush.bf16.msra.mxu0 0
        %3121 = vmatpush.bf16.msra.mxu0 0
        %3122 = vmatpush.bf16.msra.mxu0 %v3110
        %3123 = vmatpush.bf16.msra.mxu0 %v3109
        %3124 = vmatmul.bf16.gmra.mxu0 %v3114
        %v3125 = vpop.f32.mrf.mxu0
        %v3126 = vadd.f32 %v3099, %v3125
        %v3127 = vpop.f32.mrf.mxu0
        %v3128 = vadd.f32 %v3099, %v3127
        %3129 = vdwg.mxu0
        %v3130 = vmul.f32 %v3126, 0.5
        %v3131 = vmul.f32 %v3128, 0.5
        %v3132 = vmul.f32 %v3126, 0.044715
        %v3133 = vmul.f32 %v3128, 0.044715
        %v3134 = vmul.f32 %v3132, %v3126
        %v3135 = vmul.f32 %v3133, %v3128
        %v3136 = vmul.f32 %v3134, %v3126
        %v3137 = vmul.f32 %v3135, %v3128
        %v3138 = vadd.f32 %v3126, %v3136
        %v3139 = vadd.f32 %v3128, %v3137
        %v3140 = vmul.f32 %v3138, 0.7978846
        %v3141 = vmul.f32 %v3139, 0.7978846
        %v3142 = vtanh.pop %v3140
        %v3143 = vtanh.pop %v3141
        %v3144 = vadd.f32 %v3142, 1.0
        %v3145 = vadd.f32 %v3143, 1.0
        %v3146 = vmul.f32 %v3130, %v3144
        %v3147 = vmul.f32 %v3131, %v3145
        %s3148 = scalar_lea.vmem %s11, 96
        %v3149 = vld [vmem:[%s3148] sm:$0xf]
        %v3150 = vld [vmem:[%s3148 + $0x4] sm:$0xf]
        %v3151 = vld [vmem:[%s3148 + $0x8] sm:$0xf]
        %v3152 = vld [vmem:[%s3148 + $0xc] sm:$0xf]
        %v3153 = vld [vmem:[%s3148 + $0x10] sm:$0xf]
        %v3154 = vld [vmem:[%s3148 + $0x14] sm:$0xf]
        %v3155 = vld [vmem:[%s3148 + $0x18] sm:$0xf]
        %v3156 = vld [vmem:[%s3148 + $0x1c] sm:$0xf]
        %v3157 = vpack.c.bf16 %v3147, %v3146
        %v3166 = vunpack.c.l.b16 %v3149
        %v3167 = vunpack.c.l.b16 %v3150
        %v3168 = vunpack.c.l.b16 %v3151
        %v3169 = vunpack.c.l.b16 %v3152
        %v3170 = vunpack.c.l.b16 %v3153
        %v3171 = vunpack.c.l.b16 %v3154
        %v3172 = vunpack.c.l.b16 %v3155
        %v3173 = vunpack.c.l.b16 %v3156
        %v3174 = vpack.c.b16 %v3167, %v3166
        %v3175 = vpack.c.b16 %v3169, %v3168
        %v3176 = vpack.c.b16 %v3171, %v3170
        %v3177 = vpack.c.b16 %v3173, %v3172
        %v3183 = vsel %vm1310, %v3157, 0
        %3185 = vmatpush.bf16.msra.mxu0 0
        %3186 = vmatpush.bf16.msra.mxu0 0
        %3187 = vmatpush.bf16.msra.mxu0 0
        %3188 = vmatpush.bf16.msra.mxu0 0
        %3189 = vmatpush.bf16.msra.mxu0 %v3177
        %3190 = vmatpush.bf16.msra.mxu0 %v3176
        %3191 = vmatpush.bf16.msra.mxu0 %v3175
        %3192 = vmatpush.bf16.msra.mxu0 %v3174
        %3193 = vmatmul.bf16.gmra.mxu0 %v3183
        %v3194 = vpop.f32.mrf.mxu0
        %v3195 = vadd.f32 0.0, %v3194
        %v3196 = vpop.f32.mrf.mxu0
        %v3197 = vadd.f32 0.0, %v3196
        %3198 = vdwg.mxu0
        %v3199 = vadd.f32 %v3030, %v3195
        %v3200 = vadd.f32 %v3031, %v3197
        %s3201 = scalar_lea.vmem %s12, 3
        %v3202 = vld [vmem:[%s3201] sm:$0x1]
        %v3204 = vperm.slane %v3202, 0
        %v3206 = vadd.f32 %v3199, %v3204
        %v3207 = vadd.f32 %v3200, %v3204
        %v3208 = vld [vmem:[#allocation3] sm:$0x1]
        %s3209 = scalar_lea.vmem [#allocation3], 1
        %v3210 = vld [vmem:[%s3209] sm:$0x1]
        %v3211 = vsel %vm712, %v3206, 0.0
        %3212 = vadd.xlane.f32.xlu0 %v3211
        %v3213 = vpop.xlane.xlu0 %3212
        %v3214 = vsel %vm712, %v3207, 0.0
        %3215 = vadd.xlane.f32.xlu0 %v3214
        %v3216 = vpop.xlane.xlu0 %3215
        %v3217 = vmul.f32 %v3213, %v725
        %v3218 = vmul.f32 %v3216, %v725
        %v3219 = vsub.f32 %v3206, %v3217
        %v3220 = vsub.f32 %v3207, %v3218
        %v3221 = vmul.f32 %v3219, %v3219
        %v3222 = vmul.f32 %v3220, %v3220
        %v3223 = vsel %vm712, %v3221, 0.0
        %3224 = vadd.xlane.f32.xlu0 %v3223
        %v3225 = vpop.xlane.xlu0 %3224
        %v3226 = vsel %vm712, %v3222, 0.0
        %3227 = vadd.xlane.f32.xlu0 %v3226
        %v3228 = vpop.xlane.xlu0 %3227
        %v3229 = vmul.f32 %v3225, %v725
        %v3230 = vmul.f32 %v3228, %v725
        %v3231 = vadd.f32 %v3229, 1e-05
        %v3232 = vadd.f32 %v3230, 1e-05
        %v3233 = vrsqrt.pop %v3231
        %v3234 = vmul.f32 %v3233, %v3231
        %v3235 = vmul.f32 %v3234, %v3233
        %v3236 = vmul.f32 0.5, %v3235
        %v3237 = vsub.f32 1.5, %v3236
        %v3238 = vmul.f32 %v3233, %v3237
        %vm3239 = vweird.f32 %v3231
        %vm3240 = vweird.f32 %v3233
        %vm3241 = vmor %vm3239, %vm3240
        %v3242 = vsel %vm3241, %v3233, %v3238
        %v3243 = vrsqrt.pop %v3232
        %v3244 = vmul.f32 %v3243, %v3232
        %v3245 = vmul.f32 %v3244, %v3243
        %v3246 = vmul.f32 0.5, %v3245
        %v3247 = vsub.f32 1.5, %v3246
        %v3248 = vmul.f32 %v3243, %v3247
        %vm3249 = vweird.f32 %v3232
        %vm3250 = vweird.f32 %v3243
        %vm3251 = vmor %vm3249, %vm3250
        %v3252 = vsel %vm3251, %v3243, %v3248
        %v3253 = vmul.f32 %v3219, %v3242
        %v3254 = vmul.f32 %v3220, %v3252
        %v3256 = vperm.slane %v3208, 0
        %v3258 = vmul.f32 %v3253, %v3256
        %v3259 = vmul.f32 %v3254, %v3256
        %v3261 = vperm.slane %v3210, 0
        %v3263 = vadd.f32 %v3258, %v3261
        %v3264 = vadd.f32 %v3259, %v3261
        %v3265 = vperm.slane %v700, 1
        %v3266 = vmul.f32 %v3265, %v699
        %v3267 = vperm.slane %v700, 2
        %v3268 = vmul.f32 %v3267, %v3263
        %v3269 = vadd.f32 %v3266, %v3268
        %3270 = vst.msk [vmem:[#allocation2] sm:$0xff] %vm712, %v3269
        %3271 = vst.msk [vmem:[%s638] sm:$0xff] %vm712, %v3269
        %3272 = vst.msk [vmem:[%s682] sm:$0xff] %vm712, %v3264
        %v3273 = vld [vmem:[%s14] sm:$0xf]
        %v3274 = vld [vmem:[%s14 + $0x4] sm:$0xf]
        %v3275 = vld [vmem:[%s14 + $0x8] sm:$0xf]
        %v3276 = vld [vmem:[%s14 + $0xc] sm:$0xf]
        %v3277 = vpack.c.bf16 %v3269, %v3269
        %v3278 = vld [vmem:[%s15] sm:$0x1]
        %v3280 = vperm.slane %v3278, 0
        %v3286 = vunpack.c.l.b16 %v3273
        %v3287 = vunpack.c.l.b16 %v3274
        %v3288 = vunpack.c.l.b16 %v3275
        %v3289 = vunpack.c.l.b16 %v3276
        %v3290 = vpack.c.b16 %v3287, %v3286
        %v3291 = vpack.c.b16 %v3289, %v3288
        %v3295 = vsel %vm712, %v3277, 0
        %3297 = vmatpush.bf16.msra.mxu0 0
        %3298 = vmatpush.bf16.msra.mxu0 0
        %3299 = vmatpush.bf16.msra.mxu0 0
        %3300 = vmatpush.bf16.msra.mxu0 0
        %3301 = vmatpush.bf16.msra.mxu0 0
        %3302 = vmatpush.bf16.msra.mxu0 0
        %3303 = vmatpush.bf16.msra.mxu0 %v3291
        %3304 = vmatpush.bf16.msra.mxu0 %v3290
        %3305 = vmatmul.bf16.gmra.mxu0 %v3295
        %v3306 = vpop.f32.mrf.mxu0
        %v3307 = vadd.f32 %v3280, %v3306
        %v3308 = vpop.f32.mrf.mxu0
        %3309 = vdwg.mxu0
        %v3310 = vmul.f32 %v3307, 0.5
        %v3311 = vmul.f32 %v3307, 0.044715
        %v3312 = vmul.f32 %v3311, %v3307
        %v3313 = vmul.f32 %v3312, %v3307
        %v3314 = vadd.f32 %v3307, %v3313
        %v3315 = vmul.f32 %v3314, 0.7978846
        %v3316 = vtanh.pop %v3315
        %v3317 = vadd.f32 %v3316, 1.0
        %v3318 = vmul.f32 %v3310, %v3317
        %3319 = vst.msk [vmem:[%s690] sm:$0xff] %vm712, %v3318
        %s3320 = sand.u32 %s409, 1
        %s3321 = scalar_lea.sflag [#allocation5], %s3320
        %s3322 = sand.u32 %s409, 1
        %s3323 = smul.addr %s3322, 8
        %s3324 = scalar_lea.vmem [#allocation6], %s3323
        %p3325 = scmp.lt.s32.totalorder %s38, 1
        %s3326 = scalar_select %p3325, %s38, 1
        %p3327 = scmp.lt.s32.totalorder %s39, 5
        %s3328 = scalar_select %p3327, %s39, 5
        %s3329 = smul.addr %s3326, 6
        %s3330 = sadd.s32 %s3328, %s3329
        %s3331 = smul.addr %s3330, 8
        %s3332 = scalar_lea.vmem %s17, %s3331
        %p3333 = scmp.lt.s32.totalorder %s38, 1
        %s3334 = scalar_select %p3333, %s38, 1
        %p3335 = scmp.lt.s32.totalorder %s39, 5
        %s3336 = scalar_select %p3335, %s39, 5
        %s3337 = smul.addr %s3334, 6
        %s3338 = sadd.s32 %s3336, %s3337
        %s3339 = smul.addr %s3338, 8
        %s3340 = scalar_lea.vmem %s18, %s3339
        // Predicated region
        $region93: #{diffmesh_forward.3} parent=83 // pred_check
          %p3341 = pneg %p419
        $region94: #{diffmesh_forward.3} parent=83 // pred_check_branch
          %3343 = sbr.rel (%p3341) target = $region96
        $region95: #{diffmesh_forward.3} parent=83 // pred_region
          %3345 = vsyncadd %s3321, 0
          %s3346 = smul.addr %s38, 6
          %s3347 = sadd.s32 %s39, %s3346
          %s3348 = smul.addr %s3347, 8
          %s3349 = scalar_lea.hbm %s16, %s3348
          %s3351 = sshll.u32 %s3324, 4
          %s3352 = int_to_ptr.vmem [resolvable:$true] %s3351
          %s3353 = sshll.u32 %s3349, 4
          %s3354 = int_to_ptr.hbm [resolvable:$true] %s3353
          %3356 = dma.vmem_to_hbm [thread:$0]  %s3352, 128, %s3354, %s3321
        $region96: #{diffmesh_forward.3} parent=83 // pred_fallthru
          _
        // Predicated region
        $region97: #{diffmesh_forward.3} parent=83 // pred_check
          %p3357 = pneg %p447
        $region98: #{diffmesh_forward.3} parent=83 // pred_check_branch
          %3359 = sbr.rel (%p3357) target = $region100
        $region99: #{diffmesh_forward.3} parent=83 // pred_region
          _
        $region100: #{diffmesh_forward.3} parent=83 // pred_fallthru
          _
        // Predicated region
        $region101: #{diffmesh_forward.3} parent=83 // pred_check
          %p3360 = pneg %p475
        $region102: #{diffmesh_forward.3} parent=83 // pred_check_branch
          %3362 = sbr.rel (%p3360) target = $region104
        $region103: #{diffmesh_forward.3} parent=83 // pred_region
          _
        $region104: #{diffmesh_forward.3} parent=83 // pred_fallthru
          _
      $region84: #{diffmesh_forward.3} parent=5 // pred_fallthru
        _
      %p3363 = scmp.le.s32.totalorder 2, %s29
      // Predicated region
      $region105: #{diffmesh_forward.3} parent=5 // pred_check
        %p3364 = pneg %p3363
      $region106: #{diffmesh_forward.3} parent=5 // pred_check_branch
        %3366 = sbr.rel (%p3364) target = $region108
      $region107: #{diffmesh_forward.3} parent=5 // pred_region
        %s3367 = ssub.s32 %s29, 2
        // Predicated region
        $region109: #{diffmesh_forward.3} parent=107 // pred_check
          %p3368 = pneg %p425
        $region110: #{diffmesh_forward.3} parent=107 // pred_check_branch
          %3370 = sbr.rel (%p3368) target = $region112
        $region111: #{diffmesh_forward.3} parent=107 // pred_region
          %s3371 = sand.u32 %s410, 1
          %s3372 = scalar_lea.sflag [#allocation5], %s3371
          %s3373 = sand.u32 %s410, 1
          %s3374 = smul.addr %s3373, 8
          %s3375 = scalar_lea.vmem [#allocation6], %s3374
          %3377 = dma.done %s3372, 128
        $region112: #{diffmesh_forward.3} parent=107 // pred_fallthru
          _
        // Predicated region
        $region113: #{diffmesh_forward.3} parent=107 // pred_check
          %p3378 = pneg %p453
        $region114: #{diffmesh_forward.3} parent=107 // pred_check_branch
          %3380 = sbr.rel (%p3378) target = $region116
        $region115: #{diffmesh_forward.3} parent=107 // pred_region
          %p3381 = scmp.lt.s32.totalorder %s40, 1
          %s3382 = scalar_select %p3381, %s40, 1
          %p3383 = scmp.lt.s32.totalorder %s41, 5
          %s3384 = scalar_select %p3383, %s41, 5
          %s3385 = smul.addr %s3382, 6
          %s3386 = sadd.s32 %s3384, %s3385
          %s3387 = smul.addr %s3386, 8
          %s3388 = scalar_lea.vmem %s17, %s3387
        $region116: #{diffmesh_forward.3} parent=107 // pred_fallthru
          _
        // Predicated region
        $region117: #{diffmesh_forward.3} parent=107 // pred_check
          %p3389 = pneg %p481
        $region118: #{diffmesh_forward.3} parent=107 // pred_check_branch
          %3391 = sbr.rel (%p3389) target = $region120
        $region119: #{diffmesh_forward.3} parent=107 // pred_region
          %p3392 = scmp.lt.s32.totalorder %s40, 1
          %s3393 = scalar_select %p3392, %s40, 1
          %p3394 = scmp.lt.s32.totalorder %s41, 5
          %s3395 = scalar_select %p3394, %s41, 5
          %s3396 = smul.addr %s3393, 6
          %s3397 = sadd.s32 %s3395, %s3396
          %s3398 = smul.addr %s3397, 8
          %s3399 = scalar_lea.vmem %s18, %s3398
        $region120: #{diffmesh_forward.3} parent=107 // pred_fallthru
          _
      $region108: #{diffmesh_forward.3} parent=5 // pred_fallthru
        _
    $region6: #{diffmesh_forward.3} parent=1 // loop_footer
      %s33 = sadd.s32 1, %s29
    $region7: #{diffmesh_forward.3} parent=1 // loop_footer_branch
      %28 = sbr.rel target = $region3
    $region8: #{diffmesh_forward.3} parent=1 // loop_exit
      _
    %3400 = vsyncpa [#allocation4], 1
    %s3401 = scalar_lea.sflag [#allocation4], 1
    %3402 = vsyncpa %s3401, 1
    %3403 = vsyncpa [#allocation5], 1
    %s3404 = scalar_lea.sflag [#allocation5], 1
    %3405 = vsyncpa %s3404, 1

// kernel: diffmesh_forward.2
$region0: #{diffmesh_forward.2}
  #allocation0 [shape = 'u32[]', space=smem, size = 0x4, offset = 0x4, fixed_abs, tag = 'smem constant byte address 0x4 - core index']
  #allocation1 [shape = 'u32[72,128]{1,0:T(1,128)}', space=vmem, size = 0x9000, scoped, tag = 'internal scratch']
  %s0 = inlined_call_operand.vmem [shape: f32[2,6,256], index: 0, kind: input, shape index: {}]
  %s1 = inlined_call_operand.hbm [shape: f32[1,6,256], index: 1, kind: input, shape index: {}]
  %s2 = inlined_call_operand.vmem [shape: f32[2,4,1,256], index: 2, kind: input, shape index: {}]
  %s3 = inlined_call_operand.vmem [shape: bf16[2,256,768], index: 3, kind: input, shape index: {}]
  %s4 = inlined_call_operand.vmem [shape: f32[2,1,768], index: 4, kind: input, shape index: {}]
  %s5 = inlined_call_operand.vmem [shape: bf16[2,256,256], index: 5, kind: input, shape index: {}]
  %s6 = inlined_call_operand.vmem [shape: f32[2,1,256], index: 6, kind: input, shape index: {}, may-alias: {6,10}]
  %s7 = inlined_call_operand.hbm [shape: bf16[2,256,32], index: 7, kind: input, shape index: {}]
  %s8 = inlined_call_operand.vmem [shape: f32[2,1,32], index: 8, kind: input, shape index: {}]
  %s9 = inlined_call_operand.hbm [shape: bf16[2,32,256], index: 9, kind: input, shape index: {}]
  %s10 = inlined_call_operand.vmem [shape: f32[2,1,256], index: 10, kind: input, shape index: {}, may-alias: {6,10}]
  %s11 = inlined_call_operand.vmem [shape: f32[2,1,256], index: 11, kind: input, shape index: {}]
  %s12 = inlined_call_operand.vmem [shape: f32[2,6,256], index: 12, kind: output, shape index: {}]
  %s13 = sld [smem:[#allocation0]]
  $region93: #{diffmesh_forward.2} parent=0
    _
  %s15 = ssub.s32 1, %s13
  %s16 = scalar_select 0, %s15, %s13
  $region1: #{diffmesh_forward.2} parent=0
    #allocation2 [shape = 'u8[8192]{0}', space=vmem, size = 0x2000, scoped, tag = 'input window, operand 1, single buffered']
    #allocation3 [shape = 's32[2]{0}', space=sflag, size = 0x8, scoped, tag = 'scoped memory for diffmesh_forward.2']
    #allocation4 [shape = 'u8[131072]{0}', space=vmem, size = 0x20000, scoped, tag = 'input window, operand 7, single buffered']
    #allocation5 [shape = 's32[1]{0}', space=sflag, size = 0x4, scoped, tag = 'scoped memory for diffmesh_forward.2']
    #allocation6 [shape = 'u8[32768]{0}', space=vmem, size = 0x8000, scoped, tag = 'input window, operand 9, single buffered']
    %17 = vsyncpa [#allocation3], 0
    %18 = vsyncpa [#allocation5], 0
    loop: start=0, step=1, limit=4
    $region2: #{diffmesh_forward.2} parent=1 // loop_pre_header
      _
    $region3: #{diffmesh_forward.2} parent=1 // loop_header
      %s20 = sphi 0, %s24
      %p21 = scmp.ge.s32.totalorder %s20, 4
      %s30 = sphi 0, %s32
      %s33 = sphi 0, %s30
      %s34 = sphi 0, %s33
      %s50 = sphi 0, %s34
      %s54 = sphi 0, %s54
      %s56 = sphi 0, %s54
      %s57 = sphi 0, %s56
      %s71 = sphi 0, %s57
      %s75 = sphi 0, %s75
      %s77 = sphi 0, %s75
      %s78 = sphi 0, %s77
      %s92 = sphi 0, %s78
      %s96 = sphi 0, %s96
      %s98 = sphi 0, %s96
      %s99 = sphi 0, %s98
      %s113 = sphi 0, %s99
      %s117 = sphi 0, %s117
      %s119 = sphi 0, %s117
      %s120 = sphi 0, %s119
      %s134 = sphi 0, %s120
      %s138 = sphi 0, %s138
      %s140 = sphi 0, %s138
      %s141 = sphi 0, %s140
      %s155 = sphi 0, %s141
      %s159 = sphi 0, %s159
      %s161 = sphi 0, %s159
      %s162 = sphi 0, %s161
      %s176 = sphi 0, %s162
      %s180 = sphi 0, %s180
      %s182 = sphi 0, %s180
      %s183 = sphi 0, %s182
      %s197 = sphi 0, %s183
      %s201 = sphi 0, %s201
      %s203 = sphi 0, %s201
      %s204 = sphi 0, %s203
      %s218 = sphi 0, %s204
      %s222 = sphi 0, %s222
      %s224 = sphi 0, %s222
      %s225 = sphi 0, %s224
      %s239 = sphi 0, %s225
      %s243 = sphi 0, %s243
      %s245 = sphi 0, %s243
      %s246 = sphi 0, %s245
      %s260 = sphi 0, %s246
      %s264 = sphi 0, %s264
      %s266 = sphi 0, %s264
      %s267 = sphi 0, %s266
      %s281 = sphi 0, %s267
      %s287 = sphi 0, %s289
      %s290 = sphi 0, %s287
      %s291 = sphi 0, %s290
      %s307 = sphi 0, %s291
    $region4: #{diffmesh_forward.2} parent=1 // loop_header_branch
      %23 = sbr.rel (%p21) target = $region8
    $region5: #{diffmesh_forward.2} parent=1 // loop_body
      %s25 = ssub.s32 %s20, 1
      %s26 = ssub.s32 %s20, 2
      %s27 = sadd.s32 %s20, 1
      %s28 = ssub.s32 %s20, %s27
      %p29 = scmp.eq.s32.totalorder %s28, 0
      %s31 = sadd.s32 %s30, 1
      %s32 = scalar_select %p29, %s30, %s31
      %p35 = pneg %p29
      %p36 = scmp.eq.s32.totalorder %s20, 1
      %p37 = por %p35, %p36
      %p38 = scmp.ne.s32.totalorder %s30, %s33
      %p39 = scmp.eq.s32.totalorder %s20, 0
      %p40 = por %p38, %p39
      %p41 = scmp.ne.s32.totalorder %s30, %s33
      %p42 = scmp.eq.s32.totalorder %s25, 1
      %p43 = por %p41, %p42
      %p44 = scmp.ne.s32.totalorder %s33, %s34
      %p45 = scmp.eq.s32.totalorder %s25, 0
      %p46 = por %p44, %p45
      %p47 = scmp.ne.s32.totalorder %s33, %s34
      %p48 = scmp.eq.s32.totalorder %s26, 1
      %p49 = por %p47, %p48
      %p51 = scmp.ne.s32.totalorder %s34, %s50
      %p52 = scmp.eq.s32.totalorder %s26, 0
      %p53 = por %p51, %p52
      %s55 = sadd.s32 %s54, 1
      %p58 = scmp.eq.s32.totalorder %s20, 1
      %p59 = scmp.ne.s32.totalorder %s54, %s56
      %p60 = scmp.eq.s32.totalorder %s20, 0
      %p61 = por %p59, %p60
      %p62 = scmp.ne.s32.totalorder %s54, %s56
      %p63 = scmp.eq.s32.totalorder %s25, 1
      %p64 = por %p62, %p63
      %p65 = scmp.ne.s32.totalorder %s56, %s57
      %p66 = scmp.eq.s32.totalorder %s25, 0
      %p67 = por %p65, %p66
      %p68 = scmp.ne.s32.totalorder %s56, %s57
      %p69 = scmp.eq.s32.totalorder %s26, 1
      %p70 = por %p68, %p69
      %p72 = scmp.ne.s32.totalorder %s57, %s71
      %p73 = scmp.eq.s32.totalorder %s26, 0
      %p74 = por %p72, %p73
      %s76 = sadd.s32 %s75, 1
      %p79 = scmp.eq.s32.totalorder %s20, 1
      %p80 = scmp.ne.s32.totalorder %s75, %s77
      %p81 = scmp.eq.s32.totalorder %s20, 0
      %p82 = por %p80, %p81
      %p83 = scmp.ne.s32.totalorder %s75, %s77
      %p84 = scmp.eq.s32.totalorder %s25, 1
      %p85 = por %p83, %p84
      %p86 = scmp.ne.s32.totalorder %s77, %s78
      %p87 = scmp.eq.s32.totalorder %s25, 0
      %p88 = por %p86, %p87
      %p89 = scmp.ne.s32.totalorder %s77, %s78
      %p90 = scmp.eq.s32.totalorder %s26, 1
      %p91 = por %p89, %p90
      %p93 = scmp.ne.s32.totalorder %s78, %s92
      %p94 = scmp.eq.s32.totalorder %s26, 0
      %p95 = por %p93, %p94
      %s97 = sadd.s32 %s96, 1
      %p100 = scmp.eq.s32.totalorder %s20, 1
      %p101 = scmp.ne.s32.totalorder %s96, %s98
      %p102 = scmp.eq.s32.totalorder %s20, 0
      %p103 = por %p101, %p102
      %p104 = scmp.ne.s32.totalorder %s96, %s98
      %p105 = scmp.eq.s32.totalorder %s25, 1
      %p106 = por %p104, %p105
      %p107 = scmp.ne.s32.totalorder %s98, %s99
      %p108 = scmp.eq.s32.totalorder %s25, 0
      %p109 = por %p107, %p108
      %p110 = scmp.ne.s32.totalorder %s98, %s99
      %p111 = scmp.eq.s32.totalorder %s26, 1
      %p112 = por %p110, %p111
      %p114 = scmp.ne.s32.totalorder %s99, %s113
      %p115 = scmp.eq.s32.totalorder %s26, 0
      %p116 = por %p114, %p115
      %s118 = sadd.s32 %s117, 1
      %p121 = scmp.eq.s32.totalorder %s20, 1
      %p122 = scmp.ne.s32.totalorder %s117, %s119
      %p123 = scmp.eq.s32.totalorder %s20, 0
      %p124 = por %p122, %p123
      %p125 = scmp.ne.s32.totalorder %s117, %s119
      %p126 = scmp.eq.s32.totalorder %s25, 1
      %p127 = por %p125, %p126
      %p128 = scmp.ne.s32.totalorder %s119, %s120
      %p129 = scmp.eq.s32.totalorder %s25, 0
      %p130 = por %p128, %p129
      %p131 = scmp.ne.s32.totalorder %s119, %s120
      %p132 = scmp.eq.s32.totalorder %s26, 1
      %p133 = por %p131, %p132
      %p135 = scmp.ne.s32.totalorder %s120, %s134
      %p136 = scmp.eq.s32.totalorder %s26, 0
      %p137 = por %p135, %p136
      %s139 = sadd.s32 %s138, 1
      %p142 = scmp.eq.s32.totalorder %s20, 1
      %p143 = scmp.ne.s32.totalorder %s138, %s140
      %p144 = scmp.eq.s32.totalorder %s20, 0
      %p145 = por %p143, %p144
      %p146 = scmp.ne.s32.totalorder %s138, %s140
      %p147 = scmp.eq.s32.totalorder %s25, 1
      %p148 = por %p146, %p147
      %p149 = scmp.ne.s32.totalorder %s140, %s141
      %p150 = scmp.eq.s32.totalorder %s25, 0
      %p151 = por %p149, %p150
      %p152 = scmp.ne.s32.totalorder %s140, %s141
      %p153 = scmp.eq.s32.totalorder %s26, 1
      %p154 = por %p152, %p153
      %p156 = scmp.ne.s32.totalorder %s141, %s155
      %p157 = scmp.eq.s32.totalorder %s26, 0
      %p158 = por %p156, %p157
      %s160 = sadd.s32 %s159, 1
      %p163 = scmp.eq.s32.totalorder %s20, 1
      %p164 = scmp.ne.s32.totalorder %s159, %s161
      %p165 = scmp.eq.s32.totalorder %s20, 0
      %p166 = por %p164, %p165
      %p167 = scmp.ne.s32.totalorder %s159, %s161
      %p168 = scmp.eq.s32.totalorder %s25, 1
      %p169 = por %p167, %p168
      %p170 = scmp.ne.s32.totalorder %s161, %s162
      %p171 = scmp.eq.s32.totalorder %s25, 0
      %p172 = por %p170, %p171
      %p173 = scmp.ne.s32.totalorder %s161, %s162
      %p174 = scmp.eq.s32.totalorder %s26, 1
      %p175 = por %p173, %p174
      %p177 = scmp.ne.s32.totalorder %s162, %s176
      %p178 = scmp.eq.s32.totalorder %s26, 0
      %p179 = por %p177, %p178
      %s181 = sadd.s32 %s180, 1
      %p184 = scmp.eq.s32.totalorder %s20, 1
      %p185 = scmp.ne.s32.totalorder %s180, %s182
      %p186 = scmp.eq.s32.totalorder %s20, 0
      %p187 = por %p185, %p186
      %p188 = scmp.ne.s32.totalorder %s180, %s182
      %p189 = scmp.eq.s32.totalorder %s25, 1
      %p190 = por %p188, %p189
      %p191 = scmp.ne.s32.totalorder %s182, %s183
      %p192 = scmp.eq.s32.totalorder %s25, 0
      %p193 = por %p191, %p192
      %p194 = scmp.ne.s32.totalorder %s182, %s183
      %p195 = scmp.eq.s32.totalorder %s26, 1
      %p196 = por %p194, %p195
      %p198 = scmp.ne.s32.totalorder %s183, %s197
      %p199 = scmp.eq.s32.totalorder %s26, 0
      %p200 = por %p198, %p199
      %s202 = sadd.s32 %s201, 1
      %p205 = scmp.eq.s32.totalorder %s20, 1
      %p206 = scmp.ne.s32.totalorder %s201, %s203
      %p207 = scmp.eq.s32.totalorder %s20, 0
      %p208 = por %p206, %p207
      %p209 = scmp.ne.s32.totalorder %s201, %s203
      %p210 = scmp.eq.s32.totalorder %s25, 1
      %p211 = por %p209, %p210
      %p212 = scmp.ne.s32.totalorder %s203, %s204
      %p213 = scmp.eq.s32.totalorder %s25, 0
      %p214 = por %p212, %p213
      %p215 = scmp.ne.s32.totalorder %s203, %s204
      %p216 = scmp.eq.s32.totalorder %s26, 1
      %p217 = por %p215, %p216
      %p219 = scmp.ne.s32.totalorder %s204, %s218
      %p220 = scmp.eq.s32.totalorder %s26, 0
      %p221 = por %p219, %p220
      %s223 = sadd.s32 %s222, 1
      %p226 = scmp.eq.s32.totalorder %s20, 1
      %p227 = scmp.ne.s32.totalorder %s222, %s224
      %p228 = scmp.eq.s32.totalorder %s20, 0
      %p229 = por %p227, %p228
      %p230 = scmp.ne.s32.totalorder %s222, %s224
      %p231 = scmp.eq.s32.totalorder %s25, 1
      %p232 = por %p230, %p231
      %p233 = scmp.ne.s32.totalorder %s224, %s225
      %p234 = scmp.eq.s32.totalorder %s25, 0
      %p235 = por %p233, %p234
      %p236 = scmp.ne.s32.totalorder %s224, %s225
      %p237 = scmp.eq.s32.totalorder %s26, 1
      %p238 = por %p236, %p237
      %p240 = scmp.ne.s32.totalorder %s225, %s239
      %p241 = scmp.eq.s32.totalorder %s26, 0
      %p242 = por %p240, %p241
      %s244 = sadd.s32 %s243, 1
      %p247 = scmp.eq.s32.totalorder %s20, 1
      %p248 = scmp.ne.s32.totalorder %s243, %s245
      %p249 = scmp.eq.s32.totalorder %s20, 0
      %p250 = por %p248, %p249
      %p251 = scmp.ne.s32.totalorder %s243, %s245
      %p252 = scmp.eq.s32.totalorder %s25, 1
      %p253 = por %p251, %p252
      %p254 = scmp.ne.s32.totalorder %s245, %s246
      %p255 = scmp.eq.s32.totalorder %s25, 0
      %p256 = por %p254, %p255
      %p257 = scmp.ne.s32.totalorder %s245, %s246
      %p258 = scmp.eq.s32.totalorder %s26, 1
      %p259 = por %p257, %p258
      %p261 = scmp.ne.s32.totalorder %s246, %s260
      %p262 = scmp.eq.s32.totalorder %s26, 0
      %p263 = por %p261, %p262
      %s265 = sadd.s32 %s264, 1
      %p268 = scmp.eq.s32.totalorder %s20, 1
      %p269 = scmp.ne.s32.totalorder %s264, %s266
      %p270 = scmp.eq.s32.totalorder %s20, 0
      %p271 = por %p269, %p270
      %p272 = scmp.ne.s32.totalorder %s264, %s266
      %p273 = scmp.eq.s32.totalorder %s25, 1
      %p274 = por %p272, %p273
      %p275 = scmp.ne.s32.totalorder %s266, %s267
      %p276 = scmp.eq.s32.totalorder %s25, 0
      %p277 = por %p275, %p276
      %p278 = scmp.ne.s32.totalorder %s266, %s267
      %p279 = scmp.eq.s32.totalorder %s26, 1
      %p280 = por %p278, %p279
      %p282 = scmp.ne.s32.totalorder %s267, %s281
      %p283 = scmp.eq.s32.totalorder %s26, 0
      %p284 = por %p282, %p283
      %s285 = ssub.s32 %s20, %s27
      %p286 = scmp.eq.s32.totalorder %s285, 0
      %s288 = sadd.s32 %s287, 1
      %s289 = scalar_select %p286, %s287, %s288
      %p292 = pneg %p286
      %p293 = scmp.eq.s32.totalorder %s20, 1
      %p294 = por %p292, %p293
      %p295 = scmp.ne.s32.totalorder %s287, %s290
      %p296 = scmp.eq.s32.totalorder %s20, 0
      %p297 = por %p295, %p296
      %p298 = scmp.ne.s32.totalorder %s287, %s290
      %p299 = scmp.eq.s32.totalorder %s25, 1
      %p300 = por %p298, %p299
      %p301 = scmp.ne.s32.totalorder %s290, %s291
      %p302 = scmp.eq.s32.totalorder %s25, 0
      %p303 = por %p301, %p302
      %p304 = scmp.ne.s32.totalorder %s290, %s291
      %p305 = scmp.eq.s32.totalorder %s26, 1
      %p306 = por %p304, %p305
      %p308 = scmp.ne.s32.totalorder %s291, %s307
      %p309 = scmp.eq.s32.totalorder %s26, 0
      %p310 = por %p308, %p309
      %p311 = scmp.le.s32.totalorder 1, %s20
      %p312 = scmp.lt.s32.totalorder %s20, 3
      %p313 = pnand %p311, %p312
      %p314 = pneg %p313
      // Predicated region
      $region9: #{diffmesh_forward.2} parent=5 // pred_check
        _
      $region10: #{diffmesh_forward.2} parent=5 // pred_check_branch
        %316 = sbr.rel (%p313) target = $region12
      $region11: #{diffmesh_forward.2} parent=5 // pred_region
        %s317 = ssub.s32 %s20, 1
        // Predicated region
        $region13: #{diffmesh_forward.2} parent=11 // pred_check
          %p318 = pneg %p67
        $region14: #{diffmesh_forward.2} parent=11 // pred_check_branch
          %320 = sbr.rel (%p318) target = $region16
        $region15: #{diffmesh_forward.2} parent=11 // pred_region
          %322 = vsyncadd [#allocation3], 0
          %s324 = sshll.u32 %s1, 4
          %s325 = int_to_ptr.hbm [resolvable:$true] %s324
          %s326 = sshll.u32 [#allocation2], 4
          %s327 = int_to_ptr.vmem [resolvable:$true] %s326
          %329 = dma.hbm_to_vmem [thread:$0]  %s325, 256, %s327, [#allocation3]
        $region16: #{diffmesh_forward.2} parent=11 // pred_fallthru
          _
        // Predicated region
        $region17: #{diffmesh_forward.2} parent=11 // pred_check
          %p330 = pneg %p88
        $region18: #{diffmesh_forward.2} parent=11 // pred_check_branch
          %332 = sbr.rel (%p330) target = $region20
        $region19: #{diffmesh_forward.2} parent=11 // pred_region
          _
        $region20: #{diffmesh_forward.2} parent=11 // pred_fallthru
          _
        // Predicated region
        $region21: #{diffmesh_forward.2} parent=11 // pred_check
          %p333 = pneg %p109
        $region22: #{diffmesh_forward.2} parent=11 // pred_check_branch
          %335 = sbr.rel (%p333) target = $region24
        $region23: #{diffmesh_forward.2} parent=11 // pred_region
          _
        $region24: #{diffmesh_forward.2} parent=11 // pred_fallthru
          _
        // Predicated region
        $region25: #{diffmesh_forward.2} parent=11 // pred_check
          %p336 = pneg %p130
        $region26: #{diffmesh_forward.2} parent=11 // pred_check_branch
          %338 = sbr.rel (%p336) target = $region28
        $region27: #{diffmesh_forward.2} parent=11 // pred_region
          _
        $region28: #{diffmesh_forward.2} parent=11 // pred_fallthru
          _
        // Predicated region
        $region29: #{diffmesh_forward.2} parent=11 // pred_check
          %p339 = pneg %p151
        $region30: #{diffmesh_forward.2} parent=11 // pred_check_branch
          %341 = sbr.rel (%p339) target = $region32
        $region31: #{diffmesh_forward.2} parent=11 // pred_region
          _
        $region32: #{diffmesh_forward.2} parent=11 // pred_fallthru
          _
        // Predicated region
        $region33: #{diffmesh_forward.2} parent=11 // pred_check
          %p342 = pneg %p172
        $region34: #{diffmesh_forward.2} parent=11 // pred_check_branch
          %344 = sbr.rel (%p342) target = $region36
        $region35: #{diffmesh_forward.2} parent=11 // pred_region
          _
        $region36: #{diffmesh_forward.2} parent=11 // pred_fallthru
          _
        // Predicated region
        $region37: #{diffmesh_forward.2} parent=11 // pred_check
          %p345 = pneg %p193
        $region38: #{diffmesh_forward.2} parent=11 // pred_check_branch
          %347 = sbr.rel (%p345) target = $region40
        $region39: #{diffmesh_forward.2} parent=11 // pred_region
          %349 = vsyncadd [#allocation5], 0
          %s350 = sshll.u32 %s7, 4
          %s351 = int_to_ptr.hbm [resolvable:$true] %s350
          %s352 = sshll.u32 [#allocation4], 4
          %s353 = int_to_ptr.vmem [resolvable:$true] %s352
          %358 = dma.hbm_to_vmem [thread:$0]  %s351, 4096, %s353, [#allocation5], 64, 64, 4
        $region40: #{diffmesh_forward.2} parent=11 // pred_fallthru
          _
        // Predicated region
        $region41: #{diffmesh_forward.2} parent=11 // pred_check
          %p359 = pneg %p214
        $region42: #{diffmesh_forward.2} parent=11 // pred_check_branch
          %361 = sbr.rel (%p359) target = $region44
        $region43: #{diffmesh_forward.2} parent=11 // pred_region
          _
        $region44: #{diffmesh_forward.2} parent=11 // pred_fallthru
          _
        // Predicated region
        $region45: #{diffmesh_forward.2} parent=11 // pred_check
          %p362 = pneg %p235
        $region46: #{diffmesh_forward.2} parent=11 // pred_check_branch
          %364 = sbr.rel (%p362) target = $region48
        $region47: #{diffmesh_forward.2} parent=11 // pred_region
          %366 = vsyncadd [#allocation5], 0
          %s367 = sshll.u32 %s9, 4
          %s368 = int_to_ptr.hbm [resolvable:$true] %s367
          %s369 = sshll.u32 [#allocation6], 4
          %s370 = int_to_ptr.vmem [resolvable:$true] %s369
          %375 = dma.hbm_to_vmem [thread:$0]  %s368, 1024, %s370, [#allocation5], 128, 128, 8
        $region48: #{diffmesh_forward.2} parent=11 // pred_fallthru
          _
        // Predicated region
        $region49: #{diffmesh_forward.2} parent=11 // pred_check
          %p376 = pneg %p256
        $region50: #{diffmesh_forward.2} parent=11 // pred_check_branch
          %378 = sbr.rel (%p376) target = $region52
        $region51: #{diffmesh_forward.2} parent=11 // pred_region
          _
        $region52: #{diffmesh_forward.2} parent=11 // pred_fallthru
          _
        // Predicated region
        $region53: #{diffmesh_forward.2} parent=11 // pred_check
          %p379 = pneg %p277
        $region54: #{diffmesh_forward.2} parent=11 // pred_check_branch
          %381 = sbr.rel (%p379) target = $region56
        $region55: #{diffmesh_forward.2} parent=11 // pred_region
          _
        $region56: #{diffmesh_forward.2} parent=11 // pred_fallthru
          _
      $region12: #{diffmesh_forward.2} parent=5 // pred_fallthru
        _
      %p382 = scmp.lt.s32.totalorder %s20, 2
      // Predicated region
      $region57: #{diffmesh_forward.2} parent=5 // pred_check
        %p383 = pneg %p382
      $region58: #{diffmesh_forward.2} parent=5 // pred_check_branch
        %385 = sbr.rel (%p383) target = $region60
      $region59: #{diffmesh_forward.2} parent=5 // pred_region
        // Predicated region
        $region61: #{diffmesh_forward.2} parent=59 // pred_check
          %p386 = pneg %p40
        $region62: #{diffmesh_forward.2} parent=59 // pred_check_branch
          %388 = sbr.rel (%p386) target = $region64
        $region63: #{diffmesh_forward.2} parent=59 // pred_region
          %p389 = scmp.lt.s32.totalorder %s20, 1
          %s390 = scalar_select %p389, %s20, 1
          %s391 = smul.addr %s390, 2
          %s392 = smul.addr %s391, 8
          %s393 = scalar_lea.vmem %s0, %s392
        $region64: #{diffmesh_forward.2} parent=59 // pred_fallthru
          _
      $region60: #{diffmesh_forward.2} parent=5 // pred_fallthru
        _
      %p394 = scmp.le.s32.totalorder 1, %s20
      %p395 = scmp.lt.s32.totalorder %s20, 3
      %p396 = pnand %p394, %p395
      %p397 = pneg %p396
      // Predicated region
      $region65: #{diffmesh_forward.2} parent=5 // pred_check
        _
      $region66: #{diffmesh_forward.2} parent=5 // pred_check_branch
        %399 = sbr.rel (%p396) target = $region68
      $region67: #{diffmesh_forward.2} parent=5 // pred_region
        %s400 = ssub.s32 %s20, 1
        // Predicated region
        $region69: #{diffmesh_forward.2} parent=67 // pred_check
          %p401 = pneg %p67
        $region70: #{diffmesh_forward.2} parent=67 // pred_check_branch
          %403 = sbr.rel (%p401) target = $region72
        $region71: #{diffmesh_forward.2} parent=67 // pred_region
          %405 = dma.done [#allocation3], 256
        $region72: #{diffmesh_forward.2} parent=67 // pred_fallthru
          _
        // Predicated region
        $region73: #{diffmesh_forward.2} parent=67 // pred_check
          %p406 = pneg %p193
        $region74: #{diffmesh_forward.2} parent=67 // pred_check_branch
          %408 = sbr.rel (%p406) target = $region76
        $region75: #{diffmesh_forward.2} parent=67 // pred_region
          %410 = dma.done [#allocation5], 4096
        $region76: #{diffmesh_forward.2} parent=67 // pred_fallthru
          _
        // Predicated region
        $region77: #{diffmesh_forward.2} parent=67 // pred_check
          %p411 = pneg %p235
        $region78: #{diffmesh_forward.2} parent=67 // pred_check_branch
          %413 = sbr.rel (%p411) target = $region80
        $region79: #{diffmesh_forward.2} parent=67 // pred_region
          %415 = dma.done [#allocation5], 1024
        $region80: #{diffmesh_forward.2} parent=67 // pred_fallthru
          _
        %p416 = scmp.lt.s32.totalorder %s25, 1
        %s417 = scalar_select %p416, %s25, 1
        %s418 = smul.addr %s417, 2
        %s419 = smul.addr %s418, 8
        %s420 = scalar_lea.vmem %s0, %s419
        %p421 = pneg %p46
        %p422 = pneg %p43
        %p423 = pneg %p67
        %p424 = pneg %p64
        %p425 = pneg %p88
        %p426 = pneg %p85
        %p427 = pneg %p109
        %p428 = pneg %p106
        %p429 = pneg %p130
        %p430 = pneg %p127
        %p431 = pneg %p151
        %p432 = pneg %p148
        %p433 = pneg %p172
        %p434 = pneg %p169
        %p435 = pneg %p193
        %p436 = pneg %p190
        %p437 = pneg %p214
        %p438 = pneg %p211
        %p439 = pneg %p235
        %p440 = pneg %p232
        %p441 = pneg %p256
        %p442 = pneg %p253
        %p443 = pneg %p277
        %p444 = pneg %p274
        %p445 = pneg %p303
        %p446 = pneg %p300
        %p447 = scmp.lt.s32.totalorder %s25, 1
        %s448 = scalar_select %p447, %s25, 1
        %s449 = smul.addr %s448, 2
        %s450 = smul.addr %s449, 8
        %s451 = scalar_lea.vmem %s12, %s450
        %p452 = scmp.lt.s32.totalorder %s25, 1
        %s453 = scalar_select %p452, %s25, 1
        %s454 = smul.addr %s453, 2
        %s455 = smul.addr %s454, 8
        %s456 = scalar_lea.vmem %s0, %s455
        %p457 = scmp.lt.s32.totalorder %s25, 1
        %s458 = scalar_select %p457, %s25, 1
        %s459 = smul.addr %s458, 2
        %s460 = smul.addr %s459, 8
        %s461 = scalar_lea.vmem %s12, %s460
        %v463 = vld [vmem:[%s456] sm:$0x3f]
        %v464 = vld [vmem:[%s456 + $0x8] sm:$0x3f]
        %v465 = vld [vmem:[#allocation2] sm:$0x3f]
        %v466 = vld [vmem:[#allocation2 + $0x8] sm:$0x3f]
        %v467 = vadd.f32 %v463, %v465
        %v468 = vadd.f32 %v464, %v466
        %v469 = vld [vmem:[%s2] sm:$0x3]
        %s470 = scalar_lea.vmem %s2, 2
        %v471 = vld [vmem:[%s470] sm:$0x3]
        %vm472 = vcmask 1045504
        %v473 = vsel %vm472, %v467, 0.0
        %v474 = vsel %vm472, %v468, 0.0
        %v475 = vadd.f32 %v473, %v474
        %476 = vadd.xlane.f32.xlu0 %v475
        %v477 = vpop.xlane.xlu0 %476
        %v478 = vrcp.pop 256.0
        %v479 = vmul.f32 256.0, %v478
        %v480 = vsub.f32 1.0, %v479
        %v481 = vmul.f32 %v478, %v480
        %v482 = vadd.f32 %v478, %v481
        %vm483 = vweird.f32 %v478
        %v484 = vsel %vm483, %v478, %v482
        %v485 = vmul.f32 %v477, %v484
        %v486 = vsub.f32 %v467, %v485
        %v487 = vsub.f32 %v468, %v485
        %v488 = vmul.f32 %v486, %v486
        %v489 = vmul.f32 %v487, %v487
        %v490 = vsel %vm472, %v488, 0.0
        %v491 = vsel %vm472, %v489, 0.0
        %v492 = vadd.f32 %v490, %v491
        %493 = vadd.xlane.f32.xlu0 %v492
        %v494 = vpop.xlane.xlu0 %493
        %v495 = vmul.f32 %v494, %v484
        %v496 = vadd.f32 %v495, 1e-05
        %v497 = vrsqrt.pop %v496
        %v498 = vmul.f32 %v497, %v496
        %v499 = vmul.f32 %v498, %v497
        %v500 = vmul.f32 0.5, %v499
        %v501 = vsub.f32 1.5, %v500
        %v502 = vmul.f32 %v497, %v501
        %vm503 = vweird.f32 %v496
        %vm504 = vweird.f32 %v497
        %vm505 = vmor %vm503, %vm504
        %v506 = vsel %vm505, %v497, %v502
        %v507 = vmul.f32 %v486, %v506
        %v508 = vmul.f32 %v487, %v506
        %v510 = vperm.slane %v469, 0
        %v511 = vperm.slane %v469, 1
        %v514 = vmul.f32 %v507, %v510
        %v515 = vmul.f32 %v508, %v511
        %v517 = vperm.slane %v471, 0
        %v518 = vperm.slane %v471, 1
        %v521 = vadd.f32 %v514, %v517
        %v522 = vadd.f32 %v515, %v518
        %v523 = vld [vmem:[%s3] sm:$0xff]
        %v524 = vld [vmem:[%s3 + $0x8] sm:$0xff]
        %v525 = vld [vmem:[%s3 + $0x10] sm:$0xff]
        %v526 = vld [vmem:[%s3 + $0x18] sm:$0xff]
        %v527 = vld [vmem:[%s3 + $0x20] sm:$0xff]
        %v528 = vld [vmem:[%s3 + $0x28] sm:$0xff]
        %v529 = vld [vmem:[%s3 + $0x30] sm:$0xff]
        %v530 = vld [vmem:[%s3 + $0x38] sm:$0xff]
        %v531 = vld [vmem:[%s3 + $0x40] sm:$0xff]
        %v532 = vld [vmem:[%s3 + $0x48] sm:$0xff]
        %v533 = vld [vmem:[%s3 + $0x50] sm:$0xff]
        %v534 = vld [vmem:[%s3 + $0x58] sm:$0xff]
        %v535 = vld [vmem:[%s3 + $0x60] sm:$0xff]
        %v536 = vld [vmem:[%s3 + $0x68] sm:$0xff]
        %v537 = vld [vmem:[%s3 + $0x70] sm:$0xff]
        %v538 = vld [vmem:[%s3 + $0x78] sm:$0xff]
        %v539 = vld [vmem:[%s3 + $0x80] sm:$0xff]
        %v540 = vld [vmem:[%s3 + $0x88] sm:$0xff]
        %v541 = vld [vmem:[%s3 + $0x90] sm:$0xff]
        %v542 = vld [vmem:[%s3 + $0x98] sm:$0xff]
        %v543 = vld [vmem:[%s3 + $0xa0] sm:$0xff]
        %v544 = vld [vmem:[%s3 + $0xa8] sm:$0xff]
        %v545 = vld [vmem:[%s3 + $0xb0] sm:$0xff]
        %v546 = vld [vmem:[%s3 + $0xb8] sm:$0xff]
        %v547 = vld [vmem:[%s3 + $0xc0] sm:$0xff]
        %v548 = vld [vmem:[%s3 + $0xc8] sm:$0xff]
        %v549 = vld [vmem:[%s3 + $0xd0] sm:$0xff]
        %v550 = vld [vmem:[%s3 + $0xd8] sm:$0xff]
        %v551 = vld [vmem:[%s3 + $0xe0] sm:$0xff]
        %v552 = vld [vmem:[%s3 + $0xe8] sm:$0xff]
        %v553 = vld [vmem:[%s3 + $0xf0] sm:$0xff]
        %v554 = vld [vmem:[%s3 + $0xf8] sm:$0xff]
        %v555 = vld [vmem:[%s3 + $0x100] sm:$0xff]
        %v556 = vld [vmem:[%s3 + $0x108] sm:$0xff]
        %v557 = vld [vmem:[%s3 + $0x110] sm:$0xff]
        %v558 = vld [vmem:[%s3 + $0x118] sm:$0xff]
        %v559 = vld [vmem:[%s3 + $0x120] sm:$0xff]
        %v560 = vld [vmem:[%s3 + $0x128] sm:$0xff]
        %v561 = vld [vmem:[%s3 + $0x130] sm:$0xff]
        %v562 = vld [vmem:[%s3 + $0x138] sm:$0xff]
        %v563 = vld [vmem:[%s3 + $0x140] sm:$0xff]
        %v564 = vld [vmem:[%s3 + $0x148] sm:$0xff]
        %v565 = vld [vmem:[%s3 + $0x150] sm:$0xff]
        %v566 = vld [vmem:[%s3 + $0x158] sm:$0xff]
        %v567 = vld [vmem:[%s3 + $0x160] sm:$0xff]
        %v568 = vld [vmem:[%s3 + $0x168] sm:$0xff]
        %v569 = vld [vmem:[%s3 + $0x170] sm:$0xff]
        %v570 = vld [vmem:[%s3 + $0x178] sm:$0xff]
        %v571 = vld [vmem:[%s3 + $0x180] sm:$0xff]
        %v572 = vld [vmem:[%s3 + $0x188] sm:$0xff]
        %v573 = vld [vmem:[%s3 + $0x190] sm:$0xff]
        %v574 = vld [vmem:[%s3 + $0x198] sm:$0xff]
        %v575 = vld [vmem:[%s3 + $0x1a0] sm:$0xff]
        %v576 = vld [vmem:[%s3 + $0x1a8] sm:$0xff]
        %v577 = vld [vmem:[%s3 + $0x1b0] sm:$0xff]
        %v578 = vld [vmem:[%s3 + $0x1b8] sm:$0xff]
        %v579 = vld [vmem:[%s3 + $0x1c0] sm:$0xff]
        %v580 = vld [vmem:[%s3 + $0x1c8] sm:$0xff]
        %v581 = vld [vmem:[%s3 + $0x1d0] sm:$0xff]
        %v582 = vld [vmem:[%s3 + $0x1d8] sm:$0xff]
        %v583 = vld [vmem:[%s3 + $0x1e0] sm:$0xff]
        %v584 = vld [vmem:[%s3 + $0x1e8] sm:$0xff]
        %v585 = vld [vmem:[%s3 + $0x1f0] sm:$0xff]
        %v586 = vld [vmem:[%s3 + $0x1f8] sm:$0xff]
        %v587 = vld [vmem:[%s3 + $0x200] sm:$0xff]
        %v588 = vld [vmem:[%s3 + $0x208] sm:$0xff]
        %v589 = vld [vmem:[%s3 + $0x210] sm:$0xff]
        %v590 = vld [vmem:[%s3 + $0x218] sm:$0xff]
        %v591 = vld [vmem:[%s3 + $0x220] sm:$0xff]
        %v592 = vld [vmem:[%s3 + $0x228] sm:$0xff]
        %v593 = vld [vmem:[%s3 + $0x230] sm:$0xff]
        %v594 = vld [vmem:[%s3 + $0x238] sm:$0xff]
        %v595 = vld [vmem:[%s3 + $0x240] sm:$0xff]
        %v596 = vld [vmem:[%s3 + $0x248] sm:$0xff]
        %v597 = vld [vmem:[%s3 + $0x250] sm:$0xff]
        %v598 = vld [vmem:[%s3 + $0x258] sm:$0xff]
        %v599 = vld [vmem:[%s3 + $0x260] sm:$0xff]
        %v600 = vld [vmem:[%s3 + $0x268] sm:$0xff]
        %v601 = vld [vmem:[%s3 + $0x270] sm:$0xff]
        %v602 = vld [vmem:[%s3 + $0x278] sm:$0xff]
        %v603 = vld [vmem:[%s3 + $0x280] sm:$0xff]
        %v604 = vld [vmem:[%s3 + $0x288] sm:$0xff]
        %v605 = vld [vmem:[%s3 + $0x290] sm:$0xff]
        %v606 = vld [vmem:[%s3 + $0x298] sm:$0xff]
        %v607 = vld [vmem:[%s3 + $0x2a0] sm:$0xff]
        %v608 = vld [vmem:[%s3 + $0x2a8] sm:$0xff]
        %v609 = vld [vmem:[%s3 + $0x2b0] sm:$0xff]
        %v610 = vld [vmem:[%s3 + $0x2b8] sm:$0xff]
        %v611 = vld [vmem:[%s3 + $0x2c0] sm:$0xff]
        %v612 = vld [vmem:[%s3 + $0x2c8] sm:$0xff]
        %v613 = vld [vmem:[%s3 + $0x2d0] sm:$0xff]
        %v614 = vld [vmem:[%s3 + $0x2d8] sm:$0xff]
        %v615 = vld [vmem:[%s3 + $0x2e0] sm:$0xff]
        %v616 = vld [vmem:[%s3 + $0x2e8] sm:$0xff]
        %v617 = vld [vmem:[%s3 + $0x2f0] sm:$0xff]
        %v618 = vld [vmem:[%s3 + $0x2f8] sm:$0xff]
        %v619 = vpack.c.bf16 %v521, %v521
        %v620 = vpack.c.bf16 %v522, %v522
        %v621 = vld [vmem:[%s4] sm:$0x3f]
        %v623 = vperm.slane %v621, 0
        %v624 = vperm.slane %v621, 1
        %v625 = vperm.slane %v621, 2
        %v626 = vperm.slane %v621, 3
        %v627 = vperm.slane %v621, 4
        %v628 = vperm.slane %v621, 5
        %v731 = vunpack.c.l.b16 %v523
        %v732 = vunpack.c.h.b16 %v523
        %v733 = vunpack.c.l.b16 %v524
        %v734 = vunpack.c.h.b16 %v524
        %v735 = vunpack.c.l.b16 %v525
        %v736 = vunpack.c.h.b16 %v525
        %v737 = vunpack.c.l.b16 %v526
        %v738 = vunpack.c.h.b16 %v526
        %v739 = vunpack.c.l.b16 %v527
        %v740 = vunpack.c.h.b16 %v527
        %v741 = vunpack.c.l.b16 %v528
        %v742 = vunpack.c.h.b16 %v528
        %v743 = vunpack.c.l.b16 %v529
        %v744 = vunpack.c.h.b16 %v529
        %v745 = vunpack.c.l.b16 %v530
        %v746 = vunpack.c.h.b16 %v530
        %v747 = vunpack.c.l.b16 %v531
        %v748 = vunpack.c.h.b16 %v531
        %v749 = vunpack.c.l.b16 %v532
        %v750 = vunpack.c.h.b16 %v532
        %v751 = vunpack.c.l.b16 %v533
        %v752 = vunpack.c.h.b16 %v533
        %v753 = vunpack.c.l.b16 %v534
        %v754 = vunpack.c.h.b16 %v534
        %v755 = vunpack.c.l.b16 %v535
        %v756 = vunpack.c.h.b16 %v535
        %v757 = vunpack.c.l.b16 %v536
        %v758 = vunpack.c.h.b16 %v536
        %v759 = vunpack.c.l.b16 %v537
        %v760 = vunpack.c.h.b16 %v537
        %v761 = vunpack.c.l.b16 %v538
        %v762 = vunpack.c.h.b16 %v538
        %v763 = vunpack.c.l.b16 %v539
        %v764 = vunpack.c.h.b16 %v539
        %v765 = vunpack.c.l.b16 %v540
        %v766 = vunpack.c.h.b16 %v540
        %v767 = vunpack.c.l.b16 %v541
        %v768 = vunpack.c.h.b16 %v541
        %v769 = vunpack.c.l.b16 %v542
        %v770 = vunpack.c.h.b16 %v542
        %v771 = vunpack.c.l.b16 %v543
        %v772 = vunpack.c.h.b16 %v543
        %v773 = vunpack.c.l.b16 %v544
        %v774 = vunpack.c.h.b16 %v544
        %v775 = vunpack.c.l.b16 %v545
        %v776 = vunpack.c.h.b16 %v545
        %v777 = vunpack.c.l.b16 %v546
        %v778 = vunpack.c.h.b16 %v546
        %v779 = vunpack.c.l.b16 %v547
        %v780 = vunpack.c.h.b16 %v547
        %v781 = vunpack.c.l.b16 %v548
        %v782 = vunpack.c.h.b16 %v548
        %v783 = vunpack.c.l.b16 %v549
        %v784 = vunpack.c.h.b16 %v549
        %v785 = vunpack.c.l.b16 %v550
        %v786 = vunpack.c.h.b16 %v550
        %v787 = vunpack.c.l.b16 %v551
        %v788 = vunpack.c.h.b16 %v551
        %v789 = vunpack.c.l.b16 %v552
        %v790 = vunpack.c.h.b16 %v552
        %v791 = vunpack.c.l.b16 %v553
        %v792 = vunpack.c.h.b16 %v553
        %v793 = vunpack.c.l.b16 %v554
        %v794 = vunpack.c.h.b16 %v554
        %v795 = vunpack.c.l.b16 %v555
        %v796 = vunpack.c.h.b16 %v555
        %v797 = vunpack.c.l.b16 %v556
        %v798 = vunpack.c.h.b16 %v556
        %v799 = vunpack.c.l.b16 %v557
        %v800 = vunpack.c.h.b16 %v557
        %v801 = vunpack.c.l.b16 %v558
        %v802 = vunpack.c.h.b16 %v558
        %v803 = vunpack.c.l.b16 %v559
        %v804 = vunpack.c.h.b16 %v559
        %v805 = vunpack.c.l.b16 %v560
        %v806 = vunpack.c.h.b16 %v560
        %v807 = vunpack.c.l.b16 %v561
        %v808 = vunpack.c.h.b16 %v561
        %v809 = vunpack.c.l.b16 %v562
        %v810 = vunpack.c.h.b16 %v562
        %v811 = vunpack.c.l.b16 %v563
        %v812 = vunpack.c.h.b16 %v563
        %v813 = vunpack.c.l.b16 %v564
        %v814 = vunpack.c.h.b16 %v564
        %v815 = vunpack.c.l.b16 %v565
        %v816 = vunpack.c.h.b16 %v565
        %v817 = vunpack.c.l.b16 %v566
        %v818 = vunpack.c.h.b16 %v566
        %v819 = vunpack.c.l.b16 %v567
        %v820 = vunpack.c.h.b16 %v567
        %v821 = vunpack.c.l.b16 %v568
        %v822 = vunpack.c.h.b16 %v568
        %v823 = vunpack.c.l.b16 %v569
        %v824 = vunpack.c.h.b16 %v569
        %v825 = vunpack.c.l.b16 %v570
        %v826 = vunpack.c.h.b16 %v570
        %v827 = vunpack.c.l.b16 %v571
        %v828 = vunpack.c.h.b16 %v571
        %v829 = vunpack.c.l.b16 %v572
        %v830 = vunpack.c.h.b16 %v572
        %v831 = vunpack.c.l.b16 %v573
        %v832 = vunpack.c.h.b16 %v573
        %v833 = vunpack.c.l.b16 %v574
        %v834 = vunpack.c.h.b16 %v574
        %v835 = vunpack.c.l.b16 %v575
        %v836 = vunpack.c.h.b16 %v575
        %v837 = vunpack.c.l.b16 %v576
        %v838 = vunpack.c.h.b16 %v576
        %v839 = vunpack.c.l.b16 %v577
        %v840 = vunpack.c.h.b16 %v577
        %v841 = vunpack.c.l.b16 %v578
        %v842 = vunpack.c.h.b16 %v578
        %v843 = vunpack.c.l.b16 %v579
        %v844 = vunpack.c.h.b16 %v579
        %v845 = vunpack.c.l.b16 %v580
        %v846 = vunpack.c.h.b16 %v580
        %v847 = vunpack.c.l.b16 %v581
        %v848 = vunpack.c.h.b16 %v581
        %v849 = vunpack.c.l.b16 %v582
        %v850 = vunpack.c.h.b16 %v582
        %v851 = vunpack.c.l.b16 %v583
        %v852 = vunpack.c.h.b16 %v583
        %v853 = vunpack.c.l.b16 %v584
        %v854 = vunpack.c.h.b16 %v584
        %v855 = vunpack.c.l.b16 %v585
        %v856 = vunpack.c.h.b16 %v585
        %v857 = vunpack.c.l.b16 %v586
        %v858 = vunpack.c.h.b16 %v586
        %v859 = vunpack.c.l.b16 %v587
        %v860 = vunpack.c.h.b16 %v587
        %v861 = vunpack.c.l.b16 %v588
        %v862 = vunpack.c.h.b16 %v588
        %v863 = vunpack.c.l.b16 %v589
        %v864 = vunpack.c.h.b16 %v589
        %v865 = vunpack.c.l.b16 %v590
        %v866 = vunpack.c.h.b16 %v590
        %v867 = vunpack.c.l.b16 %v591
        %v868 = vunpack.c.h.b16 %v591
        %v869 = vunpack.c.l.b16 %v592
        %v870 = vunpack.c.h.b16 %v592
        %v871 = vunpack.c.l.b16 %v593
        %v872 = vunpack.c.h.b16 %v593
        %v873 = vunpack.c.l.b16 %v594
        %v874 = vunpack.c.h.b16 %v594
        %v875 = vunpack.c.l.b16 %v595
        %v876 = vunpack.c.h.b16 %v595
        %v877 = vunpack.c.l.b16 %v596
        %v878 = vunpack.c.h.b16 %v596
        %v879 = vunpack.c.l.b16 %v597
        %v880 = vunpack.c.h.b16 %v597
        %v881 = vunpack.c.l.b16 %v598
        %v882 = vunpack.c.h.b16 %v598
        %v883 = vunpack.c.l.b16 %v599
        %v884 = vunpack.c.h.b16 %v599
        %v885 = vunpack.c.l.b16 %v600
        %v886 = vunpack.c.h.b16 %v600
        %v887 = vunpack.c.l.b16 %v601
        %v888 = vunpack.c.h.b16 %v601
        %v889 = vunpack.c.l.b16 %v602
        %v890 = vunpack.c.h.b16 %v602
        %v891 = vunpack.c.l.b16 %v603
        %v892 = vunpack.c.h.b16 %v603
        %v893 = vunpack.c.l.b16 %v604
        %v894 = vunpack.c.h.b16 %v604
        %v895 = vunpack.c.l.b16 %v605
        %v896 = vunpack.c.h.b16 %v605
        %v897 = vunpack.c.l.b16 %v606
        %v898 = vunpack.c.h.b16 %v606
        %v899 = vunpack.c.l.b16 %v607
        %v900 = vunpack.c.h.b16 %v607
        %v901 = vunpack.c.l.b16 %v608
        %v902 = vunpack.c.h.b16 %v608
        %v903 = vunpack.c.l.b16 %v609
        %v904 = vunpack.c.h.b16 %v609
        %v905 = vunpack.c.l.b16 %v610
        %v906 = vunpack.c.h.b16 %v610
        %v907 = vunpack.c.l.b16 %v611
        %v908 = vunpack.c.h.b16 %v611
        %v909 = vunpack.c.l.b16 %v612
        %v910 = vunpack.c.h.b16 %v612
        %v911 = vunpack.c.l.b16 %v613
        %v912 = vunpack.c.h.b16 %v613
        %v913 = vunpack.c.l.b16 %v614
        %v914 = vunpack.c.h.b16 %v614
        %v915 = vunpack.c.l.b16 %v615
        %v916 = vunpack.c.h.b16 %v615
        %v917 = vunpack.c.l.b16 %v616
        %v918 = vunpack.c.h.b16 %v616
        %v919 = vunpack.c.l.b16 %v617
        %v920 = vunpack.c.h.b16 %v617
        %v921 = vunpack.c.l.b16 %v618
        %v922 = vunpack.c.h.b16 %v618
        %v923 = vpack.c.b16 %v737, %v731
        %v924 = vpack.c.b16 %v738, %v732
        %v925 = vpack.c.b16 %v739, %v733
        %v926 = vpack.c.b16 %v740, %v734
        %v927 = vpack.c.b16 %v741, %v735
        %v928 = vpack.c.b16 %v742, %v736
        %v929 = vpack.c.b16 %v749, %v743
        %v930 = vpack.c.b16 %v750, %v744
        %v931 = vpack.c.b16 %v751, %v745
        %v932 = vpack.c.b16 %v752, %v746
        %v933 = vpack.c.b16 %v753, %v747
        %v934 = vpack.c.b16 %v754, %v748
        %v935 = vpack.c.b16 %v761, %v755
        %v936 = vpack.c.b16 %v762, %v756
        %v937 = vpack.c.b16 %v763, %v757
        %v938 = vpack.c.b16 %v764, %v758
        %v939 = vpack.c.b16 %v765, %v759
        %v940 = vpack.c.b16 %v766, %v760
        %v941 = vpack.c.b16 %v773, %v767
        %v942 = vpack.c.b16 %v774, %v768
        %v943 = vpack.c.b16 %v775, %v769
        %v944 = vpack.c.b16 %v776, %v770
        %v945 = vpack.c.b16 %v777, %v771
        %v946 = vpack.c.b16 %v778, %v772
        %v947 = vpack.c.b16 %v785, %v779
        %v948 = vpack.c.b16 %v786, %v780
        %v949 = vpack.c.b16 %v787, %v781
        %v950 = vpack.c.b16 %v788, %v782
        %v951 = vpack.c.b16 %v789, %v783
        %v952 = vpack.c.b16 %v790, %v784
        %v953 = vpack.c.b16 %v797, %v791
        %v954 = vpack.c.b16 %v798, %v792
        %v955 = vpack.c.b16 %v799, %v793
        %v956 = vpack.c.b16 %v800, %v794
        %v957 = vpack.c.b16 %v801, %v795
        %v958 = vpack.c.b16 %v802, %v796
        %v959 = vpack.c.b16 %v809, %v803
        %v960 = vpack.c.b16 %v810, %v804
        %v961 = vpack.c.b16 %v811, %v805
        %v962 = vpack.c.b16 %v812, %v806
        %v963 = vpack.c.b16 %v813, %v807
        %v964 = vpack.c.b16 %v814, %v808
        %v965 = vpack.c.b16 %v821, %v815
        %v966 = vpack.c.b16 %v822, %v816
        %v967 = vpack.c.b16 %v823, %v817
        %v968 = vpack.c.b16 %v824, %v818
        %v969 = vpack.c.b16 %v825, %v819
        %v970 = vpack.c.b16 %v826, %v820
        %v971 = vpack.c.b16 %v833, %v827
        %v972 = vpack.c.b16 %v834, %v828
        %v973 = vpack.c.b16 %v835, %v829
        %v974 = vpack.c.b16 %v836, %v830
        %v975 = vpack.c.b16 %v837, %v831
        %v976 = vpack.c.b16 %v838, %v832
        %v977 = vpack.c.b16 %v845, %v839
        %v978 = vpack.c.b16 %v846, %v840
        %v979 = vpack.c.b16 %v847, %v841
        %v980 = vpack.c.b16 %v848, %v842
        %v981 = vpack.c.b16 %v849, %v843
        %v982 = vpack.c.b16 %v850, %v844
        %v983 = vpack.c.b16 %v857, %v851
        %v984 = vpack.c.b16 %v858, %v852
        %v985 = vpack.c.b16 %v859, %v853
        %v986 = vpack.c.b16 %v860, %v854
        %v987 = vpack.c.b16 %v861, %v855
        %v988 = vpack.c.b16 %v862, %v856
        %v989 = vpack.c.b16 %v869, %v863
        %v990 = vpack.c.b16 %v870, %v864
        %v991 = vpack.c.b16 %v871, %v865
        %v992 = vpack.c.b16 %v872, %v866
        %v993 = vpack.c.b16 %v873, %v867
        %v994 = vpack.c.b16 %v874, %v868
        %v995 = vpack.c.b16 %v881, %v875
        %v996 = vpack.c.b16 %v882, %v876
        %v997 = vpack.c.b16 %v883, %v877
        %v998 = vpack.c.b16 %v884, %v878
        %v999 = vpack.c.b16 %v885, %v879
        %v1000 = vpack.c.b16 %v886, %v880
        %v1001 = vpack.c.b16 %v893, %v887
        %v1002 = vpack.c.b16 %v894, %v888
        %v1003 = vpack.c.b16 %v895, %v889
        %v1004 = vpack.c.b16 %v896, %v890
        %v1005 = vpack.c.b16 %v897, %v891
        %v1006 = vpack.c.b16 %v898, %v892
        %v1007 = vpack.c.b16 %v905, %v899
        %v1008 = vpack.c.b16 %v906, %v900
        %v1009 = vpack.c.b16 %v907, %v901
        %v1010 = vpack.c.b16 %v908, %v902
        %v1011 = vpack.c.b16 %v909, %v903
        %v1012 = vpack.c.b16 %v910, %v904
        %v1013 = vpack.c.b16 %v917, %v911
        %v1014 = vpack.c.b16 %v918, %v912
        %v1015 = vpack.c.b16 %v919, %v913
        %v1016 = vpack.c.b16 %v920, %v914
        %v1017 = vpack.c.b16 %v921, %v915
        %v1018 = vpack.c.b16 %v922, %v916
        %1115 = vmatpush.bf16.msra.mxu0 %v965
        %1116 = vmatpush.bf16.msra.mxu0 %v959
        %1117 = vmatpush.bf16.msra.mxu0 %v953
        %1118 = vmatpush.bf16.msra.mxu0 %v947
        %1119 = vmatpush.bf16.msra.mxu0 %v941
        %1120 = vmatpush.bf16.msra.mxu0 %v935
        %1121 = vmatpush.bf16.msra.mxu0 %v929
        %1122 = vmatpush.bf16.msra.mxu0 %v923
        %1123 = vmatmul.bf16.gmra.mxu0 %v619
        %v1124 = vpop.f32.mrf.mxu0
        %v1125 = vadd.f32 %v623, %v1124
        %v1126 = vpop.f32.mrf.mxu0
        %1127 = vdwg.mxu0
        %1128 = vmatpush.bf16.msra.mxu0 %v1013
        %1129 = vmatpush.bf16.msra.mxu0 %v1007
        %1130 = vmatpush.bf16.msra.mxu0 %v1001
        %1131 = vmatpush.bf16.msra.mxu0 %v995
        %1132 = vmatpush.bf16.msra.mxu0 %v989
        %1133 = vmatpush.bf16.msra.mxu0 %v983
        %1134 = vmatpush.bf16.msra.mxu0 %v977
        %1135 = vmatpush.bf16.msra.mxu0 %v971
        %1136 = vmatmul.bf16.gmra.mxu0 %v620
        %v1137 = vpop.f32.mrf.mxu0
        %v1138 = vadd.f32 %v1125, %v1137
        %v1139 = vpop.f32.mrf.mxu0
        %1140 = vdwg.mxu0
        %1141 = vmatpush.bf16.msra.mxu0 %v966
        %1142 = vmatpush.bf16.msra.mxu0 %v960
        %1143 = vmatpush.bf16.msra.mxu0 %v954
        %1144 = vmatpush.bf16.msra.mxu0 %v948
        %1145 = vmatpush.bf16.msra.mxu0 %v942
        %1146 = vmatpush.bf16.msra.mxu0 %v936
        %1147 = vmatpush.bf16.msra.mxu0 %v930
        %1148 = vmatpush.bf16.msra.mxu0 %v924
        %1149 = vmatmul.bf16.gmra.mxu0 %v619
        %v1150 = vpop.f32.mrf.mxu0
        %v1151 = vadd.f32 %v624, %v1150
        %v1152 = vpop.f32.mrf.mxu0
        %1153 = vdwg.mxu0
        %1154 = vmatpush.bf16.msra.mxu0 %v1014
        %1155 = vmatpush.bf16.msra.mxu0 %v1008
        %1156 = vmatpush.bf16.msra.mxu0 %v1002
        %1157 = vmatpush.bf16.msra.mxu0 %v996
        %1158 = vmatpush.bf16.msra.mxu0 %v990
        %1159 = vmatpush.bf16.msra.mxu0 %v984
        %1160 = vmatpush.bf16.msra.mxu0 %v978
        %1161 = vmatpush.bf16.msra.mxu0 %v972
        %1162 = vmatmul.bf16.gmra.mxu0 %v620
        %v1163 = vpop.f32.mrf.mxu0
        %v1164 = vadd.f32 %v1151, %v1163
        %v1165 = vpop.f32.mrf.mxu0
        %1166 = vdwg.mxu0
        %1167 = vmatpush.bf16.msra.mxu0 %v967
        %1168 = vmatpush.bf16.msra.mxu0 %v961
        %1169 = vmatpush.bf16.msra.mxu0 %v955
        %1170 = vmatpush.bf16.msra.mxu0 %v949
        %1171 = vmatpush.bf16.msra.mxu0 %v943
        %1172 = vmatpush.bf16.msra.mxu0 %v937
        %1173 = vmatpush.bf16.msra.mxu0 %v931
        %1174 = vmatpush.bf16.msra.mxu0 %v925
        %1175 = vmatmul.bf16.gmra.mxu0 %v619
        %v1176 = vpop.f32.mrf.mxu0
        %v1177 = vadd.f32 %v625, %v1176
        %v1178 = vpop.f32.mrf.mxu0
        %1179 = vdwg.mxu0
        %1180 = vmatpush.bf16.msra.mxu0 %v1015
        %1181 = vmatpush.bf16.msra.mxu0 %v1009
        %1182 = vmatpush.bf16.msra.mxu0 %v1003
        %1183 = vmatpush.bf16.msra.mxu0 %v997
        %1184 = vmatpush.bf16.msra.mxu0 %v991
        %1185 = vmatpush.bf16.msra.mxu0 %v985
        %1186 = vmatpush.bf16.msra.mxu0 %v979
        %1187 = vmatpush.bf16.msra.mxu0 %v973
        %1188 = vmatmul.bf16.gmra.mxu0 %v620
        %v1189 = vpop.f32.mrf.mxu0
        %v1190 = vadd.f32 %v1177, %v1189
        %v1191 = vpop.f32.mrf.mxu0
        %1192 = vdwg.mxu0
        %1193 = vmatpush.bf16.msra.mxu0 %v968
        %1194 = vmatpush.bf16.msra.mxu0 %v962
        %1195 = vmatpush.bf16.msra.mxu0 %v956
        %1196 = vmatpush.bf16.msra.mxu0 %v950
        %1197 = vmatpush.bf16.msra.mxu0 %v944
        %1198 = vmatpush.bf16.msra.mxu0 %v938
        %1199 = vmatpush.bf16.msra.mxu0 %v932
        %1200 = vmatpush.bf16.msra.mxu0 %v926
        %1201 = vmatmul.bf16.gmra.mxu0 %v619
        %v1202 = vpop.f32.mrf.mxu0
        %v1203 = vadd.f32 %v626, %v1202
        %v1204 = vpop.f32.mrf.mxu0
        %1205 = vdwg.mxu0
        %1206 = vmatpush.bf16.msra.mxu0 %v1016
        %1207 = vmatpush.bf16.msra.mxu0 %v1010
        %1208 = vmatpush.bf16.msra.mxu0 %v1004
        %1209 = vmatpush.bf16.msra.mxu0 %v998
        %1210 = vmatpush.bf16.msra.mxu0 %v992
        %1211 = vmatpush.bf16.msra.mxu0 %v986
        %1212 = vmatpush.bf16.msra.mxu0 %v980
        %1213 = vmatpush.bf16.msra.mxu0 %v974
        %1214 = vmatmul.bf16.gmra.mxu0 %v620
        %v1215 = vpop.f32.mrf.mxu0
        %v1216 = vadd.f32 %v1203, %v1215
        %v1217 = vpop.f32.mrf.mxu0
        %1218 = vdwg.mxu0
        %1219 = vmatpush.bf16.msra.mxu0 %v969
        %1220 = vmatpush.bf16.msra.mxu0 %v963
        %1221 = vmatpush.bf16.msra.mxu0 %v957
        %1222 = vmatpush.bf16.msra.mxu0 %v951
        %1223 = vmatpush.bf16.msra.mxu0 %v945
        %1224 = vmatpush.bf16.msra.mxu0 %v939
        %1225 = vmatpush.bf16.msra.mxu0 %v933
        %1226 = vmatpush.bf16.msra.mxu0 %v927
        %1227 = vmatmul.bf16.gmra.mxu0 %v619
        %v1228 = vpop.f32.mrf.mxu0
        %v1229 = vadd.f32 %v627, %v1228
        %v1230 = vpop.f32.mrf.mxu0
        %1231 = vdwg.mxu0
        %1232 = vmatpush.bf16.msra.mxu0 %v1017
        %1233 = vmatpush.bf16.msra.mxu0 %v1011
        %1234 = vmatpush.bf16.msra.mxu0 %v1005
        %1235 = vmatpush.bf16.msra.mxu0 %v999
        %1236 = vmatpush.bf16.msra.mxu0 %v993
        %1237 = vmatpush.bf16.msra.mxu0 %v987
        %1238 = vmatpush.bf16.msra.mxu0 %v981
        %1239 = vmatpush.bf16.msra.mxu0 %v975
        %1240 = vmatmul.bf16.gmra.mxu0 %v620
        %v1241 = vpop.f32.mrf.mxu0
        %v1242 = vadd.f32 %v1229, %v1241
        %v1243 = vpop.f32.mrf.mxu0
        %1244 = vdwg.mxu0
        %1245 = vmatpush.bf16.msra.mxu0 %v970
        %1246 = vmatpush.bf16.msra.mxu0 %v964
        %1247 = vmatpush.bf16.msra.mxu0 %v958
        %1248 = vmatpush.bf16.msra.mxu0 %v952
        %1249 = vmatpush.bf16.msra.mxu0 %v946
        %1250 = vmatpush.bf16.msra.mxu0 %v940
        %1251 = vmatpush.bf16.msra.mxu0 %v934
        %1252 = vmatpush.bf16.msra.mxu0 %v928
        %1253 = vmatmul.bf16.gmra.mxu0 %v619
        %v1254 = vpop.f32.mrf.mxu0
        %v1255 = vadd.f32 %v628, %v1254
        %v1256 = vpop.f32.mrf.mxu0
        %1257 = vdwg.mxu0
        %1258 = vmatpush.bf16.msra.mxu0 %v1018
        %1259 = vmatpush.bf16.msra.mxu0 %v1012
        %1260 = vmatpush.bf16.msra.mxu0 %v1006
        %1261 = vmatpush.bf16.msra.mxu0 %v1000
        %1262 = vmatpush.bf16.msra.mxu0 %v994
        %1263 = vmatpush.bf16.msra.mxu0 %v988
        %1264 = vmatpush.bf16.msra.mxu0 %v982
        %1265 = vmatpush.bf16.msra.mxu0 %v976
        %1266 = vmatmul.bf16.gmra.mxu0 %v620
        %v1267 = vpop.f32.mrf.mxu0
        %v1268 = vadd.f32 %v1255, %v1267
        %v1269 = vpop.f32.mrf.mxu0
        %1270 = vdwg.mxu0
        %v1271 = vpack.c.bf16 %v1138, %v1138
        %v1272 = vpack.c.bf16 %v1190, %v1190
        %vm1273 = vcmask 261120
        %v1275 = vsel %vm1273, %v1271, 0
        %v1278 = vsel %vm1273, %v1272, 0
        %1280 = vmatpush.bf16.xpose.msra.mxu0 0
        %1281 = vmatpush.bf16.xpose.msra.mxu0 0
        %1282 = vmatpush.bf16.xpose.msra.mxu0 0
        %1283 = vmatpush.bf16.xpose.msra.mxu0 0
        %1284 = vmatpush.bf16.xpose.msra.mxu0 0
        %1285 = vmatpush.bf16.xpose.msra.mxu0 0
        %1286 = vmatpush.bf16.xpose.msra.mxu0 0
        %1287 = vmatpush.bf16.xpose.msra.mxu0 %v1278
        %1288 = vmatmul.bf16.gmra.mxu0 %v1275
        %v1289 = vpop.f32.mrf.mxu0
        %v1290 = vadd.f32 0.0, %v1289
        %v1291 = vpop.f32.mrf.mxu0
        %1292 = vdwg.mxu0
        %v1293 = vmul.f32 %v1290, 0.17677669
        %vm1294 = vcmask 46080
        %v1295 = vsel %vm1294, %v1293, -inf
        %1296 = vmax.xlane.f32.xlu0 %v1295
        %v1297 = vpop.xlane.xlu0 %1296
        %v1298 = vsub.f32 %v1293, %v1297
        %v1299 = vmul.f32 %v1298, 1.442695
        %v1300 = vpow.pop %v1299
        %v1301 = vsel %vm1294, %v1300, 0.0
        %1302 = vadd.xlane.f32.xlu0 %v1301
        %v1303 = vpop.xlane.xlu0 %1302
        %v1304 = vrcp.pop %v1303
        %v1305 = vmul.f32 %v1300, %v1304
        %v1306 = vpack.c.bf16 %v1305, %v1305
        %v1307 = vpack.c.bf16 %v1242, %v1242
        %vm1308 = vcmask 48128
        %v1310 = vsel %vm1308, %v1306, 0
        %vm1312 = vcmask 1042432
        %v1314 = vsel %vm1312, %v1307, 0
        %1316 = vmatpush.bf16.msra.mxu0 0
        %1317 = vmatpush.bf16.msra.mxu0 0
        %1318 = vmatpush.bf16.msra.mxu0 0
        %1319 = vmatpush.bf16.msra.mxu0 0
        %1320 = vmatpush.bf16.msra.mxu0 0
        %1321 = vmatpush.bf16.msra.mxu0 0
        %1322 = vmatpush.bf16.msra.mxu0 0
        %1323 = vmatpush.bf16.msra.mxu0 %v1314
        %1324 = vmatmul.bf16.gmra.mxu0 %v1310
        %v1325 = vpop.f32.mrf.mxu0
        %v1326 = vadd.f32 0.0, %v1325
        %v1327 = vpop.f32.mrf.mxu0
        %1328 = vdwg.mxu0
        %1330 = vrot.lane.b32.xlu0 %v1271, 96
        %v1331 = vpop.permute.xlu0 %1330
        %1333 = vrot.lane.b32.xlu0 %v1272, 96
        %v1334 = vpop.permute.xlu0 %1333
        %v1336 = vsel %vm1273, %v1331, 0
        %v1339 = vsel %vm1273, %v1334, 0
        %1341 = vmatpush.bf16.xpose.msra.mxu0 0
        %1342 = vmatpush.bf16.xpose.msra.mxu0 0
        %1343 = vmatpush.bf16.xpose.msra.mxu0 0
        %1344 = vmatpush.bf16.xpose.msra.mxu0 0
        %1345 = vmatpush.bf16.xpose.msra.mxu0 0
        %1346 = vmatpush.bf16.xpose.msra.mxu0 0
        %1347 = vmatpush.bf16.xpose.msra.mxu0 0
        %1348 = vmatpush.bf16.xpose.msra.mxu0 %v1339
        %1349 = vmatmul.bf16.gmra.mxu0 %v1336
        %v1350 = vpop.f32.mrf.mxu0
        %v1351 = vadd.f32 0.0, %v1350
        %v1352 = vpop.f32.mrf.mxu0
        %1353 = vdwg.mxu0
        %v1354 = vmul.f32 %v1351, 0.17677669
        %v1355 = vsel %vm1294, %v1354, -inf
        %1356 = vmax.xlane.f32.xlu0 %v1355
        %v1357 = vpop.xlane.xlu0 %1356
        %v1358 = vsub.f32 %v1354, %v1357
        %v1359 = vmul.f32 %v1358, 1.442695
        %v1360 = vpow.pop %v1359
        %v1361 = vsel %vm1294, %v1360, 0.0
        %1362 = vadd.xlane.f32.xlu0 %v1361
        %v1363 = vpop.xlane.xlu0 %1362
        %v1364 = vrcp.pop %v1363
        %v1365 = vmul.f32 %v1360, %v1364
        %v1366 = vpack.c.bf16 %v1365, %v1365
        %1368 = vrot.lane.b32.xlu0 %v1307, 96
        %v1369 = vpop.permute.xlu0 %1368
        %v1371 = vsel %vm1308, %v1366, 0
        %v1374 = vsel %vm1312, %v1369, 0
        %1376 = vmatpush.bf16.msra.mxu0 0
        %1377 = vmatpush.bf16.msra.mxu0 0
        %1378 = vmatpush.bf16.msra.mxu0 0
        %1379 = vmatpush.bf16.msra.mxu0 0
        %1380 = vmatpush.bf16.msra.mxu0 0
        %1381 = vmatpush.bf16.msra.mxu0 0
        %1382 = vmatpush.bf16.msra.mxu0 0
        %1383 = vmatpush.bf16.msra.mxu0 %v1374
        %1384 = vmatmul.bf16.gmra.mxu0 %v1371
        %v1385 = vpop.f32.mrf.mxu0
        %v1386 = vadd.f32 0.0, %v1385
        %v1387 = vpop.f32.mrf.mxu0
        %1388 = vdwg.mxu0
        %1389 = vrot.lane.b32.xlu0 %v1271, 64
        %v1390 = vpop.permute.xlu0 %1389
        %1391 = vrot.lane.b32.xlu0 %v1272, 64
        %v1392 = vpop.permute.xlu0 %1391
        %v1394 = vsel %vm1273, %v1390, 0
        %v1397 = vsel %vm1273, %v1392, 0
        %1399 = vmatpush.bf16.xpose.msra.mxu0 0
        %1400 = vmatpush.bf16.xpose.msra.mxu0 0
        %1401 = vmatpush.bf16.xpose.msra.mxu0 0
        %1402 = vmatpush.bf16.xpose.msra.mxu0 0
        %1403 = vmatpush.bf16.xpose.msra.mxu0 0
        %1404 = vmatpush.bf16.xpose.msra.mxu0 0
        %1405 = vmatpush.bf16.xpose.msra.mxu0 0
        %1406 = vmatpush.bf16.xpose.msra.mxu0 %v1397
        %1407 = vmatmul.bf16.gmra.mxu0 %v1394
        %v1408 = vpop.f32.mrf.mxu0
        %v1409 = vadd.f32 0.0, %v1408
        %v1410 = vpop.f32.mrf.mxu0
        %1411 = vdwg.mxu0
        %v1412 = vmul.f32 %v1409, 0.17677669
        %v1413 = vsel %vm1294, %v1412, -inf
        %1414 = vmax.xlane.f32.xlu0 %v1413
        %v1415 = vpop.xlane.xlu0 %1414
        %v1416 = vsub.f32 %v1412, %v1415
        %v1417 = vmul.f32 %v1416, 1.442695
        %v1418 = vpow.pop %v1417
        %v1419 = vsel %vm1294, %v1418, 0.0
        %1420 = vadd.xlane.f32.xlu0 %v1419
        %v1421 = vpop.xlane.xlu0 %1420
        %v1422 = vrcp.pop %v1421
        %v1423 = vmul.f32 %v1418, %v1422
        %v1424 = vpack.c.bf16 %v1423, %v1423
        %1425 = vrot.lane.b32.xlu0 %v1307, 64
        %v1426 = vpop.permute.xlu0 %1425
        %v1428 = vsel %vm1308, %v1424, 0
        %v1431 = vsel %vm1312, %v1426, 0
        %1433 = vmatpush.bf16.msra.mxu0 0
        %1434 = vmatpush.bf16.msra.mxu0 0
        %1435 = vmatpush.bf16.msra.mxu0 0
        %1436 = vmatpush.bf16.msra.mxu0 0
        %1437 = vmatpush.bf16.msra.mxu0 0
        %1438 = vmatpush.bf16.msra.mxu0 0
        %1439 = vmatpush.bf16.msra.mxu0 0
        %1440 = vmatpush.bf16.msra.mxu0 %v1431
        %1441 = vmatmul.bf16.gmra.mxu0 %v1428
        %v1442 = vpop.f32.mrf.mxu0
        %v1443 = vadd.f32 0.0, %v1442
        %v1444 = vpop.f32.mrf.mxu0
        %1445 = vdwg.mxu0
        %1446 = vrot.lane.b32.xlu0 %v1271, 32
        %v1447 = vpop.permute.xlu0 %1446
        %1448 = vrot.lane.b32.xlu0 %v1272, 32
        %v1449 = vpop.permute.xlu0 %1448
        %v1451 = vsel %vm1273, %v1447, 0
        %v1454 = vsel %vm1273, %v1449, 0
        %1456 = vmatpush.bf16.xpose.msra.mxu0 0
        %1457 = vmatpush.bf16.xpose.msra.mxu0 0
        %1458 = vmatpush.bf16.xpose.msra.mxu0 0
        %1459 = vmatpush.bf16.xpose.msra.mxu0 0
        %1460 = vmatpush.bf16.xpose.msra.mxu0 0
        %1461 = vmatpush.bf16.xpose.msra.mxu0 0
        %1462 = vmatpush.bf16.xpose.msra.mxu0 0
        %1463 = vmatpush.bf16.xpose.msra.mxu0 %v1454
        %1464 = vmatmul.bf16.gmra.mxu0 %v1451
        %v1465 = vpop.f32.mrf.mxu0
        %v1466 = vadd.f32 0.0, %v1465
        %v1467 = vpop.f32.mrf.mxu0
        %1468 = vdwg.mxu0
        %v1469 = vmul.f32 %v1466, 0.17677669
        %v1470 = vsel %vm1294, %v1469, -inf
        %1471 = vmax.xlane.f32.xlu0 %v1470
        %v1472 = vpop.xlane.xlu0 %1471
        %v1473 = vsub.f32 %v1469, %v1472
        %v1474 = vmul.f32 %v1473, 1.442695
        %v1475 = vpow.pop %v1474
        %v1476 = vsel %vm1294, %v1475, 0.0
        %1477 = vadd.xlane.f32.xlu0 %v1476
        %v1478 = vpop.xlane.xlu0 %1477
        %v1479 = vrcp.pop %v1478
        %v1480 = vmul.f32 %v1475, %v1479
        %v1481 = vpack.c.bf16 %v1480, %v1480
        %1482 = vrot.lane.b32.xlu0 %v1307, 32
        %v1483 = vpop.permute.xlu0 %1482
        %v1485 = vsel %vm1308, %v1481, 0
        %v1488 = vsel %vm1312, %v1483, 0
        %1490 = vmatpush.bf16.msra.mxu0 0
        %1491 = vmatpush.bf16.msra.mxu0 0
        %1492 = vmatpush.bf16.msra.mxu0 0
        %1493 = vmatpush.bf16.msra.mxu0 0
        %1494 = vmatpush.bf16.msra.mxu0 0
        %1495 = vmatpush.bf16.msra.mxu0 0
        %1496 = vmatpush.bf16.msra.mxu0 0
        %1497 = vmatpush.bf16.msra.mxu0 %v1488
        %1498 = vmatmul.bf16.gmra.mxu0 %v1485
        %v1499 = vpop.f32.mrf.mxu0
        %v1500 = vadd.f32 0.0, %v1499
        %v1501 = vpop.f32.mrf.mxu0
        %1502 = vdwg.mxu0
        %v1503 = vpack.c.bf16 %v1164, %v1164
        %v1504 = vpack.c.bf16 %v1216, %v1216
        %v1506 = vsel %vm1273, %v1503, 0
        %v1509 = vsel %vm1273, %v1504, 0
        %1511 = vmatpush.bf16.xpose.msra.mxu0 0
        %1512 = vmatpush.bf16.xpose.msra.mxu0 0
        %1513 = vmatpush.bf16.xpose.msra.mxu0 0
        %1514 = vmatpush.bf16.xpose.msra.mxu0 0
        %1515 = vmatpush.bf16.xpose.msra.mxu0 0
        %1516 = vmatpush.bf16.xpose.msra.mxu0 0
        %1517 = vmatpush.bf16.xpose.msra.mxu0 0
        %1518 = vmatpush.bf16.xpose.msra.mxu0 %v1509
        %1519 = vmatmul.bf16.gmra.mxu0 %v1506
        %v1520 = vpop.f32.mrf.mxu0
        %v1521 = vadd.f32 0.0, %v1520
        %v1522 = vpop.f32.mrf.mxu0
        %1523 = vdwg.mxu0
        %v1524 = vmul.f32 %v1521, 0.17677669
        %v1525 = vsel %vm1294, %v1524, -inf
        %1526 = vmax.xlane.f32.xlu0 %v1525
        %v1527 = vpop.xlane.xlu0 %1526
        %v1528 = vsub.f32 %v1524, %v1527
        %v1529 = vmul.f32 %v1528, 1.442695
        %v1530 = vpow.pop %v1529
        %v1531 = vsel %vm1294, %v1530, 0.0
        %1532 = vadd.xlane.f32.xlu0 %v1531
        %v1533 = vpop.xlane.xlu0 %1532
        %v1534 = vrcp.pop %v1533
        %v1535 = vmul.f32 %v1530, %v1534
        %v1536 = vpack.c.bf16 %v1535, %v1535
        %v1537 = vpack.c.bf16 %v1268, %v1268
        %v1539 = vsel %vm1308, %v1536, 0
        %v1542 = vsel %vm1312, %v1537, 0
        %1544 = vmatpush.bf16.msra.mxu0 0
        %1545 = vmatpush.bf16.msra.mxu0 0
        %1546 = vmatpush.bf16.msra.mxu0 0
        %1547 = vmatpush.bf16.msra.mxu0 0
        %1548 = vmatpush.bf16.msra.mxu0 0
        %1549 = vmatpush.bf16.msra.mxu0 0
        %1550 = vmatpush.bf16.msra.mxu0 0
        %1551 = vmatpush.bf16.msra.mxu0 %v1542
        %1552 = vmatmul.bf16.gmra.mxu0 %v1539
        %v1553 = vpop.f32.mrf.mxu0
        %v1554 = vadd.f32 0.0, %v1553
        %v1555 = vpop.f32.mrf.mxu0
        %1556 = vdwg.mxu0
        %1558 = vrot.lane.b32.xlu0 %v1503, 96
        %v1559 = vpop.permute.xlu0 %1558
        %1561 = vrot.lane.b32.xlu0 %v1504, 96
        %v1562 = vpop.permute.xlu0 %1561
        %v1564 = vsel %vm1273, %v1559, 0
        %v1567 = vsel %vm1273, %v1562, 0
        %1569 = vmatpush.bf16.xpose.msra.mxu0 0
        %1570 = vmatpush.bf16.xpose.msra.mxu0 0
        %1571 = vmatpush.bf16.xpose.msra.mxu0 0
        %1572 = vmatpush.bf16.xpose.msra.mxu0 0
        %1573 = vmatpush.bf16.xpose.msra.mxu0 0
        %1574 = vmatpush.bf16.xpose.msra.mxu0 0
        %1575 = vmatpush.bf16.xpose.msra.mxu0 0
        %1576 = vmatpush.bf16.xpose.msra.mxu0 %v1567
        %1577 = vmatmul.bf16.gmra.mxu0 %v1564
        %v1578 = vpop.f32.mrf.mxu0
        %v1579 = vadd.f32 0.0, %v1578
        %v1580 = vpop.f32.mrf.mxu0
        %1581 = vdwg.mxu0
        %v1582 = vmul.f32 %v1579, 0.17677669
        %v1583 = vsel %vm1294, %v1582, -inf
        %1584 = vmax.xlane.f32.xlu0 %v1583
        %v1585 = vpop.xlane.xlu0 %1584
        %v1586 = vsub.f32 %v1582, %v1585
        %v1587 = vmul.f32 %v1586, 1.442695
        %v1588 = vpow.pop %v1587
        %v1589 = vsel %vm1294, %v1588, 0.0
        %1590 = vadd.xlane.f32.xlu0 %v1589
        %v1591 = vpop.xlane.xlu0 %1590
        %v1592 = vrcp.pop %v1591
        %v1593 = vmul.f32 %v1588, %v1592
        %v1594 = vpack.c.bf16 %v1593, %v1593
        %1596 = vrot.lane.b32.xlu0 %v1537, 96
        %v1597 = vpop.permute.xlu0 %1596
        %v1599 = vsel %vm1308, %v1594, 0
        %v1602 = vsel %vm1312, %v1597, 0
        %1604 = vmatpush.bf16.msra.mxu0 0
        %1605 = vmatpush.bf16.msra.mxu0 0
        %1606 = vmatpush.bf16.msra.mxu0 0
        %1607 = vmatpush.bf16.msra.mxu0 0
        %1608 = vmatpush.bf16.msra.mxu0 0
        %1609 = vmatpush.bf16.msra.mxu0 0
        %1610 = vmatpush.bf16.msra.mxu0 0
        %1611 = vmatpush.bf16.msra.mxu0 %v1602
        %1612 = vmatmul.bf16.gmra.mxu0 %v1599
        %v1613 = vpop.f32.mrf.mxu0
        %v1614 = vadd.f32 0.0, %v1613
        %v1615 = vpop.f32.mrf.mxu0
        %1616 = vdwg.mxu0
        %1617 = vrot.lane.b32.xlu0 %v1503, 64
        %v1618 = vpop.permute.xlu0 %1617
        %1619 = vrot.lane.b32.xlu0 %v1504, 64
        %v1620 = vpop.permute.xlu0 %1619
        %v1622 = vsel %vm1273, %v1618, 0
        %v1625 = vsel %vm1273, %v1620, 0
        %1627 = vmatpush.bf16.xpose.msra.mxu0 0
        %1628 = vmatpush.bf16.xpose.msra.mxu0 0
        %1629 = vmatpush.bf16.xpose.msra.mxu0 0
        %1630 = vmatpush.bf16.xpose.msra.mxu0 0
        %1631 = vmatpush.bf16.xpose.msra.mxu0 0
        %1632 = vmatpush.bf16.xpose.msra.mxu0 0
        %1633 = vmatpush.bf16.xpose.msra.mxu0 0
        %1634 = vmatpush.bf16.xpose.msra.mxu0 %v1625
        %1635 = vmatmul.bf16.gmra.mxu0 %v1622
        %v1636 = vpop.f32.mrf.mxu0
        %v1637 = vadd.f32 0.0, %v1636
        %v1638 = vpop.f32.mrf.mxu0
        %1639 = vdwg.mxu0
        %v1640 = vmul.f32 %v1637, 0.17677669
        %v1641 = vsel %vm1294, %v1640, -inf
        %1642 = vmax.xlane.f32.xlu0 %v1641
        %v1643 = vpop.xlane.xlu0 %1642
        %v1644 = vsub.f32 %v1640, %v1643
        %v1645 = vmul.f32 %v1644, 1.442695
        %v1646 = vpow.pop %v1645
        %v1647 = vsel %vm1294, %v1646, 0.0
        %1648 = vadd.xlane.f32.xlu0 %v1647
        %v1649 = vpop.xlane.xlu0 %1648
        %v1650 = vrcp.pop %v1649
        %v1651 = vmul.f32 %v1646, %v1650
        %v1652 = vpack.c.bf16 %v1651, %v1651
        %1653 = vrot.lane.b32.xlu0 %v1537, 64
        %v1654 = vpop.permute.xlu0 %1653
        %v1656 = vsel %vm1308, %v1652, 0
        %v1659 = vsel %vm1312, %v1654, 0
        %1661 = vmatpush.bf16.msra.mxu0 0
        %1662 = vmatpush.bf16.msra.mxu0 0
        %1663 = vmatpush.bf16.msra.mxu0 0
        %1664 = vmatpush.bf16.msra.mxu0 0
        %1665 = vmatpush.bf16.msra.mxu0 0
        %1666 = vmatpush.bf16.msra.mxu0 0
        %1667 = vmatpush.bf16.msra.mxu0 0
        %1668 = vmatpush.bf16.msra.mxu0 %v1659
        %1669 = vmatmul.bf16.gmra.mxu0 %v1656
        %v1670 = vpop.f32.mrf.mxu0
        %v1671 = vadd.f32 0.0, %v1670
        %v1672 = vpop.f32.mrf.mxu0
        %1673 = vdwg.mxu0
        %1674 = vrot.lane.b32.xlu0 %v1503, 32
        %v1675 = vpop.permute.xlu0 %1674
        %1676 = vrot.lane.b32.xlu0 %v1504, 32
        %v1677 = vpop.permute.xlu0 %1676
        %v1679 = vsel %vm1273, %v1675, 0
        %v1682 = vsel %vm1273, %v1677, 0
        %1684 = vmatpush.bf16.xpose.msra.mxu0 0
        %1685 = vmatpush.bf16.xpose.msra.mxu0 0
        %1686 = vmatpush.bf16.xpose.msra.mxu0 0
        %1687 = vmatpush.bf16.xpose.msra.mxu0 0
        %1688 = vmatpush.bf16.xpose.msra.mxu0 0
        %1689 = vmatpush.bf16.xpose.msra.mxu0 0
        %1690 = vmatpush.bf16.xpose.msra.mxu0 0
        %1691 = vmatpush.bf16.xpose.msra.mxu0 %v1682
        %1692 = vmatmul.bf16.gmra.mxu0 %v1679
        %v1693 = vpop.f32.mrf.mxu0
        %v1694 = vadd.f32 0.0, %v1693
        %v1695 = vpop.f32.mrf.mxu0
        %1696 = vdwg.mxu0
        %v1697 = vmul.f32 %v1694, 0.17677669
        %v1698 = vsel %vm1294, %v1697, -inf
        %1699 = vmax.xlane.f32.xlu0 %v1698
        %v1700 = vpop.xlane.xlu0 %1699
        %v1701 = vsub.f32 %v1697, %v1700
        %v1702 = vmul.f32 %v1701, 1.442695
        %v1703 = vpow.pop %v1702
        %v1704 = vsel %vm1294, %v1703, 0.0
        %1705 = vadd.xlane.f32.xlu0 %v1704
        %v1706 = vpop.xlane.xlu0 %1705
        %v1707 = vrcp.pop %v1706
        %v1708 = vmul.f32 %v1703, %v1707
        %v1709 = vpack.c.bf16 %v1708, %v1708
        %1710 = vrot.lane.b32.xlu0 %v1537, 32
        %v1711 = vpop.permute.xlu0 %1710
        %v1713 = vsel %vm1308, %v1709, 0
        %v1716 = vsel %vm1312, %v1711, 0
        %1718 = vmatpush.bf16.msra.mxu0 0
        %1719 = vmatpush.bf16.msra.mxu0 0
        %1720 = vmatpush.bf16.msra.mxu0 0
        %1721 = vmatpush.bf16.msra.mxu0 0
        %1722 = vmatpush.bf16.msra.mxu0 0
        %1723 = vmatpush.bf16.msra.mxu0 0
        %1724 = vmatpush.bf16.msra.mxu0 0
        %1725 = vmatpush.bf16.msra.mxu0 %v1716
        %1726 = vmatmul.bf16.gmra.mxu0 %v1713
        %v1727 = vpop.f32.mrf.mxu0
        %v1728 = vadd.f32 0.0, %v1727
        %v1729 = vpop.f32.mrf.mxu0
        %1730 = vdwg.mxu0
        %1732 = vrot.lane.b32.xlu0 %v1386, 32
        %v1733 = vpop.permute.xlu0 %1732
        %1736 = vrot.lane.b32.xlu0 %v1443, 64
        %v1737 = vpop.permute.xlu0 %1736
        %1740 = vrot.lane.b32.xlu0 %v1500, 96
        %v1741 = vpop.permute.xlu0 %1740
        %1744 = vrot.lane.b32.xlu0 %v1614, 32
        %v1745 = vpop.permute.xlu0 %1744
        %1748 = vrot.lane.b32.xlu0 %v1671, 64
        %v1749 = vpop.permute.xlu0 %1748
        %1752 = vrot.lane.b32.xlu0 %v1728, 96
        %v1753 = vpop.permute.xlu0 %1752
        %v1755 = vsel %vm1273, %v1326, %v1733
        %vm1756 = vcmask 523264
        %v1757 = vsel %vm1756, %v1755, %v1737
        %vm1758 = vcmask 785408
        %v1759 = vsel %vm1758, %v1757, %v1741
        %v1760 = vsel %vm1273, %v1554, %v1745
        %v1761 = vsel %vm1756, %v1760, %v1749
        %v1762 = vsel %vm1758, %v1761, %v1753
        %v1763 = vld [vmem:[%s5] sm:$0xff]
        %v1764 = vld [vmem:[%s5 + $0x8] sm:$0xff]
        %v1765 = vld [vmem:[%s5 + $0x10] sm:$0xff]
        %v1766 = vld [vmem:[%s5 + $0x18] sm:$0xff]
        %v1767 = vld [vmem:[%s5 + $0x20] sm:$0xff]
        %v1768 = vld [vmem:[%s5 + $0x28] sm:$0xff]
        %v1769 = vld [vmem:[%s5 + $0x30] sm:$0xff]
        %v1770 = vld [vmem:[%s5 + $0x38] sm:$0xff]
        %v1771 = vld [vmem:[%s5 + $0x40] sm:$0xff]
        %v1772 = vld [vmem:[%s5 + $0x48] sm:$0xff]
        %v1773 = vld [vmem:[%s5 + $0x50] sm:$0xff]
        %v1774 = vld [vmem:[%s5 + $0x58] sm:$0xff]
        %v1775 = vld [vmem:[%s5 + $0x60] sm:$0xff]
        %v1776 = vld [vmem:[%s5 + $0x68] sm:$0xff]
        %v1777 = vld [vmem:[%s5 + $0x70] sm:$0xff]
        %v1778 = vld [vmem:[%s5 + $0x78] sm:$0xff]
        %v1779 = vld [vmem:[%s5 + $0x80] sm:$0xff]
        %v1780 = vld [vmem:[%s5 + $0x88] sm:$0xff]
        %v1781 = vld [vmem:[%s5 + $0x90] sm:$0xff]
        %v1782 = vld [vmem:[%s5 + $0x98] sm:$0xff]
        %v1783 = vld [vmem:[%s5 + $0xa0] sm:$0xff]
        %v1784 = vld [vmem:[%s5 + $0xa8] sm:$0xff]
        %v1785 = vld [vmem:[%s5 + $0xb0] sm:$0xff]
        %v1786 = vld [vmem:[%s5 + $0xb8] sm:$0xff]
        %v1787 = vld [vmem:[%s5 + $0xc0] sm:$0xff]
        %v1788 = vld [vmem:[%s5 + $0xc8] sm:$0xff]
        %v1789 = vld [vmem:[%s5 + $0xd0] sm:$0xff]
        %v1790 = vld [vmem:[%s5 + $0xd8] sm:$0xff]
        %v1791 = vld [vmem:[%s5 + $0xe0] sm:$0xff]
        %v1792 = vld [vmem:[%s5 + $0xe8] sm:$0xff]
        %v1793 = vld [vmem:[%s5 + $0xf0] sm:$0xff]
        %v1794 = vld [vmem:[%s5 + $0xf8] sm:$0xff]
        %v1795 = vpack.c.bf16 %v1759, %v1759
        %v1796 = vpack.c.bf16 %v1762, %v1762
        %v1829 = vunpack.c.l.b16 %v1763
        %v1830 = vunpack.c.h.b16 %v1763
        %v1831 = vunpack.c.l.b16 %v1764
        %v1832 = vunpack.c.h.b16 %v1764
        %v1833 = vunpack.c.l.b16 %v1765
        %v1834 = vunpack.c.h.b16 %v1765
        %v1835 = vunpack.c.l.b16 %v1766
        %v1836 = vunpack.c.h.b16 %v1766
        %v1837 = vunpack.c.l.b16 %v1767
        %v1838 = vunpack.c.h.b16 %v1767
        %v1839 = vunpack.c.l.b16 %v1768
        %v1840 = vunpack.c.h.b16 %v1768
        %v1841 = vunpack.c.l.b16 %v1769
        %v1842 = vunpack.c.h.b16 %v1769
        %v1843 = vunpack.c.l.b16 %v1770
        %v1844 = vunpack.c.h.b16 %v1770
        %v1845 = vunpack.c.l.b16 %v1771
        %v1846 = vunpack.c.h.b16 %v1771
        %v1847 = vunpack.c.l.b16 %v1772
        %v1848 = vunpack.c.h.b16 %v1772
        %v1849 = vunpack.c.l.b16 %v1773
        %v1850 = vunpack.c.h.b16 %v1773
        %v1851 = vunpack.c.l.b16 %v1774
        %v1852 = vunpack.c.h.b16 %v1774
        %v1853 = vunpack.c.l.b16 %v1775
        %v1854 = vunpack.c.h.b16 %v1775
        %v1855 = vunpack.c.l.b16 %v1776
        %v1856 = vunpack.c.h.b16 %v1776
        %v1857 = vunpack.c.l.b16 %v1777
        %v1858 = vunpack.c.h.b16 %v1777
        %v1859 = vunpack.c.l.b16 %v1778
        %v1860 = vunpack.c.h.b16 %v1778
        %v1861 = vunpack.c.l.b16 %v1779
        %v1862 = vunpack.c.h.b16 %v1779
        %v1863 = vunpack.c.l.b16 %v1780
        %v1864 = vunpack.c.h.b16 %v1780
        %v1865 = vunpack.c.l.b16 %v1781
        %v1866 = vunpack.c.h.b16 %v1781
        %v1867 = vunpack.c.l.b16 %v1782
        %v1868 = vunpack.c.h.b16 %v1782
        %v1869 = vunpack.c.l.b16 %v1783
        %v1870 = vunpack.c.h.b16 %v1783
        %v1871 = vunpack.c.l.b16 %v1784
        %v1872 = vunpack.c.h.b16 %v1784
        %v1873 = vunpack.c.l.b16 %v1785
        %v1874 = vunpack.c.h.b16 %v1785
        %v1875 = vunpack.c.l.b16 %v1786
        %v1876 = vunpack.c.h.b16 %v1786
        %v1877 = vunpack.c.l.b16 %v1787
        %v1878 = vunpack.c.h.b16 %v1787
        %v1879 = vunpack.c.l.b16 %v1788
        %v1880 = vunpack.c.h.b16 %v1788
        %v1881 = vunpack.c.l.b16 %v1789
        %v1882 = vunpack.c.h.b16 %v1789
        %v1883 = vunpack.c.l.b16 %v1790
        %v1884 = vunpack.c.h.b16 %v1790
        %v1885 = vunpack.c.l.b16 %v1791
        %v1886 = vunpack.c.h.b16 %v1791
        %v1887 = vunpack.c.l.b16 %v1792
        %v1888 = vunpack.c.h.b16 %v1792
        %v1889 = vunpack.c.l.b16 %v1793
        %v1890 = vunpack.c.h.b16 %v1793
        %v1891 = vunpack.c.l.b16 %v1794
        %v1892 = vunpack.c.h.b16 %v1794
        %v1893 = vpack.c.b16 %v1831, %v1829
        %v1894 = vpack.c.b16 %v1832, %v1830
        %v1895 = vpack.c.b16 %v1835, %v1833
        %v1896 = vpack.c.b16 %v1836, %v1834
        %v1897 = vpack.c.b16 %v1839, %v1837
        %v1898 = vpack.c.b16 %v1840, %v1838
        %v1899 = vpack.c.b16 %v1843, %v1841
        %v1900 = vpack.c.b16 %v1844, %v1842
        %v1901 = vpack.c.b16 %v1847, %v1845
        %v1902 = vpack.c.b16 %v1848, %v1846
        %v1903 = vpack.c.b16 %v1851, %v1849
        %v1904 = vpack.c.b16 %v1852, %v1850
        %v1905 = vpack.c.b16 %v1855, %v1853
        %v1906 = vpack.c.b16 %v1856, %v1854
        %v1907 = vpack.c.b16 %v1859, %v1857
        %v1908 = vpack.c.b16 %v1860, %v1858
        %v1909 = vpack.c.b16 %v1863, %v1861
        %v1910 = vpack.c.b16 %v1864, %v1862
        %v1911 = vpack.c.b16 %v1867, %v1865
        %v1912 = vpack.c.b16 %v1868, %v1866
        %v1913 = vpack.c.b16 %v1871, %v1869
        %v1914 = vpack.c.b16 %v1872, %v1870
        %v1915 = vpack.c.b16 %v1875, %v1873
        %v1916 = vpack.c.b16 %v1876, %v1874
        %v1917 = vpack.c.b16 %v1879, %v1877
        %v1918 = vpack.c.b16 %v1880, %v1878
        %v1919 = vpack.c.b16 %v1883, %v1881
        %v1920 = vpack.c.b16 %v1884, %v1882
        %v1921 = vpack.c.b16 %v1887, %v1885
        %v1922 = vpack.c.b16 %v1888, %v1886
        %v1923 = vpack.c.b16 %v1891, %v1889
        %v1924 = vpack.c.b16 %v1892, %v1890
        %1957 = vmatpush.bf16.msra.mxu0 %v1907
        %1958 = vmatpush.bf16.msra.mxu0 %v1905
        %1959 = vmatpush.bf16.msra.mxu0 %v1903
        %1960 = vmatpush.bf16.msra.mxu0 %v1901
        %1961 = vmatpush.bf16.msra.mxu0 %v1899
        %1962 = vmatpush.bf16.msra.mxu0 %v1897
        %1963 = vmatpush.bf16.msra.mxu0 %v1895
        %1964 = vmatpush.bf16.msra.mxu0 %v1893
        %1965 = vmatmul.bf16.gmra.mxu0 %v1795
        %v1966 = vpop.f32.mrf.mxu0
        %v1967 = vadd.f32 0.0, %v1966
        %v1968 = vpop.f32.mrf.mxu0
        %1969 = vdwg.mxu0
        %1970 = vmatpush.bf16.msra.mxu0 %v1923
        %1971 = vmatpush.bf16.msra.mxu0 %v1921
        %1972 = vmatpush.bf16.msra.mxu0 %v1919
        %1973 = vmatpush.bf16.msra.mxu0 %v1917
        %1974 = vmatpush.bf16.msra.mxu0 %v1915
        %1975 = vmatpush.bf16.msra.mxu0 %v1913
        %1976 = vmatpush.bf16.msra.mxu0 %v1911
        %1977 = vmatpush.bf16.msra.mxu0 %v1909
        %1978 = vmatmul.bf16.gmra.mxu0 %v1796
        %v1979 = vpop.f32.mrf.mxu0
        %v1980 = vadd.f32 %v1967, %v1979
        %v1981 = vpop.f32.mrf.mxu0
        %1982 = vdwg.mxu0
        %1983 = vmatpush.bf16.msra.mxu0 %v1908
        %1984 = vmatpush.bf16.msra.mxu0 %v1906
        %1985 = vmatpush.bf16.msra.mxu0 %v1904
        %1986 = vmatpush.bf16.msra.mxu0 %v1902
        %1987 = vmatpush.bf16.msra.mxu0 %v1900
        %1988 = vmatpush.bf16.msra.mxu0 %v1898
        %1989 = vmatpush.bf16.msra.mxu0 %v1896
        %1990 = vmatpush.bf16.msra.mxu0 %v1894
        %1991 = vmatmul.bf16.gmra.mxu0 %v1795
        %v1992 = vpop.f32.mrf.mxu0
        %v1993 = vadd.f32 0.0, %v1992
        %v1994 = vpop.f32.mrf.mxu0
        %1995 = vdwg.mxu0
        %1996 = vmatpush.bf16.msra.mxu0 %v1924
        %1997 = vmatpush.bf16.msra.mxu0 %v1922
        %1998 = vmatpush.bf16.msra.mxu0 %v1920
        %1999 = vmatpush.bf16.msra.mxu0 %v1918
        %2000 = vmatpush.bf16.msra.mxu0 %v1916
        %2001 = vmatpush.bf16.msra.mxu0 %v1914
        %2002 = vmatpush.bf16.msra.mxu0 %v1912
        %2003 = vmatpush.bf16.msra.mxu0 %v1910
        %2004 = vmatmul.bf16.gmra.mxu0 %v1796
        %v2005 = vpop.f32.mrf.mxu0
        %v2006 = vadd.f32 %v1993, %v2005
        %v2007 = vpop.f32.mrf.mxu0
        %2008 = vdwg.mxu0
        %v2009 = vadd.f32 %v467, %v1980
        %v2010 = vadd.f32 %v468, %v2006
        %v2011 = vld [vmem:[%s6] sm:$0x3]
        %v2013 = vperm.slane %v2011, 0
        %v2014 = vperm.slane %v2011, 1
        %v2017 = vadd.f32 %v2009, %v2013
        %v2018 = vadd.f32 %v2010, %v2014
        %s2019 = scalar_lea.vmem %s2, 4
        %v2020 = vld [vmem:[%s2019] sm:$0x3]
        %s2021 = scalar_lea.vmem %s2, 6
        %v2022 = vld [vmem:[%s2021] sm:$0x3]
        %v2023 = vsel %vm472, %v2017, 0.0
        %v2024 = vsel %vm472, %v2018, 0.0
        %v2025 = vadd.f32 %v2023, %v2024
        %2026 = vadd.xlane.f32.xlu0 %v2025
        %v2027 = vpop.xlane.xlu0 %2026
        %v2028 = vmul.f32 %v2027, %v484
        %v2029 = vsub.f32 %v2017, %v2028
        %v2030 = vsub.f32 %v2018, %v2028
        %v2031 = vmul.f32 %v2029, %v2029
        %v2032 = vmul.f32 %v2030, %v2030
        %v2033 = vsel %vm472, %v2031, 0.0
        %v2034 = vsel %vm472, %v2032, 0.0
        %v2035 = vadd.f32 %v2033, %v2034
        %2036 = vadd.xlane.f32.xlu0 %v2035
        %v2037 = vpop.xlane.xlu0 %2036
        %v2038 = vmul.f32 %v2037, %v484
        %v2039 = vadd.f32 %v2038, 1e-05
        %v2040 = vrsqrt.pop %v2039
        %v2041 = vmul.f32 %v2040, %v2039
        %v2042 = vmul.f32 %v2041, %v2040
        %v2043 = vmul.f32 0.5, %v2042
        %v2044 = vsub.f32 1.5, %v2043
        %v2045 = vmul.f32 %v2040, %v2044
        %vm2046 = vweird.f32 %v2039
        %vm2047 = vweird.f32 %v2040
        %vm2048 = vmor %vm2046, %vm2047
        %v2049 = vsel %vm2048, %v2040, %v2045
        %v2050 = vmul.f32 %v2029, %v2049
        %v2051 = vmul.f32 %v2030, %v2049
        %v2053 = vperm.slane %v2020, 0
        %v2054 = vperm.slane %v2020, 1
        %v2057 = vmul.f32 %v2050, %v2053
        %v2058 = vmul.f32 %v2051, %v2054
        %v2060 = vperm.slane %v2022, 0
        %v2061 = vperm.slane %v2022, 1
        %v2064 = vadd.f32 %v2057, %v2060
        %v2065 = vadd.f32 %v2058, %v2061
        %v2066 = vld [vmem:[#allocation4] sm:$0xf]
        %v2067 = vld [vmem:[#allocation4 + $0x4] sm:$0xf]
        %v2068 = vld [vmem:[#allocation4 + $0x8] sm:$0xf]
        %v2069 = vld [vmem:[#allocation4 + $0xc] sm:$0xf]
        %v2070 = vld [vmem:[#allocation4 + $0x10] sm:$0xf]
        %v2071 = vld [vmem:[#allocation4 + $0x14] sm:$0xf]
        %v2072 = vld [vmem:[#allocation4 + $0x18] sm:$0xf]
        %v2073 = vld [vmem:[#allocation4 + $0x1c] sm:$0xf]
        %v2074 = vld [vmem:[#allocation4 + $0x20] sm:$0xf]
        %v2075 = vld [vmem:[#allocation4 + $0x24] sm:$0xf]
        %v2076 = vld [vmem:[#allocation4 + $0x28] sm:$0xf]
        %v2077 = vld [vmem:[#allocation4 + $0x2c] sm:$0xf]
        %v2078 = vld [vmem:[#allocation4 + $0x30] sm:$0xf]
        %v2079 = vld [vmem:[#allocation4 + $0x34] sm:$0xf]
        %v2080 = vld [vmem:[#allocation4 + $0x38] sm:$0xf]
        %v2081 = vld [vmem:[#allocation4 + $0x3c] sm:$0xf]
        %v2082 = vld [vmem:[#allocation4 + $0x40] sm:$0xf]
        %v2083 = vld [vmem:[#allocation4 + $0x44] sm:$0xf]
        %v2084 = vld [vmem:[#allocation4 + $0x48] sm:$0xf]
        %v2085 = vld [vmem:[#allocation4 + $0x4c] sm:$0xf]
        %v2086 = vld [vmem:[#allocation4 + $0x50] sm:$0xf]
        %v2087 = vld [vmem:[#allocation4 + $0x54] sm:$0xf]
        %v2088 = vld [vmem:[#allocation4 + $0x58] sm:$0xf]
        %v2089 = vld [vmem:[#allocation4 + $0x5c] sm:$0xf]
        %v2090 = vld [vmem:[#allocation4 + $0x60] sm:$0xf]
        %v2091 = vld [vmem:[#allocation4 + $0x64] sm:$0xf]
        %v2092 = vld [vmem:[#allocation4 + $0x68] sm:$0xf]
        %v2093 = vld [vmem:[#allocation4 + $0x6c] sm:$0xf]
        %v2094 = vld [vmem:[#allocation4 + $0x70] sm:$0xf]
        %v2095 = vld [vmem:[#allocation4 + $0x74] sm:$0xf]
        %v2096 = vld [vmem:[#allocation4 + $0x78] sm:$0xf]
        %v2097 = vld [vmem:[#allocation4 + $0x7c] sm:$0xf]
        %v2098 = vpack.c.bf16 %v2064, %v2064
        %v2099 = vpack.c.bf16 %v2065, %v2065
        %v2100 = vld [vmem:[%s8] sm:$0x1]
        %v2102 = vperm.slane %v2100, 0
        %v2136 = vunpack.c.l.b16 %v2066
        %v2137 = vunpack.c.l.b16 %v2067
        %v2138 = vunpack.c.l.b16 %v2068
        %v2139 = vunpack.c.l.b16 %v2069
        %v2140 = vunpack.c.l.b16 %v2070
        %v2141 = vunpack.c.l.b16 %v2071
        %v2142 = vunpack.c.l.b16 %v2072
        %v2143 = vunpack.c.l.b16 %v2073
        %v2144 = vunpack.c.l.b16 %v2074
        %v2145 = vunpack.c.l.b16 %v2075
        %v2146 = vunpack.c.l.b16 %v2076
        %v2147 = vunpack.c.l.b16 %v2077
        %v2148 = vunpack.c.l.b16 %v2078
        %v2149 = vunpack.c.l.b16 %v2079
        %v2150 = vunpack.c.l.b16 %v2080
        %v2151 = vunpack.c.l.b16 %v2081
        %v2152 = vunpack.c.l.b16 %v2082
        %v2153 = vunpack.c.l.b16 %v2083
        %v2154 = vunpack.c.l.b16 %v2084
        %v2155 = vunpack.c.l.b16 %v2085
        %v2156 = vunpack.c.l.b16 %v2086
        %v2157 = vunpack.c.l.b16 %v2087
        %v2158 = vunpack.c.l.b16 %v2088
        %v2159 = vunpack.c.l.b16 %v2089
        %v2160 = vunpack.c.l.b16 %v2090
        %v2161 = vunpack.c.l.b16 %v2091
        %v2162 = vunpack.c.l.b16 %v2092
        %v2163 = vunpack.c.l.b16 %v2093
        %v2164 = vunpack.c.l.b16 %v2094
        %v2165 = vunpack.c.l.b16 %v2095
        %v2166 = vunpack.c.l.b16 %v2096
        %v2167 = vunpack.c.l.b16 %v2097
        %v2168 = vpack.c.b16 %v2137, %v2136
        %v2169 = vpack.c.b16 %v2139, %v2138
        %v2170 = vpack.c.b16 %v2141, %v2140
        %v2171 = vpack.c.b16 %v2143, %v2142
        %v2172 = vpack.c.b16 %v2145, %v2144
        %v2173 = vpack.c.b16 %v2147, %v2146
        %v2174 = vpack.c.b16 %v2149, %v2148
        %v2175 = vpack.c.b16 %v2151, %v2150
        %v2176 = vpack.c.b16 %v2153, %v2152
        %v2177 = vpack.c.b16 %v2155, %v2154
        %v2178 = vpack.c.b16 %v2157, %v2156
        %v2179 = vpack.c.b16 %v2159, %v2158
        %v2180 = vpack.c.b16 %v2161, %v2160
        %v2181 = vpack.c.b16 %v2163, %v2162
        %v2182 = vpack.c.b16 %v2165, %v2164
        %v2183 = vpack.c.b16 %v2167, %v2166
        %2200 = vmatpush.bf16.msra.mxu0 %v2175
        %2201 = vmatpush.bf16.msra.mxu0 %v2174
        %2202 = vmatpush.bf16.msra.mxu0 %v2173
        %2203 = vmatpush.bf16.msra.mxu0 %v2172
        %2204 = vmatpush.bf16.msra.mxu0 %v2171
        %2205 = vmatpush.bf16.msra.mxu0 %v2170
        %2206 = vmatpush.bf16.msra.mxu0 %v2169
        %2207 = vmatpush.bf16.msra.mxu0 %v2168
        %2208 = vmatmul.bf16.gmra.mxu0 %v2098
        %v2209 = vpop.f32.mrf.mxu0
        %v2210 = vadd.f32 %v2102, %v2209
        %v2211 = vpop.f32.mrf.mxu0
        %2212 = vdwg.mxu0
        %2213 = vmatpush.bf16.msra.mxu0 %v2183
        %2214 = vmatpush.bf16.msra.mxu0 %v2182
        %2215 = vmatpush.bf16.msra.mxu0 %v2181
        %2216 = vmatpush.bf16.msra.mxu0 %v2180
        %2217 = vmatpush.bf16.msra.mxu0 %v2179
        %2218 = vmatpush.bf16.msra.mxu0 %v2178
        %2219 = vmatpush.bf16.msra.mxu0 %v2177
        %2220 = vmatpush.bf16.msra.mxu0 %v2176
        %2221 = vmatmul.bf16.gmra.mxu0 %v2099
        %v2222 = vpop.f32.mrf.mxu0
        %v2223 = vadd.f32 %v2210, %v2222
        %v2224 = vpop.f32.mrf.mxu0
        %2225 = vdwg.mxu0
        %v2226 = vmul.f32 %v2223, 0.5
        %v2227 = vmul.f32 %v2223, 0.044715
        %v2228 = vmul.f32 %v2227, %v2223
        %v2229 = vmul.f32 %v2228, %v2223
        %v2230 = vadd.f32 %v2223, %v2229
        %v2231 = vmul.f32 %v2230, 0.7978846
        %v2232 = vtanh.pop %v2231
        %v2233 = vadd.f32 %v2232, 1.0
        %v2234 = vmul.f32 %v2226, %v2233
        %v2235 = vld [vmem:[#allocation6] sm:$0xff]
        %v2236 = vld [vmem:[#allocation6 + $0x8] sm:$0xff]
        %v2237 = vld [vmem:[#allocation6 + $0x10] sm:$0xff]
        %v2238 = vld [vmem:[#allocation6 + $0x18] sm:$0xff]
        %v2239 = vpack.c.bf16 %v2234, %v2234
        %v2244 = vunpack.c.l.b16 %v2235
        %v2245 = vunpack.c.h.b16 %v2235
        %v2246 = vunpack.c.l.b16 %v2236
        %v2247 = vunpack.c.h.b16 %v2236
        %v2248 = vunpack.c.l.b16 %v2237
        %v2249 = vunpack.c.h.b16 %v2237
        %v2250 = vunpack.c.l.b16 %v2238
        %v2251 = vunpack.c.h.b16 %v2238
        %v2252 = vpack.c.b16 %v2246, %v2244
        %v2253 = vpack.c.b16 %v2247, %v2245
        %v2254 = vpack.c.b16 %v2250, %v2248
        %v2255 = vpack.c.b16 %v2251, %v2249
        %v2261 = vsel %vm1273, %v2239, 0
        %2263 = vmatpush.bf16.msra.mxu0 0
        %2264 = vmatpush.bf16.msra.mxu0 0
        %2265 = vmatpush.bf16.msra.mxu0 0
        %2266 = vmatpush.bf16.msra.mxu0 0
        %2267 = vmatpush.bf16.msra.mxu0 0
        %2268 = vmatpush.bf16.msra.mxu0 0
        %2269 = vmatpush.bf16.msra.mxu0 %v2254
        %2270 = vmatpush.bf16.msra.mxu0 %v2252
        %2271 = vmatmul.bf16.gmra.mxu0 %v2261
        %v2272 = vpop.f32.mrf.mxu0
        %v2273 = vadd.f32 0.0, %v2272
        %v2274 = vpop.f32.mrf.mxu0
        %2275 = vdwg.mxu0
        %2276 = vmatpush.bf16.msra.mxu0 0
        %2277 = vmatpush.bf16.msra.mxu0 0
        %2278 = vmatpush.bf16.msra.mxu0 0
        %2279 = vmatpush.bf16.msra.mxu0 0
        %2280 = vmatpush.bf16.msra.mxu0 0
        %2281 = vmatpush.bf16.msra.mxu0 0
        %2282 = vmatpush.bf16.msra.mxu0 %v2255
        %2283 = vmatpush.bf16.msra.mxu0 %v2253
        %2284 = vmatmul.bf16.gmra.mxu0 %v2261
        %v2285 = vpop.f32.mrf.mxu0
        %v2286 = vadd.f32 0.0, %v2285
        %v2287 = vpop.f32.mrf.mxu0
        %2288 = vdwg.mxu0
        %v2289 = vadd.f32 %v2017, %v2273
        %v2290 = vadd.f32 %v2018, %v2286
        %v2291 = vld [vmem:[%s10] sm:$0x3]
        %v2293 = vperm.slane %v2291, 0
        %v2294 = vperm.slane %v2291, 1
        %v2297 = vadd.f32 %v2289, %v2293
        %v2298 = vadd.f32 %v2290, %v2294
        %s2299 = scalar_lea.vmem %s2, 8
        %v2300 = vld [vmem:[%s2299] sm:$0x3]
        %s2301 = scalar_lea.vmem %s2, 10
        %v2302 = vld [vmem:[%s2301] sm:$0x3]
        %v2303 = vsel %vm472, %v2297, 0.0
        %v2304 = vsel %vm472, %v2298, 0.0
        %v2305 = vadd.f32 %v2303, %v2304
        %2306 = vadd.xlane.f32.xlu0 %v2305
        %v2307 = vpop.xlane.xlu0 %2306
        %v2308 = vmul.f32 %v2307, %v484
        %v2309 = vsub.f32 %v2297, %v2308
        %v2310 = vsub.f32 %v2298, %v2308
        %v2311 = vmul.f32 %v2309, %v2309
        %v2312 = vmul.f32 %v2310, %v2310
        %v2313 = vsel %vm472, %v2311, 0.0
        %v2314 = vsel %vm472, %v2312, 0.0
        %v2315 = vadd.f32 %v2313, %v2314
        %2316 = vadd.xlane.f32.xlu0 %v2315
        %v2317 = vpop.xlane.xlu0 %2316
        %v2318 = vmul.f32 %v2317, %v484
        %v2319 = vadd.f32 %v2318, 1e-05
        %v2320 = vrsqrt.pop %v2319
        %v2321 = vmul.f32 %v2320, %v2319
        %v2322 = vmul.f32 %v2321, %v2320
        %v2323 = vmul.f32 0.5, %v2322
        %v2324 = vsub.f32 1.5, %v2323
        %v2325 = vmul.f32 %v2320, %v2324
        %vm2326 = vweird.f32 %v2319
        %vm2327 = vweird.f32 %v2320
        %vm2328 = vmor %vm2326, %vm2327
        %v2329 = vsel %vm2328, %v2320, %v2325
        %v2330 = vmul.f32 %v2309, %v2329
        %v2331 = vmul.f32 %v2310, %v2329
        %v2333 = vperm.slane %v2300, 0
        %v2334 = vperm.slane %v2300, 1
        %v2337 = vmul.f32 %v2330, %v2333
        %v2338 = vmul.f32 %v2331, %v2334
        %v2340 = vperm.slane %v2302, 0
        %v2341 = vperm.slane %v2302, 1
        %v2344 = vadd.f32 %v2337, %v2340
        %v2345 = vadd.f32 %v2338, %v2341
        %s2346 = scalar_lea.vmem %s3, 768
        %v2347 = vld [vmem:[%s2346] sm:$0xff]
        %v2348 = vld [vmem:[%s2346 + $0x8] sm:$0xff]
        %v2349 = vld [vmem:[%s2346 + $0x10] sm:$0xff]
        %v2350 = vld [vmem:[%s2346 + $0x18] sm:$0xff]
        %v2351 = vld [vmem:[%s2346 + $0x20] sm:$0xff]
        %v2352 = vld [vmem:[%s2346 + $0x28] sm:$0xff]
        %v2353 = vld [vmem:[%s2346 + $0x30] sm:$0xff]
        %v2354 = vld [vmem:[%s2346 + $0x38] sm:$0xff]
        %v2355 = vld [vmem:[%s2346 + $0x40] sm:$0xff]
        %v2356 = vld [vmem:[%s2346 + $0x48] sm:$0xff]
        %v2357 = vld [vmem:[%s2346 + $0x50] sm:$0xff]
        %v2358 = vld [vmem:[%s2346 + $0x58] sm:$0xff]
        %v2359 = vld [vmem:[%s2346 + $0x60] sm:$0xff]
        %v2360 = vld [vmem:[%s2346 + $0x68] sm:$0xff]
        %v2361 = vld [vmem:[%s2346 + $0x70] sm:$0xff]
        %v2362 = vld [vmem:[%s2346 + $0x78] sm:$0xff]
        %v2363 = vld [vmem:[%s2346 + $0x80] sm:$0xff]
        %v2364 = vld [vmem:[%s2346 + $0x88] sm:$0xff]
        %v2365 = vld [vmem:[%s2346 + $0x90] sm:$0xff]
        %v2366 = vld [vmem:[%s2346 + $0x98] sm:$0xff]
        %v2367 = vld [vmem:[%s2346 + $0xa0] sm:$0xff]
        %v2368 = vld [vmem:[%s2346 + $0xa8] sm:$0xff]
        %v2369 = vld [vmem:[%s2346 + $0xb0] sm:$0xff]
        %v2370 = vld [vmem:[%s2346 + $0xb8] sm:$0xff]
        %v2371 = vld [vmem:[%s2346 + $0xc0] sm:$0xff]
        %v2372 = vld [vmem:[%s2346 + $0xc8] sm:$0xff]
        %v2373 = vld [vmem:[%s2346 + $0xd0] sm:$0xff]
        %v2374 = vld [vmem:[%s2346 + $0xd8] sm:$0xff]
        %v2375 = vld [vmem:[%s2346 + $0xe0] sm:$0xff]
        %v2376 = vld [vmem:[%s2346 + $0xe8] sm:$0xff]
        %v2377 = vld [vmem:[%s2346 + $0xf0] sm:$0xff]
        %v2378 = vld [vmem:[%s2346 + $0xf8] sm:$0xff]
        %v2379 = vld [vmem:[%s2346 + $0x100] sm:$0xff]
        %v2380 = vld [vmem:[%s2346 + $0x108] sm:$0xff]
        %v2381 = vld [vmem:[%s2346 + $0x110] sm:$0xff]
        %v2382 = vld [vmem:[%s2346 + $0x118] sm:$0xff]
        %v2383 = vld [vmem:[%s2346 + $0x120] sm:$0xff]
        %v2384 = vld [vmem:[%s2346 + $0x128] sm:$0xff]
        %v2385 = vld [vmem:[%s2346 + $0x130] sm:$0xff]
        %v2386 = vld [vmem:[%s2346 + $0x138] sm:$0xff]
        %v2387 = vld [vmem:[%s2346 + $0x140] sm:$0xff]
        %v2388 = vld [vmem:[%s2346 + $0x148] sm:$0xff]
        %v2389 = vld [vmem:[%s2346 + $0x150] sm:$0xff]
        %v2390 = vld [vmem:[%s2346 + $0x158] sm:$0xff]
        %v2391 = vld [vmem:[%s2346 + $0x160] sm:$0xff]
        %v2392 = vld [vmem:[%s2346 + $0x168] sm:$0xff]
        %v2393 = vld [vmem:[%s2346 + $0x170] sm:$0xff]
        %v2394 = vld [vmem:[%s2346 + $0x178] sm:$0xff]
        %v2395 = vld [vmem:[%s2346 + $0x180] sm:$0xff]
        %v2396 = vld [vmem:[%s2346 + $0x188] sm:$0xff]
        %v2397 = vld [vmem:[%s2346 + $0x190] sm:$0xff]
        %v2398 = vld [vmem:[%s2346 + $0x198] sm:$0xff]
        %v2399 = vld [vmem:[%s2346 + $0x1a0] sm:$0xff]
        %v2400 = vld [vmem:[%s2346 + $0x1a8] sm:$0xff]
        %v2401 = vld [vmem:[%s2346 + $0x1b0] sm:$0xff]
        %v2402 = vld [vmem:[%s2346 + $0x1b8] sm:$0xff]
        %v2403 = vld [vmem:[%s2346 + $0x1c0] sm:$0xff]
        %v2404 = vld [vmem:[%s2346 + $0x1c8] sm:$0xff]
        %v2405 = vld [vmem:[%s2346 + $0x1d0] sm:$0xff]
        %v2406 = vld [vmem:[%s2346 + $0x1d8] sm:$0xff]
        %v2407 = vld [vmem:[%s2346 + $0x1e0] sm:$0xff]
        %v2408 = vld [vmem:[%s2346 + $0x1e8] sm:$0xff]
        %v2409 = vld [vmem:[%s2346 + $0x1f0] sm:$0xff]
        %v2410 = vld [vmem:[%s2346 + $0x1f8] sm:$0xff]
        %v2411 = vld [vmem:[%s2346 + $0x200] sm:$0xff]
        %v2412 = vld [vmem:[%s2346 + $0x208] sm:$0xff]
        %v2413 = vld [vmem:[%s2346 + $0x210] sm:$0xff]
        %v2414 = vld [vmem:[%s2346 + $0x218] sm:$0xff]
        %v2415 = vld [vmem:[%s2346 + $0x220] sm:$0xff]
        %v2416 = vld [vmem:[%s2346 + $0x228] sm:$0xff]
        %v2417 = vld [vmem:[%s2346 + $0x230] sm:$0xff]
        %v2418 = vld [vmem:[%s2346 + $0x238] sm:$0xff]
        %v2419 = vld [vmem:[%s2346 + $0x240] sm:$0xff]
        %v2420 = vld [vmem:[%s2346 + $0x248] sm:$0xff]
        %v2421 = vld [vmem:[%s2346 + $0x250] sm:$0xff]
        %v2422 = vld [vmem:[%s2346 + $0x258] sm:$0xff]
        %v2423 = vld [vmem:[%s2346 + $0x260] sm:$0xff]
        %v2424 = vld [vmem:[%s2346 + $0x268] sm:$0xff]
        %v2425 = vld [vmem:[%s2346 + $0x270] sm:$0xff]
        %v2426 = vld [vmem:[%s2346 + $0x278] sm:$0xff]
        %v2427 = vld [vmem:[%s2346 + $0x280] sm:$0xff]
        %v2428 = vld [vmem:[%s2346 + $0x288] sm:$0xff]
        %v2429 = vld [vmem:[%s2346 + $0x290] sm:$0xff]
        %v2430 = vld [vmem:[%s2346 + $0x298] sm:$0xff]
        %v2431 = vld [vmem:[%s2346 + $0x2a0] sm:$0xff]
        %v2432 = vld [vmem:[%s2346 + $0x2a8] sm:$0xff]
        %v2433 = vld [vmem:[%s2346 + $0x2b0] sm:$0xff]
        %v2434 = vld [vmem:[%s2346 + $0x2b8] sm:$0xff]
        %v2435 = vld [vmem:[%s2346 + $0x2c0] sm:$0xff]
        %v2436 = vld [vmem:[%s2346 + $0x2c8] sm:$0xff]
        %v2437 = vld [vmem:[%s2346 + $0x2d0] sm:$0xff]
        %v2438 = vld [vmem:[%s2346 + $0x2d8] sm:$0xff]
        %v2439 = vld [vmem:[%s2346 + $0x2e0] sm:$0xff]
        %v2440 = vld [vmem:[%s2346 + $0x2e8] sm:$0xff]
        %v2441 = vld [vmem:[%s2346 + $0x2f0] sm:$0xff]
        %v2442 = vld [vmem:[%s2346 + $0x2f8] sm:$0xff]
        %v2443 = vpack.c.bf16 %v2344, %v2344
        %v2444 = vpack.c.bf16 %v2345, %v2345
        %s2445 = scalar_lea.vmem %s4, 6
        %v2446 = vld [vmem:[%s2445] sm:$0x3f]
        %v2448 = vperm.slane %v2446, 0
        %v2449 = vperm.slane %v2446, 1
        %v2450 = vperm.slane %v2446, 2
        %v2451 = vperm.slane %v2446, 3
        %v2452 = vperm.slane %v2446, 4
        %v2453 = vperm.slane %v2446, 5
        %v2556 = vunpack.c.l.b16 %v2347
        %v2557 = vunpack.c.h.b16 %v2347
        %v2558 = vunpack.c.l.b16 %v2348
        %v2559 = vunpack.c.h.b16 %v2348
        %v2560 = vunpack.c.l.b16 %v2349
        %v2561 = vunpack.c.h.b16 %v2349
        %v2562 = vunpack.c.l.b16 %v2350
        %v2563 = vunpack.c.h.b16 %v2350
        %v2564 = vunpack.c.l.b16 %v2351
        %v2565 = vunpack.c.h.b16 %v2351
        %v2566 = vunpack.c.l.b16 %v2352
        %v2567 = vunpack.c.h.b16 %v2352
        %v2568 = vunpack.c.l.b16 %v2353
        %v2569 = vunpack.c.h.b16 %v2353
        %v2570 = vunpack.c.l.b16 %v2354
        %v2571 = vunpack.c.h.b16 %v2354
        %v2572 = vunpack.c.l.b16 %v2355
        %v2573 = vunpack.c.h.b16 %v2355
        %v2574 = vunpack.c.l.b16 %v2356
        %v2575 = vunpack.c.h.b16 %v2356
        %v2576 = vunpack.c.l.b16 %v2357
        %v2577 = vunpack.c.h.b16 %v2357
        %v2578 = vunpack.c.l.b16 %v2358
        %v2579 = vunpack.c.h.b16 %v2358
        %v2580 = vunpack.c.l.b16 %v2359
        %v2581 = vunpack.c.h.b16 %v2359
        %v2582 = vunpack.c.l.b16 %v2360
        %v2583 = vunpack.c.h.b16 %v2360
        %v2584 = vunpack.c.l.b16 %v2361
        %v2585 = vunpack.c.h.b16 %v2361
        %v2586 = vunpack.c.l.b16 %v2362
        %v2587 = vunpack.c.h.b16 %v2362
        %v2588 = vunpack.c.l.b16 %v2363
        %v2589 = vunpack.c.h.b16 %v2363
        %v2590 = vunpack.c.l.b16 %v2364
        %v2591 = vunpack.c.h.b16 %v2364
        %v2592 = vunpack.c.l.b16 %v2365
        %v2593 = vunpack.c.h.b16 %v2365
        %v2594 = vunpack.c.l.b16 %v2366
        %v2595 = vunpack.c.h.b16 %v2366
        %v2596 = vunpack.c.l.b16 %v2367
        %v2597 = vunpack.c.h.b16 %v2367
        %v2598 = vunpack.c.l.b16 %v2368
        %v2599 = vunpack.c.h.b16 %v2368
        %v2600 = vunpack.c.l.b16 %v2369
        %v2601 = vunpack.c.h.b16 %v2369
        %v2602 = vunpack.c.l.b16 %v2370
        %v2603 = vunpack.c.h.b16 %v2370
        %v2604 = vunpack.c.l.b16 %v2371
        %v2605 = vunpack.c.h.b16 %v2371
        %v2606 = vunpack.c.l.b16 %v2372
        %v2607 = vunpack.c.h.b16 %v2372
        %v2608 = vunpack.c.l.b16 %v2373
        %v2609 = vunpack.c.h.b16 %v2373
        %v2610 = vunpack.c.l.b16 %v2374
        %v2611 = vunpack.c.h.b16 %v2374
        %v2612 = vunpack.c.l.b16 %v2375
        %v2613 = vunpack.c.h.b16 %v2375
        %v2614 = vunpack.c.l.b16 %v2376
        %v2615 = vunpack.c.h.b16 %v2376
        %v2616 = vunpack.c.l.b16 %v2377
        %v2617 = vunpack.c.h.b16 %v2377
        %v2618 = vunpack.c.l.b16 %v2378
        %v2619 = vunpack.c.h.b16 %v2378
        %v2620 = vunpack.c.l.b16 %v2379
        %v2621 = vunpack.c.h.b16 %v2379
        %v2622 = vunpack.c.l.b16 %v2380
        %v2623 = vunpack.c.h.b16 %v2380
        %v2624 = vunpack.c.l.b16 %v2381
        %v2625 = vunpack.c.h.b16 %v2381
        %v2626 = vunpack.c.l.b16 %v2382
        %v2627 = vunpack.c.h.b16 %v2382
        %v2628 = vunpack.c.l.b16 %v2383
        %v2629 = vunpack.c.h.b16 %v2383
        %v2630 = vunpack.c.l.b16 %v2384
        %v2631 = vunpack.c.h.b16 %v2384
        %v2632 = vunpack.c.l.b16 %v2385
        %v2633 = vunpack.c.h.b16 %v2385
        %v2634 = vunpack.c.l.b16 %v2386
        %v2635 = vunpack.c.h.b16 %v2386
        %v2636 = vunpack.c.l.b16 %v2387
        %v2637 = vunpack.c.h.b16 %v2387
        %v2638 = vunpack.c.l.b16 %v2388
        %v2639 = vunpack.c.h.b16 %v2388
        %v2640 = vunpack.c.l.b16 %v2389
        %v2641 = vunpack.c.h.b16 %v2389
        %v2642 = vunpack.c.l.b16 %v2390
        %v2643 = vunpack.c.h.b16 %v2390
        %v2644 = vunpack.c.l.b16 %v2391
        %v2645 = vunpack.c.h.b16 %v2391
        %v2646 = vunpack.c.l.b16 %v2392
        %v2647 = vunpack.c.h.b16 %v2392
        %v2648 = vunpack.c.l.b16 %v2393
        %v2649 = vunpack.c.h.b16 %v2393
        %v2650 = vunpack.c.l.b16 %v2394
        %v2651 = vunpack.c.h.b16 %v2394
        %v2652 = vunpack.c.l.b16 %v2395
        %v2653 = vunpack.c.h.b16 %v2395
        %v2654 = vunpack.c.l.b16 %v2396
        %v2655 = vunpack.c.h.b16 %v2396
        %v2656 = vunpack.c.l.b16 %v2397
        %v2657 = vunpack.c.h.b16 %v2397
        %v2658 = vunpack.c.l.b16 %v2398
        %v2659 = vunpack.c.h.b16 %v2398
        %v2660 = vunpack.c.l.b16 %v2399
        %v2661 = vunpack.c.h.b16 %v2399
        %v2662 = vunpack.c.l.b16 %v2400
        %v2663 = vunpack.c.h.b16 %v2400
        %v2664 = vunpack.c.l.b16 %v2401
        %v2665 = vunpack.c.h.b16 %v2401
        %v2666 = vunpack.c.l.b16 %v2402
        %v2667 = vunpack.c.h.b16 %v2402
        %v2668 = vunpack.c.l.b16 %v2403
        %v2669 = vunpack.c.h.b16 %v2403
        %v2670 = vunpack.c.l.b16 %v2404
        %v2671 = vunpack.c.h.b16 %v2404
        %v2672 = vunpack.c.l.b16 %v2405
        %v2673 = vunpack.c.h.b16 %v2405
        %v2674 = vunpack.c.l.b16 %v2406
        %v2675 = vunpack.c.h.b16 %v2406
        %v2676 = vunpack.c.l.b16 %v2407
        %v2677 = vunpack.c.h.b16 %v2407
        %v2678 = vunpack.c.l.b16 %v2408
        %v2679 = vunpack.c.h.b16 %v2408
        %v2680 = vunpack.c.l.b16 %v2409
        %v2681 = vunpack.c.h.b16 %v2409
        %v2682 = vunpack.c.l.b16 %v2410
        %v2683 = vunpack.c.h.b16 %v2410
        %v2684 = vunpack.c.l.b16 %v2411
        %v2685 = vunpack.c.h.b16 %v2411
        %v2686 = vunpack.c.l.b16 %v2412
        %v2687 = vunpack.c.h.b16 %v2412
        %v2688 = vunpack.c.l.b16 %v2413
        %v2689 = vunpack.c.h.b16 %v2413
        %v2690 = vunpack.c.l.b16 %v2414
        %v2691 = vunpack.c.h.b16 %v2414
        %v2692 = vunpack.c.l.b16 %v2415
        %v2693 = vunpack.c.h.b16 %v2415
        %v2694 = vunpack.c.l.b16 %v2416
        %v2695 = vunpack.c.h.b16 %v2416
        %v2696 = vunpack.c.l.b16 %v2417
        %v2697 = vunpack.c.h.b16 %v2417
        %v2698 = vunpack.c.l.b16 %v2418
        %v2699 = vunpack.c.h.b16 %v2418
        %v2700 = vunpack.c.l.b16 %v2419
        %v2701 = vunpack.c.h.b16 %v2419
        %v2702 = vunpack.c.l.b16 %v2420
        %v2703 = vunpack.c.h.b16 %v2420
        %v2704 = vunpack.c.l.b16 %v2421
        %v2705 = vunpack.c.h.b16 %v2421
        %v2706 = vunpack.c.l.b16 %v2422
        %v2707 = vunpack.c.h.b16 %v2422
        %v2708 = vunpack.c.l.b16 %v2423
        %v2709 = vunpack.c.h.b16 %v2423
        %v2710 = vunpack.c.l.b16 %v2424
        %v2711 = vunpack.c.h.b16 %v2424
        %v2712 = vunpack.c.l.b16 %v2425
        %v2713 = vunpack.c.h.b16 %v2425
        %v2714 = vunpack.c.l.b16 %v2426
        %v2715 = vunpack.c.h.b16 %v2426
        %v2716 = vunpack.c.l.b16 %v2427
        %v2717 = vunpack.c.h.b16 %v2427
        %v2718 = vunpack.c.l.b16 %v2428
        %v2719 = vunpack.c.h.b16 %v2428
        %v2720 = vunpack.c.l.b16 %v2429
        %v2721 = vunpack.c.h.b16 %v2429
        %v2722 = vunpack.c.l.b16 %v2430
        %v2723 = vunpack.c.h.b16 %v2430
        %v2724 = vunpack.c.l.b16 %v2431
        %v2725 = vunpack.c.h.b16 %v2431
        %v2726 = vunpack.c.l.b16 %v2432
        %v2727 = vunpack.c.h.b16 %v2432
        %v2728 = vunpack.c.l.b16 %v2433
        %v2729 = vunpack.c.h.b16 %v2433
        %v2730 = vunpack.c.l.b16 %v2434
        %v2731 = vunpack.c.h.b16 %v2434
        %v2732 = vunpack.c.l.b16 %v2435
        %v2733 = vunpack.c.h.b16 %v2435
        %v2734 = vunpack.c.l.b16 %v2436
        %v2735 = vunpack.c.h.b16 %v2436
        %v2736 = vunpack.c.l.b16 %v2437
        %v2737 = vunpack.c.h.b16 %v2437
        %v2738 = vunpack.c.l.b16 %v2438
        %v2739 = vunpack.c.h.b16 %v2438
        %v2740 = vunpack.c.l.b16 %v2439
        %v2741 = vunpack.c.h.b16 %v2439
        %v2742 = vunpack.c.l.b16 %v2440
        %v2743 = vunpack.c.h.b16 %v2440
        %v2744 = vunpack.c.l.b16 %v2441
        %v2745 = vunpack.c.h.b16 %v2441
        %v2746 = vunpack.c.l.b16 %v2442
        %v2747 = vunpack.c.h.b16 %v2442
        %v2748 = vpack.c.b16 %v2562, %v2556
        %v2749 = vpack.c.b16 %v2563, %v2557
        %v2750 = vpack.c.b16 %v2564, %v2558
        %v2751 = vpack.c.b16 %v2565, %v2559
        %v2752 = vpack.c.b16 %v2566, %v2560
        %v2753 = vpack.c.b16 %v2567, %v2561
        %v2754 = vpack.c.b16 %v2574, %v2568
        %v2755 = vpack.c.b16 %v2575, %v2569
        %v2756 = vpack.c.b16 %v2576, %v2570
        %v2757 = vpack.c.b16 %v2577, %v2571
        %v2758 = vpack.c.b16 %v2578, %v2572
        %v2759 = vpack.c.b16 %v2579, %v2573
        %v2760 = vpack.c.b16 %v2586, %v2580
        %v2761 = vpack.c.b16 %v2587, %v2581
        %v2762 = vpack.c.b16 %v2588, %v2582
        %v2763 = vpack.c.b16 %v2589, %v2583
        %v2764 = vpack.c.b16 %v2590, %v2584
        %v2765 = vpack.c.b16 %v2591, %v2585
        %v2766 = vpack.c.b16 %v2598, %v2592
        %v2767 = vpack.c.b16 %v2599, %v2593
        %v2768 = vpack.c.b16 %v2600, %v2594
        %v2769 = vpack.c.b16 %v2601, %v2595
        %v2770 = vpack.c.b16 %v2602, %v2596
        %v2771 = vpack.c.b16 %v2603, %v2597
        %v2772 = vpack.c.b16 %v2610, %v2604
        %v2773 = vpack.c.b16 %v2611, %v2605
        %v2774 = vpack.c.b16 %v2612, %v2606
        %v2775 = vpack.c.b16 %v2613, %v2607
        %v2776 = vpack.c.b16 %v2614, %v2608
        %v2777 = vpack.c.b16 %v2615, %v2609
        %v2778 = vpack.c.b16 %v2622, %v2616
        %v2779 = vpack.c.b16 %v2623, %v2617
        %v2780 = vpack.c.b16 %v2624, %v2618
        %v2781 = vpack.c.b16 %v2625, %v2619
        %v2782 = vpack.c.b16 %v2626, %v2620
        %v2783 = vpack.c.b16 %v2627, %v2621
        %v2784 = vpack.c.b16 %v2634, %v2628
        %v2785 = vpack.c.b16 %v2635, %v2629
        %v2786 = vpack.c.b16 %v2636, %v2630
        %v2787 = vpack.c.b16 %v2637, %v2631
        %v2788 = vpack.c.b16 %v2638, %v2632
        %v2789 = vpack.c.b16 %v2639, %v2633
        %v2790 = vpack.c.b16 %v2646, %v2640
        %v2791 = vpack.c.b16 %v2647, %v2641
        %v2792 = vpack.c.b16 %v2648, %v2642
        %v2793 = vpack.c.b16 %v2649, %v2643
        %v2794 = vpack.c.b16 %v2650, %v2644
        %v2795 = vpack.c.b16 %v2651, %v2645
        %v2796 = vpack.c.b16 %v2658, %v2652
        %v2797 = vpack.c.b16 %v2659, %v2653
        %v2798 = vpack.c.b16 %v2660, %v2654
        %v2799 = vpack.c.b16 %v2661, %v2655
        %v2800 = vpack.c.b16 %v2662, %v2656
        %v2801 = vpack.c.b16 %v2663, %v2657
        %v2802 = vpack.c.b16 %v2670, %v2664
        %v2803 = vpack.c.b16 %v2671, %v2665
        %v2804 = vpack.c.b16 %v2672, %v2666
        %v2805 = vpack.c.b16 %v2673, %v2667
        %v2806 = vpack.c.b16 %v2674, %v2668
        %v2807 = vpack.c.b16 %v2675, %v2669
        %v2808 = vpack.c.b16 %v2682, %v2676
        %v2809 = vpack.c.b16 %v2683, %v2677
        %v2810 = vpack.c.b16 %v2684, %v2678
        %v2811 = vpack.c.b16 %v2685, %v2679
        %v2812 = vpack.c.b16 %v2686, %v2680
        %v2813 = vpack.c.b16 %v2687, %v2681
        %v2814 = vpack.c.b16 %v2694, %v2688
        %v2815 = vpack.c.b16 %v2695, %v2689
        %v2816 = vpack.c.b16 %v2696, %v2690
        %v2817 = vpack.c.b16 %v2697, %v2691
        %v2818 = vpack.c.b16 %v2698, %v2692
        %v2819 = vpack.c.b16 %v2699, %v2693
        %v2820 = vpack.c.b16 %v2706, %v2700
        %v2821 = vpack.c.b16 %v2707, %v2701
        %v2822 = vpack.c.b16 %v2708, %v2702
        %v2823 = vpack.c.b16 %v2709, %v2703
        %v2824 = vpack.c.b16 %v2710, %v2704
        %v2825 = vpack.c.b16 %v2711, %v2705
        %v2826 = vpack.c.b16 %v2718, %v2712
        %v2827 = vpack.c.b16 %v2719, %v2713
        %v2828 = vpack.c.b16 %v2720, %v2714
        %v2829 = vpack.c.b16 %v2721, %v2715
        %v2830 = vpack.c.b16 %v2722, %v2716
        %v2831 = vpack.c.b16 %v2723, %v2717
        %v2832 = vpack.c.b16 %v2730, %v2724
        %v2833 = vpack.c.b16 %v2731, %v2725
        %v2834 = vpack.c.b16 %v2732, %v2726
        %v2835 = vpack.c.b16 %v2733, %v2727
        %v2836 = vpack.c.b16 %v2734, %v2728
        %v2837 = vpack.c.b16 %v2735, %v2729
        %v2838 = vpack.c.b16 %v2742, %v2736
        %v2839 = vpack.c.b16 %v2743, %v2737
        %v2840 = vpack.c.b16 %v2744, %v2738
        %v2841 = vpack.c.b16 %v2745, %v2739
        %v2842 = vpack.c.b16 %v2746, %v2740
        %v2843 = vpack.c.b16 %v2747, %v2741
        %2940 = vmatpush.bf16.msra.mxu0 %v2790
        %2941 = vmatpush.bf16.msra.mxu0 %v2784
        %2942 = vmatpush.bf16.msra.mxu0 %v2778
        %2943 = vmatpush.bf16.msra.mxu0 %v2772
        %2944 = vmatpush.bf16.msra.mxu0 %v2766
        %2945 = vmatpush.bf16.msra.mxu0 %v2760
        %2946 = vmatpush.bf16.msra.mxu0 %v2754
        %2947 = vmatpush.bf16.msra.mxu0 %v2748
        %2948 = vmatmul.bf16.gmra.mxu0 %v2443
        %v2949 = vpop.f32.mrf.mxu0
        %v2950 = vadd.f32 %v2448, %v2949
        %v2951 = vpop.f32.mrf.mxu0
        %2952 = vdwg.mxu0
        %2953 = vmatpush.bf16.msra.mxu0 %v2838
        %2954 = vmatpush.bf16.msra.mxu0 %v2832
        %2955 = vmatpush.bf16.msra.mxu0 %v2826
        %2956 = vmatpush.bf16.msra.mxu0 %v2820
        %2957 = vmatpush.bf16.msra.mxu0 %v2814
        %2958 = vmatpush.bf16.msra.mxu0 %v2808
        %2959 = vmatpush.bf16.msra.mxu0 %v2802
        %2960 = vmatpush.bf16.msra.mxu0 %v2796
        %2961 = vmatmul.bf16.gmra.mxu0 %v2444
        %v2962 = vpop.f32.mrf.mxu0
        %v2963 = vadd.f32 %v2950, %v2962
        %v2964 = vpop.f32.mrf.mxu0
        %2965 = vdwg.mxu0
        %2966 = vmatpush.bf16.msra.mxu0 %v2791
        %2967 = vmatpush.bf16.msra.mxu0 %v2785
        %2968 = vmatpush.bf16.msra.mxu0 %v2779
        %2969 = vmatpush.bf16.msra.mxu0 %v2773
        %2970 = vmatpush.bf16.msra.mxu0 %v2767
        %2971 = vmatpush.bf16.msra.mxu0 %v2761
        %2972 = vmatpush.bf16.msra.mxu0 %v2755
        %2973 = vmatpush.bf16.msra.mxu0 %v2749
        %2974 = vmatmul.bf16.gmra.mxu0 %v2443
        %v2975 = vpop.f32.mrf.mxu0
        %v2976 = vadd.f32 %v2449, %v2975
        %v2977 = vpop.f32.mrf.mxu0
        %2978 = vdwg.mxu0
        %2979 = vmatpush.bf16.msra.mxu0 %v2839
        %2980 = vmatpush.bf16.msra.mxu0 %v2833
        %2981 = vmatpush.bf16.msra.mxu0 %v2827
        %2982 = vmatpush.bf16.msra.mxu0 %v2821
        %2983 = vmatpush.bf16.msra.mxu0 %v2815
        %2984 = vmatpush.bf16.msra.mxu0 %v2809
        %2985 = vmatpush.bf16.msra.mxu0 %v2803
        %2986 = vmatpush.bf16.msra.mxu0 %v2797
        %2987 = vmatmul.bf16.gmra.mxu0 %v2444
        %v2988 = vpop.f32.mrf.mxu0
        %v2989 = vadd.f32 %v2976, %v2988
        %v2990 = vpop.f32.mrf.mxu0
        %2991 = vdwg.mxu0
        %2992 = vmatpush.bf16.msra.mxu0 %v2792
        %2993 = vmatpush.bf16.msra.mxu0 %v2786
        %2994 = vmatpush.bf16.msra.mxu0 %v2780
        %2995 = vmatpush.bf16.msra.mxu0 %v2774
        %2996 = vmatpush.bf16.msra.mxu0 %v2768
        %2997 = vmatpush.bf16.msra.mxu0 %v2762
        %2998 = vmatpush.bf16.msra.mxu0 %v2756
        %2999 = vmatpush.bf16.msra.mxu0 %v2750
        %3000 = vmatmul.bf16.gmra.mxu0 %v2443
        %v3001 = vpop.f32.mrf.mxu0
        %v3002 = vadd.f32 %v2450, %v3001
        %v3003 = vpop.f32.mrf.mxu0
        %3004 = vdwg.mxu0
        %3005 = vmatpush.bf16.msra.mxu0 %v2840
        %3006 = vmatpush.bf16.msra.mxu0 %v2834
        %3007 = vmatpush.bf16.msra.mxu0 %v2828
        %3008 = vmatpush.bf16.msra.mxu0 %v2822
        %3009 = vmatpush.bf16.msra.mxu0 %v2816
        %3010 = vmatpush.bf16.msra.mxu0 %v2810
        %3011 = vmatpush.bf16.msra.mxu0 %v2804
        %3012 = vmatpush.bf16.msra.mxu0 %v2798
        %3013 = vmatmul.bf16.gmra.mxu0 %v2444
        %v3014 = vpop.f32.mrf.mxu0
        %v3015 = vadd.f32 %v3002, %v3014
        %v3016 = vpop.f32.mrf.mxu0
        %3017 = vdwg.mxu0
        %3018 = vmatpush.bf16.msra.mxu0 %v2793
        %3019 = vmatpush.bf16.msra.mxu0 %v2787
        %3020 = vmatpush.bf16.msra.mxu0 %v2781
        %3021 = vmatpush.bf16.msra.mxu0 %v2775
        %3022 = vmatpush.bf16.msra.mxu0 %v2769
        %3023 = vmatpush.bf16.msra.mxu0 %v2763
        %3024 = vmatpush.bf16.msra.mxu0 %v2757
        %3025 = vmatpush.bf16.msra.mxu0 %v2751
        %3026 = vmatmul.bf16.gmra.mxu0 %v2443
        %v3027 = vpop.f32.mrf.mxu0
        %v3028 = vadd.f32 %v2451, %v3027
        %v3029 = vpop.f32.mrf.mxu0
        %3030 = vdwg.mxu0
        %3031 = vmatpush.bf16.msra.mxu0 %v2841
        %3032 = vmatpush.bf16.msra.mxu0 %v2835
        %3033 = vmatpush.bf16.msra.mxu0 %v2829
        %3034 = vmatpush.bf16.msra.mxu0 %v2823
        %3035 = vmatpush.bf16.msra.mxu0 %v2817
        %3036 = vmatpush.bf16.msra.mxu0 %v2811
        %3037 = vmatpush.bf16.msra.mxu0 %v2805
        %3038 = vmatpush.bf16.msra.mxu0 %v2799
        %3039 = vmatmul.bf16.gmra.mxu0 %v2444
        %v3040 = vpop.f32.mrf.mxu0
        %v3041 = vadd.f32 %v3028, %v3040
        %v3042 = vpop.f32.mrf.mxu0
        %3043 = vdwg.mxu0
        %3044 = vmatpush.bf16.msra.mxu0 %v2794
        %3045 = vmatpush.bf16.msra.mxu0 %v2788
        %3046 = vmatpush.bf16.msra.mxu0 %v2782
        %3047 = vmatpush.bf16.msra.mxu0 %v2776
        %3048 = vmatpush.bf16.msra.mxu0 %v2770
        %3049 = vmatpush.bf16.msra.mxu0 %v2764
        %3050 = vmatpush.bf16.msra.mxu0 %v2758
        %3051 = vmatpush.bf16.msra.mxu0 %v2752
        %3052 = vmatmul.bf16.gmra.mxu0 %v2443
        %v3053 = vpop.f32.mrf.mxu0
        %v3054 = vadd.f32 %v2452, %v3053
        %v3055 = vpop.f32.mrf.mxu0
        %3056 = vdwg.mxu0
        %3057 = vmatpush.bf16.msra.mxu0 %v2842
        %3058 = vmatpush.bf16.msra.mxu0 %v2836
        %3059 = vmatpush.bf16.msra.mxu0 %v2830
        %3060 = vmatpush.bf16.msra.mxu0 %v2824
        %3061 = vmatpush.bf16.msra.mxu0 %v2818
        %3062 = vmatpush.bf16.msra.mxu0 %v2812
        %3063 = vmatpush.bf16.msra.mxu0 %v2806
        %3064 = vmatpush.bf16.msra.mxu0 %v2800
        %3065 = vmatmul.bf16.gmra.mxu0 %v2444
        %v3066 = vpop.f32.mrf.mxu0
        %v3067 = vadd.f32 %v3054, %v3066
        %v3068 = vpop.f32.mrf.mxu0
        %3069 = vdwg.mxu0
        %3070 = vmatpush.bf16.msra.mxu0 %v2795
        %3071 = vmatpush.bf16.msra.mxu0 %v2789
        %3072 = vmatpush.bf16.msra.mxu0 %v2783
        %3073 = vmatpush.bf16.msra.mxu0 %v2777
        %3074 = vmatpush.bf16.msra.mxu0 %v2771
        %3075 = vmatpush.bf16.msra.mxu0 %v2765
        %3076 = vmatpush.bf16.msra.mxu0 %v2759
        %3077 = vmatpush.bf16.msra.mxu0 %v2753
        %3078 = vmatmul.bf16.gmra.mxu0 %v2443
        %v3079 = vpop.f32.mrf.mxu0
        %v3080 = vadd.f32 %v2453, %v3079
        %v3081 = vpop.f32.mrf.mxu0
        %3082 = vdwg.mxu0
        %3083 = vmatpush.bf16.msra.mxu0 %v2843
        %3084 = vmatpush.bf16.msra.mxu0 %v2837
        %3085 = vmatpush.bf16.msra.mxu0 %v2831
        %3086 = vmatpush.bf16.msra.mxu0 %v2825
        %3087 = vmatpush.bf16.msra.mxu0 %v2819
        %3088 = vmatpush.bf16.msra.mxu0 %v2813
        %3089 = vmatpush.bf16.msra.mxu0 %v2807
        %3090 = vmatpush.bf16.msra.mxu0 %v2801
        %3091 = vmatmul.bf16.gmra.mxu0 %v2444
        %v3092 = vpop.f32.mrf.mxu0
        %v3093 = vadd.f32 %v3080, %v3092
        %v3094 = vpop.f32.mrf.mxu0
        %3095 = vdwg.mxu0
        %v3096 = vpack.c.bf16 %v2963, %v2963
        %v3097 = vpack.c.bf16 %v3015, %v3015
        %v3099 = vsel %vm1273, %v3096, 0
        %v3102 = vsel %vm1273, %v3097, 0
        %3104 = vmatpush.bf16.xpose.msra.mxu0 0
        %3105 = vmatpush.bf16.xpose.msra.mxu0 0
        %3106 = vmatpush.bf16.xpose.msra.mxu0 0
        %3107 = vmatpush.bf16.xpose.msra.mxu0 0
        %3108 = vmatpush.bf16.xpose.msra.mxu0 0
        %3109 = vmatpush.bf16.xpose.msra.mxu0 0
        %3110 = vmatpush.bf16.xpose.msra.mxu0 0
        %3111 = vmatpush.bf16.xpose.msra.mxu0 %v3102
        %3112 = vmatmul.bf16.gmra.mxu0 %v3099
        %v3113 = vpop.f32.mrf.mxu0
        %v3114 = vadd.f32 0.0, %v3113
        %v3115 = vpop.f32.mrf.mxu0
        %3116 = vdwg.mxu0
        %v3117 = vmul.f32 %v3114, 0.17677669
        %v3118 = vsel %vm1294, %v3117, -inf
        %3119 = vmax.xlane.f32.xlu0 %v3118
        %v3120 = vpop.xlane.xlu0 %3119
        %v3121 = vsub.f32 %v3117, %v3120
        %v3122 = vmul.f32 %v3121, 1.442695
        %v3123 = vpow.pop %v3122
        %v3124 = vsel %vm1294, %v3123, 0.0
        %3125 = vadd.xlane.f32.xlu0 %v3124
        %v3126 = vpop.xlane.xlu0 %3125
        %v3127 = vrcp.pop %v3126
        %v3128 = vmul.f32 %v3123, %v3127
        %v3129 = vpack.c.bf16 %v3128, %v3128
        %v3130 = vpack.c.bf16 %v3067, %v3067
        %v3132 = vsel %vm1308, %v3129, 0
        %v3135 = vsel %vm1312, %v3130, 0
        %3137 = vmatpush.bf16.msra.mxu0 0
        %3138 = vmatpush.bf16.msra.mxu0 0
        %3139 = vmatpush.bf16.msra.mxu0 0
        %3140 = vmatpush.bf16.msra.mxu0 0
        %3141 = vmatpush.bf16.msra.mxu0 0
        %3142 = vmatpush.bf16.msra.mxu0 0
        %3143 = vmatpush.bf16.msra.mxu0 0
        %3144 = vmatpush.bf16.msra.mxu0 %v3135
        %3145 = vmatmul.bf16.gmra.mxu0 %v3132
        %v3146 = vpop.f32.mrf.mxu0
        %v3147 = vadd.f32 0.0, %v3146
        %v3148 = vpop.f32.mrf.mxu0
        %3149 = vdwg.mxu0
        %3151 = vrot.lane.b32.xlu0 %v3096, 96
        %v3152 = vpop.permute.xlu0 %3151
        %3154 = vrot.lane.b32.xlu0 %v3097, 96
        %v3155 = vpop.permute.xlu0 %3154
        %v3157 = vsel %vm1273, %v3152, 0
        %v3160 = vsel %vm1273, %v3155, 0
        %3162 = vmatpush.bf16.xpose.msra.mxu0 0
        %3163 = vmatpush.bf16.xpose.msra.mxu0 0
        %3164 = vmatpush.bf16.xpose.msra.mxu0 0
        %3165 = vmatpush.bf16.xpose.msra.mxu0 0
        %3166 = vmatpush.bf16.xpose.msra.mxu0 0
        %3167 = vmatpush.bf16.xpose.msra.mxu0 0
        %3168 = vmatpush.bf16.xpose.msra.mxu0 0
        %3169 = vmatpush.bf16.xpose.msra.mxu0 %v3160
        %3170 = vmatmul.bf16.gmra.mxu0 %v3157
        %v3171 = vpop.f32.mrf.mxu0
        %v3172 = vadd.f32 0.0, %v3171
        %v3173 = vpop.f32.mrf.mxu0
        %3174 = vdwg.mxu0
        %v3175 = vmul.f32 %v3172, 0.17677669
        %v3176 = vsel %vm1294, %v3175, -inf
        %3177 = vmax.xlane.f32.xlu0 %v3176
        %v3178 = vpop.xlane.xlu0 %3177
        %v3179 = vsub.f32 %v3175, %v3178
        %v3180 = vmul.f32 %v3179, 1.442695
        %v3181 = vpow.pop %v3180
        %v3182 = vsel %vm1294, %v3181, 0.0
        %3183 = vadd.xlane.f32.xlu0 %v3182
        %v3184 = vpop.xlane.xlu0 %3183
        %v3185 = vrcp.pop %v3184
        %v3186 = vmul.f32 %v3181, %v3185
        %v3187 = vpack.c.bf16 %v3186, %v3186
        %3189 = vrot.lane.b32.xlu0 %v3130, 96
        %v3190 = vpop.permute.xlu0 %3189
        %v3192 = vsel %vm1308, %v3187, 0
        %v3195 = vsel %vm1312, %v3190, 0
        %3197 = vmatpush.bf16.msra.mxu0 0
        %3198 = vmatpush.bf16.msra.mxu0 0
        %3199 = vmatpush.bf16.msra.mxu0 0
        %3200 = vmatpush.bf16.msra.mxu0 0
        %3201 = vmatpush.bf16.msra.mxu0 0
        %3202 = vmatpush.bf16.msra.mxu0 0
        %3203 = vmatpush.bf16.msra.mxu0 0
        %3204 = vmatpush.bf16.msra.mxu0 %v3195
        %3205 = vmatmul.bf16.gmra.mxu0 %v3192
        %v3206 = vpop.f32.mrf.mxu0
        %v3207 = vadd.f32 0.0, %v3206
        %v3208 = vpop.f32.mrf.mxu0
        %3209 = vdwg.mxu0
        %3210 = vrot.lane.b32.xlu0 %v3096, 64
        %v3211 = vpop.permute.xlu0 %3210
        %3212 = vrot.lane.b32.xlu0 %v3097, 64
        %v3213 = vpop.permute.xlu0 %3212
        %v3215 = vsel %vm1273, %v3211, 0
        %v3218 = vsel %vm1273, %v3213, 0
        %3220 = vmatpush.bf16.xpose.msra.mxu0 0
        %3221 = vmatpush.bf16.xpose.msra.mxu0 0
        %3222 = vmatpush.bf16.xpose.msra.mxu0 0
        %3223 = vmatpush.bf16.xpose.msra.mxu0 0
        %3224 = vmatpush.bf16.xpose.msra.mxu0 0
        %3225 = vmatpush.bf16.xpose.msra.mxu0 0
        %3226 = vmatpush.bf16.xpose.msra.mxu0 0
        %3227 = vmatpush.bf16.xpose.msra.mxu0 %v3218
        %3228 = vmatmul.bf16.gmra.mxu0 %v3215
        %v3229 = vpop.f32.mrf.mxu0
        %v3230 = vadd.f32 0.0, %v3229
        %v3231 = vpop.f32.mrf.mxu0
        %3232 = vdwg.mxu0
        %v3233 = vmul.f32 %v3230, 0.17677669
        %v3234 = vsel %vm1294, %v3233, -inf
        %3235 = vmax.xlane.f32.xlu0 %v3234
        %v3236 = vpop.xlane.xlu0 %3235
        %v3237 = vsub.f32 %v3233, %v3236
        %v3238 = vmul.f32 %v3237, 1.442695
        %v3239 = vpow.pop %v3238
        %v3240 = vsel %vm1294, %v3239, 0.0
        %3241 = vadd.xlane.f32.xlu0 %v3240
        %v3242 = vpop.xlane.xlu0 %3241
        %v3243 = vrcp.pop %v3242
        %v3244 = vmul.f32 %v3239, %v3243
        %v3245 = vpack.c.bf16 %v3244, %v3244
        %3246 = vrot.lane.b32.xlu0 %v3130, 64
        %v3247 = vpop.permute.xlu0 %3246
        %v3249 = vsel %vm1308, %v3245, 0
        %v3252 = vsel %vm1312, %v3247, 0
        %3254 = vmatpush.bf16.msra.mxu0 0
        %3255 = vmatpush.bf16.msra.mxu0 0
        %3256 = vmatpush.bf16.msra.mxu0 0
        %3257 = vmatpush.bf16.msra.mxu0 0
        %3258 = vmatpush.bf16.msra.mxu0 0
        %3259 = vmatpush.bf16.msra.mxu0 0
        %3260 = vmatpush.bf16.msra.mxu0 0
        %3261 = vmatpush.bf16.msra.mxu0 %v3252
        %3262 = vmatmul.bf16.gmra.mxu0 %v3249
        %v3263 = vpop.f32.mrf.mxu0
        %v3264 = vadd.f32 0.0, %v3263
        %v3265 = vpop.f32.mrf.mxu0
        %3266 = vdwg.mxu0
        %3267 = vrot.lane.b32.xlu0 %v3096, 32
        %v3268 = vpop.permute.xlu0 %3267
        %3269 = vrot.lane.b32.xlu0 %v3097, 32
        %v3270 = vpop.permute.xlu0 %3269
        %v3272 = vsel %vm1273, %v3268, 0
        %v3275 = vsel %vm1273, %v3270, 0
        %3277 = vmatpush.bf16.xpose.msra.mxu0 0
        %3278 = vmatpush.bf16.xpose.msra.mxu0 0
        %3279 = vmatpush.bf16.xpose.msra.mxu0 0
        %3280 = vmatpush.bf16.xpose.msra.mxu0 0
        %3281 = vmatpush.bf16.xpose.msra.mxu0 0
        %3282 = vmatpush.bf16.xpose.msra.mxu0 0
        %3283 = vmatpush.bf16.xpose.msra.mxu0 0
        %3284 = vmatpush.bf16.xpose.msra.mxu0 %v3275
        %3285 = vmatmul.bf16.gmra.mxu0 %v3272
        %v3286 = vpop.f32.mrf.mxu0
        %v3287 = vadd.f32 0.0, %v3286
        %v3288 = vpop.f32.mrf.mxu0
        %3289 = vdwg.mxu0
        %v3290 = vmul.f32 %v3287, 0.17677669
        %v3291 = vsel %vm1294, %v3290, -inf
        %3292 = vmax.xlane.f32.xlu0 %v3291
        %v3293 = vpop.xlane.xlu0 %3292
        %v3294 = vsub.f32 %v3290, %v3293
        %v3295 = vmul.f32 %v3294, 1.442695
        %v3296 = vpow.pop %v3295
        %v3297 = vsel %vm1294, %v3296, 0.0
        %3298 = vadd.xlane.f32.xlu0 %v3297
        %v3299 = vpop.xlane.xlu0 %3298
        %v3300 = vrcp.pop %v3299
        %v3301 = vmul.f32 %v3296, %v3300
        %v3302 = vpack.c.bf16 %v3301, %v3301
        %3303 = vrot.lane.b32.xlu0 %v3130, 32
        %v3304 = vpop.permute.xlu0 %3303
        %v3306 = vsel %vm1308, %v3302, 0
        %v3309 = vsel %vm1312, %v3304, 0
        %3311 = vmatpush.bf16.msra.mxu0 0
        %3312 = vmatpush.bf16.msra.mxu0 0
        %3313 = vmatpush.bf16.msra.mxu0 0
        %3314 = vmatpush.bf16.msra.mxu0 0
        %3315 = vmatpush.bf16.msra.mxu0 0
        %3316 = vmatpush.bf16.msra.mxu0 0
        %3317 = vmatpush.bf16.msra.mxu0 0
        %3318 = vmatpush.bf16.msra.mxu0 %v3309
        %3319 = vmatmul.bf16.gmra.mxu0 %v3306
        %v3320 = vpop.f32.mrf.mxu0
        %v3321 = vadd.f32 0.0, %v3320
        %v3322 = vpop.f32.mrf.mxu0
        %3323 = vdwg.mxu0
        %v3324 = vpack.c.bf16 %v2989, %v2989
        %v3325 = vpack.c.bf16 %v3041, %v3041
        %v3327 = vsel %vm1273, %v3324, 0
        %v3330 = vsel %vm1273, %v3325, 0
        %3332 = vmatpush.bf16.xpose.msra.mxu0 0
        %3333 = vmatpush.bf16.xpose.msra.mxu0 0
        %3334 = vmatpush.bf16.xpose.msra.mxu0 0
        %3335 = vmatpush.bf16.xpose.msra.mxu0 0
        %3336 = vmatpush.bf16.xpose.msra.mxu0 0
        %3337 = vmatpush.bf16.xpose.msra.mxu0 0
        %3338 = vmatpush.bf16.xpose.msra.mxu0 0
        %3339 = vmatpush.bf16.xpose.msra.mxu0 %v3330
        %3340 = vmatmul.bf16.gmra.mxu0 %v3327
        %v3341 = vpop.f32.mrf.mxu0
        %v3342 = vadd.f32 0.0, %v3341
        %v3343 = vpop.f32.mrf.mxu0
        %3344 = vdwg.mxu0
        %v3345 = vmul.f32 %v3342, 0.17677669
        %v3346 = vsel %vm1294, %v3345, -inf
        %3347 = vmax.xlane.f32.xlu0 %v3346
        %v3348 = vpop.xlane.xlu0 %3347
        %v3349 = vsub.f32 %v3345, %v3348
        %v3350 = vmul.f32 %v3349, 1.442695
        %v3351 = vpow.pop %v3350
        %v3352 = vsel %vm1294, %v3351, 0.0
        %3353 = vadd.xlane.f32.xlu0 %v3352
        %v3354 = vpop.xlane.xlu0 %3353
        %v3355 = vrcp.pop %v3354
        %v3356 = vmul.f32 %v3351, %v3355
        %v3357 = vpack.c.bf16 %v3356, %v3356
        %v3358 = vpack.c.bf16 %v3093, %v3093
        %v3360 = vsel %vm1308, %v3357, 0
        %v3363 = vsel %vm1312, %v3358, 0
        %3365 = vmatpush.bf16.msra.mxu0 0
        %3366 = vmatpush.bf16.msra.mxu0 0
        %3367 = vmatpush.bf16.msra.mxu0 0
        %3368 = vmatpush.bf16.msra.mxu0 0
        %3369 = vmatpush.bf16.msra.mxu0 0
        %3370 = vmatpush.bf16.msra.mxu0 0
        %3371 = vmatpush.bf16.msra.mxu0 0
        %3372 = vmatpush.bf16.msra.mxu0 %v3363
        %3373 = vmatmul.bf16.gmra.mxu0 %v3360
        %v3374 = vpop.f32.mrf.mxu0
        %v3375 = vadd.f32 0.0, %v3374
        %v3376 = vpop.f32.mrf.mxu0
        %3377 = vdwg.mxu0
        %3379 = vrot.lane.b32.xlu0 %v3324, 96
        %v3380 = vpop.permute.xlu0 %3379
        %3382 = vrot.lane.b32.xlu0 %v3325, 96
        %v3383 = vpop.permute.xlu0 %3382
        %v3385 = vsel %vm1273, %v3380, 0
        %v3388 = vsel %vm1273, %v3383, 0
        %3390 = vmatpush.bf16.xpose.msra.mxu0 0
        %3391 = vmatpush.bf16.xpose.msra.mxu0 0
        %3392 = vmatpush.bf16.xpose.msra.mxu0 0
        %3393 = vmatpush.bf16.xpose.msra.mxu0 0
        %3394 = vmatpush.bf16.xpose.msra.mxu0 0
        %3395 = vmatpush.bf16.xpose.msra.mxu0 0
        %3396 = vmatpush.bf16.xpose.msra.mxu0 0
        %3397 = vmatpush.bf16.xpose.msra.mxu0 %v3388
        %3398 = vmatmul.bf16.gmra.mxu0 %v3385
        %v3399 = vpop.f32.mrf.mxu0
        %v3400 = vadd.f32 0.0, %v3399
        %v3401 = vpop.f32.mrf.mxu0
        %3402 = vdwg.mxu0
        %v3403 = vmul.f32 %v3400, 0.17677669
        %v3404 = vsel %vm1294, %v3403, -inf
        %3405 = vmax.xlane.f32.xlu0 %v3404
        %v3406 = vpop.xlane.xlu0 %3405
        %v3407 = vsub.f32 %v3403, %v3406
        %v3408 = vmul.f32 %v3407, 1.442695
        %v3409 = vpow.pop %v3408
        %v3410 = vsel %vm1294, %v3409, 0.0
        %3411 = vadd.xlane.f32.xlu0 %v3410
        %v3412 = vpop.xlane.xlu0 %3411
        %v3413 = vrcp.pop %v3412
        %v3414 = vmul.f32 %v3409, %v3413
        %v3415 = vpack.c.bf16 %v3414, %v3414
        %3417 = vrot.lane.b32.xlu0 %v3358, 96
        %v3418 = vpop.permute.xlu0 %3417
        %v3420 = vsel %vm1308, %v3415, 0
        %v3423 = vsel %vm1312, %v3418, 0
        %3425 = vmatpush.bf16.msra.mxu0 0
        %3426 = vmatpush.bf16.msra.mxu0 0
        %3427 = vmatpush.bf16.msra.mxu0 0
        %3428 = vmatpush.bf16.msra.mxu0 0
        %3429 = vmatpush.bf16.msra.mxu0 0
        %3430 = vmatpush.bf16.msra.mxu0 0
        %3431 = vmatpush.bf16.msra.mxu0 0
        %3432 = vmatpush.bf16.msra.mxu0 %v3423
        %3433 = vmatmul.bf16.gmra.mxu0 %v3420
        %v3434 = vpop.f32.mrf.mxu0
        %v3435 = vadd.f32 0.0, %v3434
        %v3436 = vpop.f32.mrf.mxu0
        %3437 = vdwg.mxu0
        %3438 = vrot.lane.b32.xlu0 %v3324, 64
        %v3439 = vpop.permute.xlu0 %3438
        %3440 = vrot.lane.b32.xlu0 %v3325, 64
        %v3441 = vpop.permute.xlu0 %3440
        %v3443 = vsel %vm1273, %v3439, 0
        %v3446 = vsel %vm1273, %v3441, 0
        %3448 = vmatpush.bf16.xpose.msra.mxu0 0
        %3449 = vmatpush.bf16.xpose.msra.mxu0 0
        %3450 = vmatpush.bf16.xpose.msra.mxu0 0
        %3451 = vmatpush.bf16.xpose.msra.mxu0 0
        %3452 = vmatpush.bf16.xpose.msra.mxu0 0
        %3453 = vmatpush.bf16.xpose.msra.mxu0 0
        %3454 = vmatpush.bf16.xpose.msra.mxu0 0
        %3455 = vmatpush.bf16.xpose.msra.mxu0 %v3446
        %3456 = vmatmul.bf16.gmra.mxu0 %v3443
        %v3457 = vpop.f32.mrf.mxu0
        %v3458 = vadd.f32 0.0, %v3457
        %v3459 = vpop.f32.mrf.mxu0
        %3460 = vdwg.mxu0
        %v3461 = vmul.f32 %v3458, 0.17677669
        %v3462 = vsel %vm1294, %v3461, -inf
        %3463 = vmax.xlane.f32.xlu0 %v3462
        %v3464 = vpop.xlane.xlu0 %3463
        %v3465 = vsub.f32 %v3461, %v3464
        %v3466 = vmul.f32 %v3465, 1.442695
        %v3467 = vpow.pop %v3466
        %v3468 = vsel %vm1294, %v3467, 0.0
        %3469 = vadd.xlane.f32.xlu0 %v3468
        %v3470 = vpop.xlane.xlu0 %3469
        %v3471 = vrcp.pop %v3470
        %v3472 = vmul.f32 %v3467, %v3471
        %v3473 = vpack.c.bf16 %v3472, %v3472
        %3474 = vrot.lane.b32.xlu0 %v3358, 64
        %v3475 = vpop.permute.xlu0 %3474
        %v3477 = vsel %vm1308, %v3473, 0
        %v3480 = vsel %vm1312, %v3475, 0
        %3482 = vmatpush.bf16.msra.mxu0 0
        %3483 = vmatpush.bf16.msra.mxu0 0
        %3484 = vmatpush.bf16.msra.mxu0 0
        %3485 = vmatpush.bf16.msra.mxu0 0
        %3486 = vmatpush.bf16.msra.mxu0 0
        %3487 = vmatpush.bf16.msra.mxu0 0
        %3488 = vmatpush.bf16.msra.mxu0 0
        %3489 = vmatpush.bf16.msra.mxu0 %v3480
        %3490 = vmatmul.bf16.gmra.mxu0 %v3477
        %v3491 = vpop.f32.mrf.mxu0
        %v3492 = vadd.f32 0.0, %v3491
        %v3493 = vpop.f32.mrf.mxu0
        %3494 = vdwg.mxu0
        %3495 = vrot.lane.b32.xlu0 %v3324, 32
        %v3496 = vpop.permute.xlu0 %3495
        %3497 = vrot.lane.b32.xlu0 %v3325, 32
        %v3498 = vpop.permute.xlu0 %3497
        %v3500 = vsel %vm1273, %v3496, 0
        %v3503 = vsel %vm1273, %v3498, 0
        %3505 = vmatpush.bf16.xpose.msra.mxu0 0
        %3506 = vmatpush.bf16.xpose.msra.mxu0 0
        %3507 = vmatpush.bf16.xpose.msra.mxu0 0
        %3508 = vmatpush.bf16.xpose.msra.mxu0 0
        %3509 = vmatpush.bf16.xpose.msra.mxu0 0
        %3510 = vmatpush.bf16.xpose.msra.mxu0 0
        %3511 = vmatpush.bf16.xpose.msra.mxu0 0
        %3512 = vmatpush.bf16.xpose.msra.mxu0 %v3503
        %3513 = vmatmul.bf16.gmra.mxu0 %v3500
        %v3514 = vpop.f32.mrf.mxu0
        %v3515 = vadd.f32 0.0, %v3514
        %v3516 = vpop.f32.mrf.mxu0
        %3517 = vdwg.mxu0
        %v3518 = vmul.f32 %v3515, 0.17677669
        %v3519 = vsel %vm1294, %v3518, -inf
        %3520 = vmax.xlane.f32.xlu0 %v3519
        %v3521 = vpop.xlane.xlu0 %3520
        %v3522 = vsub.f32 %v3518, %v3521
        %v3523 = vmul.f32 %v3522, 1.442695
        %v3524 = vpow.pop %v3523
        %v3525 = vsel %vm1294, %v3524, 0.0
        %3526 = vadd.xlane.f32.xlu0 %v3525
        %v3527 = vpop.xlane.xlu0 %3526
        %v3528 = vrcp.pop %v3527
        %v3529 = vmul.f32 %v3524, %v3528
        %v3530 = vpack.c.bf16 %v3529, %v3529
        %3531 = vrot.lane.b32.xlu0 %v3358, 32
        %v3532 = vpop.permute.xlu0 %3531
        %v3534 = vsel %vm1308, %v3530, 0
        %v3537 = vsel %vm1312, %v3532, 0
        %3539 = vmatpush.bf16.msra.mxu0 0
        %3540 = vmatpush.bf16.msra.mxu0 0
        %3541 = vmatpush.bf16.msra.mxu0 0
        %3542 = vmatpush.bf16.msra.mxu0 0
        %3543 = vmatpush.bf16.msra.mxu0 0
        %3544 = vmatpush.bf16.msra.mxu0 0
        %3545 = vmatpush.bf16.msra.mxu0 0
        %3546 = vmatpush.bf16.msra.mxu0 %v3537
        %3547 = vmatmul.bf16.gmra.mxu0 %v3534
        %v3548 = vpop.f32.mrf.mxu0
        %v3549 = vadd.f32 0.0, %v3548
        %v3550 = vpop.f32.mrf.mxu0
        %3551 = vdwg.mxu0
        %3553 = vrot.lane.b32.xlu0 %v3207, 32
        %v3554 = vpop.permute.xlu0 %3553
        %3557 = vrot.lane.b32.xlu0 %v3264, 64
        %v3558 = vpop.permute.xlu0 %3557
        %3561 = vrot.lane.b32.xlu0 %v3321, 96
        %v3562 = vpop.permute.xlu0 %3561
        %3565 = vrot.lane.b32.xlu0 %v3435, 32
        %v3566 = vpop.permute.xlu0 %3565
        %3569 = vrot.lane.b32.xlu0 %v3492, 64
        %v3570 = vpop.permute.xlu0 %3569
        %3573 = vrot.lane.b32.xlu0 %v3549, 96
        %v3574 = vpop.permute.xlu0 %3573
        %v3576 = vsel %vm1273, %v3147, %v3554
        %v3577 = vsel %vm1756, %v3576, %v3558
        %v3578 = vsel %vm1758, %v3577, %v3562
        %v3579 = vsel %vm1273, %v3375, %v3566
        %v3580 = vsel %vm1756, %v3579, %v3570
        %v3581 = vsel %vm1758, %v3580, %v3574
        %s3582 = scalar_lea.vmem %s5, 256
        %v3583 = vld [vmem:[%s3582] sm:$0xff]
        %v3584 = vld [vmem:[%s3582 + $0x8] sm:$0xff]
        %v3585 = vld [vmem:[%s3582 + $0x10] sm:$0xff]
        %v3586 = vld [vmem:[%s3582 + $0x18] sm:$0xff]
        %v3587 = vld [vmem:[%s3582 + $0x20] sm:$0xff]
        %v3588 = vld [vmem:[%s3582 + $0x28] sm:$0xff]
        %v3589 = vld [vmem:[%s3582 + $0x30] sm:$0xff]
        %v3590 = vld [vmem:[%s3582 + $0x38] sm:$0xff]
        %v3591 = vld [vmem:[%s3582 + $0x40] sm:$0xff]
        %v3592 = vld [vmem:[%s3582 + $0x48] sm:$0xff]
        %v3593 = vld [vmem:[%s3582 + $0x50] sm:$0xff]
        %v3594 = vld [vmem:[%s3582 + $0x58] sm:$0xff]
        %v3595 = vld [vmem:[%s3582 + $0x60] sm:$0xff]
        %v3596 = vld [vmem:[%s3582 + $0x68] sm:$0xff]
        %v3597 = vld [vmem:[%s3582 + $0x70] sm:$0xff]
        %v3598 = vld [vmem:[%s3582 + $0x78] sm:$0xff]
        %v3599 = vld [vmem:[%s3582 + $0x80] sm:$0xff]
        %v3600 = vld [vmem:[%s3582 + $0x88] sm:$0xff]
        %v3601 = vld [vmem:[%s3582 + $0x90] sm:$0xff]
        %v3602 = vld [vmem:[%s3582 + $0x98] sm:$0xff]
        %v3603 = vld [vmem:[%s3582 + $0xa0] sm:$0xff]
        %v3604 = vld [vmem:[%s3582 + $0xa8] sm:$0xff]
        %v3605 = vld [vmem:[%s3582 + $0xb0] sm:$0xff]
        %v3606 = vld [vmem:[%s3582 + $0xb8] sm:$0xff]
        %v3607 = vld [vmem:[%s3582 + $0xc0] sm:$0xff]
        %v3608 = vld [vmem:[%s3582 + $0xc8] sm:$0xff]
        %v3609 = vld [vmem:[%s3582 + $0xd0] sm:$0xff]
        %v3610 = vld [vmem:[%s3582 + $0xd8] sm:$0xff]
        %v3611 = vld [vmem:[%s3582 + $0xe0] sm:$0xff]
        %v3612 = vld [vmem:[%s3582 + $0xe8] sm:$0xff]
        %v3613 = vld [vmem:[%s3582 + $0xf0] sm:$0xff]
        %v3614 = vld [vmem:[%s3582 + $0xf8] sm:$0xff]
        %v3615 = vpack.c.bf16 %v3578, %v3578
        %v3616 = vpack.c.bf16 %v3581, %v3581
        %v3649 = vunpack.c.l.b16 %v3583
        %v3650 = vunpack.c.h.b16 %v3583
        %v3651 = vunpack.c.l.b16 %v3584
        %v3652 = vunpack.c.h.b16 %v3584
        %v3653 = vunpack.c.l.b16 %v3585
        %v3654 = vunpack.c.h.b16 %v3585
        %v3655 = vunpack.c.l.b16 %v3586
        %v3656 = vunpack.c.h.b16 %v3586
        %v3657 = vunpack.c.l.b16 %v3587
        %v3658 = vunpack.c.h.b16 %v3587
        %v3659 = vunpack.c.l.b16 %v3588
        %v3660 = vunpack.c.h.b16 %v3588
        %v3661 = vunpack.c.l.b16 %v3589
        %v3662 = vunpack.c.h.b16 %v3589
        %v3663 = vunpack.c.l.b16 %v3590
        %v3664 = vunpack.c.h.b16 %v3590
        %v3665 = vunpack.c.l.b16 %v3591
        %v3666 = vunpack.c.h.b16 %v3591
        %v3667 = vunpack.c.l.b16 %v3592
        %v3668 = vunpack.c.h.b16 %v3592
        %v3669 = vunpack.c.l.b16 %v3593
        %v3670 = vunpack.c.h.b16 %v3593
        %v3671 = vunpack.c.l.b16 %v3594
        %v3672 = vunpack.c.h.b16 %v3594
        %v3673 = vunpack.c.l.b16 %v3595
        %v3674 = vunpack.c.h.b16 %v3595
        %v3675 = vunpack.c.l.b16 %v3596
        %v3676 = vunpack.c.h.b16 %v3596
        %v3677 = vunpack.c.l.b16 %v3597
        %v3678 = vunpack.c.h.b16 %v3597
        %v3679 = vunpack.c.l.b16 %v3598
        %v3680 = vunpack.c.h.b16 %v3598
        %v3681 = vunpack.c.l.b16 %v3599
        %v3682 = vunpack.c.h.b16 %v3599
        %v3683 = vunpack.c.l.b16 %v3600
        %v3684 = vunpack.c.h.b16 %v3600
        %v3685 = vunpack.c.l.b16 %v3601
        %v3686 = vunpack.c.h.b16 %v3601
        %v3687 = vunpack.c.l.b16 %v3602
        %v3688 = vunpack.c.h.b16 %v3602
        %v3689 = vunpack.c.l.b16 %v3603
        %v3690 = vunpack.c.h.b16 %v3603
        %v3691 = vunpack.c.l.b16 %v3604
        %v3692 = vunpack.c.h.b16 %v3604
        %v3693 = vunpack.c.l.b16 %v3605
        %v3694 = vunpack.c.h.b16 %v3605
        %v3695 = vunpack.c.l.b16 %v3606
        %v3696 = vunpack.c.h.b16 %v3606
        %v3697 = vunpack.c.l.b16 %v3607
        %v3698 = vunpack.c.h.b16 %v3607
        %v3699 = vunpack.c.l.b16 %v3608
        %v3700 = vunpack.c.h.b16 %v3608
        %v3701 = vunpack.c.l.b16 %v3609
        %v3702 = vunpack.c.h.b16 %v3609
        %v3703 = vunpack.c.l.b16 %v3610
        %v3704 = vunpack.c.h.b16 %v3610
        %v3705 = vunpack.c.l.b16 %v3611
        %v3706 = vunpack.c.h.b16 %v3611
        %v3707 = vunpack.c.l.b16 %v3612
        %v3708 = vunpack.c.h.b16 %v3612
        %v3709 = vunpack.c.l.b16 %v3613
        %v3710 = vunpack.c.h.b16 %v3613
        %v3711 = vunpack.c.l.b16 %v3614
        %v3712 = vunpack.c.h.b16 %v3614
        %v3713 = vpack.c.b16 %v3651, %v3649
        %v3714 = vpack.c.b16 %v3652, %v3650
        %v3715 = vpack.c.b16 %v3655, %v3653
        %v3716 = vpack.c.b16 %v3656, %v3654
        %v3717 = vpack.c.b16 %v3659, %v3657
        %v3718 = vpack.c.b16 %v3660, %v3658
        %v3719 = vpack.c.b16 %v3663, %v3661
        %v3720 = vpack.c.b16 %v3664, %v3662
        %v3721 = vpack.c.b16 %v3667, %v3665
        %v3722 = vpack.c.b16 %v3668, %v3666
        %v3723 = vpack.c.b16 %v3671, %v3669
        %v3724 = vpack.c.b16 %v3672, %v3670
        %v3725 = vpack.c.b16 %v3675, %v3673
        %v3726 = vpack.c.b16 %v3676, %v3674
        %v3727 = vpack.c.b16 %v3679, %v3677
        %v3728 = vpack.c.b16 %v3680, %v3678
        %v3729 = vpack.c.b16 %v3683, %v3681
        %v3730 = vpack.c.b16 %v3684, %v3682
        %v3731 = vpack.c.b16 %v3687, %v3685
        %v3732 = vpack.c.b16 %v3688, %v3686
        %v3733 = vpack.c.b16 %v3691, %v3689
        %v3734 = vpack.c.b16 %v3692, %v3690
        %v3735 = vpack.c.b16 %v3695, %v3693
        %v3736 = vpack.c.b16 %v3696, %v3694
        %v3737 = vpack.c.b16 %v3699, %v3697
        %v3738 = vpack.c.b16 %v3700, %v3698
        %v3739 = vpack.c.b16 %v3703, %v3701
        %v3740 = vpack.c.b16 %v3704, %v3702
        %v3741 = vpack.c.b16 %v3707, %v3705
        %v3742 = vpack.c.b16 %v3708, %v3706
        %v3743 = vpack.c.b16 %v3711, %v3709
        %v3744 = vpack.c.b16 %v3712, %v3710
        %3777 = vmatpush.bf16.msra.mxu0 %v3727
        %3778 = vmatpush.bf16.msra.mxu0 %v3725
        %3779 = vmatpush.bf16.msra.mxu0 %v3723
        %3780 = vmatpush.bf16.msra.mxu0 %v3721
        %3781 = vmatpush.bf16.msra.mxu0 %v3719
        %3782 = vmatpush.bf16.msra.mxu0 %v3717
        %3783 = vmatpush.bf16.msra.mxu0 %v3715
        %3784 = vmatpush.bf16.msra.mxu0 %v3713
        %3785 = vmatmul.bf16.gmra.mxu0 %v3615
        %v3786 = vpop.f32.mrf.mxu0
        %v3787 = vadd.f32 0.0, %v3786
        %v3788 = vpop.f32.mrf.mxu0
        %3789 = vdwg.mxu0
        %3790 = vmatpush.bf16.msra.mxu0 %v3743
        %3791 = vmatpush.bf16.msra.mxu0 %v3741
        %3792 = vmatpush.bf16.msra.mxu0 %v3739
        %3793 = vmatpush.bf16.msra.mxu0 %v3737
        %3794 = vmatpush.bf16.msra.mxu0 %v3735
        %3795 = vmatpush.bf16.msra.mxu0 %v3733
        %3796 = vmatpush.bf16.msra.mxu0 %v3731
        %3797 = vmatpush.bf16.msra.mxu0 %v3729
        %3798 = vmatmul.bf16.gmra.mxu0 %v3616
        %v3799 = vpop.f32.mrf.mxu0
        %v3800 = vadd.f32 %v3787, %v3799
        %v3801 = vpop.f32.mrf.mxu0
        %3802 = vdwg.mxu0
        %3803 = vmatpush.bf16.msra.mxu0 %v3728
        %3804 = vmatpush.bf16.msra.mxu0 %v3726
        %3805 = vmatpush.bf16.msra.mxu0 %v3724
        %3806 = vmatpush.bf16.msra.mxu0 %v3722
        %3807 = vmatpush.bf16.msra.mxu0 %v3720
        %3808 = vmatpush.bf16.msra.mxu0 %v3718
        %3809 = vmatpush.bf16.msra.mxu0 %v3716
        %3810 = vmatpush.bf16.msra.mxu0 %v3714
        %3811 = vmatmul.bf16.gmra.mxu0 %v3615
        %v3812 = vpop.f32.mrf.mxu0
        %v3813 = vadd.f32 0.0, %v3812
        %v3814 = vpop.f32.mrf.mxu0
        %3815 = vdwg.mxu0
        %3816 = vmatpush.bf16.msra.mxu0 %v3744
        %3817 = vmatpush.bf16.msra.mxu0 %v3742
        %3818 = vmatpush.bf16.msra.mxu0 %v3740
        %3819 = vmatpush.bf16.msra.mxu0 %v3738
        %3820 = vmatpush.bf16.msra.mxu0 %v3736
        %3821 = vmatpush.bf16.msra.mxu0 %v3734
        %3822 = vmatpush.bf16.msra.mxu0 %v3732
        %3823 = vmatpush.bf16.msra.mxu0 %v3730
        %3824 = vmatmul.bf16.gmra.mxu0 %v3616
        %v3825 = vpop.f32.mrf.mxu0
        %v3826 = vadd.f32 %v3813, %v3825
        %v3827 = vpop.f32.mrf.mxu0
        %3828 = vdwg.mxu0
        %v3829 = vadd.f32 %v2297, %v3800
        %v3830 = vadd.f32 %v2298, %v3826
        %s3831 = scalar_lea.vmem %s6, 2
        %v3832 = vld [vmem:[%s3831] sm:$0x3]
        %v3834 = vperm.slane %v3832, 0
        %v3835 = vperm.slane %v3832, 1
        %v3838 = vadd.f32 %v3829, %v3834
        %v3839 = vadd.f32 %v3830, %v3835
        %s3840 = scalar_lea.vmem %s2, 12
        %v3841 = vld [vmem:[%s3840] sm:$0x3]
        %s3842 = scalar_lea.vmem %s2, 14
        %v3843 = vld [vmem:[%s3842] sm:$0x3]
        %v3844 = vsel %vm472, %v3838, 0.0
        %v3845 = vsel %vm472, %v3839, 0.0
        %v3846 = vadd.f32 %v3844, %v3845
        %3847 = vadd.xlane.f32.xlu0 %v3846
        %v3848 = vpop.xlane.xlu0 %3847
        %v3849 = vmul.f32 %v3848, %v484
        %v3850 = vsub.f32 %v3838, %v3849
        %v3851 = vsub.f32 %v3839, %v3849
        %v3852 = vmul.f32 %v3850, %v3850
        %v3853 = vmul.f32 %v3851, %v3851
        %v3854 = vsel %vm472, %v3852, 0.0
        %v3855 = vsel %vm472, %v3853, 0.0
        %v3856 = vadd.f32 %v3854, %v3855
        %3857 = vadd.xlane.f32.xlu0 %v3856
        %v3858 = vpop.xlane.xlu0 %3857
        %v3859 = vmul.f32 %v3858, %v484
        %v3860 = vadd.f32 %v3859, 1e-05
        %v3861 = vrsqrt.pop %v3860
        %v3862 = vmul.f32 %v3861, %v3860
        %v3863 = vmul.f32 %v3862, %v3861
        %v3864 = vmul.f32 0.5, %v3863
        %v3865 = vsub.f32 1.5, %v3864
        %v3866 = vmul.f32 %v3861, %v3865
        %vm3867 = vweird.f32 %v3860
        %vm3868 = vweird.f32 %v3861
        %vm3869 = vmor %vm3867, %vm3868
        %v3870 = vsel %vm3869, %v3861, %v3866
        %v3871 = vmul.f32 %v3850, %v3870
        %v3872 = vmul.f32 %v3851, %v3870
        %v3874 = vperm.slane %v3841, 0
        %v3875 = vperm.slane %v3841, 1
        %v3878 = vmul.f32 %v3871, %v3874
        %v3879 = vmul.f32 %v3872, %v3875
        %v3881 = vperm.slane %v3843, 0
        %v3882 = vperm.slane %v3843, 1
        %v3885 = vadd.f32 %v3878, %v3881
        %v3886 = vadd.f32 %v3879, %v3882
        %s3887 = scalar_lea.vmem [#allocation4], 128
        %v3888 = vld [vmem:[%s3887] sm:$0xf]
        %v3889 = vld [vmem:[%s3887 + $0x4] sm:$0xf]
        %v3890 = vld [vmem:[%s3887 + $0x8] sm:$0xf]
        %v3891 = vld [vmem:[%s3887 + $0xc] sm:$0xf]
        %v3892 = vld [vmem:[%s3887 + $0x10] sm:$0xf]
        %v3893 = vld [vmem:[%s3887 + $0x14] sm:$0xf]
        %v3894 = vld [vmem:[%s3887 + $0x18] sm:$0xf]
        %v3895 = vld [vmem:[%s3887 + $0x1c] sm:$0xf]
        %v3896 = vld [vmem:[%s3887 + $0x20] sm:$0xf]
        %v3897 = vld [vmem:[%s3887 + $0x24] sm:$0xf]
        %v3898 = vld [vmem:[%s3887 + $0x28] sm:$0xf]
        %v3899 = vld [vmem:[%s3887 + $0x2c] sm:$0xf]
        %v3900 = vld [vmem:[%s3887 + $0x30] sm:$0xf]
        %v3901 = vld [vmem:[%s3887 + $0x34] sm:$0xf]
        %v3902 = vld [vmem:[%s3887 + $0x38] sm:$0xf]
        %v3903 = vld [vmem:[%s3887 + $0x3c] sm:$0xf]
        %v3904 = vld [vmem:[%s3887 + $0x40] sm:$0xf]
        %v3905 = vld [vmem:[%s3887 + $0x44] sm:$0xf]
        %v3906 = vld [vmem:[%s3887 + $0x48] sm:$0xf]
        %v3907 = vld [vmem:[%s3887 + $0x4c] sm:$0xf]
        %v3908 = vld [vmem:[%s3887 + $0x50] sm:$0xf]
        %v3909 = vld [vmem:[%s3887 + $0x54] sm:$0xf]
        %v3910 = vld [vmem:[%s3887 + $0x58] sm:$0xf]
        %v3911 = vld [vmem:[%s3887 + $0x5c] sm:$0xf]
        %v3912 = vld [vmem:[%s3887 + $0x60] sm:$0xf]
        %v3913 = vld [vmem:[%s3887 + $0x64] sm:$0xf]
        %v3914 = vld [vmem:[%s3887 + $0x68] sm:$0xf]
        %v3915 = vld [vmem:[%s3887 + $0x6c] sm:$0xf]
        %v3916 = vld [vmem:[%s3887 + $0x70] sm:$0xf]
        %v3917 = vld [vmem:[%s3887 + $0x74] sm:$0xf]
        %v3918 = vld [vmem:[%s3887 + $0x78] sm:$0xf]
        %v3919 = vld [vmem:[%s3887 + $0x7c] sm:$0xf]
        %v3920 = vpack.c.bf16 %v3885, %v3885
        %v3921 = vpack.c.bf16 %v3886, %v3886
        %s3922 = scalar_lea.vmem %s8, 1
        %v3923 = vld [vmem:[%s3922] sm:$0x1]
        %v3925 = vperm.slane %v3923, 0
        %v3959 = vunpack.c.l.b16 %v3888
        %v3960 = vunpack.c.l.b16 %v3889
        %v3961 = vunpack.c.l.b16 %v3890
        %v3962 = vunpack.c.l.b16 %v3891
        %v3963 = vunpack.c.l.b16 %v3892
        %v3964 = vunpack.c.l.b16 %v3893
        %v3965 = vunpack.c.l.b16 %v3894
        %v3966 = vunpack.c.l.b16 %v3895
        %v3967 = vunpack.c.l.b16 %v3896
        %v3968 = vunpack.c.l.b16 %v3897
        %v3969 = vunpack.c.l.b16 %v3898
        %v3970 = vunpack.c.l.b16 %v3899
        %v3971 = vunpack.c.l.b16 %v3900
        %v3972 = vunpack.c.l.b16 %v3901
        %v3973 = vunpack.c.l.b16 %v3902
        %v3974 = vunpack.c.l.b16 %v3903
        %v3975 = vunpack.c.l.b16 %v3904
        %v3976 = vunpack.c.l.b16 %v3905
        %v3977 = vunpack.c.l.b16 %v3906
        %v3978 = vunpack.c.l.b16 %v3907
        %v3979 = vunpack.c.l.b16 %v3908
        %v3980 = vunpack.c.l.b16 %v3909
        %v3981 = vunpack.c.l.b16 %v3910
        %v3982 = vunpack.c.l.b16 %v3911
        %v3983 = vunpack.c.l.b16 %v3912
        %v3984 = vunpack.c.l.b16 %v3913
        %v3985 = vunpack.c.l.b16 %v3914
        %v3986 = vunpack.c.l.b16 %v3915
        %v3987 = vunpack.c.l.b16 %v3916
        %v3988 = vunpack.c.l.b16 %v3917
        %v3989 = vunpack.c.l.b16 %v3918
        %v3990 = vunpack.c.l.b16 %v3919
        %v3991 = vpack.c.b16 %v3960, %v3959
        %v3992 = vpack.c.b16 %v3962, %v3961
        %v3993 = vpack.c.b16 %v3964, %v3963
        %v3994 = vpack.c.b16 %v3966, %v3965
        %v3995 = vpack.c.b16 %v3968, %v3967
        %v3996 = vpack.c.b16 %v3970, %v3969
        %v3997 = vpack.c.b16 %v3972, %v3971
        %v3998 = vpack.c.b16 %v3974, %v3973
        %v3999 = vpack.c.b16 %v3976, %v3975
        %v4000 = vpack.c.b16 %v3978, %v3977
        %v4001 = vpack.c.b16 %v3980, %v3979
        %v4002 = vpack.c.b16 %v3982, %v3981
        %v4003 = vpack.c.b16 %v3984, %v3983
        %v4004 = vpack.c.b16 %v3986, %v3985
        %v4005 = vpack.c.b16 %v3988, %v3987
        %v4006 = vpack.c.b16 %v3990, %v3989
        %4023 = vmatpush.bf16.msra.mxu0 %v3998
        %4024 = vmatpush.bf16.msra.mxu0 %v3997
        %4025 = vmatpush.bf16.msra.mxu0 %v3996
        %4026 = vmatpush.bf16.msra.mxu0 %v3995
        %4027 = vmatpush.bf16.msra.mxu0 %v3994
        %4028 = vmatpush.bf16.msra.mxu0 %v3993
        %4029 = vmatpush.bf16.msra.mxu0 %v3992
        %4030 = vmatpush.bf16.msra.mxu0 %v3991
        %4031 = vmatmul.bf16.gmra.mxu0 %v3920
        %v4032 = vpop.f32.mrf.mxu0
        %v4033 = vadd.f32 %v3925, %v4032
        %v4034 = vpop.f32.mrf.mxu0
        %4035 = vdwg.mxu0
        %4036 = vmatpush.bf16.msra.mxu0 %v4006
        %4037 = vmatpush.bf16.msra.mxu0 %v4005
        %4038 = vmatpush.bf16.msra.mxu0 %v4004
        %4039 = vmatpush.bf16.msra.mxu0 %v4003
        %4040 = vmatpush.bf16.msra.mxu0 %v4002
        %4041 = vmatpush.bf16.msra.mxu0 %v4001
        %4042 = vmatpush.bf16.msra.mxu0 %v4000
        %4043 = vmatpush.bf16.msra.mxu0 %v3999
        %4044 = vmatmul.bf16.gmra.mxu0 %v3921
        %v4045 = vpop.f32.mrf.mxu0
        %v4046 = vadd.f32 %v4033, %v4045
        %v4047 = vpop.f32.mrf.mxu0
        %4048 = vdwg.mxu0
        %v4049 = vmul.f32 %v4046, 0.5
        %v4050 = vmul.f32 %v4046, 0.044715
        %v4051 = vmul.f32 %v4050, %v4046
        %v4052 = vmul.f32 %v4051, %v4046
        %v4053 = vadd.f32 %v4046, %v4052
        %v4054 = vmul.f32 %v4053, 0.7978846
        %v4055 = vtanh.pop %v4054
        %v4056 = vadd.f32 %v4055, 1.0
        %v4057 = vmul.f32 %v4049, %v4056
        %s4058 = scalar_lea.vmem [#allocation6], 32
        %v4059 = vld [vmem:[%s4058] sm:$0xff]
        %v4060 = vld [vmem:[%s4058 + $0x8] sm:$0xff]
        %v4061 = vld [vmem:[%s4058 + $0x10] sm:$0xff]
        %v4062 = vld [vmem:[%s4058 + $0x18] sm:$0xff]
        %v4063 = vpack.c.bf16 %v4057, %v4057
        %v4068 = vunpack.c.l.b16 %v4059
        %v4069 = vunpack.c.h.b16 %v4059
        %v4070 = vunpack.c.l.b16 %v4060
        %v4071 = vunpack.c.h.b16 %v4060
        %v4072 = vunpack.c.l.b16 %v4061
        %v4073 = vunpack.c.h.b16 %v4061
        %v4074 = vunpack.c.l.b16 %v4062
        %v4075 = vunpack.c.h.b16 %v4062
        %v4076 = vpack.c.b16 %v4070, %v4068
        %v4077 = vpack.c.b16 %v4071, %v4069
        %v4078 = vpack.c.b16 %v4074, %v4072
        %v4079 = vpack.c.b16 %v4075, %v4073
        %v4085 = vsel %vm1273, %v4063, 0
        %4087 = vmatpush.bf16.msra.mxu0 0
        %4088 = vmatpush.bf16.msra.mxu0 0
        %4089 = vmatpush.bf16.msra.mxu0 0
        %4090 = vmatpush.bf16.msra.mxu0 0
        %4091 = vmatpush.bf16.msra.mxu0 0
        %4092 = vmatpush.bf16.msra.mxu0 0
        %4093 = vmatpush.bf16.msra.mxu0 %v4078
        %4094 = vmatpush.bf16.msra.mxu0 %v4076
        %4095 = vmatmul.bf16.gmra.mxu0 %v4085
        %v4096 = vpop.f32.mrf.mxu0
        %v4097 = vadd.f32 0.0, %v4096
        %v4098 = vpop.f32.mrf.mxu0
        %4099 = vdwg.mxu0
        %4100 = vmatpush.bf16.msra.mxu0 0
        %4101 = vmatpush.bf16.msra.mxu0 0
        %4102 = vmatpush.bf16.msra.mxu0 0
        %4103 = vmatpush.bf16.msra.mxu0 0
        %4104 = vmatpush.bf16.msra.mxu0 0
        %4105 = vmatpush.bf16.msra.mxu0 0
        %4106 = vmatpush.bf16.msra.mxu0 %v4079
        %4107 = vmatpush.bf16.msra.mxu0 %v4077
        %4108 = vmatmul.bf16.gmra.mxu0 %v4085
        %v4109 = vpop.f32.mrf.mxu0
        %v4110 = vadd.f32 0.0, %v4109
        %v4111 = vpop.f32.mrf.mxu0
        %4112 = vdwg.mxu0
        %v4113 = vadd.f32 %v3838, %v4097
        %v4114 = vadd.f32 %v3839, %v4110
        %s4115 = scalar_lea.vmem %s10, 2
        %v4116 = vld [vmem:[%s4115] sm:$0x3]
        %v4118 = vperm.slane %v4116, 0
        %v4119 = vperm.slane %v4116, 1
        %v4122 = vadd.f32 %v4113, %v4118
        %v4123 = vadd.f32 %v4114, %v4119
        %v4124 = vld [vmem:[%s11] sm:$0x3]
        %s4125 = scalar_lea.vmem %s11, 2
        %v4126 = vld [vmem:[%s4125] sm:$0x3]
        %v4127 = vsel %vm472, %v4122, 0.0
        %v4128 = vsel %vm472, %v4123, 0.0
        %v4129 = vadd.f32 %v4127, %v4128
        %4130 = vadd.xlane.f32.xlu0 %v4129
        %v4131 = vpop.xlane.xlu0 %4130
        %v4132 = vmul.f32 %v4131, %v484
        %v4133 = vsub.f32 %v4122, %v4132
        %v4134 = vsub.f32 %v4123, %v4132
        %v4135 = vmul.f32 %v4133, %v4133
        %v4136 = vmul.f32 %v4134, %v4134
        %v4137 = vsel %vm472, %v4135, 0.0
        %v4138 = vsel %vm472, %v4136, 0.0
        %v4139 = vadd.f32 %v4137, %v4138
        %4140 = vadd.xlane.f32.xlu0 %v4139
        %v4141 = vpop.xlane.xlu0 %4140
        %v4142 = vmul.f32 %v4141, %v484
        %v4143 = vadd.f32 %v4142, 1e-05
        %v4144 = vrsqrt.pop %v4143
        %v4145 = vmul.f32 %v4144, %v4143
        %v4146 = vmul.f32 %v4145, %v4144
        %v4147 = vmul.f32 0.5, %v4146
        %v4148 = vsub.f32 1.5, %v4147
        %v4149 = vmul.f32 %v4144, %v4148
        %vm4150 = vweird.f32 %v4143
        %vm4151 = vweird.f32 %v4144
        %vm4152 = vmor %vm4150, %vm4151
        %v4153 = vsel %vm4152, %v4144, %v4149
        %v4154 = vmul.f32 %v4133, %v4153
        %v4155 = vmul.f32 %v4134, %v4153
        %v4157 = vperm.slane %v4124, 0
        %v4158 = vperm.slane %v4124, 1
        %v4161 = vmul.f32 %v4154, %v4157
        %v4162 = vmul.f32 %v4155, %v4158
        %v4164 = vperm.slane %v4126, 0
        %v4165 = vperm.slane %v4126, 1
        %v4168 = vadd.f32 %v4161, %v4164
        %v4169 = vadd.f32 %v4162, %v4165
        %4170 = vst [vmem:[%s461] sm:$0x3f] %v4168
        %4171 = vst [vmem:[%s461 + $0x8] sm:$0x3f] %v4169
        %p4172 = scmp.lt.s32.totalorder %s25, 1
        %s4173 = scalar_select %p4172, %s25, 1
        %s4174 = smul.addr %s4173, 2
        %s4175 = smul.addr %s4174, 8
        %s4176 = scalar_lea.vmem %s12, %s4175
        // Predicated region
        $region81: #{diffmesh_forward.2} parent=67 // pred_check
          %p4177 = pneg %p300
        $region82: #{diffmesh_forward.2} parent=67 // pred_check_branch
          %4179 = sbr.rel (%p4177) target = $region84
        $region83: #{diffmesh_forward.2} parent=67 // pred_region
          _
        $region84: #{diffmesh_forward.2} parent=67 // pred_fallthru
          _
      $region68: #{diffmesh_forward.2} parent=5 // pred_fallthru
        _
      %p4180 = scmp.le.s32.totalorder 2, %s20
      // Predicated region
      $region85: #{diffmesh_forward.2} parent=5 // pred_check
        %p4181 = pneg %p4180
      $region86: #{diffmesh_forward.2} parent=5 // pred_check_branch
        %4183 = sbr.rel (%p4181) target = $region88
      $region87: #{diffmesh_forward.2} parent=5 // pred_region
        %s4184 = ssub.s32 %s20, 2
        // Predicated region
        $region89: #{diffmesh_forward.2} parent=87 // pred_check
          %p4185 = pneg %p306
        $region90: #{diffmesh_forward.2} parent=87 // pred_check_branch
          %4187 = sbr.rel (%p4185) target = $region92
        $region91: #{diffmesh_forward.2} parent=87 // pred_region
          %p4188 = scmp.lt.s32.totalorder %s26, 1
          %s4189 = scalar_select %p4188, %s26, 1
          %s4190 = smul.addr %s4189, 2
          %s4191 = smul.addr %s4190, 8
          %s4192 = scalar_lea.vmem %s12, %s4191
        $region92: #{diffmesh_forward.2} parent=87 // pred_fallthru
          _
      $region88: #{diffmesh_forward.2} parent=5 // pred_fallthru
        _
    $region6: #{diffmesh_forward.2} parent=1 // loop_footer
      %s24 = sadd.s32 1, %s20
    $region7: #{diffmesh_forward.2} parent=1 // loop_footer_branch
      %19 = sbr.rel target = $region3
    $region8: #{diffmesh_forward.2} parent=1 // loop_exit
      _
    %4193 = vsyncpa [#allocation3], 1
    %s4194 = scalar_lea.sflag [#allocation3], 1
    %4195 = vsyncpa %s4194, 1
    %4196 = vsyncpa [#allocation5], 1

</llo_original>
